<compile_context>
chip_gen: v7x
topology: tpu7x:2x2x1
jax: 0.10.0
libtpu: 0.0.40
codegen_flags: <defaults>
</compile_context>

<pallas_src>
import jax
import jax.numpy as jnp
from jax.experimental import pallas as pl
from jax.experimental.pallas import tpu as pltpu

# ---------------- model configuration (mirrors `hyper`) ----------------
NODE_TYPES = ("joint", "grain")
EDGE_TYPES = (
    ("joint", "connect", "joint"),
    ("grain", "push", "joint"),
    ("joint", "pull", "grain"),
)
IN_CHANNELS = {"joint": 8, "grain": 8}      # len(hyper.features[nt]); grain uses column 3
TARGETS     = {"joint": 2, "grain": 2}      # len(hyper.targets[nt])
HIDDEN      = 32                            # hyper.layer_size
GATES       = 4 * HIDDEN                    # 128 = fused i|f|c|o gate block (lane-dense)
NUM_LAYERS  = 2                             # hyper.layers
NUM_NODES   = {"joint": 64, "grain": 48}
NUM_EDGES   = {EDGE_TYPES[0]: 128, EDGE_TYPES[1]: 96, EDGE_TYPES[2]: 96}
SCALING     = {"grain": 20.0, "joint": 5.0} # joint scaling only used in update(), not forward
PAD_IN      = HIDDEN                        # layer-0 features zero-padded to 32 cols so all
                                            # 4 cells share weight shapes (pad rows are zero)
NUM_CELLS   = 2 * NUM_LAYERS                # enc L0, enc L1, dec L0, dec L1

_VMEM = pl.BlockSpec(memory_space=pltpu.MemorySpace.VMEM)


# ---------------- the fused Pallas kernel (whole forward) ----------------
def _fused_forward_kernel(
    # activations / graph operators
    xj_ref, xg_ref, ajj_ref, ajg_ref, agj_ref,
    # per-cell (stacked over 4 cells) GCLSTM parameters, gates fused along lanes
    wl_jj_ref, wl_push_ref, wl_pull_ref, wr_j_ref, wr_g_ref,
    bl_j_ref, bl_g_ref, wh_j_ref, wh_g_ref, wc_j_ref, wc_g_ref,
    b_j_ref, b_g_ref,
    # regression heads
    hwt_j_ref, hb_j_ref, hwt_g_ref, hb_g_ref,
    # outputs
    yj_ref, yg_ref, area_ref,
):
    f32 = jnp.float32
    xj = xj_ref[...]          # (64, 32)  (8 real features, zero-padded)
    xg = xg_ref[...]          # (48, 32)
    ajj = ajj_ref[...]        # (64, 64)  joint->joint mean-aggregation operator
    ajg = ajg_ref[...]        # (64, 48)  grain->joint
    agj = agj_ref[...]        # (48, 64)  joint->grain

    def gates_to_hc(g, c, wc):
        # g: (N, 128) fused gate pre-activations [i | f | c | o]; wc: (3, 32) peepholes i,f,o
        i_g = jax.nn.sigmoid(g[:, 0 * HIDDEN:1 * HIDDEN] + wc[0:1] * c)
        f_g = jax.nn.sigmoid(g[:, 1 * HIDDEN:2 * HIDDEN] + wc[1:2] * c)
        t_g = jnp.tanh(g[:, 2 * HIDDEN:3 * HIDDEN])
        c_new = f_g * c + i_g * t_g
        o_g = jax.nn.sigmoid(g[:, 3 * HIDDEN:4 * HIDDEN] + wc[2:3] * c_new)
        return o_g * jnp.tanh(c_new), c_new

    def cell(idx, in_j, in_g, hj, cj, hg, cg):
        # HeteroGCLSTM cell.  SAGE conv is reassociated as A @ (X_src @ Wl) so every
        # intermediate is lane-dense (*, 128); root weights/biases are pre-combined per
        # destination node type (HeteroConv sum aggregation).
        proj_jj   = jnp.dot(in_j, wl_jj_ref[idx],   preferred_element_type=f32)  # (64,128)
        proj_push = jnp.dot(in_g, wl_push_ref[idx], preferred_element_type=f32)  # (48,128)
        proj_pull = jnp.dot(in_j, wl_pull_ref[idx], preferred_element_type=f32)  # (64,128)
        conv_j = (jnp.dot(ajj, proj_jj,   preferred_element_type=f32)
                  + jnp.dot(ajg, proj_push, preferred_element_type=f32)
                  + jnp.dot(in_j, wr_j_ref[idx], preferred_element_type=f32)
                  + bl_j_ref[idx])
        conv_g = (jnp.dot(agj, proj_pull, preferred_element_type=f32)
                  + jnp.dot(in_g, wr_g_ref[idx], preferred_element_type=f32)
                  + bl_g_ref[idx])
        g_j = conv_j + jnp.dot(hj, wh_j_ref[idx], preferred_element_type=f32) + b_j_ref[idx]
        g_g = conv_g + jnp.dot(hg, wh_g_ref[idx], preferred_element_type=f32) + b_g_ref[idx]
        hj_n, cj_n = gates_to_hc(g_j, cj, wc_j_ref[idx])
        hg_n, cg_n = gates_to_hc(g_g, cg, wc_g_ref[idx])
        return hj_n, cj_n, hg_n, cg_n

    zj = jnp.zeros((xj.shape[0], HIDDEN), f32)
    zg = jnp.zeros((xg.shape[0], HIDDEN), f32)

    # encoder: layer 0 then layer 1 (zero initial hidden state)
    hj0, cj0, hg0, cg0 = cell(0, xj, xg, zj, zj, zg, zg)
    hj1, cj1, hg1, cg1 = cell(1, hj0, hg0, zj, zj, zg, zg)
    # decoder: same original x, hidden state carried over from the encoder
    hj0, cj0, hg0, cg0 = cell(2, xj, xg, hj0, cj0, hg0, cg0)
    hj1, cj1, hg1, cg1 = cell(3, hj0, hg0, hj1, cj1, hg1, cg1)

    # regression heads (direct column slices, no iota/where)
    lin_j = jnp.dot(hj1, hwt_j_ref[...], preferred_element_type=f32) + hb_j_ref[...]
    yj_ref[...] = jnp.tanh(lin_j)

    lin_g = jnp.dot(hg1, hwt_g_ref[...], preferred_element_type=f32) + hb_g_ref[...]
    t0 = jnp.tanh(lin_g[:, 0:1])
    yg_ref[...] = jnp.concatenate([t0, jnp.maximum(lin_g[:, 1:2], 0.0)], axis=1)
    area_ref[...] = t0 / SCALING["grain"] + xg_ref[:, 3:4]


@jax.jit
def grainnn_forward(xj_pad, xg_pad, ajj, ajg, agj, fused_params):
    nj, ng = NUM_NODES["joint"], NUM_NODES["grain"]
    yj, yg, area = pl.pallas_call(
        _fused_forward_kernel,
        out_shape=(
            jax.ShapeDtypeStruct((nj, TARGETS["joint"]), jnp.float32),
            jax.ShapeDtypeStruct((ng, TARGETS["grain"]), jnp.float32),
            jax.ShapeDtypeStruct((ng, 1), jnp.float32),
        ),
        in_specs=[_VMEM] * (5 + len(fused_params)),
        out_specs=(_VMEM, _VMEM, _VMEM),
        compiler_params=pltpu.CompilerParams(vmem_limit_bytes=8 * 1024 * 1024),
    )(xj_pad, xg_pad, ajj, ajg, agj, *fused_params)
    return {"joint": yj, "grain": yg, "grain_area": area[:, 0]}


# ---------------- one-time host-side preparation (hoisted out of forward) ----------------
def build_adjacency(edge_index, n_src, n_dst):
    # Dense mean-aggregation operator: A[d, s] = (# edges s->d) / in_degree(d)
    src, dst = edge_index[0], edge_index[1]
    counts = jnp.zeros((n_dst, n_src), jnp.float32).at[dst, src].add(1.0)
    deg = counts.sum(axis=1, keepdims=True)
    return counts / jnp.maximum(deg, 1.0)


def pad_features(x):
    return jnp.pad(x, ((0, 0), (0, PAD_IN - x.shape[1])))


def init_params(key):
    keys = iter(jax.random.split(key, 512))

    def nxt(shape, scale=0.1):
        return scale * jax.random.normal(next(keys), shape, dtype=jnp.float32)

    def layer_cell(in_ch):
        conv = {}
        for et in EDGE_TYPES:
            s, _, d = et
            conv[et] = dict(
                wl=nxt((in_ch[s], GATES)),   # neighbor-aggregation weight, 4 gates on lanes
                wr=nxt((in_ch[d], GATES)),   # root weight, 4 gates on lanes
                bl=nxt((1, GATES)),
            )
        return dict(
            conv=conv,
            wh={nt: nxt((HIDDEN, GATES)) for nt in NODE_TYPES},
            wc={nt: nxt((3, HIDDEN)) for nt in NODE_TYPES},   # peepholes i, f, o
            b={nt: nxt((1, GATES)) for nt in NODE_TYPES},
        )

    def seq_params():
        cells = []
        for layer in range(NUM_LAYERS):
            in_ch = IN_CHANNELS if layer == 0 else {nt: HIDDEN for nt in NODE_TYPES}
            cells.append(layer_cell(in_ch))
        return cells

    lin = {nt: dict(wt=nxt((HIDDEN, TARGETS[nt])), b=nxt((1, TARGETS[nt])))
           for nt in NODE_TYPES}
    return dict(encoder=seq_params(), decoder=seq_params(), lin=lin)


def prepare_fused_params(params):
    """One-time weight re-layout: zero-pad layer-0 weights to PAD_IN rows, combine
    per-destination root weights/biases across edge types (HeteroConv sum aggregation),
    and stack the 4 cells (enc L0, enc L1, dec L0, dec L1) along a leading axis."""
    cells = [params["encoder"][0], params["encoder"][1],
             params["decoder"][0], params["decoder"][1]]
    et_jj, et_push, et_pull = EDGE_TYPES

    def pad_rows(w):
        return jnp.pad(w, ((0, PAD_IN - w.shape[0]), (0, 0))) if w.shape[0] < PAD_IN else w

    wl_jj, wl_push, wl_pull = [], [], []
    wr_j, wr_g, bl_j, bl_g = [], [], [], []
    wh_j, wh_g, wc_j, wc_g, b_j, b_g = [], [], [], [], [], []
    for cell in cells:
        c = cell["conv"]
        wl_jj.append(pad_rows(c[et_jj]["wl"]))
        wl_push.append(pad_rows(c[et_push]["wl"]))
        wl_pull.append(pad_rows(c[et_pull]["wl"]))
        wr_j.append(pad_rows(c[et_jj]["wr"] + c[et_push]["wr"]))   # both feed joint dst
        wr_g.append(pad_rows(c[et_pull]["wr"]))
        bl_j.append(c[et_jj]["bl"] + c[et_push]["bl"])
        bl_g.append(c[et_pull]["bl"])
        wh_j.append(cell["wh"]["joint"]); wh_g.append(cell["wh"]["grain"])
        wc_j.append(cell["wc"]["joint"]); wc_g.append(cell["wc"]["grain"])
        b_j.append(cell["b"]["joint"]);   b_g.append(cell["b"]["grain"])

    stk = lambda xs: jnp.stack(xs, axis=0)
    return (stk(wl_jj), stk(wl_push), stk(wl_pull), stk(wr_j), stk(wr_g),
            stk(bl_j), stk(bl_g), stk(wh_j), stk(wh_g), stk(wc_j), stk(wc_g),
            stk(b_j), stk(b_g),
            params["lin"]["joint"]["wt"], params["lin"]["joint"]["b"],
            params["lin"]["grain"]["wt"], params["lin"]["grain"]["b"])


if __name__ == "__main__":
    key = jax.random.PRNGKey(0)
    kp, kx, ke = jax.random.split(key, 3)

    params = init_params(kp)
    fused = prepare_fused_params(params)     # weight re-layout done once, not per forward

    xks = jax.random.split(kx, len(NODE_TYPES))
    x_dict = {nt: jax.random.normal(k, (NUM_NODES[nt], IN_CHANNELS[nt]), jnp.float32)
              for nt, k in zip(NODE_TYPES, xks)}

    eks = jax.random.split(ke, 2 * len(EDGE_TYPES))
    edge_index_dict = {}
    for i, et in enumerate(EDGE_TYPES):
        s, _, d = et
        src = jax.random.randint(eks[2 * i], (NUM_EDGES[et],), 0, NUM_NODES[s])
        dst = jax.random.randint(eks[2 * i + 1], (NUM_EDGES[et],), 0, NUM_NODES[d])
        edge_index_dict[et] = jnp.stack([src, dst]).astype(jnp.int32)
    # edge_attr is not needed: history=False / edge_len=False (module defaults)

    # adjacency operators are static across calls -> build once, outside the forward
    adj = {et: build_adjacency(edge_index_dict[et], NUM_NODES[et[0]], NUM_NODES[et[2]])
           for et in EDGE_TYPES}

    xj = pad_features(x_dict["joint"])
    xg = pad_features(x_dict["grain"])

    y = grainnn_forward(xj, xg,
                        adj[EDGE_TYPES[0]], adj[EDGE_TYPES[1]], adj[EDGE_TYPES[2]],
                        fused)
    y = jax.block_until_ready(y)

    assert y["joint"].shape == (NUM_NODES["joint"], TARGETS["joint"])
    assert y["grain"].shape == (NUM_NODES["grain"], TARGETS["grain"])
    assert y["grain_area"].shape == (NUM_NODES["grain"],)
    assert all(bool(jnp.all(jnp.isfinite(v))) for v in y.values())
    print("KERNEL_OK")
</pallas_src>

<mosaic_0001>
module attributes {stable_mosaic.version = 11 : i64} {
  func.func @_fused_forward_kernel(%arg0: memref<64x32xf32, #tpu.memory_space<vmem>>, %arg1: memref<48x32xf32, #tpu.memory_space<vmem>>, %arg2: memref<64x64xf32, #tpu.memory_space<vmem>>, %arg3: memref<64x48xf32, #tpu.memory_space<vmem>>, %arg4: memref<48x64xf32, #tpu.memory_space<vmem>>, %arg5: memref<4x32x128xf32, #tpu.memory_space<vmem>>, %arg6: memref<4x32x128xf32, #tpu.memory_space<vmem>>, %arg7: memref<4x32x128xf32, #tpu.memory_space<vmem>>, %arg8: memref<4x32x128xf32, #tpu.memory_space<vmem>>, %arg9: memref<4x32x128xf32, #tpu.memory_space<vmem>>, %arg10: memref<4x1x128xf32, #tpu.memory_space<vmem>>, %arg11: memref<4x1x128xf32, #tpu.memory_space<vmem>>, %arg12: memref<4x32x128xf32, #tpu.memory_space<vmem>>, %arg13: memref<4x32x128xf32, #tpu.memory_space<vmem>>, %arg14: memref<4x3x32xf32, #tpu.memory_space<vmem>>, %arg15: memref<4x3x32xf32, #tpu.memory_space<vmem>>, %arg16: memref<4x1x128xf32, #tpu.memory_space<vmem>>, %arg17: memref<4x1x128xf32, #tpu.memory_space<vmem>>, %arg18: memref<32x2xf32, #tpu.memory_space<vmem>>, %arg19: memref<1x2xf32, #tpu.memory_space<vmem>>, %arg20: memref<32x2xf32, #tpu.memory_space<vmem>>, %arg21: memref<1x2xf32, #tpu.memory_space<vmem>>, %arg22: memref<64x2xf32, #tpu.memory_space<vmem>>, %arg23: memref<48x2xf32, #tpu.memory_space<vmem>>, %arg24: memref<48x1xf32, #tpu.memory_space<vmem>>) attributes {dimension_semantics = [], scalar_prefetch = 0 : i64, scratch_operands = 0 : i64, tpu.core_type = #tpu.core_type<tc>} {
    %c0 = arith.constant 0 : index
    %c0_0 = arith.constant 0 : index
    %0 = vector.load %arg0[%c0, %c0_0] : memref<64x32xf32, #tpu.memory_space<vmem>>, vector<64x32xf32>
    %c0_1 = arith.constant 0 : index
    %c0_2 = arith.constant 0 : index
    %1 = vector.load %arg1[%c0_1, %c0_2] : memref<48x32xf32, #tpu.memory_space<vmem>>, vector<48x32xf32>
    %c0_3 = arith.constant 0 : index
    %c0_4 = arith.constant 0 : index
    %2 = vector.load %arg2[%c0_3, %c0_4] : memref<64x64xf32, #tpu.memory_space<vmem>>, vector<64x64xf32>
    %c0_5 = arith.constant 0 : index
    %c0_6 = arith.constant 0 : index
    %3 = vector.load %arg3[%c0_5, %c0_6] : memref<64x48xf32, #tpu.memory_space<vmem>>, vector<64x48xf32>
    %c0_7 = arith.constant 0 : index
    %c0_8 = arith.constant 0 : index
    %4 = vector.load %arg4[%c0_7, %c0_8] : memref<48x64xf32, #tpu.memory_space<vmem>>, vector<48x64xf32>
    %cst = arith.constant 0.000000e+00 : f32
    %5 = vector.broadcast %cst : f32 to vector<64x32xf32>
    %cst_9 = arith.constant 0.000000e+00 : f32
    %6 = vector.broadcast %cst_9 : f32 to vector<48x32xf32>
    %c0_10 = arith.constant 0 : index
    %c0_11 = arith.constant 0 : index
    %c0_12 = arith.constant 0 : index
    %7 = vector.load %arg5[%c0_10, %c0_11, %c0_12] : memref<4x32x128xf32, #tpu.memory_space<vmem>>, vector<1x32x128xf32>
    %8 = vector.shape_cast %7 : vector<1x32x128xf32> to vector<32x128xf32>
    %cst_13 = arith.constant dense<0.000000e+00> : vector<64x128xf32>
    %9 = tpu.matmul %0, %8, %cst_13 {dimension_numbers = #tpu.dot_dimension_numbers<[1], [0], [0], [1], [0, 0, 1, 1], [], []>} : vector<64x32xf32>, vector<32x128xf32>, vector<64x128xf32> -> vector<64x128xf32>
    %c0_14 = arith.constant 0 : index
    %c0_15 = arith.constant 0 : index
    %c0_16 = arith.constant 0 : index
    %10 = vector.load %arg6[%c0_14, %c0_15, %c0_16] : memref<4x32x128xf32, #tpu.memory_space<vmem>>, vector<1x32x128xf32>
    %11 = vector.shape_cast %10 : vector<1x32x128xf32> to vector<32x128xf32>
    %cst_17 = arith.constant dense<0.000000e+00> : vector<48x128xf32>
    %12 = tpu.matmul %1, %11, %cst_17 {dimension_numbers = #tpu.dot_dimension_numbers<[1], [0], [0], [1], [0, 0, 1, 1], [], []>} : vector<48x32xf32>, vector<32x128xf32>, vector<48x128xf32> -> vector<48x128xf32>
    %c0_18 = arith.constant 0 : index
    %c0_19 = arith.constant 0 : index
    %c0_20 = arith.constant 0 : index
    %13 = vector.load %arg7[%c0_18, %c0_19, %c0_20] : memref<4x32x128xf32, #tpu.memory_space<vmem>>, vector<1x32x128xf32>
    %14 = vector.shape_cast %13 : vector<1x32x128xf32> to vector<32x128xf32>
    %cst_21 = arith.constant dense<0.000000e+00> : vector<64x128xf32>
    %15 = tpu.matmul %0, %14, %cst_21 {dimension_numbers = #tpu.dot_dimension_numbers<[1], [0], [0], [1], [0, 0, 1, 1], [], []>} : vector<64x32xf32>, vector<32x128xf32>, vector<64x128xf32> -> vector<64x128xf32>
    %cst_22 = arith.constant dense<0.000000e+00> : vector<64x128xf32>
    %16 = tpu.matmul %2, %9, %cst_22 {dimension_numbers = #tpu.dot_dimension_numbers<[1], [0], [0], [1], [0, 0, 1, 1], [], []>} : vector<64x64xf32>, vector<64x128xf32>, vector<64x128xf32> -> vector<64x128xf32>
    %cst_23 = arith.constant dense<0.000000e+00> : vector<64x128xf32>
    %17 = tpu.matmul %3, %12, %cst_23 {dimension_numbers = #tpu.dot_dimension_numbers<[1], [0], [0], [1], [0, 0, 1, 1], [], []>} : vector<64x48xf32>, vector<48x128xf32>, vector<64x128xf32> -> vector<64x128xf32>
    %18 = arith.addf %16, %17 : vector<64x128xf32>
    %c0_24 = arith.constant 0 : index
    %c0_25 = arith.constant 0 : index
    %c0_26 = arith.constant 0 : index
    %19 = vector.load %arg8[%c0_24, %c0_25, %c0_26] : memref<4x32x128xf32, #tpu.memory_space<vmem>>, vector<1x32x128xf32>
    %20 = vector.shape_cast %19 : vector<1x32x128xf32> to vector<32x128xf32>
    %cst_27 = arith.constant dense<0.000000e+00> : vector<64x128xf32>
    %21 = tpu.matmul %0, %20, %cst_27 {dimension_numbers = #tpu.dot_dimension_numbers<[1], [0], [0], [1], [0, 0, 1, 1], [], []>} : vector<64x32xf32>, vector<32x128xf32>, vector<64x128xf32> -> vector<64x128xf32>
    %22 = arith.addf %18, %21 : vector<64x128xf32>
    %c0_28 = arith.constant 0 : index
    %c0_29 = arith.constant 0 : index
    %c0_30 = arith.constant 0 : index
    %23 = vector.load %arg10[%c0_28, %c0_29, %c0_30] : memref<4x1x128xf32, #tpu.memory_space<vmem>>, vector<1x1x128xf32>
    %24 = vector.shape_cast %23 : vector<1x1x128xf32> to vector<1x128xf32>
    %25 = vector.broadcast %24 : vector<1x128xf32> to vector<64x128xf32>
    %26 = arith.addf %22, %25 : vector<64x128xf32>
    %cst_31 = arith.constant dense<0.000000e+00> : vector<48x128xf32>
    %27 = tpu.matmul %4, %15, %cst_31 {dimension_numbers = #tpu.dot_dimension_numbers<[1], [0], [0], [1], [0, 0, 1, 1], [], []>} : vector<48x64xf32>, vector<64x128xf32>, vector<48x128xf32> -> vector<48x128xf32>
    %c0_32 = arith.constant 0 : index
    %c0_33 = arith.constant 0 : index
    %c0_34 = arith.constant 0 : index
    %28 = vector.load %arg9[%c0_32, %c0_33, %c0_34] : memref<4x32x128xf32, #tpu.memory_space<vmem>>, vector<1x32x128xf32>
    %29 = vector.shape_cast %28 : vector<1x32x128xf32> to vector<32x128xf32>
    %cst_35 = arith.constant dense<0.000000e+00> : vector<48x128xf32>
    %30 = tpu.matmul %1, %29, %cst_35 {dimension_numbers = #tpu.dot_dimension_numbers<[1], [0], [0], [1], [0, 0, 1, 1], [], []>} : vector<48x32xf32>, vector<32x128xf32>, vector<48x128xf32> -> vector<48x128xf32>
    %31 = arith.addf %27, %30 : vector<48x128xf32>
    %c0_36 = arith.constant 0 : index
    %c0_37 = arith.constant 0 : index
    %c0_38 = arith.constant 0 : index
    %32 = vector.load %arg11[%c0_36, %c0_37, %c0_38] : memref<4x1x128xf32, #tpu.memory_space<vmem>>, vector<1x1x128xf32>
    %33 = vector.shape_cast %32 : vector<1x1x128xf32> to vector<1x128xf32>
    %34 = vector.broadcast %33 : vector<1x128xf32> to vector<48x128xf32>
    %35 = arith.addf %31, %34 : vector<48x128xf32>
    %c0_39 = arith.constant 0 : index
    %c0_40 = arith.constant 0 : index
    %c0_41 = arith.constant 0 : index
    %36 = vector.load %arg12[%c0_39, %c0_40, %c0_41] : memref<4x32x128xf32, #tpu.memory_space<vmem>>, vector<1x32x128xf32>
    %37 = vector.shape_cast %36 : vector<1x32x128xf32> to vector<32x128xf32>
    %cst_42 = arith.constant dense<0.000000e+00> : vector<64x128xf32>
    %38 = tpu.matmul %5, %37, %cst_42 {dimension_numbers = #tpu.dot_dimension_numbers<[1], [0], [0], [1], [0, 0, 1, 1], [], []>} : vector<64x32xf32>, vector<32x128xf32>, vector<64x128xf32> -> vector<64x128xf32>
    %39 = arith.addf %26, %38 : vector<64x128xf32>
    %c0_43 = arith.constant 0 : index
    %c0_44 = arith.constant 0 : index
    %c0_45 = arith.constant 0 : index
    %40 = vector.load %arg16[%c0_43, %c0_44, %c0_45] : memref<4x1x128xf32, #tpu.memory_space<vmem>>, vector<1x1x128xf32>
    %41 = vector.shape_cast %40 : vector<1x1x128xf32> to vector<1x128xf32>
    %42 = vector.broadcast %41 : vector<1x128xf32> to vector<64x128xf32>
    %43 = arith.addf %39, %42 : vector<64x128xf32>
    %c0_46 = arith.constant 0 : index
    %c0_47 = arith.constant 0 : index
    %c0_48 = arith.constant 0 : index
    %44 = vector.load %arg13[%c0_46, %c0_47, %c0_48] : memref<4x32x128xf32, #tpu.memory_space<vmem>>, vector<1x32x128xf32>
    %45 = vector.shape_cast %44 : vector<1x32x128xf32> to vector<32x128xf32>
    %cst_49 = arith.constant dense<0.000000e+00> : vector<48x128xf32>
    %46 = tpu.matmul %6, %45, %cst_49 {dimension_numbers = #tpu.dot_dimension_numbers<[1], [0], [0], [1], [0, 0, 1, 1], [], []>} : vector<48x32xf32>, vector<32x128xf32>, vector<48x128xf32> -> vector<48x128xf32>
    %47 = arith.addf %35, %46 : vector<48x128xf32>
    %c0_50 = arith.constant 0 : index
    %c0_51 = arith.constant 0 : index
    %c0_52 = arith.constant 0 : index
    %48 = vector.load %arg17[%c0_50, %c0_51, %c0_52] : memref<4x1x128xf32, #tpu.memory_space<vmem>>, vector<1x1x128xf32>
    %49 = vector.shape_cast %48 : vector<1x1x128xf32> to vector<1x128xf32>
    %50 = vector.broadcast %49 : vector<1x128xf32> to vector<48x128xf32>
    %51 = arith.addf %47, %50 : vector<48x128xf32>
    %c0_53 = arith.constant 0 : index
    %c0_54 = arith.constant 0 : index
    %c0_55 = arith.constant 0 : index
    %52 = vector.load %arg14[%c0_53, %c0_54, %c0_55] : memref<4x3x32xf32, #tpu.memory_space<vmem>>, vector<1x3x32xf32>
    %53 = vector.shape_cast %52 : vector<1x3x32xf32> to vector<3x32xf32>
    %54 = vector.extract_strided_slice %43 {offsets = [0, 0], sizes = [64, 32], strides = [1, 1]} : vector<64x128xf32> to vector<64x32xf32>
    %55 = vector.extract_strided_slice %53 {offsets = [0, 0], sizes = [1, 32], strides = [1, 1]} : vector<3x32xf32> to vector<1x32xf32>
    %56 = vector.broadcast %55 : vector<1x32xf32> to vector<64x32xf32>
    %57 = arith.mulf %56, %5 : vector<64x32xf32>
    %58 = arith.addf %54, %57 : vector<64x32xf32>
    %59 = arith.negf %58 : vector<64x32xf32>
    %60 = math.exp %59 : vector<64x32xf32>
    %cst_56 = arith.constant 1.000000e+00 : f32
    %61 = vector.broadcast %cst_56 : f32 to vector<64x32xf32>
    %62 = arith.addf %61, %60 : vector<64x32xf32>
    %63 = arith.divf %61, %62 : vector<64x32xf32>
    %64 = vector.extract_strided_slice %43 {offsets = [0, 32], sizes = [64, 32], strides = [1, 1]} : vector<64x128xf32> to vector<64x32xf32>
    %65 = vector.extract_strided_slice %53 {offsets = [1, 0], sizes = [1, 32], strides = [1, 1]} : vector<3x32xf32> to vector<1x32xf32>
    %66 = vector.broadcast %65 : vector<1x32xf32> to vector<64x32xf32>
    %67 = arith.mulf %66, %5 : vector<64x32xf32>
    %68 = arith.addf %64, %67 : vector<64x32xf32>
    %69 = arith.negf %68 : vector<64x32xf32>
    %70 = math.exp %69 : vector<64x32xf32>
    %cst_57 = arith.constant 1.000000e+00 : f32
    %71 = vector.broadcast %cst_57 : f32 to vector<64x32xf32>
    %72 = arith.addf %71, %70 : vector<64x32xf32>
    %73 = arith.divf %71, %72 : vector<64x32xf32>
    %74 = vector.extract_strided_slice %43 {offsets = [0, 64], sizes = [64, 32], strides = [1, 1]} : vector<64x128xf32> to vector<64x32xf32>
    %75 = math.tanh %74 : vector<64x32xf32>
    %76 = arith.mulf %73, %5 : vector<64x32xf32>
    %77 = arith.mulf %63, %75 : vector<64x32xf32>
    %78 = arith.addf %76, %77 : vector<64x32xf32>
    %79 = vector.extract_strided_slice %43 {offsets = [0, 96], sizes = [64, 32], strides = [1, 1]} : vector<64x128xf32> to vector<64x32xf32>
    %80 = vector.extract_strided_slice %53 {offsets = [2, 0], sizes = [1, 32], strides = [1, 1]} : vector<3x32xf32> to vector<1x32xf32>
    %81 = vector.broadcast %80 : vector<1x32xf32> to vector<64x32xf32>
    %82 = arith.mulf %81, %78 : vector<64x32xf32>
    %83 = arith.addf %79, %82 : vector<64x32xf32>
    %84 = arith.negf %83 : vector<64x32xf32>
    %85 = math.exp %84 : vector<64x32xf32>
    %cst_58 = arith.constant 1.000000e+00 : f32
    %86 = vector.broadcast %cst_58 : f32 to vector<64x32xf32>
    %87 = arith.addf %86, %85 : vector<64x32xf32>
    %88 = arith.divf %86, %87 : vector<64x32xf32>
    %89 = math.tanh %78 : vector<64x32xf32>
    %90 = arith.mulf %88, %89 : vector<64x32xf32>
    %c0_59 = arith.constant 0 : index
    %c0_60 = arith.constant 0 : index
    %c0_61 = arith.constant 0 : index
    %91 = vector.load %arg15[%c0_59, %c0_60, %c0_61] : memref<4x3x32xf32, #tpu.memory_space<vmem>>, vector<1x3x32xf32>
    %92 = vector.shape_cast %91 : vector<1x3x32xf32> to vector<3x32xf32>
    %93 = vector.extract_strided_slice %51 {offsets = [0, 0], sizes = [48, 32], strides = [1, 1]} : vector<48x128xf32> to vector<48x32xf32>
    %94 = vector.extract_strided_slice %92 {offsets = [0, 0], sizes = [1, 32], strides = [1, 1]} : vector<3x32xf32> to vector<1x32xf32>
    %95 = vector.broadcast %94 : vector<1x32xf32> to vector<48x32xf32>
    %96 = arith.mulf %95, %6 : vector<48x32xf32>
    %97 = arith.addf %93, %96 : vector<48x32xf32>
    %98 = arith.negf %97 : vector<48x32xf32>
    %99 = math.exp %98 : vector<48x32xf32>
    %cst_62 = arith.constant 1.000000e+00 : f32
    %100 = vector.broadcast %cst_62 : f32 to vector<48x32xf32>
    %101 = arith.addf %100, %99 : vector<48x32xf32>
    %102 = arith.divf %100, %101 : vector<48x32xf32>
    %103 = vector.extract_strided_slice %51 {offsets = [0, 32], sizes = [48, 32], strides = [1, 1]} : vector<48x128xf32> to vector<48x32xf32>
    %104 = vector.extract_strided_slice %92 {offsets = [1, 0], sizes = [1, 32], strides = [1, 1]} : vector<3x32xf32> to vector<1x32xf32>
    %105 = vector.broadcast %104 : vector<1x32xf32> to vector<48x32xf32>
    %106 = arith.mulf %105, %6 : vector<48x32xf32>
    %107 = arith.addf %103, %106 : vector<48x32xf32>
    %108 = arith.negf %107 : vector<48x32xf32>
    %109 = math.exp %108 : vector<48x32xf32>
    %cst_63 = arith.constant 1.000000e+00 : f32
    %110 = vector.broadcast %cst_63 : f32 to vector<48x32xf32>
    %111 = arith.addf %110, %109 : vector<48x32xf32>
    %112 = arith.divf %110, %111 : vector<48x32xf32>
    %113 = vector.extract_strided_slice %51 {offsets = [0, 64], sizes = [48, 32], strides = [1, 1]} : vector<48x128xf32> to vector<48x32xf32>
    %114 = math.tanh %113 : vector<48x32xf32>
    %115 = arith.mulf %112, %6 : vector<48x32xf32>
    %116 = arith.mulf %102, %114 : vector<48x32xf32>
    %117 = arith.addf %115, %116 : vector<48x32xf32>
    %118 = vector.extract_strided_slice %51 {offsets = [0, 96], sizes = [48, 32], strides = [1, 1]} : vector<48x128xf32> to vector<48x32xf32>
    %119 = vector.extract_strided_slice %92 {offsets = [2, 0], sizes = [1, 32], strides = [1, 1]} : vector<3x32xf32> to vector<1x32xf32>
    %120 = vector.broadcast %119 : vector<1x32xf32> to vector<48x32xf32>
    %121 = arith.mulf %120, %117 : vector<48x32xf32>
    %122 = arith.addf %118, %121 : vector<48x32xf32>
    %123 = arith.negf %122 : vector<48x32xf32>
    %124 = math.exp %123 : vector<48x32xf32>
    %cst_64 = arith.constant 1.000000e+00 : f32
    %125 = vector.broadcast %cst_64 : f32 to vector<48x32xf32>
    %126 = arith.addf %125, %124 : vector<48x32xf32>
    %127 = arith.divf %125, %126 : vector<48x32xf32>
    %128 = math.tanh %117 : vector<48x32xf32>
    %129 = arith.mulf %127, %128 : vector<48x32xf32>
    %c1 = arith.constant 1 : index
    %c0_65 = arith.constant 0 : index
    %c0_66 = arith.constant 0 : index
    %130 = vector.load %arg5[%c1, %c0_65, %c0_66] : memref<4x32x128xf32, #tpu.memory_space<vmem>>, vector<1x32x128xf32>
    %131 = vector.shape_cast %130 : vector<1x32x128xf32> to vector<32x128xf32>
    %cst_67 = arith.constant dense<0.000000e+00> : vector<64x128xf32>
    %132 = tpu.matmul %90, %131, %cst_67 {dimension_numbers = #tpu.dot_dimension_numbers<[1], [0], [0], [1], [0, 0, 1, 1], [], []>} : vector<64x32xf32>, vector<32x128xf32>, vector<64x128xf32> -> vector<64x128xf32>
    %c1_68 = arith.constant 1 : index
    %c0_69 = arith.constant 0 : index
    %c0_70 = arith.constant 0 : index
    %133 = vector.load %arg6[%c1_68, %c0_69, %c0_70] : memref<4x32x128xf32, #tpu.memory_space<vmem>>, vector<1x32x128xf32>
    %134 = vector.shape_cast %133 : vector<1x32x128xf32> to vector<32x128xf32>
    %cst_71 = arith.constant dense<0.000000e+00> : vector<48x128xf32>
    %135 = tpu.matmul %129, %134, %cst_71 {dimension_numbers = #tpu.dot_dimension_numbers<[1], [0], [0], [1], [0, 0, 1, 1], [], []>} : vector<48x32xf32>, vector<32x128xf32>, vector<48x128xf32> -> vector<48x128xf32>
    %c1_72 = arith.constant 1 : index
    %c0_73 = arith.constant 0 : index
    %c0_74 = arith.constant 0 : index
    %136 = vector.load %arg7[%c1_72, %c0_73, %c0_74] : memref<4x32x128xf32, #tpu.memory_space<vmem>>, vector<1x32x128xf32>
    %137 = vector.shape_cast %136 : vector<1x32x128xf32> to vector<32x128xf32>
    %cst_75 = arith.constant dense<0.000000e+00> : vector<64x128xf32>
    %138 = tpu.matmul %90, %137, %cst_75 {dimension_numbers = #tpu.dot_dimension_numbers<[1], [0], [0], [1], [0, 0, 1, 1], [], []>} : vector<64x32xf32>, vector<32x128xf32>, vector<64x128xf32> -> vector<64x128xf32>
    %cst_76 = arith.constant dense<0.000000e+00> : vector<64x128xf32>
    %139 = tpu.matmul %2, %132, %cst_76 {dimension_numbers = #tpu.dot_dimension_numbers<[1], [0], [0], [1], [0, 0, 1, 1], [], []>} : vector<64x64xf32>, vector<64x128xf32>, vector<64x128xf32> -> vector<64x128xf32>
    %cst_77 = arith.constant dense<0.000000e+00> : vector<64x128xf32>
    %140 = tpu.matmul %3, %135, %cst_77 {dimension_numbers = #tpu.dot_dimension_numbers<[1], [0], [0], [1], [0, 0, 1, 1], [], []>} : vector<64x48xf32>, vector<48x128xf32>, vector<64x128xf32> -> vector<64x128xf32>
    %141 = arith.addf %139, %140 : vector<64x128xf32>
    %c1_78 = arith.constant 1 : index
    %c0_79 = arith.constant 0 : index
    %c0_80 = arith.constant 0 : index
    %142 = vector.load %arg8[%c1_78, %c0_79, %c0_80] : memref<4x32x128xf32, #tpu.memory_space<vmem>>, vector<1x32x128xf32>
    %143 = vector.shape_cast %142 : vector<1x32x128xf32> to vector<32x128xf32>
    %cst_81 = arith.constant dense<0.000000e+00> : vector<64x128xf32>
    %144 = tpu.matmul %90, %143, %cst_81 {dimension_numbers = #tpu.dot_dimension_numbers<[1], [0], [0], [1], [0, 0, 1, 1], [], []>} : vector<64x32xf32>, vector<32x128xf32>, vector<64x128xf32> -> vector<64x128xf32>
    %145 = arith.addf %141, %144 : vector<64x128xf32>
    %c1_82 = arith.constant 1 : index
    %c0_83 = arith.constant 0 : index
    %c0_84 = arith.constant 0 : index
    %146 = vector.load %arg10[%c1_82, %c0_83, %c0_84] : memref<4x1x128xf32, #tpu.memory_space<vmem>>, vector<1x1x128xf32>
    %147 = vector.shape_cast %146 : vector<1x1x128xf32> to vector<1x128xf32>
    %148 = vector.broadcast %147 : vector<1x128xf32> to vector<64x128xf32>
    %149 = arith.addf %145, %148 : vector<64x128xf32>
    %cst_85 = arith.constant dense<0.000000e+00> : vector<48x128xf32>
    %150 = tpu.matmul %4, %138, %cst_85 {dimension_numbers = #tpu.dot_dimension_numbers<[1], [0], [0], [1], [0, 0, 1, 1], [], []>} : vector<48x64xf32>, vector<64x128xf32>, vector<48x128xf32> -> vector<48x128xf32>
    %c1_86 = arith.constant 1 : index
    %c0_87 = arith.constant 0 : index
    %c0_88 = arith.constant 0 : index
    %151 = vector.load %arg9[%c1_86, %c0_87, %c0_88] : memref<4x32x128xf32, #tpu.memory_space<vmem>>, vector<1x32x128xf32>
    %152 = vector.shape_cast %151 : vector<1x32x128xf32> to vector<32x128xf32>
    %cst_89 = arith.constant dense<0.000000e+00> : vector<48x128xf32>
    %153 = tpu.matmul %129, %152, %cst_89 {dimension_numbers = #tpu.dot_dimension_numbers<[1], [0], [0], [1], [0, 0, 1, 1], [], []>} : vector<48x32xf32>, vector<32x128xf32>, vector<48x128xf32> -> vector<48x128xf32>
    %154 = arith.addf %150, %153 : vector<48x128xf32>
    %c1_90 = arith.constant 1 : index
    %c0_91 = arith.constant 0 : index
    %c0_92 = arith.constant 0 : index
    %155 = vector.load %arg11[%c1_90, %c0_91, %c0_92] : memref<4x1x128xf32, #tpu.memory_space<vmem>>, vector<1x1x128xf32>
    %156 = vector.shape_cast %155 : vector<1x1x128xf32> to vector<1x128xf32>
    %157 = vector.broadcast %156 : vector<1x128xf32> to vector<48x128xf32>
    %158 = arith.addf %154, %157 : vector<48x128xf32>
    %c1_93 = arith.constant 1 : index
    %c0_94 = arith.constant 0 : index
    %c0_95 = arith.constant 0 : index
    %159 = vector.load %arg12[%c1_93, %c0_94, %c0_95] : memref<4x32x128xf32, #tpu.memory_space<vmem>>, vector<1x32x128xf32>
    %160 = vector.shape_cast %159 : vector<1x32x128xf32> to vector<32x128xf32>
    %cst_96 = arith.constant dense<0.000000e+00> : vector<64x128xf32>
    %161 = tpu.matmul %5, %160, %cst_96 {dimension_numbers = #tpu.dot_dimension_numbers<[1], [0], [0], [1], [0, 0, 1, 1], [], []>} : vector<64x32xf32>, vector<32x128xf32>, vector<64x128xf32> -> vector<64x128xf32>
    %162 = arith.addf %149, %161 : vector<64x128xf32>
    %c1_97 = arith.constant 1 : index
    %c0_98 = arith.constant 0 : index
    %c0_99 = arith.constant 0 : index
    %163 = vector.load %arg16[%c1_97, %c0_98, %c0_99] : memref<4x1x128xf32, #tpu.memory_space<vmem>>, vector<1x1x128xf32>
    %164 = vector.shape_cast %163 : vector<1x1x128xf32> to vector<1x128xf32>
    %165 = vector.broadcast %164 : vector<1x128xf32> to vector<64x128xf32>
    %166 = arith.addf %162, %165 : vector<64x128xf32>
    %c1_100 = arith.constant 1 : index
    %c0_101 = arith.constant 0 : index
    %c0_102 = arith.constant 0 : index
    %167 = vector.load %arg13[%c1_100, %c0_101, %c0_102] : memref<4x32x128xf32, #tpu.memory_space<vmem>>, vector<1x32x128xf32>
    %168 = vector.shape_cast %167 : vector<1x32x128xf32> to vector<32x128xf32>
    %cst_103 = arith.constant dense<0.000000e+00> : vector<48x128xf32>
    %169 = tpu.matmul %6, %168, %cst_103 {dimension_numbers = #tpu.dot_dimension_numbers<[1], [0], [0], [1], [0, 0, 1, 1], [], []>} : vector<48x32xf32>, vector<32x128xf32>, vector<48x128xf32> -> vector<48x128xf32>
    %170 = arith.addf %158, %169 : vector<48x128xf32>
    %c1_104 = arith.constant 1 : index
    %c0_105 = arith.constant 0 : index
    %c0_106 = arith.constant 0 : index
    %171 = vector.load %arg17[%c1_104, %c0_105, %c0_106] : memref<4x1x128xf32, #tpu.memory_space<vmem>>, vector<1x1x128xf32>
    %172 = vector.shape_cast %171 : vector<1x1x128xf32> to vector<1x128xf32>
    %173 = vector.broadcast %172 : vector<1x128xf32> to vector<48x128xf32>
    %174 = arith.addf %170, %173 : vector<48x128xf32>
    %c1_107 = arith.constant 1 : index
    %c0_108 = arith.constant 0 : index
    %c0_109 = arith.constant 0 : index
    %175 = vector.load %arg14[%c1_107, %c0_108, %c0_109] : memref<4x3x32xf32, #tpu.memory_space<vmem>>, vector<1x3x32xf32>
    %176 = vector.shape_cast %175 : vector<1x3x32xf32> to vector<3x32xf32>
    %177 = vector.extract_strided_slice %166 {offsets = [0, 0], sizes = [64, 32], strides = [1, 1]} : vector<64x128xf32> to vector<64x32xf32>
    %178 = vector.extract_strided_slice %176 {offsets = [0, 0], sizes = [1, 32], strides = [1, 1]} : vector<3x32xf32> to vector<1x32xf32>
    %179 = vector.broadcast %178 : vector<1x32xf32> to vector<64x32xf32>
    %180 = arith.mulf %179, %5 : vector<64x32xf32>
    %181 = arith.addf %177, %180 : vector<64x32xf32>
    %182 = arith.negf %181 : vector<64x32xf32>
    %183 = math.exp %182 : vector<64x32xf32>
    %cst_110 = arith.constant 1.000000e+00 : f32
    %184 = vector.broadcast %cst_110 : f32 to vector<64x32xf32>
    %185 = arith.addf %184, %183 : vector<64x32xf32>
    %186 = arith.divf %184, %185 : vector<64x32xf32>
    %187 = vector.extract_strided_slice %166 {offsets = [0, 32], sizes = [64, 32], strides = [1, 1]} : vector<64x128xf32> to vector<64x32xf32>
    %188 = vector.extract_strided_slice %176 {offsets = [1, 0], sizes = [1, 32], strides = [1, 1]} : vector<3x32xf32> to vector<1x32xf32>
    %189 = vector.broadcast %188 : vector<1x32xf32> to vector<64x32xf32>
    %190 = arith.mulf %189, %5 : vector<64x32xf32>
    %191 = arith.addf %187, %190 : vector<64x32xf32>
    %192 = arith.negf %191 : vector<64x32xf32>
    %193 = math.exp %192 : vector<64x32xf32>
    %cst_111 = arith.constant 1.000000e+00 : f32
    %194 = vector.broadcast %cst_111 : f32 to vector<64x32xf32>
    %195 = arith.addf %194, %193 : vector<64x32xf32>
    %196 = arith.divf %194, %195 : vector<64x32xf32>
    %197 = vector.extract_strided_slice %166 {offsets = [0, 64], sizes = [64, 32], strides = [1, 1]} : vector<64x128xf32> to vector<64x32xf32>
    %198 = math.tanh %197 : vector<64x32xf32>
    %199 = arith.mulf %196, %5 : vector<64x32xf32>
    %200 = arith.mulf %186, %198 : vector<64x32xf32>
    %201 = arith.addf %199, %200 : vector<64x32xf32>
    %202 = vector.extract_strided_slice %166 {offsets = [0, 96], sizes = [64, 32], strides = [1, 1]} : vector<64x128xf32> to vector<64x32xf32>
    %203 = vector.extract_strided_slice %176 {offsets = [2, 0], sizes = [1, 32], strides = [1, 1]} : vector<3x32xf32> to vector<1x32xf32>
    %204 = vector.broadcast %203 : vector<1x32xf32> to vector<64x32xf32>
    %205 = arith.mulf %204, %201 : vector<64x32xf32>
    %206 = arith.addf %202, %205 : vector<64x32xf32>
    %207 = arith.negf %206 : vector<64x32xf32>
    %208 = math.exp %207 : vector<64x32xf32>
    %cst_112 = arith.constant 1.000000e+00 : f32
    %209 = vector.broadcast %cst_112 : f32 to vector<64x32xf32>
    %210 = arith.addf %209, %208 : vector<64x32xf32>
    %211 = arith.divf %209, %210 : vector<64x32xf32>
    %212 = math.tanh %201 : vector<64x32xf32>
    %213 = arith.mulf %211, %212 : vector<64x32xf32>
    %c1_113 = arith.constant 1 : index
    %c0_114 = arith.constant 0 : index
    %c0_115 = arith.constant 0 : index
    %214 = vector.load %arg15[%c1_113, %c0_114, %c0_115] : memref<4x3x32xf32, #tpu.memory_space<vmem>>, vector<1x3x32xf32>
    %215 = vector.shape_cast %214 : vector<1x3x32xf32> to vector<3x32xf32>
    %216 = vector.extract_strided_slice %174 {offsets = [0, 0], sizes = [48, 32], strides = [1, 1]} : vector<48x128xf32> to vector<48x32xf32>
    %217 = vector.extract_strided_slice %215 {offsets = [0, 0], sizes = [1, 32], strides = [1, 1]} : vector<3x32xf32> to vector<1x32xf32>
    %218 = vector.broadcast %217 : vector<1x32xf32> to vector<48x32xf32>
    %219 = arith.mulf %218, %6 : vector<48x32xf32>
    %220 = arith.addf %216, %219 : vector<48x32xf32>
    %221 = arith.negf %220 : vector<48x32xf32>
    %222 = math.exp %221 : vector<48x32xf32>
    %cst_116 = arith.constant 1.000000e+00 : f32
    %223 = vector.broadcast %cst_116 : f32 to vector<48x32xf32>
    %224 = arith.addf %223, %222 : vector<48x32xf32>
    %225 = arith.divf %223, %224 : vector<48x32xf32>
    %226 = vector.extract_strided_slice %174 {offsets = [0, 32], sizes = [48, 32], strides = [1, 1]} : vector<48x128xf32> to vector<48x32xf32>
    %227 = vector.extract_strided_slice %215 {offsets = [1, 0], sizes = [1, 32], strides = [1, 1]} : vector<3x32xf32> to vector<1x32xf32>
    %228 = vector.broadcast %227 : vector<1x32xf32> to vector<48x32xf32>
    %229 = arith.mulf %228, %6 : vector<48x32xf32>
    %230 = arith.addf %226, %229 : vector<48x32xf32>
    %231 = arith.negf %230 : vector<48x32xf32>
    %232 = math.exp %231 : vector<48x32xf32>
    %cst_117 = arith.constant 1.000000e+00 : f32
    %233 = vector.broadcast %cst_117 : f32 to vector<48x32xf32>
    %234 = arith.addf %233, %232 : vector<48x32xf32>
    %235 = arith.divf %233, %234 : vector<48x32xf32>
    %236 = vector.extract_strided_slice %174 {offsets = [0, 64], sizes = [48, 32], strides = [1, 1]} : vector<48x128xf32> to vector<48x32xf32>
    %237 = math.tanh %236 : vector<48x32xf32>
    %238 = arith.mulf %235, %6 : vector<48x32xf32>
    %239 = arith.mulf %225, %237 : vector<48x32xf32>
    %240 = arith.addf %238, %239 : vector<48x32xf32>
    %241 = vector.extract_strided_slice %174 {offsets = [0, 96], sizes = [48, 32], strides = [1, 1]} : vector<48x128xf32> to vector<48x32xf32>
    %242 = vector.extract_strided_slice %215 {offsets = [2, 0], sizes = [1, 32], strides = [1, 1]} : vector<3x32xf32> to vector<1x32xf32>
    %243 = vector.broadcast %242 : vector<1x32xf32> to vector<48x32xf32>
    %244 = arith.mulf %243, %240 : vector<48x32xf32>
    %245 = arith.addf %241, %244 : vector<48x32xf32>
    %246 = arith.negf %245 : vector<48x32xf32>
    %247 = math.exp %246 : vector<48x32xf32>
    %cst_118 = arith.constant 1.000000e+00 : f32
    %248 = vector.broadcast %cst_118 : f32 to vector<48x32xf32>
    %249 = arith.addf %248, %247 : vector<48x32xf32>
    %250 = arith.divf %248, %249 : vector<48x32xf32>
    %251 = math.tanh %240 : vector<48x32xf32>
    %252 = arith.mulf %250, %251 : vector<48x32xf32>
    %c2 = arith.constant 2 : index
    %c0_119 = arith.constant 0 : index
    %c0_120 = arith.constant 0 : index
    %253 = vector.load %arg5[%c2, %c0_119, %c0_120] : memref<4x32x128xf32, #tpu.memory_space<vmem>>, vector<1x32x128xf32>
    %254 = vector.shape_cast %253 : vector<1x32x128xf32> to vector<32x128xf32>
    %cst_121 = arith.constant dense<0.000000e+00> : vector<64x128xf32>
    %255 = tpu.matmul %0, %254, %cst_121 {dimension_numbers = #tpu.dot_dimension_numbers<[1], [0], [0], [1], [0, 0, 1, 1], [], []>} : vector<64x32xf32>, vector<32x128xf32>, vector<64x128xf32> -> vector<64x128xf32>
    %c2_122 = arith.constant 2 : index
    %c0_123 = arith.constant 0 : index
    %c0_124 = arith.constant 0 : index
    %256 = vector.load %arg6[%c2_122, %c0_123, %c0_124] : memref<4x32x128xf32, #tpu.memory_space<vmem>>, vector<1x32x128xf32>
    %257 = vector.shape_cast %256 : vector<1x32x128xf32> to vector<32x128xf32>
    %cst_125 = arith.constant dense<0.000000e+00> : vector<48x128xf32>
    %258 = tpu.matmul %1, %257, %cst_125 {dimension_numbers = #tpu.dot_dimension_numbers<[1], [0], [0], [1], [0, 0, 1, 1], [], []>} : vector<48x32xf32>, vector<32x128xf32>, vector<48x128xf32> -> vector<48x128xf32>
    %c2_126 = arith.constant 2 : index
    %c0_127 = arith.constant 0 : index
    %c0_128 = arith.constant 0 : index
    %259 = vector.load %arg7[%c2_126, %c0_127, %c0_128] : memref<4x32x128xf32, #tpu.memory_space<vmem>>, vector<1x32x128xf32>
    %260 = vector.shape_cast %259 : vector<1x32x128xf32> to vector<32x128xf32>
    %cst_129 = arith.constant dense<0.000000e+00> : vector<64x128xf32>
    %261 = tpu.matmul %0, %260, %cst_129 {dimension_numbers = #tpu.dot_dimension_numbers<[1], [0], [0], [1], [0, 0, 1, 1], [], []>} : vector<64x32xf32>, vector<32x128xf32>, vector<64x128xf32> -> vector<64x128xf32>
    %cst_130 = arith.constant dense<0.000000e+00> : vector<64x128xf32>
    %262 = tpu.matmul %2, %255, %cst_130 {dimension_numbers = #tpu.dot_dimension_numbers<[1], [0], [0], [1], [0, 0, 1, 1], [], []>} : vector<64x64xf32>, vector<64x128xf32>, vector<64x128xf32> -> vector<64x128xf32>
    %cst_131 = arith.constant dense<0.000000e+00> : vector<64x128xf32>
    %263 = tpu.matmul %3, %258, %cst_131 {dimension_numbers = #tpu.dot_dimension_numbers<[1], [0], [0], [1], [0, 0, 1, 1], [], []>} : vector<64x48xf32>, vector<48x128xf32>, vector<64x128xf32> -> vector<64x128xf32>
    %264 = arith.addf %262, %263 : vector<64x128xf32>
    %c2_132 = arith.constant 2 : index
    %c0_133 = arith.constant 0 : index
    %c0_134 = arith.constant 0 : index
    %265 = vector.load %arg8[%c2_132, %c0_133, %c0_134] : memref<4x32x128xf32, #tpu.memory_space<vmem>>, vector<1x32x128xf32>
    %266 = vector.shape_cast %265 : vector<1x32x128xf32> to vector<32x128xf32>
    %cst_135 = arith.constant dense<0.000000e+00> : vector<64x128xf32>
    %267 = tpu.matmul %0, %266, %cst_135 {dimension_numbers = #tpu.dot_dimension_numbers<[1], [0], [0], [1], [0, 0, 1, 1], [], []>} : vector<64x32xf32>, vector<32x128xf32>, vector<64x128xf32> -> vector<64x128xf32>
    %268 = arith.addf %264, %267 : vector<64x128xf32>
    %c2_136 = arith.constant 2 : index
    %c0_137 = arith.constant 0 : index
    %c0_138 = arith.constant 0 : index
    %269 = vector.load %arg10[%c2_136, %c0_137, %c0_138] : memref<4x1x128xf32, #tpu.memory_space<vmem>>, vector<1x1x128xf32>
    %270 = vector.shape_cast %269 : vector<1x1x128xf32> to vector<1x128xf32>
    %271 = vector.broadcast %270 : vector<1x128xf32> to vector<64x128xf32>
    %272 = arith.addf %268, %271 : vector<64x128xf32>
    %cst_139 = arith.constant dense<0.000000e+00> : vector<48x128xf32>
    %273 = tpu.matmul %4, %261, %cst_139 {dimension_numbers = #tpu.dot_dimension_numbers<[1], [0], [0], [1], [0, 0, 1, 1], [], []>} : vector<48x64xf32>, vector<64x128xf32>, vector<48x128xf32> -> vector<48x128xf32>
    %c2_140 = arith.constant 2 : index
    %c0_141 = arith.constant 0 : index
    %c0_142 = arith.constant 0 : index
    %274 = vector.load %arg9[%c2_140, %c0_141, %c0_142] : memref<4x32x128xf32, #tpu.memory_space<vmem>>, vector<1x32x128xf32>
    %275 = vector.shape_cast %274 : vector<1x32x128xf32> to vector<32x128xf32>
    %cst_143 = arith.constant dense<0.000000e+00> : vector<48x128xf32>
    %276 = tpu.matmul %1, %275, %cst_143 {dimension_numbers = #tpu.dot_dimension_numbers<[1], [0], [0], [1], [0, 0, 1, 1], [], []>} : vector<48x32xf32>, vector<32x128xf32>, vector<48x128xf32> -> vector<48x128xf32>
    %277 = arith.addf %273, %276 : vector<48x128xf32>
    %c2_144 = arith.constant 2 : index
    %c0_145 = arith.constant 0 : index
    %c0_146 = arith.constant 0 : index
    %278 = vector.load %arg11[%c2_144, %c0_145, %c0_146] : memref<4x1x128xf32, #tpu.memory_space<vmem>>, vector<1x1x128xf32>
    %279 = vector.shape_cast %278 : vector<1x1x128xf32> to vector<1x128xf32>
    %280 = vector.broadcast %279 : vector<1x128xf32> to vector<48x128xf32>
    %281 = arith.addf %277, %280 : vector<48x128xf32>
    %c2_147 = arith.constant 2 : index
    %c0_148 = arith.constant 0 : index
    %c0_149 = arith.constant 0 : index
    %282 = vector.load %arg12[%c2_147, %c0_148, %c0_149] : memref<4x32x128xf32, #tpu.memory_space<vmem>>, vector<1x32x128xf32>
    %283 = vector.shape_cast %282 : vector<1x32x128xf32> to vector<32x128xf32>
    %cst_150 = arith.constant dense<0.000000e+00> : vector<64x128xf32>
    %284 = tpu.matmul %90, %283, %cst_150 {dimension_numbers = #tpu.dot_dimension_numbers<[1], [0], [0], [1], [0, 0, 1, 1], [], []>} : vector<64x32xf32>, vector<32x128xf32>, vector<64x128xf32> -> vector<64x128xf32>
    %285 = arith.addf %272, %284 : vector<64x128xf32>
    %c2_151 = arith.constant 2 : index
    %c0_152 = arith.constant 0 : index
    %c0_153 = arith.constant 0 : index
    %286 = vector.load %arg16[%c2_151, %c0_152, %c0_153] : memref<4x1x128xf32, #tpu.memory_space<vmem>>, vector<1x1x128xf32>
    %287 = vector.shape_cast %286 : vector<1x1x128xf32> to vector<1x128xf32>
    %288 = vector.broadcast %287 : vector<1x128xf32> to vector<64x128xf32>
    %289 = arith.addf %285, %288 : vector<64x128xf32>
    %c2_154 = arith.constant 2 : index
    %c0_155 = arith.constant 0 : index
    %c0_156 = arith.constant 0 : index
    %290 = vector.load %arg13[%c2_154, %c0_155, %c0_156] : memref<4x32x128xf32, #tpu.memory_space<vmem>>, vector<1x32x128xf32>
    %291 = vector.shape_cast %290 : vector<1x32x128xf32> to vector<32x128xf32>
    %cst_157 = arith.constant dense<0.000000e+00> : vector<48x128xf32>
    %292 = tpu.matmul %129, %291, %cst_157 {dimension_numbers = #tpu.dot_dimension_numbers<[1], [0], [0], [1], [0, 0, 1, 1], [], []>} : vector<48x32xf32>, vector<32x128xf32>, vector<48x128xf32> -> vector<48x128xf32>
    %293 = arith.addf %281, %292 : vector<48x128xf32>
    %c2_158 = arith.constant 2 : index
    %c0_159 = arith.constant 0 : index
    %c0_160 = arith.constant 0 : index
    %294 = vector.load %arg17[%c2_158, %c0_159, %c0_160] : memref<4x1x128xf32, #tpu.memory_space<vmem>>, vector<1x1x128xf32>
    %295 = vector.shape_cast %294 : vector<1x1x128xf32> to vector<1x128xf32>
    %296 = vector.broadcast %295 : vector<1x128xf32> to vector<48x128xf32>
    %297 = arith.addf %293, %296 : vector<48x128xf32>
    %c2_161 = arith.constant 2 : index
    %c0_162 = arith.constant 0 : index
    %c0_163 = arith.constant 0 : index
    %298 = vector.load %arg14[%c2_161, %c0_162, %c0_163] : memref<4x3x32xf32, #tpu.memory_space<vmem>>, vector<1x3x32xf32>
    %299 = vector.shape_cast %298 : vector<1x3x32xf32> to vector<3x32xf32>
    %300 = vector.extract_strided_slice %289 {offsets = [0, 0], sizes = [64, 32], strides = [1, 1]} : vector<64x128xf32> to vector<64x32xf32>
    %301 = vector.extract_strided_slice %299 {offsets = [0, 0], sizes = [1, 32], strides = [1, 1]} : vector<3x32xf32> to vector<1x32xf32>
    %302 = vector.broadcast %301 : vector<1x32xf32> to vector<64x32xf32>
    %303 = arith.mulf %302, %78 : vector<64x32xf32>
    %304 = arith.addf %300, %303 : vector<64x32xf32>
    %305 = arith.negf %304 : vector<64x32xf32>
    %306 = math.exp %305 : vector<64x32xf32>
    %cst_164 = arith.constant 1.000000e+00 : f32
    %307 = vector.broadcast %cst_164 : f32 to vector<64x32xf32>
    %308 = arith.addf %307, %306 : vector<64x32xf32>
    %309 = arith.divf %307, %308 : vector<64x32xf32>
    %310 = vector.extract_strided_slice %289 {offsets = [0, 32], sizes = [64, 32], strides = [1, 1]} : vector<64x128xf32> to vector<64x32xf32>
    %311 = vector.extract_strided_slice %299 {offsets = [1, 0], sizes = [1, 32], strides = [1, 1]} : vector<3x32xf32> to vector<1x32xf32>
    %312 = vector.broadcast %311 : vector<1x32xf32> to vector<64x32xf32>
    %313 = arith.mulf %312, %78 : vector<64x32xf32>
    %314 = arith.addf %310, %313 : vector<64x32xf32>
    %315 = arith.negf %314 : vector<64x32xf32>
    %316 = math.exp %315 : vector<64x32xf32>
    %cst_165 = arith.constant 1.000000e+00 : f32
    %317 = vector.broadcast %cst_165 : f32 to vector<64x32xf32>
    %318 = arith.addf %317, %316 : vector<64x32xf32>
    %319 = arith.divf %317, %318 : vector<64x32xf32>
    %320 = vector.extract_strided_slice %289 {offsets = [0, 64], sizes = [64, 32], strides = [1, 1]} : vector<64x128xf32> to vector<64x32xf32>
    %321 = math.tanh %320 : vector<64x32xf32>
    %322 = arith.mulf %319, %78 : vector<64x32xf32>
    %323 = arith.mulf %309, %321 : vector<64x32xf32>
    %324 = arith.addf %322, %323 : vector<64x32xf32>
    %325 = vector.extract_strided_slice %289 {offsets = [0, 96], sizes = [64, 32], strides = [1, 1]} : vector<64x128xf32> to vector<64x32xf32>
    %326 = vector.extract_strided_slice %299 {offsets = [2, 0], sizes = [1, 32], strides = [1, 1]} : vector<3x32xf32> to vector<1x32xf32>
    %327 = vector.broadcast %326 : vector<1x32xf32> to vector<64x32xf32>
    %328 = arith.mulf %327, %324 : vector<64x32xf32>
    %329 = arith.addf %325, %328 : vector<64x32xf32>
    %330 = arith.negf %329 : vector<64x32xf32>
    %331 = math.exp %330 : vector<64x32xf32>
    %cst_166 = arith.constant 1.000000e+00 : f32
    %332 = vector.broadcast %cst_166 : f32 to vector<64x32xf32>
    %333 = arith.addf %332, %331 : vector<64x32xf32>
    %334 = arith.divf %332, %333 : vector<64x32xf32>
    %335 = math.tanh %324 : vector<64x32xf32>
    %336 = arith.mulf %334, %335 : vector<64x32xf32>
    %c2_167 = arith.constant 2 : index
    %c0_168 = arith.constant 0 : index
    %c0_169 = arith.constant 0 : index
    %337 = vector.load %arg15[%c2_167, %c0_168, %c0_169] : memref<4x3x32xf32, #tpu.memory_space<vmem>>, vector<1x3x32xf32>
    %338 = vector.shape_cast %337 : vector<1x3x32xf32> to vector<3x32xf32>
    %339 = vector.extract_strided_slice %297 {offsets = [0, 0], sizes = [48, 32], strides = [1, 1]} : vector<48x128xf32> to vector<48x32xf32>
    %340 = vector.extract_strided_slice %338 {offsets = [0, 0], sizes = [1, 32], strides = [1, 1]} : vector<3x32xf32> to vector<1x32xf32>
    %341 = vector.broadcast %340 : vector<1x32xf32> to vector<48x32xf32>
    %342 = arith.mulf %341, %117 : vector<48x32xf32>
    %343 = arith.addf %339, %342 : vector<48x32xf32>
    %344 = arith.negf %343 : vector<48x32xf32>
    %345 = math.exp %344 : vector<48x32xf32>
    %cst_170 = arith.constant 1.000000e+00 : f32
    %346 = vector.broadcast %cst_170 : f32 to vector<48x32xf32>
    %347 = arith.addf %346, %345 : vector<48x32xf32>
    %348 = arith.divf %346, %347 : vector<48x32xf32>
    %349 = vector.extract_strided_slice %297 {offsets = [0, 32], sizes = [48, 32], strides = [1, 1]} : vector<48x128xf32> to vector<48x32xf32>
    %350 = vector.extract_strided_slice %338 {offsets = [1, 0], sizes = [1, 32], strides = [1, 1]} : vector<3x32xf32> to vector<1x32xf32>
    %351 = vector.broadcast %350 : vector<1x32xf32> to vector<48x32xf32>
    %352 = arith.mulf %351, %117 : vector<48x32xf32>
    %353 = arith.addf %349, %352 : vector<48x32xf32>
    %354 = arith.negf %353 : vector<48x32xf32>
    %355 = math.exp %354 : vector<48x32xf32>
    %cst_171 = arith.constant 1.000000e+00 : f32
    %356 = vector.broadcast %cst_171 : f32 to vector<48x32xf32>
    %357 = arith.addf %356, %355 : vector<48x32xf32>
    %358 = arith.divf %356, %357 : vector<48x32xf32>
    %359 = vector.extract_strided_slice %297 {offsets = [0, 64], sizes = [48, 32], strides = [1, 1]} : vector<48x128xf32> to vector<48x32xf32>
    %360 = math.tanh %359 : vector<48x32xf32>
    %361 = arith.mulf %358, %117 : vector<48x32xf32>
    %362 = arith.mulf %348, %360 : vector<48x32xf32>
    %363 = arith.addf %361, %362 : vector<48x32xf32>
    %364 = vector.extract_strided_slice %297 {offsets = [0, 96], sizes = [48, 32], strides = [1, 1]} : vector<48x128xf32> to vector<48x32xf32>
    %365 = vector.extract_strided_slice %338 {offsets = [2, 0], sizes = [1, 32], strides = [1, 1]} : vector<3x32xf32> to vector<1x32xf32>
    %366 = vector.broadcast %365 : vector<1x32xf32> to vector<48x32xf32>
    %367 = arith.mulf %366, %363 : vector<48x32xf32>
    %368 = arith.addf %364, %367 : vector<48x32xf32>
    %369 = arith.negf %368 : vector<48x32xf32>
    %370 = math.exp %369 : vector<48x32xf32>
    %cst_172 = arith.constant 1.000000e+00 : f32
    %371 = vector.broadcast %cst_172 : f32 to vector<48x32xf32>
    %372 = arith.addf %371, %370 : vector<48x32xf32>
    %373 = arith.divf %371, %372 : vector<48x32xf32>
    %374 = math.tanh %363 : vector<48x32xf32>
    %375 = arith.mulf %373, %374 : vector<48x32xf32>
    %c3 = arith.constant 3 : index
    %c0_173 = arith.constant 0 : index
    %c0_174 = arith.constant 0 : index
    %376 = vector.load %arg5[%c3, %c0_173, %c0_174] : memref<4x32x128xf32, #tpu.memory_space<vmem>>, vector<1x32x128xf32>
    %377 = vector.shape_cast %376 : vector<1x32x128xf32> to vector<32x128xf32>
    %cst_175 = arith.constant dense<0.000000e+00> : vector<64x128xf32>
    %378 = tpu.matmul %336, %377, %cst_175 {dimension_numbers = #tpu.dot_dimension_numbers<[1], [0], [0], [1], [0, 0, 1, 1], [], []>} : vector<64x32xf32>, vector<32x128xf32>, vector<64x128xf32> -> vector<64x128xf32>
    %c3_176 = arith.constant 3 : index
    %c0_177 = arith.constant 0 : index
    %c0_178 = arith.constant 0 : index
    %379 = vector.load %arg6[%c3_176, %c0_177, %c0_178] : memref<4x32x128xf32, #tpu.memory_space<vmem>>, vector<1x32x128xf32>
    %380 = vector.shape_cast %379 : vector<1x32x128xf32> to vector<32x128xf32>
    %cst_179 = arith.constant dense<0.000000e+00> : vector<48x128xf32>
    %381 = tpu.matmul %375, %380, %cst_179 {dimension_numbers = #tpu.dot_dimension_numbers<[1], [0], [0], [1], [0, 0, 1, 1], [], []>} : vector<48x32xf32>, vector<32x128xf32>, vector<48x128xf32> -> vector<48x128xf32>
    %c3_180 = arith.constant 3 : index
    %c0_181 = arith.constant 0 : index
    %c0_182 = arith.constant 0 : index
    %382 = vector.load %arg7[%c3_180, %c0_181, %c0_182] : memref<4x32x128xf32, #tpu.memory_space<vmem>>, vector<1x32x128xf32>
    %383 = vector.shape_cast %382 : vector<1x32x128xf32> to vector<32x128xf32>
    %cst_183 = arith.constant dense<0.000000e+00> : vector<64x128xf32>
    %384 = tpu.matmul %336, %383, %cst_183 {dimension_numbers = #tpu.dot_dimension_numbers<[1], [0], [0], [1], [0, 0, 1, 1], [], []>} : vector<64x32xf32>, vector<32x128xf32>, vector<64x128xf32> -> vector<64x128xf32>
    %cst_184 = arith.constant dense<0.000000e+00> : vector<64x128xf32>
    %385 = tpu.matmul %2, %378, %cst_184 {dimension_numbers = #tpu.dot_dimension_numbers<[1], [0], [0], [1], [0, 0, 1, 1], [], []>} : vector<64x64xf32>, vector<64x128xf32>, vector<64x128xf32> -> vector<64x128xf32>
    %cst_185 = arith.constant dense<0.000000e+00> : vector<64x128xf32>
    %386 = tpu.matmul %3, %381, %cst_185 {dimension_numbers = #tpu.dot_dimension_numbers<[1], [0], [0], [1], [0, 0, 1, 1], [], []>} : vector<64x48xf32>, vector<48x128xf32>, vector<64x128xf32> -> vector<64x128xf32>
    %387 = arith.addf %385, %386 : vector<64x128xf32>
    %c3_186 = arith.constant 3 : index
    %c0_187 = arith.constant 0 : index
    %c0_188 = arith.constant 0 : index
    %388 = vector.load %arg8[%c3_186, %c0_187, %c0_188] : memref<4x32x128xf32, #tpu.memory_space<vmem>>, vector<1x32x128xf32>
    %389 = vector.shape_cast %388 : vector<1x32x128xf32> to vector<32x128xf32>
    %cst_189 = arith.constant dense<0.000000e+00> : vector<64x128xf32>
    %390 = tpu.matmul %336, %389, %cst_189 {dimension_numbers = #tpu.dot_dimension_numbers<[1], [0], [0], [1], [0, 0, 1, 1], [], []>} : vector<64x32xf32>, vector<32x128xf32>, vector<64x128xf32> -> vector<64x128xf32>
    %391 = arith.addf %387, %390 : vector<64x128xf32>
    %c3_190 = arith.constant 3 : index
    %c0_191 = arith.constant 0 : index
    %c0_192 = arith.constant 0 : index
    %392 = vector.load %arg10[%c3_190, %c0_191, %c0_192] : memref<4x1x128xf32, #tpu.memory_space<vmem>>, vector<1x1x128xf32>
    %393 = vector.shape_cast %392 : vector<1x1x128xf32> to vector<1x128xf32>
    %394 = vector.broadcast %393 : vector<1x128xf32> to vector<64x128xf32>
    %395 = arith.addf %391, %394 : vector<64x128xf32>
    %cst_193 = arith.constant dense<0.000000e+00> : vector<48x128xf32>
    %396 = tpu.matmul %4, %384, %cst_193 {dimension_numbers = #tpu.dot_dimension_numbers<[1], [0], [0], [1], [0, 0, 1, 1], [], []>} : vector<48x64xf32>, vector<64x128xf32>, vector<48x128xf32> -> vector<48x128xf32>
    %c3_194 = arith.constant 3 : index
    %c0_195 = arith.constant 0 : index
    %c0_196 = arith.constant 0 : index
    %397 = vector.load %arg9[%c3_194, %c0_195, %c0_196] : memref<4x32x128xf32, #tpu.memory_space<vmem>>, vector<1x32x128xf32>
    %398 = vector.shape_cast %397 : vector<1x32x128xf32> to vector<32x128xf32>
    %cst_197 = arith.constant dense<0.000000e+00> : vector<48x128xf32>
    %399 = tpu.matmul %375, %398, %cst_197 {dimension_numbers = #tpu.dot_dimension_numbers<[1], [0], [0], [1], [0, 0, 1, 1], [], []>} : vector<48x32xf32>, vector<32x128xf32>, vector<48x128xf32> -> vector<48x128xf32>
    %400 = arith.addf %396, %399 : vector<48x128xf32>
    %c3_198 = arith.constant 3 : index
    %c0_199 = arith.constant 0 : index
    %c0_200 = arith.constant 0 : index
    %401 = vector.load %arg11[%c3_198, %c0_199, %c0_200] : memref<4x1x128xf32, #tpu.memory_space<vmem>>, vector<1x1x128xf32>
    %402 = vector.shape_cast %401 : vector<1x1x128xf32> to vector<1x128xf32>
    %403 = vector.broadcast %402 : vector<1x128xf32> to vector<48x128xf32>
    %404 = arith.addf %400, %403 : vector<48x128xf32>
    %c3_201 = arith.constant 3 : index
    %c0_202 = arith.constant 0 : index
    %c0_203 = arith.constant 0 : index
    %405 = vector.load %arg12[%c3_201, %c0_202, %c0_203] : memref<4x32x128xf32, #tpu.memory_space<vmem>>, vector<1x32x128xf32>
    %406 = vector.shape_cast %405 : vector<1x32x128xf32> to vector<32x128xf32>
    %cst_204 = arith.constant dense<0.000000e+00> : vector<64x128xf32>
    %407 = tpu.matmul %213, %406, %cst_204 {dimension_numbers = #tpu.dot_dimension_numbers<[1], [0], [0], [1], [0, 0, 1, 1], [], []>} : vector<64x32xf32>, vector<32x128xf32>, vector<64x128xf32> -> vector<64x128xf32>
    %408 = arith.addf %395, %407 : vector<64x128xf32>
    %c3_205 = arith.constant 3 : index
    %c0_206 = arith.constant 0 : index
    %c0_207 = arith.constant 0 : index
    %409 = vector.load %arg16[%c3_205, %c0_206, %c0_207] : memref<4x1x128xf32, #tpu.memory_space<vmem>>, vector<1x1x128xf32>
    %410 = vector.shape_cast %409 : vector<1x1x128xf32> to vector<1x128xf32>
    %411 = vector.broadcast %410 : vector<1x128xf32> to vector<64x128xf32>
    %412 = arith.addf %408, %411 : vector<64x128xf32>
    %c3_208 = arith.constant 3 : index
    %c0_209 = arith.constant 0 : index
    %c0_210 = arith.constant 0 : index
    %413 = vector.load %arg13[%c3_208, %c0_209, %c0_210] : memref<4x32x128xf32, #tpu.memory_space<vmem>>, vector<1x32x128xf32>
    %414 = vector.shape_cast %413 : vector<1x32x128xf32> to vector<32x128xf32>
    %cst_211 = arith.constant dense<0.000000e+00> : vector<48x128xf32>
    %415 = tpu.matmul %252, %414, %cst_211 {dimension_numbers = #tpu.dot_dimension_numbers<[1], [0], [0], [1], [0, 0, 1, 1], [], []>} : vector<48x32xf32>, vector<32x128xf32>, vector<48x128xf32> -> vector<48x128xf32>
    %416 = arith.addf %404, %415 : vector<48x128xf32>
    %c3_212 = arith.constant 3 : index
    %c0_213 = arith.constant 0 : index
    %c0_214 = arith.constant 0 : index
    %417 = vector.load %arg17[%c3_212, %c0_213, %c0_214] : memref<4x1x128xf32, #tpu.memory_space<vmem>>, vector<1x1x128xf32>
    %418 = vector.shape_cast %417 : vector<1x1x128xf32> to vector<1x128xf32>
    %419 = vector.broadcast %418 : vector<1x128xf32> to vector<48x128xf32>
    %420 = arith.addf %416, %419 : vector<48x128xf32>
    %c3_215 = arith.constant 3 : index
    %c0_216 = arith.constant 0 : index
    %c0_217 = arith.constant 0 : index
    %421 = vector.load %arg14[%c3_215, %c0_216, %c0_217] : memref<4x3x32xf32, #tpu.memory_space<vmem>>, vector<1x3x32xf32>
    %422 = vector.shape_cast %421 : vector<1x3x32xf32> to vector<3x32xf32>
    %423 = vector.extract_strided_slice %412 {offsets = [0, 0], sizes = [64, 32], strides = [1, 1]} : vector<64x128xf32> to vector<64x32xf32>
    %424 = vector.extract_strided_slice %422 {offsets = [0, 0], sizes = [1, 32], strides = [1, 1]} : vector<3x32xf32> to vector<1x32xf32>
    %425 = vector.broadcast %424 : vector<1x32xf32> to vector<64x32xf32>
    %426 = arith.mulf %425, %201 : vector<64x32xf32>
    %427 = arith.addf %423, %426 : vector<64x32xf32>
    %428 = arith.negf %427 : vector<64x32xf32>
    %429 = math.exp %428 : vector<64x32xf32>
    %cst_218 = arith.constant 1.000000e+00 : f32
    %430 = vector.broadcast %cst_218 : f32 to vector<64x32xf32>
    %431 = arith.addf %430, %429 : vector<64x32xf32>
    %432 = arith.divf %430, %431 : vector<64x32xf32>
    %433 = vector.extract_strided_slice %412 {offsets = [0, 32], sizes = [64, 32], strides = [1, 1]} : vector<64x128xf32> to vector<64x32xf32>
    %434 = vector.extract_strided_slice %422 {offsets = [1, 0], sizes = [1, 32], strides = [1, 1]} : vector<3x32xf32> to vector<1x32xf32>
    %435 = vector.broadcast %434 : vector<1x32xf32> to vector<64x32xf32>
    %436 = arith.mulf %435, %201 : vector<64x32xf32>
    %437 = arith.addf %433, %436 : vector<64x32xf32>
    %438 = arith.negf %437 : vector<64x32xf32>
    %439 = math.exp %438 : vector<64x32xf32>
    %cst_219 = arith.constant 1.000000e+00 : f32
    %440 = vector.broadcast %cst_219 : f32 to vector<64x32xf32>
    %441 = arith.addf %440, %439 : vector<64x32xf32>
    %442 = arith.divf %440, %441 : vector<64x32xf32>
    %443 = vector.extract_strided_slice %412 {offsets = [0, 64], sizes = [64, 32], strides = [1, 1]} : vector<64x128xf32> to vector<64x32xf32>
    %444 = math.tanh %443 : vector<64x32xf32>
    %445 = arith.mulf %442, %201 : vector<64x32xf32>
    %446 = arith.mulf %432, %444 : vector<64x32xf32>
    %447 = arith.addf %445, %446 : vector<64x32xf32>
    %448 = vector.extract_strided_slice %412 {offsets = [0, 96], sizes = [64, 32], strides = [1, 1]} : vector<64x128xf32> to vector<64x32xf32>
    %449 = vector.extract_strided_slice %422 {offsets = [2, 0], sizes = [1, 32], strides = [1, 1]} : vector<3x32xf32> to vector<1x32xf32>
    %450 = vector.broadcast %449 : vector<1x32xf32> to vector<64x32xf32>
    %451 = arith.mulf %450, %447 : vector<64x32xf32>
    %452 = arith.addf %448, %451 : vector<64x32xf32>
    %453 = arith.negf %452 : vector<64x32xf32>
    %454 = math.exp %453 : vector<64x32xf32>
    %cst_220 = arith.constant 1.000000e+00 : f32
    %455 = vector.broadcast %cst_220 : f32 to vector<64x32xf32>
    %456 = arith.addf %455, %454 : vector<64x32xf32>
    %457 = arith.divf %455, %456 : vector<64x32xf32>
    %458 = math.tanh %447 : vector<64x32xf32>
    %459 = arith.mulf %457, %458 : vector<64x32xf32>
    %c3_221 = arith.constant 3 : index
    %c0_222 = arith.constant 0 : index
    %c0_223 = arith.constant 0 : index
    %460 = vector.load %arg15[%c3_221, %c0_222, %c0_223] : memref<4x3x32xf32, #tpu.memory_space<vmem>>, vector<1x3x32xf32>
    %461 = vector.shape_cast %460 : vector<1x3x32xf32> to vector<3x32xf32>
    %462 = vector.extract_strided_slice %420 {offsets = [0, 0], sizes = [48, 32], strides = [1, 1]} : vector<48x128xf32> to vector<48x32xf32>
    %463 = vector.extract_strided_slice %461 {offsets = [0, 0], sizes = [1, 32], strides = [1, 1]} : vector<3x32xf32> to vector<1x32xf32>
    %464 = vector.broadcast %463 : vector<1x32xf32> to vector<48x32xf32>
    %465 = arith.mulf %464, %240 : vector<48x32xf32>
    %466 = arith.addf %462, %465 : vector<48x32xf32>
    %467 = arith.negf %466 : vector<48x32xf32>
    %468 = math.exp %467 : vector<48x32xf32>
    %cst_224 = arith.constant 1.000000e+00 : f32
    %469 = vector.broadcast %cst_224 : f32 to vector<48x32xf32>
    %470 = arith.addf %469, %468 : vector<48x32xf32>
    %471 = arith.divf %469, %470 : vector<48x32xf32>
    %472 = vector.extract_strided_slice %420 {offsets = [0, 32], sizes = [48, 32], strides = [1, 1]} : vector<48x128xf32> to vector<48x32xf32>
    %473 = vector.extract_strided_slice %461 {offsets = [1, 0], sizes = [1, 32], strides = [1, 1]} : vector<3x32xf32> to vector<1x32xf32>
    %474 = vector.broadcast %473 : vector<1x32xf32> to vector<48x32xf32>
    %475 = arith.mulf %474, %240 : vector<48x32xf32>
    %476 = arith.addf %472, %475 : vector<48x32xf32>
    %477 = arith.negf %476 : vector<48x32xf32>
    %478 = math.exp %477 : vector<48x32xf32>
    %cst_225 = arith.constant 1.000000e+00 : f32
    %479 = vector.broadcast %cst_225 : f32 to vector<48x32xf32>
    %480 = arith.addf %479, %478 : vector<48x32xf32>
    %481 = arith.divf %479, %480 : vector<48x32xf32>
    %482 = vector.extract_strided_slice %420 {offsets = [0, 64], sizes = [48, 32], strides = [1, 1]} : vector<48x128xf32> to vector<48x32xf32>
    %483 = math.tanh %482 : vector<48x32xf32>
    %484 = arith.mulf %481, %240 : vector<48x32xf32>
    %485 = arith.mulf %471, %483 : vector<48x32xf32>
    %486 = arith.addf %484, %485 : vector<48x32xf32>
    %487 = vector.extract_strided_slice %420 {offsets = [0, 96], sizes = [48, 32], strides = [1, 1]} : vector<48x128xf32> to vector<48x32xf32>
    %488 = vector.extract_strided_slice %461 {offsets = [2, 0], sizes = [1, 32], strides = [1, 1]} : vector<3x32xf32> to vector<1x32xf32>
    %489 = vector.broadcast %488 : vector<1x32xf32> to vector<48x32xf32>
    %490 = arith.mulf %489, %486 : vector<48x32xf32>
    %491 = arith.addf %487, %490 : vector<48x32xf32>
    %492 = arith.negf %491 : vector<48x32xf32>
    %493 = math.exp %492 : vector<48x32xf32>
    %cst_226 = arith.constant 1.000000e+00 : f32
    %494 = vector.broadcast %cst_226 : f32 to vector<48x32xf32>
    %495 = arith.addf %494, %493 : vector<48x32xf32>
    %496 = arith.divf %494, %495 : vector<48x32xf32>
    %497 = math.tanh %486 : vector<48x32xf32>
    %498 = arith.mulf %496, %497 : vector<48x32xf32>
    %c0_227 = arith.constant 0 : index
    %c0_228 = arith.constant 0 : index
    %499 = vector.load %arg18[%c0_227, %c0_228] : memref<32x2xf32, #tpu.memory_space<vmem>>, vector<32x2xf32>
    %cst_229 = arith.constant dense<0.000000e+00> : vector<64x2xf32>
    %500 = tpu.matmul %459, %499, %cst_229 {dimension_numbers = #tpu.dot_dimension_numbers<[1], [0], [0], [1], [0, 0, 1, 1], [], []>} : vector<64x32xf32>, vector<32x2xf32>, vector<64x2xf32> -> vector<64x2xf32>
    %c0_230 = arith.constant 0 : index
    %c0_231 = arith.constant 0 : index
    %501 = vector.load %arg19[%c0_230, %c0_231] : memref<1x2xf32, #tpu.memory_space<vmem>>, vector<1x2xf32>
    %502 = vector.broadcast %501 : vector<1x2xf32> to vector<64x2xf32>
    %503 = arith.addf %500, %502 : vector<64x2xf32>
    %504 = math.tanh %503 : vector<64x2xf32>
    %c0_232 = arith.constant 0 : index
    %c0_233 = arith.constant 0 : index
    %505 = vector.load %arg22[%c0_232, %c0_233] : memref<64x2xf32, #tpu.memory_space<vmem>>, vector<64x2xf32>
    tpu.vector_store %arg22[%c0_232, %c0_233], %504 {strides = array<i32>} : memref<64x2xf32, #tpu.memory_space<vmem>>, vector<64x2xf32>,
    %c0_234 = arith.constant 0 : index
    %c0_235 = arith.constant 0 : index
    %506 = vector.load %arg20[%c0_234, %c0_235] : memref<32x2xf32, #tpu.memory_space<vmem>>, vector<32x2xf32>
    %cst_236 = arith.constant dense<0.000000e+00> : vector<48x2xf32>
    %507 = tpu.matmul %498, %506, %cst_236 {dimension_numbers = #tpu.dot_dimension_numbers<[1], [0], [0], [1], [0, 0, 1, 1], [], []>} : vector<48x32xf32>, vector<32x2xf32>, vector<48x2xf32> -> vector<48x2xf32>
    %c0_237 = arith.constant 0 : index
    %c0_238 = arith.constant 0 : index
    %508 = vector.load %arg21[%c0_237, %c0_238] : memref<1x2xf32, #tpu.memory_space<vmem>>, vector<1x2xf32>
    %509 = vector.broadcast %508 : vector<1x2xf32> to vector<48x2xf32>
    %510 = arith.addf %507, %509 : vector<48x2xf32>
    %511 = vector.extract_strided_slice %510 {offsets = [0, 0], sizes = [48, 1], strides = [1, 1]} : vector<48x2xf32> to vector<48x1xf32>
    %512 = math.tanh %511 : vector<48x1xf32>
    %513 = vector.extract_strided_slice %510 {offsets = [0, 1], sizes = [48, 1], strides = [1, 1]} : vector<48x2xf32> to vector<48x1xf32>
    %cst_239 = arith.constant 0.000000e+00 : f32
    %514 = vector.broadcast %cst_239 : f32 to vector<48x1xf32>
    %515 = arith.maximumf %513, %514 : vector<48x1xf32>
    %516 = tpu.concatenate %512, %515 in 1 : vector<48x1xf32>, vector<48x1xf32> -> vector<48x2xf32>
    %c0_240 = arith.constant 0 : index
    %c0_241 = arith.constant 0 : index
    %517 = vector.load %arg23[%c0_240, %c0_241] : memref<48x2xf32, #tpu.memory_space<vmem>>, vector<48x2xf32>
    tpu.vector_store %arg23[%c0_240, %c0_241], %516 {strides = array<i32>} : memref<48x2xf32, #tpu.memory_space<vmem>>, vector<48x2xf32>,
    %cst_242 = arith.constant 2.000000e+01 : f32
    %518 = vector.broadcast %cst_242 : f32 to vector<48x1xf32>
    %519 = arith.divf %512, %518 : vector<48x1xf32>
    %c0_243 = arith.constant 0 : index
    %c3_244 = arith.constant 3 : index
    %520 = vector.load %arg1[%c0_243, %c3_244] : memref<48x32xf32, #tpu.memory_space<vmem>>, vector<48x1xf32>
    %521 = arith.addf %519, %520 : vector<48x1xf32>
    %c0_245 = arith.constant 0 : index
    %c0_246 = arith.constant 0 : index
    %522 = vector.load %arg24[%c0_245, %c0_246] : memref<48x1xf32, #tpu.memory_space<vmem>>, vector<48x1xf32>
    tpu.vector_store %arg24[%c0_245, %c0_246], %521 {strides = array<i32>} : memref<48x1xf32, #tpu.memory_space<vmem>>, vector<48x1xf32>,
    return
  }
}

</mosaic_0001>

<llo_original>
// kernel: grainnn_forward.1
$region0: #{grainnn_forward.1}
  #allocation0 [shape = 'u32[]', space=smem, size = 0x4, offset = 0x4, fixed_abs, tag = 'smem constant byte address 0x4 - core index']
  #allocation1 [shape = 'u32[144,128]{1,0:T(1,128)}', space=vmem, size = 0x12000, scoped, tag = 'internal scratch']
  %s0 = inlined_call_operand.vmem [shape: f32[64,32], index: 0, kind: input, shape index: {}]
  %s1 = inlined_call_operand.vmem [shape: f32[48,32], index: 1, kind: input, shape index: {}]
  %s2 = inlined_call_operand.hbm [shape: f32[64,64], index: 2, kind: input, shape index: {}]
  %s3 = inlined_call_operand.vmem [shape: f32[64,48], index: 3, kind: input, shape index: {}]
  %s4 = inlined_call_operand.hbm [shape: f32[48,64], index: 4, kind: input, shape index: {}]
  %s5 = inlined_call_operand.vmem [shape: f32[4,32,128], index: 5, kind: input, shape index: {}]
  %s6 = inlined_call_operand.vmem [shape: f32[4,32,128], index: 6, kind: input, shape index: {}]
  %s7 = inlined_call_operand.vmem [shape: f32[4,32,128], index: 7, kind: input, shape index: {}]
  %s8 = inlined_call_operand.hbm [shape: f32[4,32,128], index: 8, kind: input, shape index: {}]
  %s9 = inlined_call_operand.hbm [shape: f32[4,32,128], index: 9, kind: input, shape index: {}]
  %s10 = inlined_call_operand.vmem [shape: f32[4,1,128], index: 10, kind: input, shape index: {}]
  %s11 = inlined_call_operand.vmem [shape: f32[4,1,128], index: 11, kind: input, shape index: {}]
  %s12 = inlined_call_operand.hbm [shape: f32[4,32,128], index: 12, kind: input, shape index: {}]
  %s13 = inlined_call_operand.hbm [shape: f32[4,32,128], index: 13, kind: input, shape index: {}]
  %s14 = inlined_call_operand.vmem [shape: f32[4,3,32], index: 14, kind: input, shape index: {}]
  %s15 = inlined_call_operand.vmem [shape: f32[4,3,32], index: 15, kind: input, shape index: {}]
  %s16 = inlined_call_operand.vmem [shape: f32[4,1,128], index: 16, kind: input, shape index: {}]
  %s17 = inlined_call_operand.vmem [shape: f32[4,1,128], index: 17, kind: input, shape index: {}]
  %s18 = inlined_call_operand.vmem [shape: f32[32,2], index: 18, kind: input, shape index: {}]
  %s19 = inlined_call_operand.vmem [shape: f32[1,2], index: 19, kind: input, shape index: {}]
  %s20 = inlined_call_operand.vmem [shape: f32[32,2], index: 20, kind: input, shape index: {}]
  %s21 = inlined_call_operand.vmem [shape: f32[1,2], index: 21, kind: input, shape index: {}]
  %s22 = inlined_call_operand.vmem [shape: f32[64,2], index: 22, kind: output, shape index: {0}]
  %s23 = inlined_call_operand.vmem [shape: f32[48,2], index: 23, kind: output, shape index: {1}]
  %s24 = inlined_call_operand.vmem [shape: f32[48,1], index: 24, kind: output, shape index: {2}]
  %25 = xla_tuple %s22, %s23, %s24
  %s26 = sld [smem:[#allocation0]]
  $region138: #{grainnn_forward.1} parent=0
    _
  %s28 = ssub.s32 1, %s26
  %s29 = scalar_select 0, %s28, %s26
  $region1: #{grainnn_forward.1} parent=0
    #allocation2 [shape = 'u8[32768]{0}', space=vmem, size = 0x8000, scoped, tag = 'input window, operand 2, single buffered']
    #allocation3 [shape = 's32[1]{0}', space=sflag, size = 0x4, scoped, tag = 'scoped memory for grainnn_forward.1']
    #allocation4 [shape = 'u8[24576]{0}', space=vmem, size = 0x6000, scoped, tag = 'input window, operand 4, single buffered']
    #allocation5 [shape = 's32[1]{0}', space=sflag, size = 0x4, scoped, tag = 'scoped memory for grainnn_forward.1']
    #allocation6 [shape = 'u8[65536]{0}', space=vmem, size = 0x10000, scoped, tag = 'input window, operand 8, single buffered']
    #allocation7 [shape = 'u8[65536]{0}', space=vmem, size = 0x10000, scoped, tag = 'input window, operand 9, single buffered']
    #allocation8 [shape = 's32[1]{0}', space=sflag, size = 0x4, scoped, tag = 'scoped memory for grainnn_forward.1']
    #allocation9 [shape = 'u8[65536]{0}', space=vmem, size = 0x10000, scoped, tag = 'input window, operand 12, single buffered']
    #allocation10 [shape = 'u8[65536]{0}', space=vmem, size = 0x10000, scoped, tag = 'input window, operand 13, single buffered']
    #allocation11 [shape = 's32[1]{0}', space=sflag, size = 0x4, scoped, tag = 'scoped memory for grainnn_forward.1']
    %30 = vsyncpa [#allocation3], 0
    %31 = vsyncpa [#allocation5], 0
    %32 = vsyncpa [#allocation8], 0
    %33 = vsyncpa [#allocation11], 0
    // Predicated region
    $region2: #{grainnn_forward.1} parent=1 // pred_check
      _
    $region3: #{grainnn_forward.1} parent=1 // pred_check_branch
      %35 = sbr.rel (0) target = $region5
    $region4: #{grainnn_forward.1} parent=1 // pred_region
      _
    $region5: #{grainnn_forward.1} parent=1 // pred_fallthru
      _
    // Predicated region
    $region6: #{grainnn_forward.1} parent=1 // pred_check
      _
    $region7: #{grainnn_forward.1} parent=1 // pred_check_branch
      %37 = sbr.rel (0) target = $region9
    $region8: #{grainnn_forward.1} parent=1 // pred_region
      _
    $region9: #{grainnn_forward.1} parent=1 // pred_fallthru
      _
    // Predicated region
    $region10: #{grainnn_forward.1} parent=1 // pred_check
      _
    $region11: #{grainnn_forward.1} parent=1 // pred_check_branch
      %39 = sbr.rel (0) target = $region13
    $region12: #{grainnn_forward.1} parent=1 // pred_region
      %s41 = ssub.s32 1024, 1024
      %42 = vsyncadd [#allocation3], %s41
      %s43 = sshll.u32 [#allocation2], 4
      %s44 = int_to_ptr.vmem [resolvable:$true] %s43
      %49 = dma.hbm_to_vmem [thread:$0]  %s2, 1024, %s44, [#allocation3], 128, 128, 8
    $region13: #{grainnn_forward.1} parent=1 // pred_fallthru
      _
    // Predicated region
    $region14: #{grainnn_forward.1} parent=1 // pred_check
      _
    $region15: #{grainnn_forward.1} parent=1 // pred_check_branch
      %51 = sbr.rel (0) target = $region17
    $region16: #{grainnn_forward.1} parent=1 // pred_region
      _
    $region17: #{grainnn_forward.1} parent=1 // pred_fallthru
      _
    // Predicated region
    $region18: #{grainnn_forward.1} parent=1 // pred_check
      _
    $region19: #{grainnn_forward.1} parent=1 // pred_check_branch
      %53 = sbr.rel (0) target = $region21
    $region20: #{grainnn_forward.1} parent=1 // pred_region
      %s55 = ssub.s32 768, 768
      %56 = vsyncadd [#allocation5], %s55
      %s57 = sshll.u32 [#allocation4], 4
      %s58 = int_to_ptr.vmem [resolvable:$true] %s57
      %63 = dma.hbm_to_vmem [thread:$0]  %s4, 768, %s58, [#allocation5], 128, 128, 8
    $region21: #{grainnn_forward.1} parent=1 // pred_fallthru
      _
    // Predicated region
    $region22: #{grainnn_forward.1} parent=1 // pred_check
      _
    $region23: #{grainnn_forward.1} parent=1 // pred_check_branch
      %65 = sbr.rel (0) target = $region25
    $region24: #{grainnn_forward.1} parent=1 // pred_region
      _
    $region25: #{grainnn_forward.1} parent=1 // pred_fallthru
      _
    // Predicated region
    $region26: #{grainnn_forward.1} parent=1 // pred_check
      _
    $region27: #{grainnn_forward.1} parent=1 // pred_check_branch
      %67 = sbr.rel (0) target = $region29
    $region28: #{grainnn_forward.1} parent=1 // pred_region
      _
    $region29: #{grainnn_forward.1} parent=1 // pred_fallthru
      _
    // Predicated region
    $region30: #{grainnn_forward.1} parent=1 // pred_check
      _
    $region31: #{grainnn_forward.1} parent=1 // pred_check_branch
      %69 = sbr.rel (0) target = $region33
    $region32: #{grainnn_forward.1} parent=1 // pred_region
      _
    $region33: #{grainnn_forward.1} parent=1 // pred_fallthru
      _
    // Predicated region
    $region34: #{grainnn_forward.1} parent=1 // pred_check
      _
    $region35: #{grainnn_forward.1} parent=1 // pred_check_branch
      %71 = sbr.rel (0) target = $region37
    $region36: #{grainnn_forward.1} parent=1 // pred_region
      %s73 = ssub.s32 2048, 2048
      %74 = vsyncadd [#allocation5], %s73
      %s75 = sshll.u32 [#allocation6], 4
      %s76 = int_to_ptr.vmem [resolvable:$true] %s75
      %81 = dma.hbm_to_vmem [thread:$0]  %s8, 2048, %s76, [#allocation5], 128, 128, 8
    $region37: #{grainnn_forward.1} parent=1 // pred_fallthru
      _
    // Predicated region
    $region38: #{grainnn_forward.1} parent=1 // pred_check
      _
    $region39: #{grainnn_forward.1} parent=1 // pred_check_branch
      %83 = sbr.rel (0) target = $region41
    $region40: #{grainnn_forward.1} parent=1 // pred_region
      %s85 = ssub.s32 2048, 2048
      %86 = vsyncadd [#allocation8], %s85
      %s87 = sshll.u32 [#allocation7], 4
      %s88 = int_to_ptr.vmem [resolvable:$true] %s87
      %93 = dma.hbm_to_vmem [thread:$0]  %s9, 2048, %s88, [#allocation8], 128, 128, 8
    $region41: #{grainnn_forward.1} parent=1 // pred_fallthru
      _
    // Predicated region
    $region42: #{grainnn_forward.1} parent=1 // pred_check
      _
    $region43: #{grainnn_forward.1} parent=1 // pred_check_branch
      %95 = sbr.rel (0) target = $region45
    $region44: #{grainnn_forward.1} parent=1 // pred_region
      _
    $region45: #{grainnn_forward.1} parent=1 // pred_fallthru
      _
    // Predicated region
    $region46: #{grainnn_forward.1} parent=1 // pred_check
      _
    $region47: #{grainnn_forward.1} parent=1 // pred_check_branch
      %97 = sbr.rel (0) target = $region49
    $region48: #{grainnn_forward.1} parent=1 // pred_region
      _
    $region49: #{grainnn_forward.1} parent=1 // pred_fallthru
      _
    // Predicated region
    $region50: #{grainnn_forward.1} parent=1 // pred_check
      _
    $region51: #{grainnn_forward.1} parent=1 // pred_check_branch
      %99 = sbr.rel (0) target = $region53
    $region52: #{grainnn_forward.1} parent=1 // pred_region
      %s101 = ssub.s32 2048, 2048
      %102 = vsyncadd [#allocation8], %s101
      %s103 = sshll.u32 [#allocation9], 4
      %s104 = int_to_ptr.vmem [resolvable:$true] %s103
      %109 = dma.hbm_to_vmem [thread:$0]  %s12, 2048, %s104, [#allocation8], 128, 128, 8
    $region53: #{grainnn_forward.1} parent=1 // pred_fallthru
      _
    // Predicated region
    $region54: #{grainnn_forward.1} parent=1 // pred_check
      _
    $region55: #{grainnn_forward.1} parent=1 // pred_check_branch
      %111 = sbr.rel (0) target = $region57
    $region56: #{grainnn_forward.1} parent=1 // pred_region
      %s113 = ssub.s32 2048, 2048
      %114 = vsyncadd [#allocation11], %s113
      %s115 = sshll.u32 [#allocation10], 4
      %s116 = int_to_ptr.vmem [resolvable:$true] %s115
      %121 = dma.hbm_to_vmem [thread:$0]  %s13, 2048, %s116, [#allocation11], 128, 128, 8
    $region57: #{grainnn_forward.1} parent=1 // pred_fallthru
      _
    // Predicated region
    $region58: #{grainnn_forward.1} parent=1 // pred_check
      _
    $region59: #{grainnn_forward.1} parent=1 // pred_check_branch
      %123 = sbr.rel (0) target = $region61
    $region60: #{grainnn_forward.1} parent=1 // pred_region
      _
    $region61: #{grainnn_forward.1} parent=1 // pred_fallthru
      _
    // Predicated region
    $region62: #{grainnn_forward.1} parent=1 // pred_check
      _
    $region63: #{grainnn_forward.1} parent=1 // pred_check_branch
      %125 = sbr.rel (0) target = $region65
    $region64: #{grainnn_forward.1} parent=1 // pred_region
      _
    $region65: #{grainnn_forward.1} parent=1 // pred_fallthru
      _
    // Predicated region
    $region66: #{grainnn_forward.1} parent=1 // pred_check
      _
    $region67: #{grainnn_forward.1} parent=1 // pred_check_branch
      %127 = sbr.rel (0) target = $region69
    $region68: #{grainnn_forward.1} parent=1 // pred_region
      _
    $region69: #{grainnn_forward.1} parent=1 // pred_fallthru
      _
    // Predicated region
    $region70: #{grainnn_forward.1} parent=1 // pred_check
      _
    $region71: #{grainnn_forward.1} parent=1 // pred_check_branch
      %129 = sbr.rel (0) target = $region73
    $region72: #{grainnn_forward.1} parent=1 // pred_region
      _
    $region73: #{grainnn_forward.1} parent=1 // pred_fallthru
      _
    // Predicated region
    $region74: #{grainnn_forward.1} parent=1 // pred_check
      _
    $region75: #{grainnn_forward.1} parent=1 // pred_check_branch
      %131 = sbr.rel (0) target = $region77
    $region76: #{grainnn_forward.1} parent=1 // pred_region
      _
    $region77: #{grainnn_forward.1} parent=1 // pred_fallthru
      _
    // Predicated region
    $region78: #{grainnn_forward.1} parent=1 // pred_check
      _
    $region79: #{grainnn_forward.1} parent=1 // pred_check_branch
      %133 = sbr.rel (0) target = $region81
    $region80: #{grainnn_forward.1} parent=1 // pred_region
      _
    $region81: #{grainnn_forward.1} parent=1 // pred_fallthru
      _
    // Predicated region
    $region82: #{grainnn_forward.1} parent=1 // pred_check
      _
    $region83: #{grainnn_forward.1} parent=1 // pred_check_branch
      %135 = sbr.rel (0) target = $region85
    $region84: #{grainnn_forward.1} parent=1 // pred_region
      _
    $region85: #{grainnn_forward.1} parent=1 // pred_fallthru
      _
    // Predicated region
    $region86: #{grainnn_forward.1} parent=1 // pred_check
      _
    $region87: #{grainnn_forward.1} parent=1 // pred_check_branch
      %137 = sbr.rel (0) target = $region89
    $region88: #{grainnn_forward.1} parent=1 // pred_region
      _
    $region89: #{grainnn_forward.1} parent=1 // pred_fallthru
      _
    // Predicated region
    $region90: #{grainnn_forward.1} parent=1 // pred_check
      _
    $region91: #{grainnn_forward.1} parent=1 // pred_check_branch
      %139 = sbr.rel (0) target = $region93
    $region92: #{grainnn_forward.1} parent=1 // pred_region
      %140 = dma.done [#allocation3], 1024
    $region93: #{grainnn_forward.1} parent=1 // pred_fallthru
      _
    // Predicated region
    $region94: #{grainnn_forward.1} parent=1 // pred_check
      _
    $region95: #{grainnn_forward.1} parent=1 // pred_check_branch
      %142 = sbr.rel (0) target = $region97
    $region96: #{grainnn_forward.1} parent=1 // pred_region
      %143 = dma.done [#allocation5], 768
    $region97: #{grainnn_forward.1} parent=1 // pred_fallthru
      _
    // Predicated region
    $region98: #{grainnn_forward.1} parent=1 // pred_check
      _
    $region99: #{grainnn_forward.1} parent=1 // pred_check_branch
      %145 = sbr.rel (0) target = $region101
    $region100: #{grainnn_forward.1} parent=1 // pred_region
      %146 = dma.done [#allocation5], 2048
    $region101: #{grainnn_forward.1} parent=1 // pred_fallthru
      _
    // Predicated region
    $region102: #{grainnn_forward.1} parent=1 // pred_check
      _
    $region103: #{grainnn_forward.1} parent=1 // pred_check_branch
      %148 = sbr.rel (0) target = $region105
    $region104: #{grainnn_forward.1} parent=1 // pred_region
      %149 = dma.done [#allocation8], 2048
    $region105: #{grainnn_forward.1} parent=1 // pred_fallthru
      _
    // Predicated region
    $region106: #{grainnn_forward.1} parent=1 // pred_check
      _
    $region107: #{grainnn_forward.1} parent=1 // pred_check_branch
      %151 = sbr.rel (0) target = $region109
    $region108: #{grainnn_forward.1} parent=1 // pred_region
      %152 = dma.done [#allocation8], 2048
    $region109: #{grainnn_forward.1} parent=1 // pred_fallthru
      _
    // Predicated region
    $region110: #{grainnn_forward.1} parent=1 // pred_check
      _
    $region111: #{grainnn_forward.1} parent=1 // pred_check_branch
      %154 = sbr.rel (0) target = $region113
    $region112: #{grainnn_forward.1} parent=1 // pred_region
      %155 = dma.done [#allocation11], 2048
    $region113: #{grainnn_forward.1} parent=1 // pred_fallthru
      _
    %v156 = vld [vmem:[%s0] sm:$0xff]
    %v157 = vld [vmem:[%s0 + $0x8] sm:$0xff]
    %v158 = vld [vmem:[%s0 + $0x10] sm:$0xff]
    %v159 = vld [vmem:[%s0 + $0x18] sm:$0xff]
    %v160 = vld [vmem:[%s0 + $0x20] sm:$0xff]
    %v161 = vld [vmem:[%s0 + $0x28] sm:$0xff]
    %v162 = vld [vmem:[%s0 + $0x30] sm:$0xff]
    %v163 = vld [vmem:[%s0 + $0x38] sm:$0xff]
    %v164 = vld [vmem:[%s1] sm:$0xff]
    %v165 = vld [vmem:[%s1 + $0x8] sm:$0xff]
    %v166 = vld [vmem:[%s1 + $0x10] sm:$0xff]
    %v167 = vld [vmem:[%s1 + $0x18] sm:$0xff]
    %v168 = vld [vmem:[%s1 + $0x20] sm:$0xff]
    %v169 = vld [vmem:[%s1 + $0x28] sm:$0xff]
    %v170 = vld [vmem:[#allocation2] sm:$0xff]
    %v171 = vld [vmem:[#allocation2 + $0x8] sm:$0xff]
    %v172 = vld [vmem:[#allocation2 + $0x10] sm:$0xff]
    %v173 = vld [vmem:[#allocation2 + $0x18] sm:$0xff]
    %v174 = vld [vmem:[#allocation2 + $0x20] sm:$0xff]
    %v175 = vld [vmem:[#allocation2 + $0x28] sm:$0xff]
    %v176 = vld [vmem:[#allocation2 + $0x30] sm:$0xff]
    %v177 = vld [vmem:[#allocation2 + $0x38] sm:$0xff]
    %v178 = vld [vmem:[%s3] sm:$0xff]
    %v179 = vld [vmem:[%s3 + $0x8] sm:$0xff]
    %v180 = vld [vmem:[%s3 + $0x10] sm:$0xff]
    %v181 = vld [vmem:[%s3 + $0x18] sm:$0xff]
    %v182 = vld [vmem:[%s3 + $0x20] sm:$0xff]
    %v183 = vld [vmem:[%s3 + $0x28] sm:$0xff]
    %v184 = vld [vmem:[%s3 + $0x30] sm:$0xff]
    %v185 = vld [vmem:[%s3 + $0x38] sm:$0xff]
    %v186 = vld [vmem:[#allocation4] sm:$0xff]
    %v187 = vld [vmem:[#allocation4 + $0x8] sm:$0xff]
    %v188 = vld [vmem:[#allocation4 + $0x10] sm:$0xff]
    %v189 = vld [vmem:[#allocation4 + $0x18] sm:$0xff]
    %v190 = vld [vmem:[#allocation4 + $0x20] sm:$0xff]
    %v191 = vld [vmem:[#allocation4 + $0x28] sm:$0xff]
    %v192 = vld [vmem:[%s5] sm:$0xff]
    %v193 = vld [vmem:[%s5 + $0x8] sm:$0xff]
    %v194 = vld [vmem:[%s5 + $0x10] sm:$0xff]
    %v195 = vld [vmem:[%s5 + $0x18] sm:$0xff]
    %vm196 = vcmask 261120
    %v198 = vsel %vm196, %v156, 0
    %v201 = vsel %vm196, %v157, 0
    %v204 = vsel %vm196, %v158, 0
    %v207 = vsel %vm196, %v159, 0
    %v210 = vsel %vm196, %v160, 0
    %v213 = vsel %vm196, %v161, 0
    %v216 = vsel %vm196, %v162, 0
    %v219 = vsel %vm196, %v163, 0
    %221 = vmatprep.subr.mxu0 0.0
    %222 = vmatpush1.msra.mxu0 %v192
    %223 = vmatprep.subr.mxu0 0.0
    %224 = vmatpush1.msra.mxu0 %v193
    %225 = vmatprep.subr.mxu0 0.0
    %226 = vmatpush1.msra.mxu0 %v194
    %227 = vmatprep.subr.mxu0 0.0
    %228 = vmatpush1.msra.mxu0 %v195
    %229 = vmatprep.subr.mxu0 0.0
    %230 = vmatpush1.msra.mxu0 0.0
    %231 = vmatprep.subr.mxu0 0.0
    %232 = vmatpush1.msra.mxu0 0.0
    %233 = vmatprep.subr.mxu0 0.0
    %234 = vmatpush1.msra.mxu0 0.0
    %235 = vmatprep.subr.mxu0 0.0
    %236 = vmatpush1.msra.mxu0 0.0
    %237 = vmatprep.subr.mxu0 0.0
    %238 = vmatpush1.msra.mxu0 0.0
    %239 = vmatprep.subr.mxu0 0.0
    %240 = vmatpush1.msra.mxu0 0.0
    %241 = vmatprep.subr.mxu0 0.0
    %242 = vmatpush1.msra.mxu0 0.0
    %243 = vmatprep.subr.mxu0 0.0
    %244 = vmatpush1.msra.mxu0 0.0
    %245 = vmatprep.subr.mxu0 0.0
    %246 = vmatpush1.msra.mxu0 0.0
    %247 = vmatprep.subr.mxu0 0.0
    %248 = vmatpush1.msra.mxu0 0.0
    %249 = vmatprep.subr.mxu0 0.0
    %250 = vmatpush1.msra.mxu0 0.0
    %251 = vmatprep.subr.mxu0 0.0
    %252 = vmatpush1.msra.mxu0 0.0
    %253 = vmatprep.subr.mxu0 0.0
    %254 = vmatpush1.msra.mxu0 0.0
    %255 = vmatprep.subr.mxu0 0.0
    %256 = vmatpush1.msra.mxu0 0.0
    %257 = vmatprep.subr.mxu0 0.0
    %258 = vmatpush1.msra.mxu0 0.0
    %259 = vmatprep.subr.mxu0 0.0
    %260 = vmatpush1.msra.mxu0 0.0
    %261 = vmatprep.subr.mxu0 0.0
    %262 = vmatpush1.msra.mxu0 0.0
    %263 = vmatprep.subr.mxu0 0.0
    %264 = vmatpush1.msra.mxu0 0.0
    %265 = vmatprep.subr.mxu0 0.0
    %266 = vmatpush1.msra.mxu0 0.0
    %267 = vmatprep.subr.mxu0 0.0
    %268 = vmatpush1.msra.mxu0 0.0
    %269 = vmatprep.subr.mxu0 0.0
    %270 = vmatpush1.msra.mxu0 0.0
    %271 = vmatprep.subr.mxu0 0.0
    %272 = vmatpush1.msra.mxu0 0.0
    %273 = vmatprep.subr.mxu0 0.0
    %274 = vmatpush1.msra.mxu0 0.0
    %275 = vmatprep.subr.mxu0 0.0
    %276 = vmatpush1.msra.mxu0 0.0
    %277 = vmatprep.subr.mxu0 0.0
    %278 = vmatpush1.msra.mxu0 0.0
    %279 = vmatprep.subr.mxu0 0.0
    %280 = vmatpush1.msra.mxu0 0.0
    %281 = vmatprep.subr.mxu0 0.0
    %282 = vmatpush1.msra.mxu0 0.0
    %283 = vmatprep.subr.mxu0 0.0
    %284 = vmatpush1.msra.mxu0 0.0
    %285 = vmatprep.mubr.f32.mxu0 0.0
    %286 = vmatmul.mubr.f32.gmra.mrb[0].mxu0 %v198
    %v287 = vpop.f32.mrb[0].mxu0
    %v288 = vadd.f32 0.0, %v287
    %v289 = vpop.f32.mrb[0].mxu0
    %290 = vmatprep.mubr.f32.mxu0 0.0
    %291 = vmatmul.mubr.f32.gmra.mrb[0].mxu0 %v201
    %v292 = vpop.f32.mrb[0].mxu0
    %v293 = vadd.f32 0.0, %v292
    %v294 = vpop.f32.mrb[0].mxu0
    %295 = vmatprep.mubr.f32.mxu0 0.0
    %296 = vmatmul.mubr.f32.gmra.mrb[0].mxu0 %v204
    %v297 = vpop.f32.mrb[0].mxu0
    %v298 = vadd.f32 0.0, %v297
    %v299 = vpop.f32.mrb[0].mxu0
    %300 = vmatprep.mubr.f32.mxu0 0.0
    %301 = vmatmul.mubr.f32.gmra.mrb[0].mxu0 %v207
    %v302 = vpop.f32.mrb[0].mxu0
    %v303 = vadd.f32 0.0, %v302
    %v304 = vpop.f32.mrb[0].mxu0
    %305 = vmatprep.mubr.f32.mxu0 0.0
    %306 = vmatmul.mubr.f32.gmra.mrb[0].mxu0 %v210
    %v307 = vpop.f32.mrb[0].mxu0
    %v308 = vadd.f32 0.0, %v307
    %v309 = vpop.f32.mrb[0].mxu0
    %310 = vmatprep.mubr.f32.mxu0 0.0
    %311 = vmatmul.mubr.f32.gmra.mrb[0].mxu0 %v213
    %v312 = vpop.f32.mrb[0].mxu0
    %v313 = vadd.f32 0.0, %v312
    %v314 = vpop.f32.mrb[0].mxu0
    %315 = vmatprep.mubr.f32.mxu0 0.0
    %316 = vmatmul.mubr.f32.gmra.mrb[0].mxu0 %v216
    %v317 = vpop.f32.mrb[0].mxu0
    %v318 = vadd.f32 0.0, %v317
    %v319 = vpop.f32.mrb[0].mxu0
    %320 = vmatprep.mubr.f32.mxu0 0.0
    %321 = vmatmul.mubr.f32.gmra.mrb[0].mxu0 %v219
    %v322 = vpop.f32.mrb[0].mxu0
    %v323 = vadd.f32 0.0, %v322
    %v324 = vpop.f32.mrb[0].mxu0
    %325 = vdwg.mxu0
    %v326 = vld [vmem:[%s6] sm:$0xff]
    %v327 = vld [vmem:[%s6 + $0x8] sm:$0xff]
    %v328 = vld [vmem:[%s6 + $0x10] sm:$0xff]
    %v329 = vld [vmem:[%s6 + $0x18] sm:$0xff]
    %v331 = vsel %vm196, %v164, 0
    %v334 = vsel %vm196, %v165, 0
    %v337 = vsel %vm196, %v166, 0
    %v340 = vsel %vm196, %v167, 0
    %v343 = vsel %vm196, %v168, 0
    %v346 = vsel %vm196, %v169, 0
    %348 = vmatprep.subr.mxu0 0.0
    %349 = vmatpush1.msra.mxu0 %v326
    %350 = vmatprep.subr.mxu0 0.0
    %351 = vmatpush1.msra.mxu0 %v327
    %352 = vmatprep.subr.mxu0 0.0
    %353 = vmatpush1.msra.mxu0 %v328
    %354 = vmatprep.subr.mxu0 0.0
    %355 = vmatpush1.msra.mxu0 %v329
    %356 = vmatprep.subr.mxu0 0.0
    %357 = vmatpush1.msra.mxu0 0.0
    %358 = vmatprep.subr.mxu0 0.0
    %359 = vmatpush1.msra.mxu0 0.0
    %360 = vmatprep.subr.mxu0 0.0
    %361 = vmatpush1.msra.mxu0 0.0
    %362 = vmatprep.subr.mxu0 0.0
    %363 = vmatpush1.msra.mxu0 0.0
    %364 = vmatprep.subr.mxu0 0.0
    %365 = vmatpush1.msra.mxu0 0.0
    %366 = vmatprep.subr.mxu0 0.0
    %367 = vmatpush1.msra.mxu0 0.0
    %368 = vmatprep.subr.mxu0 0.0
    %369 = vmatpush1.msra.mxu0 0.0
    %370 = vmatprep.subr.mxu0 0.0
    %371 = vmatpush1.msra.mxu0 0.0
    %372 = vmatprep.subr.mxu0 0.0
    %373 = vmatpush1.msra.mxu0 0.0
    %374 = vmatprep.subr.mxu0 0.0
    %375 = vmatpush1.msra.mxu0 0.0
    %376 = vmatprep.subr.mxu0 0.0
    %377 = vmatpush1.msra.mxu0 0.0
    %378 = vmatprep.subr.mxu0 0.0
    %379 = vmatpush1.msra.mxu0 0.0
    %380 = vmatprep.subr.mxu0 0.0
    %381 = vmatpush1.msra.mxu0 0.0
    %382 = vmatprep.subr.mxu0 0.0
    %383 = vmatpush1.msra.mxu0 0.0
    %384 = vmatprep.subr.mxu0 0.0
    %385 = vmatpush1.msra.mxu0 0.0
    %386 = vmatprep.subr.mxu0 0.0
    %387 = vmatpush1.msra.mxu0 0.0
    %388 = vmatprep.subr.mxu0 0.0
    %389 = vmatpush1.msra.mxu0 0.0
    %390 = vmatprep.subr.mxu0 0.0
    %391 = vmatpush1.msra.mxu0 0.0
    %392 = vmatprep.subr.mxu0 0.0
    %393 = vmatpush1.msra.mxu0 0.0
    %394 = vmatprep.subr.mxu0 0.0
    %395 = vmatpush1.msra.mxu0 0.0
    %396 = vmatprep.subr.mxu0 0.0
    %397 = vmatpush1.msra.mxu0 0.0
    %398 = vmatprep.subr.mxu0 0.0
    %399 = vmatpush1.msra.mxu0 0.0
    %400 = vmatprep.subr.mxu0 0.0
    %401 = vmatpush1.msra.mxu0 0.0
    %402 = vmatprep.subr.mxu0 0.0
    %403 = vmatpush1.msra.mxu0 0.0
    %404 = vmatprep.subr.mxu0 0.0
    %405 = vmatpush1.msra.mxu0 0.0
    %406 = vmatprep.subr.mxu0 0.0
    %407 = vmatpush1.msra.mxu0 0.0
    %408 = vmatprep.subr.mxu0 0.0
    %409 = vmatpush1.msra.mxu0 0.0
    %410 = vmatprep.subr.mxu0 0.0
    %411 = vmatpush1.msra.mxu0 0.0
    %412 = vmatprep.mubr.f32.mxu0 0.0
    %413 = vmatmul.mubr.f32.gmra.mrb[0].mxu0 %v331
    %v414 = vpop.f32.mrb[0].mxu0
    %v415 = vadd.f32 0.0, %v414
    %v416 = vpop.f32.mrb[0].mxu0
    %417 = vmatprep.mubr.f32.mxu0 0.0
    %418 = vmatmul.mubr.f32.gmra.mrb[0].mxu0 %v334
    %v419 = vpop.f32.mrb[0].mxu0
    %v420 = vadd.f32 0.0, %v419
    %v421 = vpop.f32.mrb[0].mxu0
    %422 = vmatprep.mubr.f32.mxu0 0.0
    %423 = vmatmul.mubr.f32.gmra.mrb[0].mxu0 %v337
    %v424 = vpop.f32.mrb[0].mxu0
    %v425 = vadd.f32 0.0, %v424
    %v426 = vpop.f32.mrb[0].mxu0
    %427 = vmatprep.mubr.f32.mxu0 0.0
    %428 = vmatmul.mubr.f32.gmra.mrb[0].mxu0 %v340
    %v429 = vpop.f32.mrb[0].mxu0
    %v430 = vadd.f32 0.0, %v429
    %v431 = vpop.f32.mrb[0].mxu0
    %432 = vmatprep.mubr.f32.mxu0 0.0
    %433 = vmatmul.mubr.f32.gmra.mrb[0].mxu0 %v343
    %v434 = vpop.f32.mrb[0].mxu0
    %v435 = vadd.f32 0.0, %v434
    %v436 = vpop.f32.mrb[0].mxu0
    %437 = vmatprep.mubr.f32.mxu0 0.0
    %438 = vmatmul.mubr.f32.gmra.mrb[0].mxu0 %v346
    %v439 = vpop.f32.mrb[0].mxu0
    %v440 = vadd.f32 0.0, %v439
    %v441 = vpop.f32.mrb[0].mxu0
    %442 = vdwg.mxu0
    %v443 = vld [vmem:[%s7] sm:$0xff]
    %v444 = vld [vmem:[%s7 + $0x8] sm:$0xff]
    %v445 = vld [vmem:[%s7 + $0x10] sm:$0xff]
    %v446 = vld [vmem:[%s7 + $0x18] sm:$0xff]
    %447 = vmatprep.subr.mxu0 0.0
    %448 = vmatpush1.msra.mxu0 %v443
    %449 = vmatprep.subr.mxu0 0.0
    %450 = vmatpush1.msra.mxu0 %v444
    %451 = vmatprep.subr.mxu0 0.0
    %452 = vmatpush1.msra.mxu0 %v445
    %453 = vmatprep.subr.mxu0 0.0
    %454 = vmatpush1.msra.mxu0 %v446
    %455 = vmatprep.subr.mxu0 0.0
    %456 = vmatpush1.msra.mxu0 0.0
    %457 = vmatprep.subr.mxu0 0.0
    %458 = vmatpush1.msra.mxu0 0.0
    %459 = vmatprep.subr.mxu0 0.0
    %460 = vmatpush1.msra.mxu0 0.0
    %461 = vmatprep.subr.mxu0 0.0
    %462 = vmatpush1.msra.mxu0 0.0
    %463 = vmatprep.subr.mxu0 0.0
    %464 = vmatpush1.msra.mxu0 0.0
    %465 = vmatprep.subr.mxu0 0.0
    %466 = vmatpush1.msra.mxu0 0.0
    %467 = vmatprep.subr.mxu0 0.0
    %468 = vmatpush1.msra.mxu0 0.0
    %469 = vmatprep.subr.mxu0 0.0
    %470 = vmatpush1.msra.mxu0 0.0
    %471 = vmatprep.subr.mxu0 0.0
    %472 = vmatpush1.msra.mxu0 0.0
    %473 = vmatprep.subr.mxu0 0.0
    %474 = vmatpush1.msra.mxu0 0.0
    %475 = vmatprep.subr.mxu0 0.0
    %476 = vmatpush1.msra.mxu0 0.0
    %477 = vmatprep.subr.mxu0 0.0
    %478 = vmatpush1.msra.mxu0 0.0
    %479 = vmatprep.subr.mxu0 0.0
    %480 = vmatpush1.msra.mxu0 0.0
    %481 = vmatprep.subr.mxu0 0.0
    %482 = vmatpush1.msra.mxu0 0.0
    %483 = vmatprep.subr.mxu0 0.0
    %484 = vmatpush1.msra.mxu0 0.0
    %485 = vmatprep.subr.mxu0 0.0
    %486 = vmatpush1.msra.mxu0 0.0
    %487 = vmatprep.subr.mxu0 0.0
    %488 = vmatpush1.msra.mxu0 0.0
    %489 = vmatprep.subr.mxu0 0.0
    %490 = vmatpush1.msra.mxu0 0.0
    %491 = vmatprep.subr.mxu0 0.0
    %492 = vmatpush1.msra.mxu0 0.0
    %493 = vmatprep.subr.mxu0 0.0
    %494 = vmatpush1.msra.mxu0 0.0
    %495 = vmatprep.subr.mxu0 0.0
    %496 = vmatpush1.msra.mxu0 0.0
    %497 = vmatprep.subr.mxu0 0.0
    %498 = vmatpush1.msra.mxu0 0.0
    %499 = vmatprep.subr.mxu0 0.0
    %500 = vmatpush1.msra.mxu0 0.0
    %501 = vmatprep.subr.mxu0 0.0
    %502 = vmatpush1.msra.mxu0 0.0
    %503 = vmatprep.subr.mxu0 0.0
    %504 = vmatpush1.msra.mxu0 0.0
    %505 = vmatprep.subr.mxu0 0.0
    %506 = vmatpush1.msra.mxu0 0.0
    %507 = vmatprep.subr.mxu0 0.0
    %508 = vmatpush1.msra.mxu0 0.0
    %509 = vmatprep.subr.mxu0 0.0
    %510 = vmatpush1.msra.mxu0 0.0
    %511 = vmatprep.mubr.f32.mxu0 0.0
    %512 = vmatmul.mubr.f32.gmra.mrb[0].mxu0 %v198
    %v513 = vpop.f32.mrb[0].mxu0
    %v514 = vadd.f32 0.0, %v513
    %v515 = vpop.f32.mrb[0].mxu0
    %516 = vmatprep.mubr.f32.mxu0 0.0
    %517 = vmatmul.mubr.f32.gmra.mrb[0].mxu0 %v201
    %v518 = vpop.f32.mrb[0].mxu0
    %v519 = vadd.f32 0.0, %v518
    %v520 = vpop.f32.mrb[0].mxu0
    %521 = vmatprep.mubr.f32.mxu0 0.0
    %522 = vmatmul.mubr.f32.gmra.mrb[0].mxu0 %v204
    %v523 = vpop.f32.mrb[0].mxu0
    %v524 = vadd.f32 0.0, %v523
    %v525 = vpop.f32.mrb[0].mxu0
    %526 = vmatprep.mubr.f32.mxu0 0.0
    %527 = vmatmul.mubr.f32.gmra.mrb[0].mxu0 %v207
    %v528 = vpop.f32.mrb[0].mxu0
    %v529 = vadd.f32 0.0, %v528
    %v530 = vpop.f32.mrb[0].mxu0
    %531 = vmatprep.mubr.f32.mxu0 0.0
    %532 = vmatmul.mubr.f32.gmra.mrb[0].mxu0 %v210
    %v533 = vpop.f32.mrb[0].mxu0
    %v534 = vadd.f32 0.0, %v533
    %v535 = vpop.f32.mrb[0].mxu0
    %536 = vmatprep.mubr.f32.mxu0 0.0
    %537 = vmatmul.mubr.f32.gmra.mrb[0].mxu0 %v213
    %v538 = vpop.f32.mrb[0].mxu0
    %v539 = vadd.f32 0.0, %v538
    %v540 = vpop.f32.mrb[0].mxu0
    %541 = vmatprep.mubr.f32.mxu0 0.0
    %542 = vmatmul.mubr.f32.gmra.mrb[0].mxu0 %v216
    %v543 = vpop.f32.mrb[0].mxu0
    %v544 = vadd.f32 0.0, %v543
    %v545 = vpop.f32.mrb[0].mxu0
    %546 = vmatprep.mubr.f32.mxu0 0.0
    %547 = vmatmul.mubr.f32.gmra.mrb[0].mxu0 %v219
    %v548 = vpop.f32.mrb[0].mxu0
    %v549 = vadd.f32 0.0, %v548
    %v550 = vpop.f32.mrb[0].mxu0
    %551 = vdwg.mxu0
    %vm552 = vcmask 392192
    %v554 = vsel %vm552, %v178, 0
    %v557 = vsel %vm552, %v179, 0
    %v560 = vsel %vm552, %v180, 0
    %v563 = vsel %vm552, %v181, 0
    %v566 = vsel %vm552, %v182, 0
    %v569 = vsel %vm552, %v183, 0
    %v572 = vsel %vm552, %v184, 0
    %v575 = vsel %vm552, %v185, 0
    %577 = vmatprep.subr.mxu0 0.0
    %578 = vmatpush1.msra.mxu0 %v415
    %579 = vmatprep.subr.mxu0 0.0
    %580 = vmatpush1.msra.mxu0 %v420
    %581 = vmatprep.subr.mxu0 0.0
    %582 = vmatpush1.msra.mxu0 %v425
    %583 = vmatprep.subr.mxu0 0.0
    %584 = vmatpush1.msra.mxu0 %v430
    %585 = vmatprep.subr.mxu0 0.0
    %586 = vmatpush1.msra.mxu0 %v435
    %587 = vmatprep.subr.mxu0 0.0
    %588 = vmatpush1.msra.mxu0 %v440
    %589 = vmatprep.subr.mxu0 0.0
    %590 = vmatpush1.msra.mxu0 0.0
    %591 = vmatprep.subr.mxu0 0.0
    %592 = vmatpush1.msra.mxu0 0.0
    %593 = vmatprep.subr.mxu0 0.0
    %594 = vmatpush1.msra.mxu0 0.0
    %595 = vmatprep.subr.mxu0 0.0
    %596 = vmatpush1.msra.mxu0 0.0
    %597 = vmatprep.subr.mxu0 0.0
    %598 = vmatpush1.msra.mxu0 0.0
    %599 = vmatprep.subr.mxu0 0.0
    %600 = vmatpush1.msra.mxu0 0.0
    %601 = vmatprep.subr.mxu0 0.0
    %602 = vmatpush1.msra.mxu0 0.0
    %603 = vmatprep.subr.mxu0 0.0
    %604 = vmatpush1.msra.mxu0 0.0
    %605 = vmatprep.subr.mxu0 0.0
    %606 = vmatpush1.msra.mxu0 0.0
    %607 = vmatprep.subr.mxu0 0.0
    %608 = vmatpush1.msra.mxu0 0.0
    %609 = vmatprep.subr.mxu0 0.0
    %610 = vmatpush1.msra.mxu0 0.0
    %611 = vmatprep.subr.mxu0 0.0
    %612 = vmatpush1.msra.mxu0 0.0
    %613 = vmatprep.subr.mxu0 0.0
    %614 = vmatpush1.msra.mxu0 0.0
    %615 = vmatprep.subr.mxu0 0.0
    %616 = vmatpush1.msra.mxu0 0.0
    %617 = vmatprep.subr.mxu0 0.0
    %618 = vmatpush1.msra.mxu0 0.0
    %619 = vmatprep.subr.mxu0 0.0
    %620 = vmatpush1.msra.mxu0 0.0
    %621 = vmatprep.subr.mxu0 0.0
    %622 = vmatpush1.msra.mxu0 0.0
    %623 = vmatprep.subr.mxu0 0.0
    %624 = vmatpush1.msra.mxu0 0.0
    %625 = vmatprep.subr.mxu0 0.0
    %626 = vmatpush1.msra.mxu0 0.0
    %627 = vmatprep.subr.mxu0 0.0
    %628 = vmatpush1.msra.mxu0 0.0
    %629 = vmatprep.subr.mxu0 0.0
    %630 = vmatpush1.msra.mxu0 0.0
    %631 = vmatprep.subr.mxu0 0.0
    %632 = vmatpush1.msra.mxu0 0.0
    %633 = vmatprep.subr.mxu0 0.0
    %634 = vmatpush1.msra.mxu0 0.0
    %635 = vmatprep.subr.mxu0 0.0
    %636 = vmatpush1.msra.mxu0 0.0
    %637 = vmatprep.subr.mxu0 0.0
    %638 = vmatpush1.msra.mxu0 0.0
    %639 = vmatprep.subr.mxu0 0.0
    %640 = vmatpush1.msra.mxu0 0.0
    %641 = vmatprep.mubr.f32.mxu0 0.0
    %642 = vmatmul.mubr.f32.gmra.mrb[0].mxu0 %v554
    %v643 = vpop.f32.mrb[0].mxu0
    %v644 = vadd.f32 0.0, %v643
    %v645 = vpop.f32.mrb[0].mxu0
    %646 = vmatprep.mubr.f32.mxu0 0.0
    %647 = vmatmul.mubr.f32.gmra.mrb[0].mxu0 %v557
    %v648 = vpop.f32.mrb[0].mxu0
    %v649 = vadd.f32 0.0, %v648
    %v650 = vpop.f32.mrb[0].mxu0
    %651 = vmatprep.mubr.f32.mxu0 0.0
    %652 = vmatmul.mubr.f32.gmra.mrb[0].mxu0 %v560
    %v653 = vpop.f32.mrb[0].mxu0
    %v654 = vadd.f32 0.0, %v653
    %v655 = vpop.f32.mrb[0].mxu0
    %656 = vmatprep.mubr.f32.mxu0 0.0
    %657 = vmatmul.mubr.f32.gmra.mrb[0].mxu0 %v563
    %v658 = vpop.f32.mrb[0].mxu0
    %v659 = vadd.f32 0.0, %v658
    %v660 = vpop.f32.mrb[0].mxu0
    %661 = vmatprep.mubr.f32.mxu0 0.0
    %662 = vmatmul.mubr.f32.gmra.mrb[0].mxu0 %v566
    %v663 = vpop.f32.mrb[0].mxu0
    %v664 = vadd.f32 0.0, %v663
    %v665 = vpop.f32.mrb[0].mxu0
    %666 = vmatprep.mubr.f32.mxu0 0.0
    %667 = vmatmul.mubr.f32.gmra.mrb[0].mxu0 %v569
    %v668 = vpop.f32.mrb[0].mxu0
    %v669 = vadd.f32 0.0, %v668
    %v670 = vpop.f32.mrb[0].mxu0
    %671 = vmatprep.mubr.f32.mxu0 0.0
    %672 = vmatmul.mubr.f32.gmra.mrb[0].mxu0 %v572
    %v673 = vpop.f32.mrb[0].mxu0
    %v674 = vadd.f32 0.0, %v673
    %v675 = vpop.f32.mrb[0].mxu0
    %676 = vmatprep.mubr.f32.mxu0 0.0
    %677 = vmatmul.mubr.f32.gmra.mrb[0].mxu0 %v575
    %v678 = vpop.f32.mrb[0].mxu0
    %v679 = vadd.f32 0.0, %v678
    %v680 = vpop.f32.mrb[0].mxu0
    %681 = vdwg.mxu0
    %vm682 = vcmask 523264
    %v684 = vsel %vm682, %v170, 0
    %v687 = vsel %vm682, %v171, 0
    %v690 = vsel %vm682, %v172, 0
    %v693 = vsel %vm682, %v173, 0
    %v696 = vsel %vm682, %v174, 0
    %v699 = vsel %vm682, %v175, 0
    %v702 = vsel %vm682, %v176, 0
    %v705 = vsel %vm682, %v177, 0
    %707 = vmatprep.subr.mxu0 0.0
    %708 = vmatpush1.msra.mxu0 %v288
    %709 = vmatprep.subr.mxu0 0.0
    %710 = vmatpush1.msra.mxu0 %v293
    %711 = vmatprep.subr.mxu0 0.0
    %712 = vmatpush1.msra.mxu0 %v298
    %713 = vmatprep.subr.mxu0 0.0
    %714 = vmatpush1.msra.mxu0 %v303
    %715 = vmatprep.subr.mxu0 0.0
    %716 = vmatpush1.msra.mxu0 %v308
    %717 = vmatprep.subr.mxu0 0.0
    %718 = vmatpush1.msra.mxu0 %v313
    %719 = vmatprep.subr.mxu0 0.0
    %720 = vmatpush1.msra.mxu0 %v318
    %721 = vmatprep.subr.mxu0 0.0
    %722 = vmatpush1.msra.mxu0 %v323
    %723 = vmatprep.subr.mxu0 0.0
    %724 = vmatpush1.msra.mxu0 0.0
    %725 = vmatprep.subr.mxu0 0.0
    %726 = vmatpush1.msra.mxu0 0.0
    %727 = vmatprep.subr.mxu0 0.0
    %728 = vmatpush1.msra.mxu0 0.0
    %729 = vmatprep.subr.mxu0 0.0
    %730 = vmatpush1.msra.mxu0 0.0
    %731 = vmatprep.subr.mxu0 0.0
    %732 = vmatpush1.msra.mxu0 0.0
    %733 = vmatprep.subr.mxu0 0.0
    %734 = vmatpush1.msra.mxu0 0.0
    %735 = vmatprep.subr.mxu0 0.0
    %736 = vmatpush1.msra.mxu0 0.0
    %737 = vmatprep.subr.mxu0 0.0
    %738 = vmatpush1.msra.mxu0 0.0
    %739 = vmatprep.subr.mxu0 0.0
    %740 = vmatpush1.msra.mxu0 0.0
    %741 = vmatprep.subr.mxu0 0.0
    %742 = vmatpush1.msra.mxu0 0.0
    %743 = vmatprep.subr.mxu0 0.0
    %744 = vmatpush1.msra.mxu0 0.0
    %745 = vmatprep.subr.mxu0 0.0
    %746 = vmatpush1.msra.mxu0 0.0
    %747 = vmatprep.subr.mxu0 0.0
    %748 = vmatpush1.msra.mxu0 0.0
    %749 = vmatprep.subr.mxu0 0.0
    %750 = vmatpush1.msra.mxu0 0.0
    %751 = vmatprep.subr.mxu0 0.0
    %752 = vmatpush1.msra.mxu0 0.0
    %753 = vmatprep.subr.mxu0 0.0
    %754 = vmatpush1.msra.mxu0 0.0
    %755 = vmatprep.subr.mxu0 0.0
    %756 = vmatpush1.msra.mxu0 0.0
    %757 = vmatprep.subr.mxu0 0.0
    %758 = vmatpush1.msra.mxu0 0.0
    %759 = vmatprep.subr.mxu0 0.0
    %760 = vmatpush1.msra.mxu0 0.0
    %761 = vmatprep.subr.mxu0 0.0
    %762 = vmatpush1.msra.mxu0 0.0
    %763 = vmatprep.subr.mxu0 0.0
    %764 = vmatpush1.msra.mxu0 0.0
    %765 = vmatprep.subr.mxu0 0.0
    %766 = vmatpush1.msra.mxu0 0.0
    %767 = vmatprep.subr.mxu0 0.0
    %768 = vmatpush1.msra.mxu0 0.0
    %769 = vmatprep.subr.mxu0 0.0
    %770 = vmatpush1.msra.mxu0 0.0
    %771 = vmatprep.mubr.f32.mxu0 0.0
    %772 = vmatmul.mubr.f32.gmra.mrb[0].mxu0 %v684
    %v773 = vpop.f32.mrb[0].mxu0
    %v774 = vadd.f32 %v644, %v773
    %v775 = vpop.f32.mrb[0].mxu0
    %776 = vmatprep.mubr.f32.mxu0 0.0
    %777 = vmatmul.mubr.f32.gmra.mrb[0].mxu0 %v687
    %v778 = vpop.f32.mrb[0].mxu0
    %v779 = vadd.f32 %v649, %v778
    %v780 = vpop.f32.mrb[0].mxu0
    %781 = vmatprep.mubr.f32.mxu0 0.0
    %782 = vmatmul.mubr.f32.gmra.mrb[0].mxu0 %v690
    %v783 = vpop.f32.mrb[0].mxu0
    %v784 = vadd.f32 %v654, %v783
    %v785 = vpop.f32.mrb[0].mxu0
    %786 = vmatprep.mubr.f32.mxu0 0.0
    %787 = vmatmul.mubr.f32.gmra.mrb[0].mxu0 %v693
    %v788 = vpop.f32.mrb[0].mxu0
    %v789 = vadd.f32 %v659, %v788
    %v790 = vpop.f32.mrb[0].mxu0
    %791 = vmatprep.mubr.f32.mxu0 0.0
    %792 = vmatmul.mubr.f32.gmra.mrb[0].mxu0 %v696
    %v793 = vpop.f32.mrb[0].mxu0
    %v794 = vadd.f32 %v664, %v793
    %v795 = vpop.f32.mrb[0].mxu0
    %796 = vmatprep.mubr.f32.mxu0 0.0
    %797 = vmatmul.mubr.f32.gmra.mrb[0].mxu0 %v699
    %v798 = vpop.f32.mrb[0].mxu0
    %v799 = vadd.f32 %v669, %v798
    %v800 = vpop.f32.mrb[0].mxu0
    %801 = vmatprep.mubr.f32.mxu0 0.0
    %802 = vmatmul.mubr.f32.gmra.mrb[0].mxu0 %v702
    %v803 = vpop.f32.mrb[0].mxu0
    %v804 = vadd.f32 %v674, %v803
    %v805 = vpop.f32.mrb[0].mxu0
    %806 = vmatprep.mubr.f32.mxu0 0.0
    %807 = vmatmul.mubr.f32.gmra.mrb[0].mxu0 %v705
    %v808 = vpop.f32.mrb[0].mxu0
    %v809 = vadd.f32 %v679, %v808
    %v810 = vpop.f32.mrb[0].mxu0
    %811 = vdwg.mxu0
    %v812 = vld [vmem:[#allocation6] sm:$0xff]
    %v813 = vld [vmem:[#allocation6 + $0x8] sm:$0xff]
    %v814 = vld [vmem:[#allocation6 + $0x10] sm:$0xff]
    %v815 = vld [vmem:[#allocation6 + $0x18] sm:$0xff]
    %816 = vmatprep.subr.mxu0 0.0
    %817 = vmatpush1.msra.mxu0 %v812
    %818 = vmatprep.subr.mxu0 0.0
    %819 = vmatpush1.msra.mxu0 %v813
    %820 = vmatprep.subr.mxu0 0.0
    %821 = vmatpush1.msra.mxu0 %v814
    %822 = vmatprep.subr.mxu0 0.0
    %823 = vmatpush1.msra.mxu0 %v815
    %824 = vmatprep.subr.mxu0 0.0
    %825 = vmatpush1.msra.mxu0 0.0
    %826 = vmatprep.subr.mxu0 0.0
    %827 = vmatpush1.msra.mxu0 0.0
    %828 = vmatprep.subr.mxu0 0.0
    %829 = vmatpush1.msra.mxu0 0.0
    %830 = vmatprep.subr.mxu0 0.0
    %831 = vmatpush1.msra.mxu0 0.0
    %832 = vmatprep.subr.mxu0 0.0
    %833 = vmatpush1.msra.mxu0 0.0
    %834 = vmatprep.subr.mxu0 0.0
    %835 = vmatpush1.msra.mxu0 0.0
    %836 = vmatprep.subr.mxu0 0.0
    %837 = vmatpush1.msra.mxu0 0.0
    %838 = vmatprep.subr.mxu0 0.0
    %839 = vmatpush1.msra.mxu0 0.0
    %840 = vmatprep.subr.mxu0 0.0
    %841 = vmatpush1.msra.mxu0 0.0
    %842 = vmatprep.subr.mxu0 0.0
    %843 = vmatpush1.msra.mxu0 0.0
    %844 = vmatprep.subr.mxu0 0.0
    %845 = vmatpush1.msra.mxu0 0.0
    %846 = vmatprep.subr.mxu0 0.0
    %847 = vmatpush1.msra.mxu0 0.0
    %848 = vmatprep.subr.mxu0 0.0
    %849 = vmatpush1.msra.mxu0 0.0
    %850 = vmatprep.subr.mxu0 0.0
    %851 = vmatpush1.msra.mxu0 0.0
    %852 = vmatprep.subr.mxu0 0.0
    %853 = vmatpush1.msra.mxu0 0.0
    %854 = vmatprep.subr.mxu0 0.0
    %855 = vmatpush1.msra.mxu0 0.0
    %856 = vmatprep.subr.mxu0 0.0
    %857 = vmatpush1.msra.mxu0 0.0
    %858 = vmatprep.subr.mxu0 0.0
    %859 = vmatpush1.msra.mxu0 0.0
    %860 = vmatprep.subr.mxu0 0.0
    %861 = vmatpush1.msra.mxu0 0.0
    %862 = vmatprep.subr.mxu0 0.0
    %863 = vmatpush1.msra.mxu0 0.0
    %864 = vmatprep.subr.mxu0 0.0
    %865 = vmatpush1.msra.mxu0 0.0
    %866 = vmatprep.subr.mxu0 0.0
    %867 = vmatpush1.msra.mxu0 0.0
    %868 = vmatprep.subr.mxu0 0.0
    %869 = vmatpush1.msra.mxu0 0.0
    %870 = vmatprep.subr.mxu0 0.0
    %871 = vmatpush1.msra.mxu0 0.0
    %872 = vmatprep.subr.mxu0 0.0
    %873 = vmatpush1.msra.mxu0 0.0
    %874 = vmatprep.subr.mxu0 0.0
    %875 = vmatpush1.msra.mxu0 0.0
    %876 = vmatprep.subr.mxu0 0.0
    %877 = vmatpush1.msra.mxu0 0.0
    %878 = vmatprep.subr.mxu0 0.0
    %879 = vmatpush1.msra.mxu0 0.0
    %880 = vmatprep.mubr.f32.mxu0 0.0
    %881 = vmatmul.mubr.f32.gmra.mrb[0].mxu0 %v198
    %v882 = vpop.f32.mrb[0].mxu0
    %v883 = vadd.f32 0.0, %v882
    %v884 = vpop.f32.mrb[0].mxu0
    %885 = vmatprep.mubr.f32.mxu0 0.0
    %886 = vmatmul.mubr.f32.gmra.mrb[0].mxu0 %v201
    %v887 = vpop.f32.mrb[0].mxu0
    %v888 = vadd.f32 0.0, %v887
    %v889 = vpop.f32.mrb[0].mxu0
    %890 = vmatprep.mubr.f32.mxu0 0.0
    %891 = vmatmul.mubr.f32.gmra.mrb[0].mxu0 %v204
    %v892 = vpop.f32.mrb[0].mxu0
    %v893 = vadd.f32 0.0, %v892
    %v894 = vpop.f32.mrb[0].mxu0
    %895 = vmatprep.mubr.f32.mxu0 0.0
    %896 = vmatmul.mubr.f32.gmra.mrb[0].mxu0 %v207
    %v897 = vpop.f32.mrb[0].mxu0
    %v898 = vadd.f32 0.0, %v897
    %v899 = vpop.f32.mrb[0].mxu0
    %900 = vmatprep.mubr.f32.mxu0 0.0
    %901 = vmatmul.mubr.f32.gmra.mrb[0].mxu0 %v210
    %v902 = vpop.f32.mrb[0].mxu0
    %v903 = vadd.f32 0.0, %v902
    %v904 = vpop.f32.mrb[0].mxu0
    %905 = vmatprep.mubr.f32.mxu0 0.0
    %906 = vmatmul.mubr.f32.gmra.mrb[0].mxu0 %v213
    %v907 = vpop.f32.mrb[0].mxu0
    %v908 = vadd.f32 0.0, %v907
    %v909 = vpop.f32.mrb[0].mxu0
    %910 = vmatprep.mubr.f32.mxu0 0.0
    %911 = vmatmul.mubr.f32.gmra.mrb[0].mxu0 %v216
    %v912 = vpop.f32.mrb[0].mxu0
    %v913 = vadd.f32 0.0, %v912
    %v914 = vpop.f32.mrb[0].mxu0
    %915 = vmatprep.mubr.f32.mxu0 0.0
    %916 = vmatmul.mubr.f32.gmra.mrb[0].mxu0 %v219
    %v917 = vpop.f32.mrb[0].mxu0
    %v918 = vadd.f32 0.0, %v917
    %v919 = vpop.f32.mrb[0].mxu0
    %920 = vdwg.mxu0
    %v921 = vadd.f32 %v774, %v883
    %v922 = vadd.f32 %v779, %v888
    %v923 = vadd.f32 %v784, %v893
    %v924 = vadd.f32 %v789, %v898
    %v925 = vadd.f32 %v794, %v903
    %v926 = vadd.f32 %v799, %v908
    %v927 = vadd.f32 %v804, %v913
    %v928 = vadd.f32 %v809, %v918
    %v929 = vld [vmem:[%s10] sm:$0x1]
    %v931 = vlaneseq
    %v932 = vshrl.u32 %v931, 7
    %v933 = vsub.s32 0, %v932
    %v934 = vrot.slane %v929, %v933
    %v936 = vadd.f32 %v921, %v934
    %v937 = vadd.f32 %v922, %v934
    %v938 = vadd.f32 %v923, %v934
    %v939 = vadd.f32 %v924, %v934
    %v940 = vadd.f32 %v925, %v934
    %v941 = vadd.f32 %v926, %v934
    %v942 = vadd.f32 %v927, %v934
    %v943 = vadd.f32 %v928, %v934
    %v944 = vld [vmem:[#allocation7] sm:$0xff]
    %v945 = vld [vmem:[#allocation7 + $0x8] sm:$0xff]
    %v946 = vld [vmem:[#allocation7 + $0x10] sm:$0xff]
    %v947 = vld [vmem:[#allocation7 + $0x18] sm:$0xff]
    %948 = vmatprep.subr.mxu0 0.0
    %949 = vmatpush1.msra.mxu0 %v944
    %950 = vmatprep.subr.mxu0 0.0
    %951 = vmatpush1.msra.mxu0 %v945
    %952 = vmatprep.subr.mxu0 0.0
    %953 = vmatpush1.msra.mxu0 %v946
    %954 = vmatprep.subr.mxu0 0.0
    %955 = vmatpush1.msra.mxu0 %v947
    %956 = vmatprep.subr.mxu0 0.0
    %957 = vmatpush1.msra.mxu0 0.0
    %958 = vmatprep.subr.mxu0 0.0
    %959 = vmatpush1.msra.mxu0 0.0
    %960 = vmatprep.subr.mxu0 0.0
    %961 = vmatpush1.msra.mxu0 0.0
    %962 = vmatprep.subr.mxu0 0.0
    %963 = vmatpush1.msra.mxu0 0.0
    %964 = vmatprep.subr.mxu0 0.0
    %965 = vmatpush1.msra.mxu0 0.0
    %966 = vmatprep.subr.mxu0 0.0
    %967 = vmatpush1.msra.mxu0 0.0
    %968 = vmatprep.subr.mxu0 0.0
    %969 = vmatpush1.msra.mxu0 0.0
    %970 = vmatprep.subr.mxu0 0.0
    %971 = vmatpush1.msra.mxu0 0.0
    %972 = vmatprep.subr.mxu0 0.0
    %973 = vmatpush1.msra.mxu0 0.0
    %974 = vmatprep.subr.mxu0 0.0
    %975 = vmatpush1.msra.mxu0 0.0
    %976 = vmatprep.subr.mxu0 0.0
    %977 = vmatpush1.msra.mxu0 0.0
    %978 = vmatprep.subr.mxu0 0.0
    %979 = vmatpush1.msra.mxu0 0.0
    %980 = vmatprep.subr.mxu0 0.0
    %981 = vmatpush1.msra.mxu0 0.0
    %982 = vmatprep.subr.mxu0 0.0
    %983 = vmatpush1.msra.mxu0 0.0
    %984 = vmatprep.subr.mxu0 0.0
    %985 = vmatpush1.msra.mxu0 0.0
    %986 = vmatprep.subr.mxu0 0.0
    %987 = vmatpush1.msra.mxu0 0.0
    %988 = vmatprep.subr.mxu0 0.0
    %989 = vmatpush1.msra.mxu0 0.0
    %990 = vmatprep.subr.mxu0 0.0
    %991 = vmatpush1.msra.mxu0 0.0
    %992 = vmatprep.subr.mxu0 0.0
    %993 = vmatpush1.msra.mxu0 0.0
    %994 = vmatprep.subr.mxu0 0.0
    %995 = vmatpush1.msra.mxu0 0.0
    %996 = vmatprep.subr.mxu0 0.0
    %997 = vmatpush1.msra.mxu0 0.0
    %998 = vmatprep.subr.mxu0 0.0
    %999 = vmatpush1.msra.mxu0 0.0
    %1000 = vmatprep.subr.mxu0 0.0
    %1001 = vmatpush1.msra.mxu0 0.0
    %1002 = vmatprep.subr.mxu0 0.0
    %1003 = vmatpush1.msra.mxu0 0.0
    %1004 = vmatprep.subr.mxu0 0.0
    %1005 = vmatpush1.msra.mxu0 0.0
    %1006 = vmatprep.subr.mxu0 0.0
    %1007 = vmatpush1.msra.mxu0 0.0
    %1008 = vmatprep.subr.mxu0 0.0
    %1009 = vmatpush1.msra.mxu0 0.0
    %1010 = vmatprep.subr.mxu0 0.0
    %1011 = vmatpush1.msra.mxu0 0.0
    %1012 = vmatprep.mubr.f32.mxu0 0.0
    %1013 = vmatmul.mubr.f32.gmra.mrb[0].mxu0 %v331
    %v1014 = vpop.f32.mrb[0].mxu0
    %v1015 = vadd.f32 0.0, %v1014
    %v1016 = vpop.f32.mrb[0].mxu0
    %1017 = vmatprep.mubr.f32.mxu0 0.0
    %1018 = vmatmul.mubr.f32.gmra.mrb[0].mxu0 %v334
    %v1019 = vpop.f32.mrb[0].mxu0
    %v1020 = vadd.f32 0.0, %v1019
    %v1021 = vpop.f32.mrb[0].mxu0
    %1022 = vmatprep.mubr.f32.mxu0 0.0
    %1023 = vmatmul.mubr.f32.gmra.mrb[0].mxu0 %v337
    %v1024 = vpop.f32.mrb[0].mxu0
    %v1025 = vadd.f32 0.0, %v1024
    %v1026 = vpop.f32.mrb[0].mxu0
    %1027 = vmatprep.mubr.f32.mxu0 0.0
    %1028 = vmatmul.mubr.f32.gmra.mrb[0].mxu0 %v340
    %v1029 = vpop.f32.mrb[0].mxu0
    %v1030 = vadd.f32 0.0, %v1029
    %v1031 = vpop.f32.mrb[0].mxu0
    %1032 = vmatprep.mubr.f32.mxu0 0.0
    %1033 = vmatmul.mubr.f32.gmra.mrb[0].mxu0 %v343
    %v1034 = vpop.f32.mrb[0].mxu0
    %v1035 = vadd.f32 0.0, %v1034
    %v1036 = vpop.f32.mrb[0].mxu0
    %1037 = vmatprep.mubr.f32.mxu0 0.0
    %1038 = vmatmul.mubr.f32.gmra.mrb[0].mxu0 %v346
    %v1039 = vpop.f32.mrb[0].mxu0
    %v1040 = vadd.f32 0.0, %v1039
    %v1041 = vpop.f32.mrb[0].mxu0
    %1042 = vdwg.mxu0
    %v1044 = vsel %vm682, %v186, 0
    %v1047 = vsel %vm682, %v187, 0
    %v1050 = vsel %vm682, %v188, 0
    %v1053 = vsel %vm682, %v189, 0
    %v1056 = vsel %vm682, %v190, 0
    %v1059 = vsel %vm682, %v191, 0
    %1061 = vmatprep.subr.mxu0 0.0
    %1062 = vmatpush1.msra.mxu0 %v514
    %1063 = vmatprep.subr.mxu0 0.0
    %1064 = vmatpush1.msra.mxu0 %v519
    %1065 = vmatprep.subr.mxu0 0.0
    %1066 = vmatpush1.msra.mxu0 %v524
    %1067 = vmatprep.subr.mxu0 0.0
    %1068 = vmatpush1.msra.mxu0 %v529
    %1069 = vmatprep.subr.mxu0 0.0
    %1070 = vmatpush1.msra.mxu0 %v534
    %1071 = vmatprep.subr.mxu0 0.0
    %1072 = vmatpush1.msra.mxu0 %v539
    %1073 = vmatprep.subr.mxu0 0.0
    %1074 = vmatpush1.msra.mxu0 %v544
    %1075 = vmatprep.subr.mxu0 0.0
    %1076 = vmatpush1.msra.mxu0 %v549
    %1077 = vmatprep.subr.mxu0 0.0
    %1078 = vmatpush1.msra.mxu0 0.0
    %1079 = vmatprep.subr.mxu0 0.0
    %1080 = vmatpush1.msra.mxu0 0.0
    %1081 = vmatprep.subr.mxu0 0.0
    %1082 = vmatpush1.msra.mxu0 0.0
    %1083 = vmatprep.subr.mxu0 0.0
    %1084 = vmatpush1.msra.mxu0 0.0
    %1085 = vmatprep.subr.mxu0 0.0
    %1086 = vmatpush1.msra.mxu0 0.0
    %1087 = vmatprep.subr.mxu0 0.0
    %1088 = vmatpush1.msra.mxu0 0.0
    %1089 = vmatprep.subr.mxu0 0.0
    %1090 = vmatpush1.msra.mxu0 0.0
    %1091 = vmatprep.subr.mxu0 0.0
    %1092 = vmatpush1.msra.mxu0 0.0
    %1093 = vmatprep.subr.mxu0 0.0
    %1094 = vmatpush1.msra.mxu0 0.0
    %1095 = vmatprep.subr.mxu0 0.0
    %1096 = vmatpush1.msra.mxu0 0.0
    %1097 = vmatprep.subr.mxu0 0.0
    %1098 = vmatpush1.msra.mxu0 0.0
    %1099 = vmatprep.subr.mxu0 0.0
    %1100 = vmatpush1.msra.mxu0 0.0
    %1101 = vmatprep.subr.mxu0 0.0
    %1102 = vmatpush1.msra.mxu0 0.0
    %1103 = vmatprep.subr.mxu0 0.0
    %1104 = vmatpush1.msra.mxu0 0.0
    %1105 = vmatprep.subr.mxu0 0.0
    %1106 = vmatpush1.msra.mxu0 0.0
    %1107 = vmatprep.subr.mxu0 0.0
    %1108 = vmatpush1.msra.mxu0 0.0
    %1109 = vmatprep.subr.mxu0 0.0
    %1110 = vmatpush1.msra.mxu0 0.0
    %1111 = vmatprep.subr.mxu0 0.0
    %1112 = vmatpush1.msra.mxu0 0.0
    %1113 = vmatprep.subr.mxu0 0.0
    %1114 = vmatpush1.msra.mxu0 0.0
    %1115 = vmatprep.subr.mxu0 0.0
    %1116 = vmatpush1.msra.mxu0 0.0
    %1117 = vmatprep.subr.mxu0 0.0
    %1118 = vmatpush1.msra.mxu0 0.0
    %1119 = vmatprep.subr.mxu0 0.0
    %1120 = vmatpush1.msra.mxu0 0.0
    %1121 = vmatprep.subr.mxu0 0.0
    %1122 = vmatpush1.msra.mxu0 0.0
    %1123 = vmatprep.subr.mxu0 0.0
    %1124 = vmatpush1.msra.mxu0 0.0
    %1125 = vmatprep.mubr.f32.mxu0 0.0
    %1126 = vmatmul.mubr.f32.gmra.mrb[0].mxu0 %v1044
    %v1127 = vpop.f32.mrb[0].mxu0
    %v1128 = vadd.f32 %v1015, %v1127
    %v1129 = vpop.f32.mrb[0].mxu0
    %1130 = vmatprep.mubr.f32.mxu0 0.0
    %1131 = vmatmul.mubr.f32.gmra.mrb[0].mxu0 %v1047
    %v1132 = vpop.f32.mrb[0].mxu0
    %v1133 = vadd.f32 %v1020, %v1132
    %v1134 = vpop.f32.mrb[0].mxu0
    %1135 = vmatprep.mubr.f32.mxu0 0.0
    %1136 = vmatmul.mubr.f32.gmra.mrb[0].mxu0 %v1050
    %v1137 = vpop.f32.mrb[0].mxu0
    %v1138 = vadd.f32 %v1025, %v1137
    %v1139 = vpop.f32.mrb[0].mxu0
    %1140 = vmatprep.mubr.f32.mxu0 0.0
    %1141 = vmatmul.mubr.f32.gmra.mrb[0].mxu0 %v1053
    %v1142 = vpop.f32.mrb[0].mxu0
    %v1143 = vadd.f32 %v1030, %v1142
    %v1144 = vpop.f32.mrb[0].mxu0
    %1145 = vmatprep.mubr.f32.mxu0 0.0
    %1146 = vmatmul.mubr.f32.gmra.mrb[0].mxu0 %v1056
    %v1147 = vpop.f32.mrb[0].mxu0
    %v1148 = vadd.f32 %v1035, %v1147
    %v1149 = vpop.f32.mrb[0].mxu0
    %1150 = vmatprep.mubr.f32.mxu0 0.0
    %1151 = vmatmul.mubr.f32.gmra.mrb[0].mxu0 %v1059
    %v1152 = vpop.f32.mrb[0].mxu0
    %v1153 = vadd.f32 %v1040, %v1152
    %v1154 = vpop.f32.mrb[0].mxu0
    %1155 = vdwg.mxu0
    %v1156 = vld [vmem:[%s11] sm:$0x1]
    %v1158 = vlaneseq
    %v1159 = vshrl.u32 %v1158, 7
    %v1160 = vsub.s32 0, %v1159
    %v1161 = vrot.slane %v1156, %v1160
    %v1163 = vadd.f32 %v1128, %v1161
    %v1164 = vadd.f32 %v1133, %v1161
    %v1165 = vadd.f32 %v1138, %v1161
    %v1166 = vadd.f32 %v1143, %v1161
    %v1167 = vadd.f32 %v1148, %v1161
    %v1168 = vadd.f32 %v1153, %v1161
    %v1169 = vld [vmem:[#allocation9] sm:$0xff]
    %v1170 = vld [vmem:[#allocation9 + $0x8] sm:$0xff]
    %v1171 = vld [vmem:[#allocation9 + $0x10] sm:$0xff]
    %v1172 = vld [vmem:[#allocation9 + $0x18] sm:$0xff]
    %v1174 = vsel %vm196, 0.0, 0
    %1176 = vmatprep.subr.mxu0 0.0
    %1177 = vmatpush1.msra.mxu0 %v1169
    %1178 = vmatprep.subr.mxu0 0.0
    %1179 = vmatpush1.msra.mxu0 %v1170
    %1180 = vmatprep.subr.mxu0 0.0
    %1181 = vmatpush1.msra.mxu0 %v1171
    %1182 = vmatprep.subr.mxu0 0.0
    %1183 = vmatpush1.msra.mxu0 %v1172
    %1184 = vmatprep.subr.mxu0 0.0
    %1185 = vmatpush1.msra.mxu0 0.0
    %1186 = vmatprep.subr.mxu0 0.0
    %1187 = vmatpush1.msra.mxu0 0.0
    %1188 = vmatprep.subr.mxu0 0.0
    %1189 = vmatpush1.msra.mxu0 0.0
    %1190 = vmatprep.subr.mxu0 0.0
    %1191 = vmatpush1.msra.mxu0 0.0
    %1192 = vmatprep.subr.mxu0 0.0
    %1193 = vmatpush1.msra.mxu0 0.0
    %1194 = vmatprep.subr.mxu0 0.0
    %1195 = vmatpush1.msra.mxu0 0.0
    %1196 = vmatprep.subr.mxu0 0.0
    %1197 = vmatpush1.msra.mxu0 0.0
    %1198 = vmatprep.subr.mxu0 0.0
    %1199 = vmatpush1.msra.mxu0 0.0
    %1200 = vmatprep.subr.mxu0 0.0
    %1201 = vmatpush1.msra.mxu0 0.0
    %1202 = vmatprep.subr.mxu0 0.0
    %1203 = vmatpush1.msra.mxu0 0.0
    %1204 = vmatprep.subr.mxu0 0.0
    %1205 = vmatpush1.msra.mxu0 0.0
    %1206 = vmatprep.subr.mxu0 0.0
    %1207 = vmatpush1.msra.mxu0 0.0
    %1208 = vmatprep.subr.mxu0 0.0
    %1209 = vmatpush1.msra.mxu0 0.0
    %1210 = vmatprep.subr.mxu0 0.0
    %1211 = vmatpush1.msra.mxu0 0.0
    %1212 = vmatprep.subr.mxu0 0.0
    %1213 = vmatpush1.msra.mxu0 0.0
    %1214 = vmatprep.subr.mxu0 0.0
    %1215 = vmatpush1.msra.mxu0 0.0
    %1216 = vmatprep.subr.mxu0 0.0
    %1217 = vmatpush1.msra.mxu0 0.0
    %1218 = vmatprep.subr.mxu0 0.0
    %1219 = vmatpush1.msra.mxu0 0.0
    %1220 = vmatprep.subr.mxu0 0.0
    %1221 = vmatpush1.msra.mxu0 0.0
    %1222 = vmatprep.subr.mxu0 0.0
    %1223 = vmatpush1.msra.mxu0 0.0
    %1224 = vmatprep.subr.mxu0 0.0
    %1225 = vmatpush1.msra.mxu0 0.0
    %1226 = vmatprep.subr.mxu0 0.0
    %1227 = vmatpush1.msra.mxu0 0.0
    %1228 = vmatprep.subr.mxu0 0.0
    %1229 = vmatpush1.msra.mxu0 0.0
    %1230 = vmatprep.subr.mxu0 0.0
    %1231 = vmatpush1.msra.mxu0 0.0
    %1232 = vmatprep.subr.mxu0 0.0
    %1233 = vmatpush1.msra.mxu0 0.0
    %1234 = vmatprep.subr.mxu0 0.0
    %1235 = vmatpush1.msra.mxu0 0.0
    %1236 = vmatprep.subr.mxu0 0.0
    %1237 = vmatpush1.msra.mxu0 0.0
    %1238 = vmatprep.subr.mxu0 0.0
    %1239 = vmatpush1.msra.mxu0 0.0
    %1240 = vmatprep.mubr.f32.mxu0 0.0
    %1241 = vmatmul.mubr.f32.gmra.mrb[0].mxu0 %v1174
    %v1242 = vpop.f32.mrb[0].mxu0
    %v1243 = vadd.f32 0.0, %v1242
    %v1244 = vpop.f32.mrb[0].mxu0
    %1245 = vmatprep.mubr.f32.mxu0 0.0
    %1246 = vmatmul.mubr.f32.gmra.mrb[0].mxu0 %v1174
    %v1247 = vpop.f32.mrb[0].mxu0
    %v1248 = vadd.f32 0.0, %v1247
    %v1249 = vpop.f32.mrb[0].mxu0
    %1250 = vmatprep.mubr.f32.mxu0 0.0
    %1251 = vmatmul.mubr.f32.gmra.mrb[0].mxu0 %v1174
    %v1252 = vpop.f32.mrb[0].mxu0
    %v1253 = vadd.f32 0.0, %v1252
    %v1254 = vpop.f32.mrb[0].mxu0
    %1255 = vmatprep.mubr.f32.mxu0 0.0
    %1256 = vmatmul.mubr.f32.gmra.mrb[0].mxu0 %v1174
    %v1257 = vpop.f32.mrb[0].mxu0
    %v1258 = vadd.f32 0.0, %v1257
    %v1259 = vpop.f32.mrb[0].mxu0
    %1260 = vmatprep.mubr.f32.mxu0 0.0
    %1261 = vmatmul.mubr.f32.gmra.mrb[0].mxu0 %v1174
    %v1262 = vpop.f32.mrb[0].mxu0
    %v1263 = vadd.f32 0.0, %v1262
    %v1264 = vpop.f32.mrb[0].mxu0
    %1265 = vmatprep.mubr.f32.mxu0 0.0
    %1266 = vmatmul.mubr.f32.gmra.mrb[0].mxu0 %v1174
    %v1267 = vpop.f32.mrb[0].mxu0
    %v1268 = vadd.f32 0.0, %v1267
    %v1269 = vpop.f32.mrb[0].mxu0
    %1270 = vmatprep.mubr.f32.mxu0 0.0
    %1271 = vmatmul.mubr.f32.gmra.mrb[0].mxu0 %v1174
    %v1272 = vpop.f32.mrb[0].mxu0
    %v1273 = vadd.f32 0.0, %v1272
    %v1274 = vpop.f32.mrb[0].mxu0
    %1275 = vmatprep.mubr.f32.mxu0 0.0
    %1276 = vmatmul.mubr.f32.gmra.mrb[0].mxu0 %v1174
    %v1277 = vpop.f32.mrb[0].mxu0
    %v1278 = vadd.f32 0.0, %v1277
    %v1279 = vpop.f32.mrb[0].mxu0
    %1280 = vdwg.mxu0
    %v1281 = vadd.f32 %v936, %v1243
    %v1282 = vadd.f32 %v937, %v1248
    %v1283 = vadd.f32 %v938, %v1253
    %v1284 = vadd.f32 %v939, %v1258
    %v1285 = vadd.f32 %v940, %v1263
    %v1286 = vadd.f32 %v941, %v1268
    %v1287 = vadd.f32 %v942, %v1273
    %v1288 = vadd.f32 %v943, %v1278
    %v1289 = vld [vmem:[%s16] sm:$0x1]
    %v1291 = vlaneseq
    %v1292 = vshrl.u32 %v1291, 7
    %v1293 = vsub.s32 0, %v1292
    %v1294 = vrot.slane %v1289, %v1293
    %v1296 = vadd.f32 %v1281, %v1294
    %v1297 = vadd.f32 %v1282, %v1294
    %v1298 = vadd.f32 %v1283, %v1294
    %v1299 = vadd.f32 %v1284, %v1294
    %v1300 = vadd.f32 %v1285, %v1294
    %v1301 = vadd.f32 %v1286, %v1294
    %v1302 = vadd.f32 %v1287, %v1294
    %v1303 = vadd.f32 %v1288, %v1294
    %v1304 = vld [vmem:[#allocation10] sm:$0xff]
    %v1305 = vld [vmem:[#allocation10 + $0x8] sm:$0xff]
    %v1306 = vld [vmem:[#allocation10 + $0x10] sm:$0xff]
    %v1307 = vld [vmem:[#allocation10 + $0x18] sm:$0xff]
    %1308 = vmatprep.subr.mxu0 0.0
    %1309 = vmatpush1.msra.mxu0 %v1304
    %1310 = vmatprep.subr.mxu0 0.0
    %1311 = vmatpush1.msra.mxu0 %v1305
    %1312 = vmatprep.subr.mxu0 0.0
    %1313 = vmatpush1.msra.mxu0 %v1306
    %1314 = vmatprep.subr.mxu0 0.0
    %1315 = vmatpush1.msra.mxu0 %v1307
    %1316 = vmatprep.subr.mxu0 0.0
    %1317 = vmatpush1.msra.mxu0 0.0
    %1318 = vmatprep.subr.mxu0 0.0
    %1319 = vmatpush1.msra.mxu0 0.0
    %1320 = vmatprep.subr.mxu0 0.0
    %1321 = vmatpush1.msra.mxu0 0.0
    %1322 = vmatprep.subr.mxu0 0.0
    %1323 = vmatpush1.msra.mxu0 0.0
    %1324 = vmatprep.subr.mxu0 0.0
    %1325 = vmatpush1.msra.mxu0 0.0
    %1326 = vmatprep.subr.mxu0 0.0
    %1327 = vmatpush1.msra.mxu0 0.0
    %1328 = vmatprep.subr.mxu0 0.0
    %1329 = vmatpush1.msra.mxu0 0.0
    %1330 = vmatprep.subr.mxu0 0.0
    %1331 = vmatpush1.msra.mxu0 0.0
    %1332 = vmatprep.subr.mxu0 0.0
    %1333 = vmatpush1.msra.mxu0 0.0
    %1334 = vmatprep.subr.mxu0 0.0
    %1335 = vmatpush1.msra.mxu0 0.0
    %1336 = vmatprep.subr.mxu0 0.0
    %1337 = vmatpush1.msra.mxu0 0.0
    %1338 = vmatprep.subr.mxu0 0.0
    %1339 = vmatpush1.msra.mxu0 0.0
    %1340 = vmatprep.subr.mxu0 0.0
    %1341 = vmatpush1.msra.mxu0 0.0
    %1342 = vmatprep.subr.mxu0 0.0
    %1343 = vmatpush1.msra.mxu0 0.0
    %1344 = vmatprep.subr.mxu0 0.0
    %1345 = vmatpush1.msra.mxu0 0.0
    %1346 = vmatprep.subr.mxu0 0.0
    %1347 = vmatpush1.msra.mxu0 0.0
    %1348 = vmatprep.subr.mxu0 0.0
    %1349 = vmatpush1.msra.mxu0 0.0
    %1350 = vmatprep.subr.mxu0 0.0
    %1351 = vmatpush1.msra.mxu0 0.0
    %1352 = vmatprep.subr.mxu0 0.0
    %1353 = vmatpush1.msra.mxu0 0.0
    %1354 = vmatprep.subr.mxu0 0.0
    %1355 = vmatpush1.msra.mxu0 0.0
    %1356 = vmatprep.subr.mxu0 0.0
    %1357 = vmatpush1.msra.mxu0 0.0
    %1358 = vmatprep.subr.mxu0 0.0
    %1359 = vmatpush1.msra.mxu0 0.0
    %1360 = vmatprep.subr.mxu0 0.0
    %1361 = vmatpush1.msra.mxu0 0.0
    %1362 = vmatprep.subr.mxu0 0.0
    %1363 = vmatpush1.msra.mxu0 0.0
    %1364 = vmatprep.subr.mxu0 0.0
    %1365 = vmatpush1.msra.mxu0 0.0
    %1366 = vmatprep.subr.mxu0 0.0
    %1367 = vmatpush1.msra.mxu0 0.0
    %1368 = vmatprep.subr.mxu0 0.0
    %1369 = vmatpush1.msra.mxu0 0.0
    %1370 = vmatprep.subr.mxu0 0.0
    %1371 = vmatpush1.msra.mxu0 0.0
    %1372 = vmatprep.mubr.f32.mxu0 0.0
    %1373 = vmatmul.mubr.f32.gmra.mrb[0].mxu0 %v1174
    %v1374 = vpop.f32.mrb[0].mxu0
    %v1375 = vadd.f32 0.0, %v1374
    %v1376 = vpop.f32.mrb[0].mxu0
    %1377 = vmatprep.mubr.f32.mxu0 0.0
    %1378 = vmatmul.mubr.f32.gmra.mrb[0].mxu0 %v1174
    %v1379 = vpop.f32.mrb[0].mxu0
    %v1380 = vadd.f32 0.0, %v1379
    %v1381 = vpop.f32.mrb[0].mxu0
    %1382 = vmatprep.mubr.f32.mxu0 0.0
    %1383 = vmatmul.mubr.f32.gmra.mrb[0].mxu0 %v1174
    %v1384 = vpop.f32.mrb[0].mxu0
    %v1385 = vadd.f32 0.0, %v1384
    %v1386 = vpop.f32.mrb[0].mxu0
    %1387 = vmatprep.mubr.f32.mxu0 0.0
    %1388 = vmatmul.mubr.f32.gmra.mrb[0].mxu0 %v1174
    %v1389 = vpop.f32.mrb[0].mxu0
    %v1390 = vadd.f32 0.0, %v1389
    %v1391 = vpop.f32.mrb[0].mxu0
    %1392 = vmatprep.mubr.f32.mxu0 0.0
    %1393 = vmatmul.mubr.f32.gmra.mrb[0].mxu0 %v1174
    %v1394 = vpop.f32.mrb[0].mxu0
    %v1395 = vadd.f32 0.0, %v1394
    %v1396 = vpop.f32.mrb[0].mxu0
    %1397 = vmatprep.mubr.f32.mxu0 0.0
    %1398 = vmatmul.mubr.f32.gmra.mrb[0].mxu0 %v1174
    %v1399 = vpop.f32.mrb[0].mxu0
    %v1400 = vadd.f32 0.0, %v1399
    %v1401 = vpop.f32.mrb[0].mxu0
    %1402 = vdwg.mxu0
    %v1403 = vadd.f32 %v1163, %v1375
    %v1404 = vadd.f32 %v1164, %v1380
    %v1405 = vadd.f32 %v1165, %v1385
    %v1406 = vadd.f32 %v1166, %v1390
    %v1407 = vadd.f32 %v1167, %v1395
    %v1408 = vadd.f32 %v1168, %v1400
    %v1409 = vld [vmem:[%s17] sm:$0x1]
    %v1411 = vlaneseq
    %v1412 = vshrl.u32 %v1411, 7
    %v1413 = vsub.s32 0, %v1412
    %v1414 = vrot.slane %v1409, %v1413
    %v1416 = vadd.f32 %v1403, %v1414
    %v1417 = vadd.f32 %v1404, %v1414
    %v1418 = vadd.f32 %v1405, %v1414
    %v1419 = vadd.f32 %v1406, %v1414
    %v1420 = vadd.f32 %v1407, %v1414
    %v1421 = vadd.f32 %v1408, %v1414
    %v1422 = vld [vmem:[%s14] sm:$0x7]
    %v1423 = vlaneseq
    %v1424 = vshrl.u32 %v1423, 7
    %v1425 = vsub.s32 0, %v1424
    %v1426 = vrot.slane %v1422, %v1425
    %v1427 = vmul.f32 %v1426, 0.0
    %v1428 = vadd.f32 %v1296, %v1427
    %v1429 = vadd.f32 %v1297, %v1427
    %v1430 = vadd.f32 %v1298, %v1427
    %v1431 = vadd.f32 %v1299, %v1427
    %v1432 = vadd.f32 %v1300, %v1427
    %v1433 = vadd.f32 %v1301, %v1427
    %v1434 = vadd.f32 %v1302, %v1427
    %v1435 = vadd.f32 %v1303, %v1427
    %v1436 = vxor.u32 %v1428, 2147483648
    %v1437 = vxor.u32 %v1429, 2147483648
    %v1438 = vxor.u32 %v1430, 2147483648
    %v1439 = vxor.u32 %v1431, 2147483648
    %v1440 = vxor.u32 %v1432, 2147483648
    %v1441 = vxor.u32 %v1433, 2147483648
    %v1442 = vxor.u32 %v1434, 2147483648
    %v1443 = vxor.u32 %v1435, 2147483648
    %v1444 = vmul.f32 %v1436, 1.442695
    %v1445 = vpow.pop %v1444
    %v1446 = vmul.f32 %v1437, 1.442695
    %v1447 = vpow.pop %v1446
    %v1448 = vmul.f32 %v1438, 1.442695
    %v1449 = vpow.pop %v1448
    %v1450 = vmul.f32 %v1439, 1.442695
    %v1451 = vpow.pop %v1450
    %v1452 = vmul.f32 %v1440, 1.442695
    %v1453 = vpow.pop %v1452
    %v1454 = vmul.f32 %v1441, 1.442695
    %v1455 = vpow.pop %v1454
    %v1456 = vmul.f32 %v1442, 1.442695
    %v1457 = vpow.pop %v1456
    %v1458 = vmul.f32 %v1443, 1.442695
    %v1459 = vpow.pop %v1458
    %v1460 = vadd.f32 %v1445, 1.0
    %v1461 = vadd.f32 %v1447, 1.0
    %v1462 = vadd.f32 %v1449, 1.0
    %v1463 = vadd.f32 %v1451, 1.0
    %v1464 = vadd.f32 %v1453, 1.0
    %v1465 = vadd.f32 %v1455, 1.0
    %v1466 = vadd.f32 %v1457, 1.0
    %v1467 = vadd.f32 %v1459, 1.0
    %v1468 = vrcp.pop %v1460
    %v1469 = vmul.f32 1.0, %v1468
    %v1470 = vrcp.pop %v1461
    %v1471 = vmul.f32 1.0, %v1470
    %v1472 = vrcp.pop %v1462
    %v1473 = vmul.f32 1.0, %v1472
    %v1474 = vrcp.pop %v1463
    %v1475 = vmul.f32 1.0, %v1474
    %v1476 = vrcp.pop %v1464
    %v1477 = vmul.f32 1.0, %v1476
    %v1478 = vrcp.pop %v1465
    %v1479 = vmul.f32 1.0, %v1478
    %v1480 = vrcp.pop %v1466
    %v1481 = vmul.f32 1.0, %v1480
    %v1482 = vrcp.pop %v1467
    %v1483 = vmul.f32 1.0, %v1482
    %v1484 = vlaneseq
    %v1485 = vshrl.u32 %v1484, 7
    %v1486 = vsub.s32 1, %v1485
    %v1487 = vrot.slane %v1422, %v1486
    %v1488 = vmul.f32 %v1487, 0.0
    %1490 = vrot.lane.b32.xlu0 %v1488, 32
    %v1491 = vpop.permute.xlu0 %1490
    %v1493 = vadd.f32 %v1296, %v1491
    %v1494 = vadd.f32 %v1297, %v1491
    %v1495 = vadd.f32 %v1298, %v1491
    %v1496 = vadd.f32 %v1299, %v1491
    %v1497 = vadd.f32 %v1300, %v1491
    %v1498 = vadd.f32 %v1301, %v1491
    %v1499 = vadd.f32 %v1302, %v1491
    %v1500 = vadd.f32 %v1303, %v1491
    %v1501 = vxor.u32 %v1493, 2147483648
    %v1502 = vxor.u32 %v1494, 2147483648
    %v1503 = vxor.u32 %v1495, 2147483648
    %v1504 = vxor.u32 %v1496, 2147483648
    %v1505 = vxor.u32 %v1497, 2147483648
    %v1506 = vxor.u32 %v1498, 2147483648
    %v1507 = vxor.u32 %v1499, 2147483648
    %v1508 = vxor.u32 %v1500, 2147483648
    %v1509 = vmul.f32 %v1501, 1.442695
    %v1510 = vpow.pop %v1509
    %v1511 = vmul.f32 %v1502, 1.442695
    %v1512 = vpow.pop %v1511
    %v1513 = vmul.f32 %v1503, 1.442695
    %v1514 = vpow.pop %v1513
    %v1515 = vmul.f32 %v1504, 1.442695
    %v1516 = vpow.pop %v1515
    %v1517 = vmul.f32 %v1505, 1.442695
    %v1518 = vpow.pop %v1517
    %v1519 = vmul.f32 %v1506, 1.442695
    %v1520 = vpow.pop %v1519
    %v1521 = vmul.f32 %v1507, 1.442695
    %v1522 = vpow.pop %v1521
    %v1523 = vmul.f32 %v1508, 1.442695
    %v1524 = vpow.pop %v1523
    %v1525 = vadd.f32 %v1510, 1.0
    %v1526 = vadd.f32 %v1512, 1.0
    %v1527 = vadd.f32 %v1514, 1.0
    %v1528 = vadd.f32 %v1516, 1.0
    %v1529 = vadd.f32 %v1518, 1.0
    %v1530 = vadd.f32 %v1520, 1.0
    %v1531 = vadd.f32 %v1522, 1.0
    %v1532 = vadd.f32 %v1524, 1.0
    %v1533 = vrcp.pop %v1525
    %v1534 = vmul.f32 1.0, %v1533
    %v1535 = vrcp.pop %v1526
    %v1536 = vmul.f32 1.0, %v1535
    %v1537 = vrcp.pop %v1527
    %v1538 = vmul.f32 1.0, %v1537
    %v1539 = vrcp.pop %v1528
    %v1540 = vmul.f32 1.0, %v1539
    %v1541 = vrcp.pop %v1529
    %v1542 = vmul.f32 1.0, %v1541
    %v1543 = vrcp.pop %v1530
    %v1544 = vmul.f32 1.0, %v1543
    %v1545 = vrcp.pop %v1531
    %v1546 = vmul.f32 1.0, %v1545
    %v1547 = vrcp.pop %v1532
    %v1548 = vmul.f32 1.0, %v1547
    %v1549 = vtanh.pop %v1296
    %v1550 = vtanh.pop %v1297
    %v1551 = vtanh.pop %v1298
    %v1552 = vtanh.pop %v1299
    %v1553 = vtanh.pop %v1300
    %v1554 = vtanh.pop %v1301
    %v1555 = vtanh.pop %v1302
    %v1556 = vtanh.pop %v1303
    %v1557 = vmul.f32 %v1534, 0.0
    %v1558 = vmul.f32 %v1536, 0.0
    %v1559 = vmul.f32 %v1538, 0.0
    %v1560 = vmul.f32 %v1540, 0.0
    %v1561 = vmul.f32 %v1542, 0.0
    %v1562 = vmul.f32 %v1544, 0.0
    %v1563 = vmul.f32 %v1546, 0.0
    %v1564 = vmul.f32 %v1548, 0.0
    %1573 = vrot.lane.b32.xlu0 %v1549, 64
    %v1574 = vpop.permute.xlu0 %1573
    %1575 = vrot.lane.b32.xlu0 %v1550, 64
    %v1576 = vpop.permute.xlu0 %1575
    %1577 = vrot.lane.b32.xlu0 %v1551, 64
    %v1578 = vpop.permute.xlu0 %1577
    %1579 = vrot.lane.b32.xlu0 %v1552, 64
    %v1580 = vpop.permute.xlu0 %1579
    %1581 = vrot.lane.b32.xlu0 %v1553, 64
    %v1582 = vpop.permute.xlu0 %1581
    %1583 = vrot.lane.b32.xlu0 %v1554, 64
    %v1584 = vpop.permute.xlu0 %1583
    %1585 = vrot.lane.b32.xlu0 %v1555, 64
    %v1586 = vpop.permute.xlu0 %1585
    %1587 = vrot.lane.b32.xlu0 %v1556, 64
    %v1588 = vpop.permute.xlu0 %1587
    %v1597 = vmul.f32 %v1469, %v1574
    %v1598 = vmul.f32 %v1471, %v1576
    %v1599 = vmul.f32 %v1473, %v1578
    %v1600 = vmul.f32 %v1475, %v1580
    %v1601 = vmul.f32 %v1477, %v1582
    %v1602 = vmul.f32 %v1479, %v1584
    %v1603 = vmul.f32 %v1481, %v1586
    %v1604 = vmul.f32 %v1483, %v1588
    %1613 = vrot.lane.b32.xlu0 %v1597, 32
    %v1614 = vpop.permute.xlu0 %1613
    %1615 = vrot.lane.b32.xlu0 %v1598, 32
    %v1616 = vpop.permute.xlu0 %1615
    %1617 = vrot.lane.b32.xlu0 %v1599, 32
    %v1618 = vpop.permute.xlu0 %1617
    %1619 = vrot.lane.b32.xlu0 %v1600, 32
    %v1620 = vpop.permute.xlu0 %1619
    %1621 = vrot.lane.b32.xlu0 %v1601, 32
    %v1622 = vpop.permute.xlu0 %1621
    %1623 = vrot.lane.b32.xlu0 %v1602, 32
    %v1624 = vpop.permute.xlu0 %1623
    %1625 = vrot.lane.b32.xlu0 %v1603, 32
    %v1626 = vpop.permute.xlu0 %1625
    %1627 = vrot.lane.b32.xlu0 %v1604, 32
    %v1628 = vpop.permute.xlu0 %1627
    %v1637 = vadd.f32 %v1557, %v1614
    %v1638 = vadd.f32 %v1558, %v1616
    %v1639 = vadd.f32 %v1559, %v1618
    %v1640 = vadd.f32 %v1560, %v1620
    %v1641 = vadd.f32 %v1561, %v1622
    %v1642 = vadd.f32 %v1562, %v1624
    %v1643 = vadd.f32 %v1563, %v1626
    %v1644 = vadd.f32 %v1564, %v1628
    %v1645 = vlaneseq
    %v1646 = vshrl.u32 %v1645, 7
    %v1647 = vsub.s32 2, %v1646
    %v1648 = vrot.slane %v1422, %v1647
    %1657 = vrot.lane.b32.xlu0 %v1637, 96
    %v1658 = vpop.permute.xlu0 %1657
    %1659 = vrot.lane.b32.xlu0 %v1638, 96
    %v1660 = vpop.permute.xlu0 %1659
    %1661 = vrot.lane.b32.xlu0 %v1639, 96
    %v1662 = vpop.permute.xlu0 %1661
    %1663 = vrot.lane.b32.xlu0 %v1640, 96
    %v1664 = vpop.permute.xlu0 %1663
    %1665 = vrot.lane.b32.xlu0 %v1641, 96
    %v1666 = vpop.permute.xlu0 %1665
    %1667 = vrot.lane.b32.xlu0 %v1642, 96
    %v1668 = vpop.permute.xlu0 %1667
    %1669 = vrot.lane.b32.xlu0 %v1643, 96
    %v1670 = vpop.permute.xlu0 %1669
    %1671 = vrot.lane.b32.xlu0 %v1644, 96
    %v1672 = vpop.permute.xlu0 %1671
    %v1681 = vmul.f32 %v1648, %v1658
    %v1682 = vmul.f32 %v1648, %v1660
    %v1683 = vmul.f32 %v1648, %v1662
    %v1684 = vmul.f32 %v1648, %v1664
    %v1685 = vmul.f32 %v1648, %v1666
    %v1686 = vmul.f32 %v1648, %v1668
    %v1687 = vmul.f32 %v1648, %v1670
    %v1688 = vmul.f32 %v1648, %v1672
    %1697 = vrot.lane.b32.xlu0 %v1681, 96
    %v1698 = vpop.permute.xlu0 %1697
    %1699 = vrot.lane.b32.xlu0 %v1682, 96
    %v1700 = vpop.permute.xlu0 %1699
    %1701 = vrot.lane.b32.xlu0 %v1683, 96
    %v1702 = vpop.permute.xlu0 %1701
    %1703 = vrot.lane.b32.xlu0 %v1684, 96
    %v1704 = vpop.permute.xlu0 %1703
    %1705 = vrot.lane.b32.xlu0 %v1685, 96
    %v1706 = vpop.permute.xlu0 %1705
    %1707 = vrot.lane.b32.xlu0 %v1686, 96
    %v1708 = vpop.permute.xlu0 %1707
    %1709 = vrot.lane.b32.xlu0 %v1687, 96
    %v1710 = vpop.permute.xlu0 %1709
    %1711 = vrot.lane.b32.xlu0 %v1688, 96
    %v1712 = vpop.permute.xlu0 %1711
    %v1721 = vadd.f32 %v1296, %v1698
    %v1722 = vadd.f32 %v1297, %v1700
    %v1723 = vadd.f32 %v1298, %v1702
    %v1724 = vadd.f32 %v1299, %v1704
    %v1725 = vadd.f32 %v1300, %v1706
    %v1726 = vadd.f32 %v1301, %v1708
    %v1727 = vadd.f32 %v1302, %v1710
    %v1728 = vadd.f32 %v1303, %v1712
    %v1729 = vxor.u32 %v1721, 2147483648
    %v1730 = vxor.u32 %v1722, 2147483648
    %v1731 = vxor.u32 %v1723, 2147483648
    %v1732 = vxor.u32 %v1724, 2147483648
    %v1733 = vxor.u32 %v1725, 2147483648
    %v1734 = vxor.u32 %v1726, 2147483648
    %v1735 = vxor.u32 %v1727, 2147483648
    %v1736 = vxor.u32 %v1728, 2147483648
    %v1737 = vmul.f32 %v1729, 1.442695
    %v1738 = vpow.pop %v1737
    %v1739 = vmul.f32 %v1730, 1.442695
    %v1740 = vpow.pop %v1739
    %v1741 = vmul.f32 %v1731, 1.442695
    %v1742 = vpow.pop %v1741
    %v1743 = vmul.f32 %v1732, 1.442695
    %v1744 = vpow.pop %v1743
    %v1745 = vmul.f32 %v1733, 1.442695
    %v1746 = vpow.pop %v1745
    %v1747 = vmul.f32 %v1734, 1.442695
    %v1748 = vpow.pop %v1747
    %v1749 = vmul.f32 %v1735, 1.442695
    %v1750 = vpow.pop %v1749
    %v1751 = vmul.f32 %v1736, 1.442695
    %v1752 = vpow.pop %v1751
    %v1753 = vadd.f32 %v1738, 1.0
    %v1754 = vadd.f32 %v1740, 1.0
    %v1755 = vadd.f32 %v1742, 1.0
    %v1756 = vadd.f32 %v1744, 1.0
    %v1757 = vadd.f32 %v1746, 1.0
    %v1758 = vadd.f32 %v1748, 1.0
    %v1759 = vadd.f32 %v1750, 1.0
    %v1760 = vadd.f32 %v1752, 1.0
    %v1761 = vrcp.pop %v1753
    %v1762 = vmul.f32 1.0, %v1761
    %v1763 = vrcp.pop %v1754
    %v1764 = vmul.f32 1.0, %v1763
    %v1765 = vrcp.pop %v1755
    %v1766 = vmul.f32 1.0, %v1765
    %v1767 = vrcp.pop %v1756
    %v1768 = vmul.f32 1.0, %v1767
    %v1769 = vrcp.pop %v1757
    %v1770 = vmul.f32 1.0, %v1769
    %v1771 = vrcp.pop %v1758
    %v1772 = vmul.f32 1.0, %v1771
    %v1773 = vrcp.pop %v1759
    %v1774 = vmul.f32 1.0, %v1773
    %v1775 = vrcp.pop %v1760
    %v1776 = vmul.f32 1.0, %v1775
    %v1777 = vtanh.pop %v1637
    %v1778 = vtanh.pop %v1638
    %v1779 = vtanh.pop %v1639
    %v1780 = vtanh.pop %v1640
    %v1781 = vtanh.pop %v1641
    %v1782 = vtanh.pop %v1642
    %v1783 = vtanh.pop %v1643
    %v1784 = vtanh.pop %v1644
    %1793 = vrot.lane.b32.xlu0 %v1777, 64
    %v1794 = vpop.permute.xlu0 %1793
    %1795 = vrot.lane.b32.xlu0 %v1778, 64
    %v1796 = vpop.permute.xlu0 %1795
    %1797 = vrot.lane.b32.xlu0 %v1779, 64
    %v1798 = vpop.permute.xlu0 %1797
    %1799 = vrot.lane.b32.xlu0 %v1780, 64
    %v1800 = vpop.permute.xlu0 %1799
    %1801 = vrot.lane.b32.xlu0 %v1781, 64
    %v1802 = vpop.permute.xlu0 %1801
    %1803 = vrot.lane.b32.xlu0 %v1782, 64
    %v1804 = vpop.permute.xlu0 %1803
    %1805 = vrot.lane.b32.xlu0 %v1783, 64
    %v1806 = vpop.permute.xlu0 %1805
    %1807 = vrot.lane.b32.xlu0 %v1784, 64
    %v1808 = vpop.permute.xlu0 %1807
    %v1817 = vmul.f32 %v1762, %v1794
    %v1818 = vmul.f32 %v1764, %v1796
    %v1819 = vmul.f32 %v1766, %v1798
    %v1820 = vmul.f32 %v1768, %v1800
    %v1821 = vmul.f32 %v1770, %v1802
    %v1822 = vmul.f32 %v1772, %v1804
    %v1823 = vmul.f32 %v1774, %v1806
    %v1824 = vmul.f32 %v1776, %v1808
    %v1825 = vld [vmem:[%s15] sm:$0x7]
    %v1826 = vlaneseq
    %v1827 = vshrl.u32 %v1826, 7
    %v1828 = vsub.s32 0, %v1827
    %v1829 = vrot.slane %v1825, %v1828
    %v1830 = vmul.f32 %v1829, 0.0
    %v1831 = vadd.f32 %v1416, %v1830
    %v1832 = vadd.f32 %v1417, %v1830
    %v1833 = vadd.f32 %v1418, %v1830
    %v1834 = vadd.f32 %v1419, %v1830
    %v1835 = vadd.f32 %v1420, %v1830
    %v1836 = vadd.f32 %v1421, %v1830
    %v1837 = vxor.u32 %v1831, 2147483648
    %v1838 = vxor.u32 %v1832, 2147483648
    %v1839 = vxor.u32 %v1833, 2147483648
    %v1840 = vxor.u32 %v1834, 2147483648
    %v1841 = vxor.u32 %v1835, 2147483648
    %v1842 = vxor.u32 %v1836, 2147483648
    %v1843 = vmul.f32 %v1837, 1.442695
    %v1844 = vpow.pop %v1843
    %v1845 = vmul.f32 %v1838, 1.442695
    %v1846 = vpow.pop %v1845
    %v1847 = vmul.f32 %v1839, 1.442695
    %v1848 = vpow.pop %v1847
    %v1849 = vmul.f32 %v1840, 1.442695
    %v1850 = vpow.pop %v1849
    %v1851 = vmul.f32 %v1841, 1.442695
    %v1852 = vpow.pop %v1851
    %v1853 = vmul.f32 %v1842, 1.442695
    %v1854 = vpow.pop %v1853
    %v1855 = vadd.f32 %v1844, 1.0
    %v1856 = vadd.f32 %v1846, 1.0
    %v1857 = vadd.f32 %v1848, 1.0
    %v1858 = vadd.f32 %v1850, 1.0
    %v1859 = vadd.f32 %v1852, 1.0
    %v1860 = vadd.f32 %v1854, 1.0
    %v1861 = vrcp.pop %v1855
    %v1862 = vmul.f32 1.0, %v1861
    %v1863 = vrcp.pop %v1856
    %v1864 = vmul.f32 1.0, %v1863
    %v1865 = vrcp.pop %v1857
    %v1866 = vmul.f32 1.0, %v1865
    %v1867 = vrcp.pop %v1858
    %v1868 = vmul.f32 1.0, %v1867
    %v1869 = vrcp.pop %v1859
    %v1870 = vmul.f32 1.0, %v1869
    %v1871 = vrcp.pop %v1860
    %v1872 = vmul.f32 1.0, %v1871
    %v1873 = vlaneseq
    %v1874 = vshrl.u32 %v1873, 7
    %v1875 = vsub.s32 1, %v1874
    %v1876 = vrot.slane %v1825, %v1875
    %v1877 = vmul.f32 %v1876, 0.0
    %1879 = vrot.lane.b32.xlu0 %v1877, 32
    %v1880 = vpop.permute.xlu0 %1879
    %v1882 = vadd.f32 %v1416, %v1880
    %v1883 = vadd.f32 %v1417, %v1880
    %v1884 = vadd.f32 %v1418, %v1880
    %v1885 = vadd.f32 %v1419, %v1880
    %v1886 = vadd.f32 %v1420, %v1880
    %v1887 = vadd.f32 %v1421, %v1880
    %v1888 = vxor.u32 %v1882, 2147483648
    %v1889 = vxor.u32 %v1883, 2147483648
    %v1890 = vxor.u32 %v1884, 2147483648
    %v1891 = vxor.u32 %v1885, 2147483648
    %v1892 = vxor.u32 %v1886, 2147483648
    %v1893 = vxor.u32 %v1887, 2147483648
    %v1894 = vmul.f32 %v1888, 1.442695
    %v1895 = vpow.pop %v1894
    %v1896 = vmul.f32 %v1889, 1.442695
    %v1897 = vpow.pop %v1896
    %v1898 = vmul.f32 %v1890, 1.442695
    %v1899 = vpow.pop %v1898
    %v1900 = vmul.f32 %v1891, 1.442695
    %v1901 = vpow.pop %v1900
    %v1902 = vmul.f32 %v1892, 1.442695
    %v1903 = vpow.pop %v1902
    %v1904 = vmul.f32 %v1893, 1.442695
    %v1905 = vpow.pop %v1904
    %v1906 = vadd.f32 %v1895, 1.0
    %v1907 = vadd.f32 %v1897, 1.0
    %v1908 = vadd.f32 %v1899, 1.0
    %v1909 = vadd.f32 %v1901, 1.0
    %v1910 = vadd.f32 %v1903, 1.0
    %v1911 = vadd.f32 %v1905, 1.0
    %v1912 = vrcp.pop %v1906
    %v1913 = vmul.f32 1.0, %v1912
    %v1914 = vrcp.pop %v1907
    %v1915 = vmul.f32 1.0, %v1914
    %v1916 = vrcp.pop %v1908
    %v1917 = vmul.f32 1.0, %v1916
    %v1918 = vrcp.pop %v1909
    %v1919 = vmul.f32 1.0, %v1918
    %v1920 = vrcp.pop %v1910
    %v1921 = vmul.f32 1.0, %v1920
    %v1922 = vrcp.pop %v1911
    %v1923 = vmul.f32 1.0, %v1922
    %v1924 = vtanh.pop %v1416
    %v1925 = vtanh.pop %v1417
    %v1926 = vtanh.pop %v1418
    %v1927 = vtanh.pop %v1419
    %v1928 = vtanh.pop %v1420
    %v1929 = vtanh.pop %v1421
    %v1930 = vmul.f32 %v1913, 0.0
    %v1931 = vmul.f32 %v1915, 0.0
    %v1932 = vmul.f32 %v1917, 0.0
    %v1933 = vmul.f32 %v1919, 0.0
    %v1934 = vmul.f32 %v1921, 0.0
    %v1935 = vmul.f32 %v1923, 0.0
    %1942 = vrot.lane.b32.xlu0 %v1924, 64
    %v1943 = vpop.permute.xlu0 %1942
    %1944 = vrot.lane.b32.xlu0 %v1925, 64
    %v1945 = vpop.permute.xlu0 %1944
    %1946 = vrot.lane.b32.xlu0 %v1926, 64
    %v1947 = vpop.permute.xlu0 %1946
    %1948 = vrot.lane.b32.xlu0 %v1927, 64
    %v1949 = vpop.permute.xlu0 %1948
    %1950 = vrot.lane.b32.xlu0 %v1928, 64
    %v1951 = vpop.permute.xlu0 %1950
    %1952 = vrot.lane.b32.xlu0 %v1929, 64
    %v1953 = vpop.permute.xlu0 %1952
    %v1960 = vmul.f32 %v1862, %v1943
    %v1961 = vmul.f32 %v1864, %v1945
    %v1962 = vmul.f32 %v1866, %v1947
    %v1963 = vmul.f32 %v1868, %v1949
    %v1964 = vmul.f32 %v1870, %v1951
    %v1965 = vmul.f32 %v1872, %v1953
    %1972 = vrot.lane.b32.xlu0 %v1960, 32
    %v1973 = vpop.permute.xlu0 %1972
    %1974 = vrot.lane.b32.xlu0 %v1961, 32
    %v1975 = vpop.permute.xlu0 %1974
    %1976 = vrot.lane.b32.xlu0 %v1962, 32
    %v1977 = vpop.permute.xlu0 %1976
    %1978 = vrot.lane.b32.xlu0 %v1963, 32
    %v1979 = vpop.permute.xlu0 %1978
    %1980 = vrot.lane.b32.xlu0 %v1964, 32
    %v1981 = vpop.permute.xlu0 %1980
    %1982 = vrot.lane.b32.xlu0 %v1965, 32
    %v1983 = vpop.permute.xlu0 %1982
    %v1990 = vadd.f32 %v1930, %v1973
    %v1991 = vadd.f32 %v1931, %v1975
    %v1992 = vadd.f32 %v1932, %v1977
    %v1993 = vadd.f32 %v1933, %v1979
    %v1994 = vadd.f32 %v1934, %v1981
    %v1995 = vadd.f32 %v1935, %v1983
    %v1996 = vlaneseq
    %v1997 = vshrl.u32 %v1996, 7
    %v1998 = vsub.s32 2, %v1997
    %v1999 = vrot.slane %v1825, %v1998
    %2006 = vrot.lane.b32.xlu0 %v1990, 96
    %v2007 = vpop.permute.xlu0 %2006
    %2008 = vrot.lane.b32.xlu0 %v1991, 96
    %v2009 = vpop.permute.xlu0 %2008
    %2010 = vrot.lane.b32.xlu0 %v1992, 96
    %v2011 = vpop.permute.xlu0 %2010
    %2012 = vrot.lane.b32.xlu0 %v1993, 96
    %v2013 = vpop.permute.xlu0 %2012
    %2014 = vrot.lane.b32.xlu0 %v1994, 96
    %v2015 = vpop.permute.xlu0 %2014
    %2016 = vrot.lane.b32.xlu0 %v1995, 96
    %v2017 = vpop.permute.xlu0 %2016
    %v2024 = vmul.f32 %v1999, %v2007
    %v2025 = vmul.f32 %v1999, %v2009
    %v2026 = vmul.f32 %v1999, %v2011
    %v2027 = vmul.f32 %v1999, %v2013
    %v2028 = vmul.f32 %v1999, %v2015
    %v2029 = vmul.f32 %v1999, %v2017
    %2036 = vrot.lane.b32.xlu0 %v2024, 96
    %v2037 = vpop.permute.xlu0 %2036
    %2038 = vrot.lane.b32.xlu0 %v2025, 96
    %v2039 = vpop.permute.xlu0 %2038
    %2040 = vrot.lane.b32.xlu0 %v2026, 96
    %v2041 = vpop.permute.xlu0 %2040
    %2042 = vrot.lane.b32.xlu0 %v2027, 96
    %v2043 = vpop.permute.xlu0 %2042
    %2044 = vrot.lane.b32.xlu0 %v2028, 96
    %v2045 = vpop.permute.xlu0 %2044
    %2046 = vrot.lane.b32.xlu0 %v2029, 96
    %v2047 = vpop.permute.xlu0 %2046
    %v2054 = vadd.f32 %v1416, %v2037
    %v2055 = vadd.f32 %v1417, %v2039
    %v2056 = vadd.f32 %v1418, %v2041
    %v2057 = vadd.f32 %v1419, %v2043
    %v2058 = vadd.f32 %v1420, %v2045
    %v2059 = vadd.f32 %v1421, %v2047
    %v2060 = vxor.u32 %v2054, 2147483648
    %v2061 = vxor.u32 %v2055, 2147483648
    %v2062 = vxor.u32 %v2056, 2147483648
    %v2063 = vxor.u32 %v2057, 2147483648
    %v2064 = vxor.u32 %v2058, 2147483648
    %v2065 = vxor.u32 %v2059, 2147483648
    %v2066 = vmul.f32 %v2060, 1.442695
    %v2067 = vpow.pop %v2066
    %v2068 = vmul.f32 %v2061, 1.442695
    %v2069 = vpow.pop %v2068
    %v2070 = vmul.f32 %v2062, 1.442695
    %v2071 = vpow.pop %v2070
    %v2072 = vmul.f32 %v2063, 1.442695
    %v2073 = vpow.pop %v2072
    %v2074 = vmul.f32 %v2064, 1.442695
    %v2075 = vpow.pop %v2074
    %v2076 = vmul.f32 %v2065, 1.442695
    %v2077 = vpow.pop %v2076
    %v2078 = vadd.f32 %v2067, 1.0
    %v2079 = vadd.f32 %v2069, 1.0
    %v2080 = vadd.f32 %v2071, 1.0
    %v2081 = vadd.f32 %v2073, 1.0
    %v2082 = vadd.f32 %v2075, 1.0
    %v2083 = vadd.f32 %v2077, 1.0
    %v2084 = vrcp.pop %v2078
    %v2085 = vmul.f32 1.0, %v2084
    %v2086 = vrcp.pop %v2079
    %v2087 = vmul.f32 1.0, %v2086
    %v2088 = vrcp.pop %v2080
    %v2089 = vmul.f32 1.0, %v2088
    %v2090 = vrcp.pop %v2081
    %v2091 = vmul.f32 1.0, %v2090
    %v2092 = vrcp.pop %v2082
    %v2093 = vmul.f32 1.0, %v2092
    %v2094 = vrcp.pop %v2083
    %v2095 = vmul.f32 1.0, %v2094
    %v2096 = vtanh.pop %v1990
    %v2097 = vtanh.pop %v1991
    %v2098 = vtanh.pop %v1992
    %v2099 = vtanh.pop %v1993
    %v2100 = vtanh.pop %v1994
    %v2101 = vtanh.pop %v1995
    %2108 = vrot.lane.b32.xlu0 %v2096, 64
    %v2109 = vpop.permute.xlu0 %2108
    %2110 = vrot.lane.b32.xlu0 %v2097, 64
    %v2111 = vpop.permute.xlu0 %2110
    %2112 = vrot.lane.b32.xlu0 %v2098, 64
    %v2113 = vpop.permute.xlu0 %2112
    %2114 = vrot.lane.b32.xlu0 %v2099, 64
    %v2115 = vpop.permute.xlu0 %2114
    %2116 = vrot.lane.b32.xlu0 %v2100, 64
    %v2117 = vpop.permute.xlu0 %2116
    %2118 = vrot.lane.b32.xlu0 %v2101, 64
    %v2119 = vpop.permute.xlu0 %2118
    %v2126 = vmul.f32 %v2085, %v2109
    %v2127 = vmul.f32 %v2087, %v2111
    %v2128 = vmul.f32 %v2089, %v2113
    %v2129 = vmul.f32 %v2091, %v2115
    %v2130 = vmul.f32 %v2093, %v2117
    %v2131 = vmul.f32 %v2095, %v2119
    %s2132 = scalar_lea.vmem %s5, 32
    %v2133 = vld [vmem:[%s2132] sm:$0xff]
    %v2134 = vld [vmem:[%s2132 + $0x8] sm:$0xff]
    %v2135 = vld [vmem:[%s2132 + $0x10] sm:$0xff]
    %v2136 = vld [vmem:[%s2132 + $0x18] sm:$0xff]
    %2145 = vrot.lane.b32.xlu0 %v1817, 32
    %v2146 = vpop.permute.xlu0 %2145
    %2147 = vrot.lane.b32.xlu0 %v1818, 32
    %v2148 = vpop.permute.xlu0 %2147
    %2149 = vrot.lane.b32.xlu0 %v1819, 32
    %v2150 = vpop.permute.xlu0 %2149
    %2151 = vrot.lane.b32.xlu0 %v1820, 32
    %v2152 = vpop.permute.xlu0 %2151
    %2153 = vrot.lane.b32.xlu0 %v1821, 32
    %v2154 = vpop.permute.xlu0 %2153
    %2155 = vrot.lane.b32.xlu0 %v1822, 32
    %v2156 = vpop.permute.xlu0 %2155
    %2157 = vrot.lane.b32.xlu0 %v1823, 32
    %v2158 = vpop.permute.xlu0 %2157
    %2159 = vrot.lane.b32.xlu0 %v1824, 32
    %v2160 = vpop.permute.xlu0 %2159
    %v2161 = vsel %vm196, %v2146, 0
    %v2163 = vsel %vm196, %v2148, 0
    %v2165 = vsel %vm196, %v2150, 0
    %v2167 = vsel %vm196, %v2152, 0
    %v2169 = vsel %vm196, %v2154, 0
    %v2171 = vsel %vm196, %v2156, 0
    %v2173 = vsel %vm196, %v2158, 0
    %v2175 = vsel %vm196, %v2160, 0
    %2177 = vmatprep.subr.mxu0 0.0
    %2178 = vmatpush1.msra.mxu0 %v2133
    %2179 = vmatprep.subr.mxu0 0.0
    %2180 = vmatpush1.msra.mxu0 %v2134
    %2181 = vmatprep.subr.mxu0 0.0
    %2182 = vmatpush1.msra.mxu0 %v2135
    %2183 = vmatprep.subr.mxu0 0.0
    %2184 = vmatpush1.msra.mxu0 %v2136
    %2185 = vmatprep.subr.mxu0 0.0
    %2186 = vmatpush1.msra.mxu0 0.0
    %2187 = vmatprep.subr.mxu0 0.0
    %2188 = vmatpush1.msra.mxu0 0.0
    %2189 = vmatprep.subr.mxu0 0.0
    %2190 = vmatpush1.msra.mxu0 0.0
    %2191 = vmatprep.subr.mxu0 0.0
    %2192 = vmatpush1.msra.mxu0 0.0
    %2193 = vmatprep.subr.mxu0 0.0
    %2194 = vmatpush1.msra.mxu0 0.0
    %2195 = vmatprep.subr.mxu0 0.0
    %2196 = vmatpush1.msra.mxu0 0.0
    %2197 = vmatprep.subr.mxu0 0.0
    %2198 = vmatpush1.msra.mxu0 0.0
    %2199 = vmatprep.subr.mxu0 0.0
    %2200 = vmatpush1.msra.mxu0 0.0
    %2201 = vmatprep.subr.mxu0 0.0
    %2202 = vmatpush1.msra.mxu0 0.0
    %2203 = vmatprep.subr.mxu0 0.0
    %2204 = vmatpush1.msra.mxu0 0.0
    %2205 = vmatprep.subr.mxu0 0.0
    %2206 = vmatpush1.msra.mxu0 0.0
    %2207 = vmatprep.subr.mxu0 0.0
    %2208 = vmatpush1.msra.mxu0 0.0
    %2209 = vmatprep.subr.mxu0 0.0
    %2210 = vmatpush1.msra.mxu0 0.0
    %2211 = vmatprep.subr.mxu0 0.0
    %2212 = vmatpush1.msra.mxu0 0.0
    %2213 = vmatprep.subr.mxu0 0.0
    %2214 = vmatpush1.msra.mxu0 0.0
    %2215 = vmatprep.subr.mxu0 0.0
    %2216 = vmatpush1.msra.mxu0 0.0
    %2217 = vmatprep.subr.mxu0 0.0
    %2218 = vmatpush1.msra.mxu0 0.0
    %2219 = vmatprep.subr.mxu0 0.0
    %2220 = vmatpush1.msra.mxu0 0.0
    %2221 = vmatprep.subr.mxu0 0.0
    %2222 = vmatpush1.msra.mxu0 0.0
    %2223 = vmatprep.subr.mxu0 0.0
    %2224 = vmatpush1.msra.mxu0 0.0
    %2225 = vmatprep.subr.mxu0 0.0
    %2226 = vmatpush1.msra.mxu0 0.0
    %2227 = vmatprep.subr.mxu0 0.0
    %2228 = vmatpush1.msra.mxu0 0.0
    %2229 = vmatprep.subr.mxu0 0.0
    %2230 = vmatpush1.msra.mxu0 0.0
    %2231 = vmatprep.subr.mxu0 0.0
    %2232 = vmatpush1.msra.mxu0 0.0
    %2233 = vmatprep.subr.mxu0 0.0
    %2234 = vmatpush1.msra.mxu0 0.0
    %2235 = vmatprep.subr.mxu0 0.0
    %2236 = vmatpush1.msra.mxu0 0.0
    %2237 = vmatprep.subr.mxu0 0.0
    %2238 = vmatpush1.msra.mxu0 0.0
    %2239 = vmatprep.subr.mxu0 0.0
    %2240 = vmatpush1.msra.mxu0 0.0
    %2241 = vmatprep.mubr.f32.mxu0 0.0
    %2242 = vmatmul.mubr.f32.gmra.mrb[0].mxu0 %v2161
    %v2243 = vpop.f32.mrb[0].mxu0
    %v2244 = vadd.f32 0.0, %v2243
    %v2245 = vpop.f32.mrb[0].mxu0
    %2246 = vmatprep.mubr.f32.mxu0 0.0
    %2247 = vmatmul.mubr.f32.gmra.mrb[0].mxu0 %v2163
    %v2248 = vpop.f32.mrb[0].mxu0
    %v2249 = vadd.f32 0.0, %v2248
    %v2250 = vpop.f32.mrb[0].mxu0
    %2251 = vmatprep.mubr.f32.mxu0 0.0
    %2252 = vmatmul.mubr.f32.gmra.mrb[0].mxu0 %v2165
    %v2253 = vpop.f32.mrb[0].mxu0
    %v2254 = vadd.f32 0.0, %v2253
    %v2255 = vpop.f32.mrb[0].mxu0
    %2256 = vmatprep.mubr.f32.mxu0 0.0
    %2257 = vmatmul.mubr.f32.gmra.mrb[0].mxu0 %v2167
    %v2258 = vpop.f32.mrb[0].mxu0
    %v2259 = vadd.f32 0.0, %v2258
    %v2260 = vpop.f32.mrb[0].mxu0
    %2261 = vmatprep.mubr.f32.mxu0 0.0
    %2262 = vmatmul.mubr.f32.gmra.mrb[0].mxu0 %v2169
    %v2263 = vpop.f32.mrb[0].mxu0
    %v2264 = vadd.f32 0.0, %v2263
    %v2265 = vpop.f32.mrb[0].mxu0
    %2266 = vmatprep.mubr.f32.mxu0 0.0
    %2267 = vmatmul.mubr.f32.gmra.mrb[0].mxu0 %v2171
    %v2268 = vpop.f32.mrb[0].mxu0
    %v2269 = vadd.f32 0.0, %v2268
    %v2270 = vpop.f32.mrb[0].mxu0
    %2271 = vmatprep.mubr.f32.mxu0 0.0
    %2272 = vmatmul.mubr.f32.gmra.mrb[0].mxu0 %v2173
    %v2273 = vpop.f32.mrb[0].mxu0
    %v2274 = vadd.f32 0.0, %v2273
    %v2275 = vpop.f32.mrb[0].mxu0
    %2276 = vmatprep.mubr.f32.mxu0 0.0
    %2277 = vmatmul.mubr.f32.gmra.mrb[0].mxu0 %v2175
    %v2278 = vpop.f32.mrb[0].mxu0
    %v2279 = vadd.f32 0.0, %v2278
    %v2280 = vpop.f32.mrb[0].mxu0
    %2281 = vdwg.mxu0
    %s2282 = scalar_lea.vmem %s6, 32
    %v2283 = vld [vmem:[%s2282] sm:$0xff]
    %v2284 = vld [vmem:[%s2282 + $0x8] sm:$0xff]
    %v2285 = vld [vmem:[%s2282 + $0x10] sm:$0xff]
    %v2286 = vld [vmem:[%s2282 + $0x18] sm:$0xff]
    %2293 = vrot.lane.b32.xlu0 %v2126, 32
    %v2294 = vpop.permute.xlu0 %2293
    %2295 = vrot.lane.b32.xlu0 %v2127, 32
    %v2296 = vpop.permute.xlu0 %2295
    %2297 = vrot.lane.b32.xlu0 %v2128, 32
    %v2298 = vpop.permute.xlu0 %2297
    %2299 = vrot.lane.b32.xlu0 %v2129, 32
    %v2300 = vpop.permute.xlu0 %2299
    %2301 = vrot.lane.b32.xlu0 %v2130, 32
    %v2302 = vpop.permute.xlu0 %2301
    %2303 = vrot.lane.b32.xlu0 %v2131, 32
    %v2304 = vpop.permute.xlu0 %2303
    %v2305 = vsel %vm196, %v2294, 0
    %v2307 = vsel %vm196, %v2296, 0
    %v2309 = vsel %vm196, %v2298, 0
    %v2311 = vsel %vm196, %v2300, 0
    %v2313 = vsel %vm196, %v2302, 0
    %v2315 = vsel %vm196, %v2304, 0
    %2317 = vmatprep.subr.mxu0 0.0
    %2318 = vmatpush1.msra.mxu0 %v2283
    %2319 = vmatprep.subr.mxu0 0.0
    %2320 = vmatpush1.msra.mxu0 %v2284
    %2321 = vmatprep.subr.mxu0 0.0
    %2322 = vmatpush1.msra.mxu0 %v2285
    %2323 = vmatprep.subr.mxu0 0.0
    %2324 = vmatpush1.msra.mxu0 %v2286
    %2325 = vmatprep.subr.mxu0 0.0
    %2326 = vmatpush1.msra.mxu0 0.0
    %2327 = vmatprep.subr.mxu0 0.0
    %2328 = vmatpush1.msra.mxu0 0.0
    %2329 = vmatprep.subr.mxu0 0.0
    %2330 = vmatpush1.msra.mxu0 0.0
    %2331 = vmatprep.subr.mxu0 0.0
    %2332 = vmatpush1.msra.mxu0 0.0
    %2333 = vmatprep.subr.mxu0 0.0
    %2334 = vmatpush1.msra.mxu0 0.0
    %2335 = vmatprep.subr.mxu0 0.0
    %2336 = vmatpush1.msra.mxu0 0.0
    %2337 = vmatprep.subr.mxu0 0.0
    %2338 = vmatpush1.msra.mxu0 0.0
    %2339 = vmatprep.subr.mxu0 0.0
    %2340 = vmatpush1.msra.mxu0 0.0
    %2341 = vmatprep.subr.mxu0 0.0
    %2342 = vmatpush1.msra.mxu0 0.0
    %2343 = vmatprep.subr.mxu0 0.0
    %2344 = vmatpush1.msra.mxu0 0.0
    %2345 = vmatprep.subr.mxu0 0.0
    %2346 = vmatpush1.msra.mxu0 0.0
    %2347 = vmatprep.subr.mxu0 0.0
    %2348 = vmatpush1.msra.mxu0 0.0
    %2349 = vmatprep.subr.mxu0 0.0
    %2350 = vmatpush1.msra.mxu0 0.0
    %2351 = vmatprep.subr.mxu0 0.0
    %2352 = vmatpush1.msra.mxu0 0.0
    %2353 = vmatprep.subr.mxu0 0.0
    %2354 = vmatpush1.msra.mxu0 0.0
    %2355 = vmatprep.subr.mxu0 0.0
    %2356 = vmatpush1.msra.mxu0 0.0
    %2357 = vmatprep.subr.mxu0 0.0
    %2358 = vmatpush1.msra.mxu0 0.0
    %2359 = vmatprep.subr.mxu0 0.0
    %2360 = vmatpush1.msra.mxu0 0.0
    %2361 = vmatprep.subr.mxu0 0.0
    %2362 = vmatpush1.msra.mxu0 0.0
    %2363 = vmatprep.subr.mxu0 0.0
    %2364 = vmatpush1.msra.mxu0 0.0
    %2365 = vmatprep.subr.mxu0 0.0
    %2366 = vmatpush1.msra.mxu0 0.0
    %2367 = vmatprep.subr.mxu0 0.0
    %2368 = vmatpush1.msra.mxu0 0.0
    %2369 = vmatprep.subr.mxu0 0.0
    %2370 = vmatpush1.msra.mxu0 0.0
    %2371 = vmatprep.subr.mxu0 0.0
    %2372 = vmatpush1.msra.mxu0 0.0
    %2373 = vmatprep.subr.mxu0 0.0
    %2374 = vmatpush1.msra.mxu0 0.0
    %2375 = vmatprep.subr.mxu0 0.0
    %2376 = vmatpush1.msra.mxu0 0.0
    %2377 = vmatprep.subr.mxu0 0.0
    %2378 = vmatpush1.msra.mxu0 0.0
    %2379 = vmatprep.subr.mxu0 0.0
    %2380 = vmatpush1.msra.mxu0 0.0
    %2381 = vmatprep.mubr.f32.mxu0 0.0
    %2382 = vmatmul.mubr.f32.gmra.mrb[0].mxu0 %v2305
    %v2383 = vpop.f32.mrb[0].mxu0
    %v2384 = vadd.f32 0.0, %v2383
    %v2385 = vpop.f32.mrb[0].mxu0
    %2386 = vmatprep.mubr.f32.mxu0 0.0
    %2387 = vmatmul.mubr.f32.gmra.mrb[0].mxu0 %v2307
    %v2388 = vpop.f32.mrb[0].mxu0
    %v2389 = vadd.f32 0.0, %v2388
    %v2390 = vpop.f32.mrb[0].mxu0
    %2391 = vmatprep.mubr.f32.mxu0 0.0
    %2392 = vmatmul.mubr.f32.gmra.mrb[0].mxu0 %v2309
    %v2393 = vpop.f32.mrb[0].mxu0
    %v2394 = vadd.f32 0.0, %v2393
    %v2395 = vpop.f32.mrb[0].mxu0
    %2396 = vmatprep.mubr.f32.mxu0 0.0
    %2397 = vmatmul.mubr.f32.gmra.mrb[0].mxu0 %v2311
    %v2398 = vpop.f32.mrb[0].mxu0
    %v2399 = vadd.f32 0.0, %v2398
    %v2400 = vpop.f32.mrb[0].mxu0
    %2401 = vmatprep.mubr.f32.mxu0 0.0
    %2402 = vmatmul.mubr.f32.gmra.mrb[0].mxu0 %v2313
    %v2403 = vpop.f32.mrb[0].mxu0
    %v2404 = vadd.f32 0.0, %v2403
    %v2405 = vpop.f32.mrb[0].mxu0
    %2406 = vmatprep.mubr.f32.mxu0 0.0
    %2407 = vmatmul.mubr.f32.gmra.mrb[0].mxu0 %v2315
    %v2408 = vpop.f32.mrb[0].mxu0
    %v2409 = vadd.f32 0.0, %v2408
    %v2410 = vpop.f32.mrb[0].mxu0
    %2411 = vdwg.mxu0
    %s2412 = scalar_lea.vmem %s7, 32
    %v2413 = vld [vmem:[%s2412] sm:$0xff]
    %v2414 = vld [vmem:[%s2412 + $0x8] sm:$0xff]
    %v2415 = vld [vmem:[%s2412 + $0x10] sm:$0xff]
    %v2416 = vld [vmem:[%s2412 + $0x18] sm:$0xff]
    %2417 = vmatprep.subr.mxu0 0.0
    %2418 = vmatpush1.msra.mxu0 %v2413
    %2419 = vmatprep.subr.mxu0 0.0
    %2420 = vmatpush1.msra.mxu0 %v2414
    %2421 = vmatprep.subr.mxu0 0.0
    %2422 = vmatpush1.msra.mxu0 %v2415
    %2423 = vmatprep.subr.mxu0 0.0
    %2424 = vmatpush1.msra.mxu0 %v2416
    %2425 = vmatprep.subr.mxu0 0.0
    %2426 = vmatpush1.msra.mxu0 0.0
    %2427 = vmatprep.subr.mxu0 0.0
    %2428 = vmatpush1.msra.mxu0 0.0
    %2429 = vmatprep.subr.mxu0 0.0
    %2430 = vmatpush1.msra.mxu0 0.0
    %2431 = vmatprep.subr.mxu0 0.0
    %2432 = vmatpush1.msra.mxu0 0.0
    %2433 = vmatprep.subr.mxu0 0.0
    %2434 = vmatpush1.msra.mxu0 0.0
    %2435 = vmatprep.subr.mxu0 0.0
    %2436 = vmatpush1.msra.mxu0 0.0
    %2437 = vmatprep.subr.mxu0 0.0
    %2438 = vmatpush1.msra.mxu0 0.0
    %2439 = vmatprep.subr.mxu0 0.0
    %2440 = vmatpush1.msra.mxu0 0.0
    %2441 = vmatprep.subr.mxu0 0.0
    %2442 = vmatpush1.msra.mxu0 0.0
    %2443 = vmatprep.subr.mxu0 0.0
    %2444 = vmatpush1.msra.mxu0 0.0
    %2445 = vmatprep.subr.mxu0 0.0
    %2446 = vmatpush1.msra.mxu0 0.0
    %2447 = vmatprep.subr.mxu0 0.0
    %2448 = vmatpush1.msra.mxu0 0.0
    %2449 = vmatprep.subr.mxu0 0.0
    %2450 = vmatpush1.msra.mxu0 0.0
    %2451 = vmatprep.subr.mxu0 0.0
    %2452 = vmatpush1.msra.mxu0 0.0
    %2453 = vmatprep.subr.mxu0 0.0
    %2454 = vmatpush1.msra.mxu0 0.0
    %2455 = vmatprep.subr.mxu0 0.0
    %2456 = vmatpush1.msra.mxu0 0.0
    %2457 = vmatprep.subr.mxu0 0.0
    %2458 = vmatpush1.msra.mxu0 0.0
    %2459 = vmatprep.subr.mxu0 0.0
    %2460 = vmatpush1.msra.mxu0 0.0
    %2461 = vmatprep.subr.mxu0 0.0
    %2462 = vmatpush1.msra.mxu0 0.0
    %2463 = vmatprep.subr.mxu0 0.0
    %2464 = vmatpush1.msra.mxu0 0.0
    %2465 = vmatprep.subr.mxu0 0.0
    %2466 = vmatpush1.msra.mxu0 0.0
    %2467 = vmatprep.subr.mxu0 0.0
    %2468 = vmatpush1.msra.mxu0 0.0
    %2469 = vmatprep.subr.mxu0 0.0
    %2470 = vmatpush1.msra.mxu0 0.0
    %2471 = vmatprep.subr.mxu0 0.0
    %2472 = vmatpush1.msra.mxu0 0.0
    %2473 = vmatprep.subr.mxu0 0.0
    %2474 = vmatpush1.msra.mxu0 0.0
    %2475 = vmatprep.subr.mxu0 0.0
    %2476 = vmatpush1.msra.mxu0 0.0
    %2477 = vmatprep.subr.mxu0 0.0
    %2478 = vmatpush1.msra.mxu0 0.0
    %2479 = vmatprep.subr.mxu0 0.0
    %2480 = vmatpush1.msra.mxu0 0.0
    %2481 = vmatprep.mubr.f32.mxu0 0.0
    %2482 = vmatmul.mubr.f32.gmra.mrb[0].mxu0 %v2161
    %v2483 = vpop.f32.mrb[0].mxu0
    %v2484 = vadd.f32 0.0, %v2483
    %v2485 = vpop.f32.mrb[0].mxu0
    %2486 = vmatprep.mubr.f32.mxu0 0.0
    %2487 = vmatmul.mubr.f32.gmra.mrb[0].mxu0 %v2163
    %v2488 = vpop.f32.mrb[0].mxu0
    %v2489 = vadd.f32 0.0, %v2488
    %v2490 = vpop.f32.mrb[0].mxu0
    %2491 = vmatprep.mubr.f32.mxu0 0.0
    %2492 = vmatmul.mubr.f32.gmra.mrb[0].mxu0 %v2165
    %v2493 = vpop.f32.mrb[0].mxu0
    %v2494 = vadd.f32 0.0, %v2493
    %v2495 = vpop.f32.mrb[0].mxu0
    %2496 = vmatprep.mubr.f32.mxu0 0.0
    %2497 = vmatmul.mubr.f32.gmra.mrb[0].mxu0 %v2167
    %v2498 = vpop.f32.mrb[0].mxu0
    %v2499 = vadd.f32 0.0, %v2498
    %v2500 = vpop.f32.mrb[0].mxu0
    %2501 = vmatprep.mubr.f32.mxu0 0.0
    %2502 = vmatmul.mubr.f32.gmra.mrb[0].mxu0 %v2169
    %v2503 = vpop.f32.mrb[0].mxu0
    %v2504 = vadd.f32 0.0, %v2503
    %v2505 = vpop.f32.mrb[0].mxu0
    %2506 = vmatprep.mubr.f32.mxu0 0.0
    %2507 = vmatmul.mubr.f32.gmra.mrb[0].mxu0 %v2171
    %v2508 = vpop.f32.mrb[0].mxu0
    %v2509 = vadd.f32 0.0, %v2508
    %v2510 = vpop.f32.mrb[0].mxu0
    %2511 = vmatprep.mubr.f32.mxu0 0.0
    %2512 = vmatmul.mubr.f32.gmra.mrb[0].mxu0 %v2173
    %v2513 = vpop.f32.mrb[0].mxu0
    %v2514 = vadd.f32 0.0, %v2513
    %v2515 = vpop.f32.mrb[0].mxu0
    %2516 = vmatprep.mubr.f32.mxu0 0.0
    %2517 = vmatmul.mubr.f32.gmra.mrb[0].mxu0 %v2175
    %v2518 = vpop.f32.mrb[0].mxu0
    %v2519 = vadd.f32 0.0, %v2518
    %v2520 = vpop.f32.mrb[0].mxu0
    %2521 = vdwg.mxu0
    %2522 = vmatprep.subr.mxu0 0.0
    %2523 = vmatpush1.msra.mxu0 %v2384
    %2524 = vmatprep.subr.mxu0 0.0
    %2525 = vmatpush1.msra.mxu0 %v2389
    %2526 = vmatprep.subr.mxu0 0.0
    %2527 = vmatpush1.msra.mxu0 %v2394
    %2528 = vmatprep.subr.mxu0 0.0
    %2529 = vmatpush1.msra.mxu0 %v2399
    %2530 = vmatprep.subr.mxu0 0.0
    %2531 = vmatpush1.msra.mxu0 %v2404
    %2532 = vmatprep.subr.mxu0 0.0
    %2533 = vmatpush1.msra.mxu0 %v2409
    %2534 = vmatprep.subr.mxu0 0.0
    %2535 = vmatpush1.msra.mxu0 0.0
    %2536 = vmatprep.subr.mxu0 0.0
    %2537 = vmatpush1.msra.mxu0 0.0
    %2538 = vmatprep.subr.mxu0 0.0
    %2539 = vmatpush1.msra.mxu0 0.0
    %2540 = vmatprep.subr.mxu0 0.0
    %2541 = vmatpush1.msra.mxu0 0.0
    %2542 = vmatprep.subr.mxu0 0.0
    %2543 = vmatpush1.msra.mxu0 0.0
    %2544 = vmatprep.subr.mxu0 0.0
    %2545 = vmatpush1.msra.mxu0 0.0
    %2546 = vmatprep.subr.mxu0 0.0
    %2547 = vmatpush1.msra.mxu0 0.0
    %2548 = vmatprep.subr.mxu0 0.0
    %2549 = vmatpush1.msra.mxu0 0.0
    %2550 = vmatprep.subr.mxu0 0.0
    %2551 = vmatpush1.msra.mxu0 0.0
    %2552 = vmatprep.subr.mxu0 0.0
    %2553 = vmatpush1.msra.mxu0 0.0
    %2554 = vmatprep.subr.mxu0 0.0
    %2555 = vmatpush1.msra.mxu0 0.0
    %2556 = vmatprep.subr.mxu0 0.0
    %2557 = vmatpush1.msra.mxu0 0.0
    %2558 = vmatprep.subr.mxu0 0.0
    %2559 = vmatpush1.msra.mxu0 0.0
    %2560 = vmatprep.subr.mxu0 0.0
    %2561 = vmatpush1.msra.mxu0 0.0
    %2562 = vmatprep.subr.mxu0 0.0
    %2563 = vmatpush1.msra.mxu0 0.0
    %2564 = vmatprep.subr.mxu0 0.0
    %2565 = vmatpush1.msra.mxu0 0.0
    %2566 = vmatprep.subr.mxu0 0.0
    %2567 = vmatpush1.msra.mxu0 0.0
    %2568 = vmatprep.subr.mxu0 0.0
    %2569 = vmatpush1.msra.mxu0 0.0
    %2570 = vmatprep.subr.mxu0 0.0
    %2571 = vmatpush1.msra.mxu0 0.0
    %2572 = vmatprep.subr.mxu0 0.0
    %2573 = vmatpush1.msra.mxu0 0.0
    %2574 = vmatprep.subr.mxu0 0.0
    %2575 = vmatpush1.msra.mxu0 0.0
    %2576 = vmatprep.subr.mxu0 0.0
    %2577 = vmatpush1.msra.mxu0 0.0
    %2578 = vmatprep.subr.mxu0 0.0
    %2579 = vmatpush1.msra.mxu0 0.0
    %2580 = vmatprep.subr.mxu0 0.0
    %2581 = vmatpush1.msra.mxu0 0.0
    %2582 = vmatprep.subr.mxu0 0.0
    %2583 = vmatpush1.msra.mxu0 0.0
    %2584 = vmatprep.subr.mxu0 0.0
    %2585 = vmatpush1.msra.mxu0 0.0
    %2586 = vmatprep.mubr.f32.mxu0 0.0
    %2587 = vmatmul.mubr.f32.gmra.mrb[0].mxu0 %v554
    %v2588 = vpop.f32.mrb[0].mxu0
    %v2589 = vadd.f32 0.0, %v2588
    %v2590 = vpop.f32.mrb[0].mxu0
    %2591 = vmatprep.mubr.f32.mxu0 0.0
    %2592 = vmatmul.mubr.f32.gmra.mrb[0].mxu0 %v557
    %v2593 = vpop.f32.mrb[0].mxu0
    %v2594 = vadd.f32 0.0, %v2593
    %v2595 = vpop.f32.mrb[0].mxu0
    %2596 = vmatprep.mubr.f32.mxu0 0.0
    %2597 = vmatmul.mubr.f32.gmra.mrb[0].mxu0 %v560
    %v2598 = vpop.f32.mrb[0].mxu0
    %v2599 = vadd.f32 0.0, %v2598
    %v2600 = vpop.f32.mrb[0].mxu0
    %2601 = vmatprep.mubr.f32.mxu0 0.0
    %2602 = vmatmul.mubr.f32.gmra.mrb[0].mxu0 %v563
    %v2603 = vpop.f32.mrb[0].mxu0
    %v2604 = vadd.f32 0.0, %v2603
    %v2605 = vpop.f32.mrb[0].mxu0
    %2606 = vmatprep.mubr.f32.mxu0 0.0
    %2607 = vmatmul.mubr.f32.gmra.mrb[0].mxu0 %v566
    %v2608 = vpop.f32.mrb[0].mxu0
    %v2609 = vadd.f32 0.0, %v2608
    %v2610 = vpop.f32.mrb[0].mxu0
    %2611 = vmatprep.mubr.f32.mxu0 0.0
    %2612 = vmatmul.mubr.f32.gmra.mrb[0].mxu0 %v569
    %v2613 = vpop.f32.mrb[0].mxu0
    %v2614 = vadd.f32 0.0, %v2613
    %v2615 = vpop.f32.mrb[0].mxu0
    %2616 = vmatprep.mubr.f32.mxu0 0.0
    %2617 = vmatmul.mubr.f32.gmra.mrb[0].mxu0 %v572
    %v2618 = vpop.f32.mrb[0].mxu0
    %v2619 = vadd.f32 0.0, %v2618
    %v2620 = vpop.f32.mrb[0].mxu0
    %2621 = vmatprep.mubr.f32.mxu0 0.0
    %2622 = vmatmul.mubr.f32.gmra.mrb[0].mxu0 %v575
    %v2623 = vpop.f32.mrb[0].mxu0
    %v2624 = vadd.f32 0.0, %v2623
    %v2625 = vpop.f32.mrb[0].mxu0
    %2626 = vdwg.mxu0
    %2627 = vmatprep.subr.mxu0 0.0
    %2628 = vmatpush1.msra.mxu0 %v2244
    %2629 = vmatprep.subr.mxu0 0.0
    %2630 = vmatpush1.msra.mxu0 %v2249
    %2631 = vmatprep.subr.mxu0 0.0
    %2632 = vmatpush1.msra.mxu0 %v2254
    %2633 = vmatprep.subr.mxu0 0.0
    %2634 = vmatpush1.msra.mxu0 %v2259
    %2635 = vmatprep.subr.mxu0 0.0
    %2636 = vmatpush1.msra.mxu0 %v2264
    %2637 = vmatprep.subr.mxu0 0.0
    %2638 = vmatpush1.msra.mxu0 %v2269
    %2639 = vmatprep.subr.mxu0 0.0
    %2640 = vmatpush1.msra.mxu0 %v2274
    %2641 = vmatprep.subr.mxu0 0.0
    %2642 = vmatpush1.msra.mxu0 %v2279
    %2643 = vmatprep.subr.mxu0 0.0
    %2644 = vmatpush1.msra.mxu0 0.0
    %2645 = vmatprep.subr.mxu0 0.0
    %2646 = vmatpush1.msra.mxu0 0.0
    %2647 = vmatprep.subr.mxu0 0.0
    %2648 = vmatpush1.msra.mxu0 0.0
    %2649 = vmatprep.subr.mxu0 0.0
    %2650 = vmatpush1.msra.mxu0 0.0
    %2651 = vmatprep.subr.mxu0 0.0
    %2652 = vmatpush1.msra.mxu0 0.0
    %2653 = vmatprep.subr.mxu0 0.0
    %2654 = vmatpush1.msra.mxu0 0.0
    %2655 = vmatprep.subr.mxu0 0.0
    %2656 = vmatpush1.msra.mxu0 0.0
    %2657 = vmatprep.subr.mxu0 0.0
    %2658 = vmatpush1.msra.mxu0 0.0
    %2659 = vmatprep.subr.mxu0 0.0
    %2660 = vmatpush1.msra.mxu0 0.0
    %2661 = vmatprep.subr.mxu0 0.0
    %2662 = vmatpush1.msra.mxu0 0.0
    %2663 = vmatprep.subr.mxu0 0.0
    %2664 = vmatpush1.msra.mxu0 0.0
    %2665 = vmatprep.subr.mxu0 0.0
    %2666 = vmatpush1.msra.mxu0 0.0
    %2667 = vmatprep.subr.mxu0 0.0
    %2668 = vmatpush1.msra.mxu0 0.0
    %2669 = vmatprep.subr.mxu0 0.0
    %2670 = vmatpush1.msra.mxu0 0.0
    %2671 = vmatprep.subr.mxu0 0.0
    %2672 = vmatpush1.msra.mxu0 0.0
    %2673 = vmatprep.subr.mxu0 0.0
    %2674 = vmatpush1.msra.mxu0 0.0
    %2675 = vmatprep.subr.mxu0 0.0
    %2676 = vmatpush1.msra.mxu0 0.0
    %2677 = vmatprep.subr.mxu0 0.0
    %2678 = vmatpush1.msra.mxu0 0.0
    %2679 = vmatprep.subr.mxu0 0.0
    %2680 = vmatpush1.msra.mxu0 0.0
    %2681 = vmatprep.subr.mxu0 0.0
    %2682 = vmatpush1.msra.mxu0 0.0
    %2683 = vmatprep.subr.mxu0 0.0
    %2684 = vmatpush1.msra.mxu0 0.0
    %2685 = vmatprep.subr.mxu0 0.0
    %2686 = vmatpush1.msra.mxu0 0.0
    %2687 = vmatprep.subr.mxu0 0.0
    %2688 = vmatpush1.msra.mxu0 0.0
    %2689 = vmatprep.subr.mxu0 0.0
    %2690 = vmatpush1.msra.mxu0 0.0
    %2691 = vmatprep.mubr.f32.mxu0 0.0
    %2692 = vmatmul.mubr.f32.gmra.mrb[0].mxu0 %v684
    %v2693 = vpop.f32.mrb[0].mxu0
    %v2694 = vadd.f32 %v2589, %v2693
    %v2695 = vpop.f32.mrb[0].mxu0
    %2696 = vmatprep.mubr.f32.mxu0 0.0
    %2697 = vmatmul.mubr.f32.gmra.mrb[0].mxu0 %v687
    %v2698 = vpop.f32.mrb[0].mxu0
    %v2699 = vadd.f32 %v2594, %v2698
    %v2700 = vpop.f32.mrb[0].mxu0
    %2701 = vmatprep.mubr.f32.mxu0 0.0
    %2702 = vmatmul.mubr.f32.gmra.mrb[0].mxu0 %v690
    %v2703 = vpop.f32.mrb[0].mxu0
    %v2704 = vadd.f32 %v2599, %v2703
    %v2705 = vpop.f32.mrb[0].mxu0
    %2706 = vmatprep.mubr.f32.mxu0 0.0
    %2707 = vmatmul.mubr.f32.gmra.mrb[0].mxu0 %v693
    %v2708 = vpop.f32.mrb[0].mxu0
    %v2709 = vadd.f32 %v2604, %v2708
    %v2710 = vpop.f32.mrb[0].mxu0
    %2711 = vmatprep.mubr.f32.mxu0 0.0
    %2712 = vmatmul.mubr.f32.gmra.mrb[0].mxu0 %v696
    %v2713 = vpop.f32.mrb[0].mxu0
    %v2714 = vadd.f32 %v2609, %v2713
    %v2715 = vpop.f32.mrb[0].mxu0
    %2716 = vmatprep.mubr.f32.mxu0 0.0
    %2717 = vmatmul.mubr.f32.gmra.mrb[0].mxu0 %v699
    %v2718 = vpop.f32.mrb[0].mxu0
    %v2719 = vadd.f32 %v2614, %v2718
    %v2720 = vpop.f32.mrb[0].mxu0
    %2721 = vmatprep.mubr.f32.mxu0 0.0
    %2722 = vmatmul.mubr.f32.gmra.mrb[0].mxu0 %v702
    %v2723 = vpop.f32.mrb[0].mxu0
    %v2724 = vadd.f32 %v2619, %v2723
    %v2725 = vpop.f32.mrb[0].mxu0
    %2726 = vmatprep.mubr.f32.mxu0 0.0
    %2727 = vmatmul.mubr.f32.gmra.mrb[0].mxu0 %v705
    %v2728 = vpop.f32.mrb[0].mxu0
    %v2729 = vadd.f32 %v2624, %v2728
    %v2730 = vpop.f32.mrb[0].mxu0
    %2731 = vdwg.mxu0
    %s2732 = scalar_lea.vmem [#allocation6], 32
    %v2733 = vld [vmem:[%s2732] sm:$0xff]
    %v2734 = vld [vmem:[%s2732 + $0x8] sm:$0xff]
    %v2735 = vld [vmem:[%s2732 + $0x10] sm:$0xff]
    %v2736 = vld [vmem:[%s2732 + $0x18] sm:$0xff]
    %2737 = vmatprep.subr.mxu0 0.0
    %2738 = vmatpush1.msra.mxu0 %v2733
    %2739 = vmatprep.subr.mxu0 0.0
    %2740 = vmatpush1.msra.mxu0 %v2734
    %2741 = vmatprep.subr.mxu0 0.0
    %2742 = vmatpush1.msra.mxu0 %v2735
    %2743 = vmatprep.subr.mxu0 0.0
    %2744 = vmatpush1.msra.mxu0 %v2736
    %2745 = vmatprep.subr.mxu0 0.0
    %2746 = vmatpush1.msra.mxu0 0.0
    %2747 = vmatprep.subr.mxu0 0.0
    %2748 = vmatpush1.msra.mxu0 0.0
    %2749 = vmatprep.subr.mxu0 0.0
    %2750 = vmatpush1.msra.mxu0 0.0
    %2751 = vmatprep.subr.mxu0 0.0
    %2752 = vmatpush1.msra.mxu0 0.0
    %2753 = vmatprep.subr.mxu0 0.0
    %2754 = vmatpush1.msra.mxu0 0.0
    %2755 = vmatprep.subr.mxu0 0.0
    %2756 = vmatpush1.msra.mxu0 0.0
    %2757 = vmatprep.subr.mxu0 0.0
    %2758 = vmatpush1.msra.mxu0 0.0
    %2759 = vmatprep.subr.mxu0 0.0
    %2760 = vmatpush1.msra.mxu0 0.0
    %2761 = vmatprep.subr.mxu0 0.0
    %2762 = vmatpush1.msra.mxu0 0.0
    %2763 = vmatprep.subr.mxu0 0.0
    %2764 = vmatpush1.msra.mxu0 0.0
    %2765 = vmatprep.subr.mxu0 0.0
    %2766 = vmatpush1.msra.mxu0 0.0
    %2767 = vmatprep.subr.mxu0 0.0
    %2768 = vmatpush1.msra.mxu0 0.0
    %2769 = vmatprep.subr.mxu0 0.0
    %2770 = vmatpush1.msra.mxu0 0.0
    %2771 = vmatprep.subr.mxu0 0.0
    %2772 = vmatpush1.msra.mxu0 0.0
    %2773 = vmatprep.subr.mxu0 0.0
    %2774 = vmatpush1.msra.mxu0 0.0
    %2775 = vmatprep.subr.mxu0 0.0
    %2776 = vmatpush1.msra.mxu0 0.0
    %2777 = vmatprep.subr.mxu0 0.0
    %2778 = vmatpush1.msra.mxu0 0.0
    %2779 = vmatprep.subr.mxu0 0.0
    %2780 = vmatpush1.msra.mxu0 0.0
    %2781 = vmatprep.subr.mxu0 0.0
    %2782 = vmatpush1.msra.mxu0 0.0
    %2783 = vmatprep.subr.mxu0 0.0
    %2784 = vmatpush1.msra.mxu0 0.0
    %2785 = vmatprep.subr.mxu0 0.0
    %2786 = vmatpush1.msra.mxu0 0.0
    %2787 = vmatprep.subr.mxu0 0.0
    %2788 = vmatpush1.msra.mxu0 0.0
    %2789 = vmatprep.subr.mxu0 0.0
    %2790 = vmatpush1.msra.mxu0 0.0
    %2791 = vmatprep.subr.mxu0 0.0
    %2792 = vmatpush1.msra.mxu0 0.0
    %2793 = vmatprep.subr.mxu0 0.0
    %2794 = vmatpush1.msra.mxu0 0.0
    %2795 = vmatprep.subr.mxu0 0.0
    %2796 = vmatpush1.msra.mxu0 0.0
    %2797 = vmatprep.subr.mxu0 0.0
    %2798 = vmatpush1.msra.mxu0 0.0
    %2799 = vmatprep.subr.mxu0 0.0
    %2800 = vmatpush1.msra.mxu0 0.0
    %2801 = vmatprep.mubr.f32.mxu0 0.0
    %2802 = vmatmul.mubr.f32.gmra.mrb[0].mxu0 %v2161
    %v2803 = vpop.f32.mrb[0].mxu0
    %v2804 = vadd.f32 0.0, %v2803
    %v2805 = vpop.f32.mrb[0].mxu0
    %2806 = vmatprep.mubr.f32.mxu0 0.0
    %2807 = vmatmul.mubr.f32.gmra.mrb[0].mxu0 %v2163
    %v2808 = vpop.f32.mrb[0].mxu0
    %v2809 = vadd.f32 0.0, %v2808
    %v2810 = vpop.f32.mrb[0].mxu0
    %2811 = vmatprep.mubr.f32.mxu0 0.0
    %2812 = vmatmul.mubr.f32.gmra.mrb[0].mxu0 %v2165
    %v2813 = vpop.f32.mrb[0].mxu0
    %v2814 = vadd.f32 0.0, %v2813
    %v2815 = vpop.f32.mrb[0].mxu0
    %2816 = vmatprep.mubr.f32.mxu0 0.0
    %2817 = vmatmul.mubr.f32.gmra.mrb[0].mxu0 %v2167
    %v2818 = vpop.f32.mrb[0].mxu0
    %v2819 = vadd.f32 0.0, %v2818
    %v2820 = vpop.f32.mrb[0].mxu0
    %2821 = vmatprep.mubr.f32.mxu0 0.0
    %2822 = vmatmul.mubr.f32.gmra.mrb[0].mxu0 %v2169
    %v2823 = vpop.f32.mrb[0].mxu0
    %v2824 = vadd.f32 0.0, %v2823
    %v2825 = vpop.f32.mrb[0].mxu0
    %2826 = vmatprep.mubr.f32.mxu0 0.0
    %2827 = vmatmul.mubr.f32.gmra.mrb[0].mxu0 %v2171
    %v2828 = vpop.f32.mrb[0].mxu0
    %v2829 = vadd.f32 0.0, %v2828
    %v2830 = vpop.f32.mrb[0].mxu0
    %2831 = vmatprep.mubr.f32.mxu0 0.0
    %2832 = vmatmul.mubr.f32.gmra.mrb[0].mxu0 %v2173
    %v2833 = vpop.f32.mrb[0].mxu0
    %v2834 = vadd.f32 0.0, %v2833
    %v2835 = vpop.f32.mrb[0].mxu0
    %2836 = vmatprep.mubr.f32.mxu0 0.0
    %2837 = vmatmul.mubr.f32.gmra.mrb[0].mxu0 %v2175
    %v2838 = vpop.f32.mrb[0].mxu0
    %v2839 = vadd.f32 0.0, %v2838
    %v2840 = vpop.f32.mrb[0].mxu0
    %2841 = vdwg.mxu0
    %v2842 = vadd.f32 %v2694, %v2804
    %v2843 = vadd.f32 %v2699, %v2809
    %v2844 = vadd.f32 %v2704, %v2814
    %v2845 = vadd.f32 %v2709, %v2819
    %v2846 = vadd.f32 %v2714, %v2824
    %v2847 = vadd.f32 %v2719, %v2829
    %v2848 = vadd.f32 %v2724, %v2834
    %v2849 = vadd.f32 %v2729, %v2839
    %s2850 = scalar_lea.vmem %s10, 1
    %v2851 = vld [vmem:[%s2850] sm:$0x1]
    %v2853 = vlaneseq
    %v2854 = vshrl.u32 %v2853, 7
    %v2855 = vsub.s32 0, %v2854
    %v2856 = vrot.slane %v2851, %v2855
    %v2858 = vadd.f32 %v2842, %v2856
    %v2859 = vadd.f32 %v2843, %v2856
    %v2860 = vadd.f32 %v2844, %v2856
    %v2861 = vadd.f32 %v2845, %v2856
    %v2862 = vadd.f32 %v2846, %v2856
    %v2863 = vadd.f32 %v2847, %v2856
    %v2864 = vadd.f32 %v2848, %v2856
    %v2865 = vadd.f32 %v2849, %v2856
    %s2866 = scalar_lea.vmem [#allocation7], 32
    %v2867 = vld [vmem:[%s2866] sm:$0xff]
    %v2868 = vld [vmem:[%s2866 + $0x8] sm:$0xff]
    %v2869 = vld [vmem:[%s2866 + $0x10] sm:$0xff]
    %v2870 = vld [vmem:[%s2866 + $0x18] sm:$0xff]
    %2871 = vmatprep.subr.mxu0 0.0
    %2872 = vmatpush1.msra.mxu0 %v2867
    %2873 = vmatprep.subr.mxu0 0.0
    %2874 = vmatpush1.msra.mxu0 %v2868
    %2875 = vmatprep.subr.mxu0 0.0
    %2876 = vmatpush1.msra.mxu0 %v2869
    %2877 = vmatprep.subr.mxu0 0.0
    %2878 = vmatpush1.msra.mxu0 %v2870
    %2879 = vmatprep.subr.mxu0 0.0
    %2880 = vmatpush1.msra.mxu0 0.0
    %2881 = vmatprep.subr.mxu0 0.0
    %2882 = vmatpush1.msra.mxu0 0.0
    %2883 = vmatprep.subr.mxu0 0.0
    %2884 = vmatpush1.msra.mxu0 0.0
    %2885 = vmatprep.subr.mxu0 0.0
    %2886 = vmatpush1.msra.mxu0 0.0
    %2887 = vmatprep.subr.mxu0 0.0
    %2888 = vmatpush1.msra.mxu0 0.0
    %2889 = vmatprep.subr.mxu0 0.0
    %2890 = vmatpush1.msra.mxu0 0.0
    %2891 = vmatprep.subr.mxu0 0.0
    %2892 = vmatpush1.msra.mxu0 0.0
    %2893 = vmatprep.subr.mxu0 0.0
    %2894 = vmatpush1.msra.mxu0 0.0
    %2895 = vmatprep.subr.mxu0 0.0
    %2896 = vmatpush1.msra.mxu0 0.0
    %2897 = vmatprep.subr.mxu0 0.0
    %2898 = vmatpush1.msra.mxu0 0.0
    %2899 = vmatprep.subr.mxu0 0.0
    %2900 = vmatpush1.msra.mxu0 0.0
    %2901 = vmatprep.subr.mxu0 0.0
    %2902 = vmatpush1.msra.mxu0 0.0
    %2903 = vmatprep.subr.mxu0 0.0
    %2904 = vmatpush1.msra.mxu0 0.0
    %2905 = vmatprep.subr.mxu0 0.0
    %2906 = vmatpush1.msra.mxu0 0.0
    %2907 = vmatprep.subr.mxu0 0.0
    %2908 = vmatpush1.msra.mxu0 0.0
    %2909 = vmatprep.subr.mxu0 0.0
    %2910 = vmatpush1.msra.mxu0 0.0
    %2911 = vmatprep.subr.mxu0 0.0
    %2912 = vmatpush1.msra.mxu0 0.0
    %2913 = vmatprep.subr.mxu0 0.0
    %2914 = vmatpush1.msra.mxu0 0.0
    %2915 = vmatprep.subr.mxu0 0.0
    %2916 = vmatpush1.msra.mxu0 0.0
    %2917 = vmatprep.subr.mxu0 0.0
    %2918 = vmatpush1.msra.mxu0 0.0
    %2919 = vmatprep.subr.mxu0 0.0
    %2920 = vmatpush1.msra.mxu0 0.0
    %2921 = vmatprep.subr.mxu0 0.0
    %2922 = vmatpush1.msra.mxu0 0.0
    %2923 = vmatprep.subr.mxu0 0.0
    %2924 = vmatpush1.msra.mxu0 0.0
    %2925 = vmatprep.subr.mxu0 0.0
    %2926 = vmatpush1.msra.mxu0 0.0
    %2927 = vmatprep.subr.mxu0 0.0
    %2928 = vmatpush1.msra.mxu0 0.0
    %2929 = vmatprep.subr.mxu0 0.0
    %2930 = vmatpush1.msra.mxu0 0.0
    %2931 = vmatprep.subr.mxu0 0.0
    %2932 = vmatpush1.msra.mxu0 0.0
    %2933 = vmatprep.subr.mxu0 0.0
    %2934 = vmatpush1.msra.mxu0 0.0
    %2935 = vmatprep.mubr.f32.mxu0 0.0
    %2936 = vmatmul.mubr.f32.gmra.mrb[0].mxu0 %v2305
    %v2937 = vpop.f32.mrb[0].mxu0
    %v2938 = vadd.f32 0.0, %v2937
    %v2939 = vpop.f32.mrb[0].mxu0
    %2940 = vmatprep.mubr.f32.mxu0 0.0
    %2941 = vmatmul.mubr.f32.gmra.mrb[0].mxu0 %v2307
    %v2942 = vpop.f32.mrb[0].mxu0
    %v2943 = vadd.f32 0.0, %v2942
    %v2944 = vpop.f32.mrb[0].mxu0
    %2945 = vmatprep.mubr.f32.mxu0 0.0
    %2946 = vmatmul.mubr.f32.gmra.mrb[0].mxu0 %v2309
    %v2947 = vpop.f32.mrb[0].mxu0
    %v2948 = vadd.f32 0.0, %v2947
    %v2949 = vpop.f32.mrb[0].mxu0
    %2950 = vmatprep.mubr.f32.mxu0 0.0
    %2951 = vmatmul.mubr.f32.gmra.mrb[0].mxu0 %v2311
    %v2952 = vpop.f32.mrb[0].mxu0
    %v2953 = vadd.f32 0.0, %v2952
    %v2954 = vpop.f32.mrb[0].mxu0
    %2955 = vmatprep.mubr.f32.mxu0 0.0
    %2956 = vmatmul.mubr.f32.gmra.mrb[0].mxu0 %v2313
    %v2957 = vpop.f32.mrb[0].mxu0
    %v2958 = vadd.f32 0.0, %v2957
    %v2959 = vpop.f32.mrb[0].mxu0
    %2960 = vmatprep.mubr.f32.mxu0 0.0
    %2961 = vmatmul.mubr.f32.gmra.mrb[0].mxu0 %v2315
    %v2962 = vpop.f32.mrb[0].mxu0
    %v2963 = vadd.f32 0.0, %v2962
    %v2964 = vpop.f32.mrb[0].mxu0
    %2965 = vdwg.mxu0
    %2966 = vmatprep.subr.mxu0 0.0
    %2967 = vmatpush1.msra.mxu0 %v2484
    %2968 = vmatprep.subr.mxu0 0.0
    %2969 = vmatpush1.msra.mxu0 %v2489
    %2970 = vmatprep.subr.mxu0 0.0
    %2971 = vmatpush1.msra.mxu0 %v2494
    %2972 = vmatprep.subr.mxu0 0.0
    %2973 = vmatpush1.msra.mxu0 %v2499
    %2974 = vmatprep.subr.mxu0 0.0
    %2975 = vmatpush1.msra.mxu0 %v2504
    %2976 = vmatprep.subr.mxu0 0.0
    %2977 = vmatpush1.msra.mxu0 %v2509
    %2978 = vmatprep.subr.mxu0 0.0
    %2979 = vmatpush1.msra.mxu0 %v2514
    %2980 = vmatprep.subr.mxu0 0.0
    %2981 = vmatpush1.msra.mxu0 %v2519
    %2982 = vmatprep.subr.mxu0 0.0
    %2983 = vmatpush1.msra.mxu0 0.0
    %2984 = vmatprep.subr.mxu0 0.0
    %2985 = vmatpush1.msra.mxu0 0.0
    %2986 = vmatprep.subr.mxu0 0.0
    %2987 = vmatpush1.msra.mxu0 0.0
    %2988 = vmatprep.subr.mxu0 0.0
    %2989 = vmatpush1.msra.mxu0 0.0
    %2990 = vmatprep.subr.mxu0 0.0
    %2991 = vmatpush1.msra.mxu0 0.0
    %2992 = vmatprep.subr.mxu0 0.0
    %2993 = vmatpush1.msra.mxu0 0.0
    %2994 = vmatprep.subr.mxu0 0.0
    %2995 = vmatpush1.msra.mxu0 0.0
    %2996 = vmatprep.subr.mxu0 0.0
    %2997 = vmatpush1.msra.mxu0 0.0
    %2998 = vmatprep.subr.mxu0 0.0
    %2999 = vmatpush1.msra.mxu0 0.0
    %3000 = vmatprep.subr.mxu0 0.0
    %3001 = vmatpush1.msra.mxu0 0.0
    %3002 = vmatprep.subr.mxu0 0.0
    %3003 = vmatpush1.msra.mxu0 0.0
    %3004 = vmatprep.subr.mxu0 0.0
    %3005 = vmatpush1.msra.mxu0 0.0
    %3006 = vmatprep.subr.mxu0 0.0
    %3007 = vmatpush1.msra.mxu0 0.0
    %3008 = vmatprep.subr.mxu0 0.0
    %3009 = vmatpush1.msra.mxu0 0.0
    %3010 = vmatprep.subr.mxu0 0.0
    %3011 = vmatpush1.msra.mxu0 0.0
    %3012 = vmatprep.subr.mxu0 0.0
    %3013 = vmatpush1.msra.mxu0 0.0
    %3014 = vmatprep.subr.mxu0 0.0
    %3015 = vmatpush1.msra.mxu0 0.0
    %3016 = vmatprep.subr.mxu0 0.0
    %3017 = vmatpush1.msra.mxu0 0.0
    %3018 = vmatprep.subr.mxu0 0.0
    %3019 = vmatpush1.msra.mxu0 0.0
    %3020 = vmatprep.subr.mxu0 0.0
    %3021 = vmatpush1.msra.mxu0 0.0
    %3022 = vmatprep.subr.mxu0 0.0
    %3023 = vmatpush1.msra.mxu0 0.0
    %3024 = vmatprep.subr.mxu0 0.0
    %3025 = vmatpush1.msra.mxu0 0.0
    %3026 = vmatprep.subr.mxu0 0.0
    %3027 = vmatpush1.msra.mxu0 0.0
    %3028 = vmatprep.subr.mxu0 0.0
    %3029 = vmatpush1.msra.mxu0 0.0
    %3030 = vmatprep.mubr.f32.mxu0 0.0
    %3031 = vmatmul.mubr.f32.gmra.mrb[0].mxu0 %v1044
    %v3032 = vpop.f32.mrb[0].mxu0
    %v3033 = vadd.f32 %v2938, %v3032
    %v3034 = vpop.f32.mrb[0].mxu0
    %3035 = vmatprep.mubr.f32.mxu0 0.0
    %3036 = vmatmul.mubr.f32.gmra.mrb[0].mxu0 %v1047
    %v3037 = vpop.f32.mrb[0].mxu0
    %v3038 = vadd.f32 %v2943, %v3037
    %v3039 = vpop.f32.mrb[0].mxu0
    %3040 = vmatprep.mubr.f32.mxu0 0.0
    %3041 = vmatmul.mubr.f32.gmra.mrb[0].mxu0 %v1050
    %v3042 = vpop.f32.mrb[0].mxu0
    %v3043 = vadd.f32 %v2948, %v3042
    %v3044 = vpop.f32.mrb[0].mxu0
    %3045 = vmatprep.mubr.f32.mxu0 0.0
    %3046 = vmatmul.mubr.f32.gmra.mrb[0].mxu0 %v1053
    %v3047 = vpop.f32.mrb[0].mxu0
    %v3048 = vadd.f32 %v2953, %v3047
    %v3049 = vpop.f32.mrb[0].mxu0
    %3050 = vmatprep.mubr.f32.mxu0 0.0
    %3051 = vmatmul.mubr.f32.gmra.mrb[0].mxu0 %v1056
    %v3052 = vpop.f32.mrb[0].mxu0
    %v3053 = vadd.f32 %v2958, %v3052
    %v3054 = vpop.f32.mrb[0].mxu0
    %3055 = vmatprep.mubr.f32.mxu0 0.0
    %3056 = vmatmul.mubr.f32.gmra.mrb[0].mxu0 %v1059
    %v3057 = vpop.f32.mrb[0].mxu0
    %v3058 = vadd.f32 %v2963, %v3057
    %v3059 = vpop.f32.mrb[0].mxu0
    %3060 = vdwg.mxu0
    %s3061 = scalar_lea.vmem %s11, 1
    %v3062 = vld [vmem:[%s3061] sm:$0x1]
    %v3064 = vlaneseq
    %v3065 = vshrl.u32 %v3064, 7
    %v3066 = vsub.s32 0, %v3065
    %v3067 = vrot.slane %v3062, %v3066
    %v3069 = vadd.f32 %v3033, %v3067
    %v3070 = vadd.f32 %v3038, %v3067
    %v3071 = vadd.f32 %v3043, %v3067
    %v3072 = vadd.f32 %v3048, %v3067
    %v3073 = vadd.f32 %v3053, %v3067
    %v3074 = vadd.f32 %v3058, %v3067
    %s3075 = scalar_lea.vmem [#allocation9], 32
    %v3076 = vld [vmem:[%s3075] sm:$0xff]
    %v3077 = vld [vmem:[%s3075 + $0x8] sm:$0xff]
    %v3078 = vld [vmem:[%s3075 + $0x10] sm:$0xff]
    %v3079 = vld [vmem:[%s3075 + $0x18] sm:$0xff]
    %3080 = vmatprep.subr.mxu0 0.0
    %3081 = vmatpush1.msra.mxu0 %v3076
    %3082 = vmatprep.subr.mxu0 0.0
    %3083 = vmatpush1.msra.mxu0 %v3077
    %3084 = vmatprep.subr.mxu0 0.0
    %3085 = vmatpush1.msra.mxu0 %v3078
    %3086 = vmatprep.subr.mxu0 0.0
    %3087 = vmatpush1.msra.mxu0 %v3079
    %3088 = vmatprep.subr.mxu0 0.0
    %3089 = vmatpush1.msra.mxu0 0.0
    %3090 = vmatprep.subr.mxu0 0.0
    %3091 = vmatpush1.msra.mxu0 0.0
    %3092 = vmatprep.subr.mxu0 0.0
    %3093 = vmatpush1.msra.mxu0 0.0
    %3094 = vmatprep.subr.mxu0 0.0
    %3095 = vmatpush1.msra.mxu0 0.0
    %3096 = vmatprep.subr.mxu0 0.0
    %3097 = vmatpush1.msra.mxu0 0.0
    %3098 = vmatprep.subr.mxu0 0.0
    %3099 = vmatpush1.msra.mxu0 0.0
    %3100 = vmatprep.subr.mxu0 0.0
    %3101 = vmatpush1.msra.mxu0 0.0
    %3102 = vmatprep.subr.mxu0 0.0
    %3103 = vmatpush1.msra.mxu0 0.0
    %3104 = vmatprep.subr.mxu0 0.0
    %3105 = vmatpush1.msra.mxu0 0.0
    %3106 = vmatprep.subr.mxu0 0.0
    %3107 = vmatpush1.msra.mxu0 0.0
    %3108 = vmatprep.subr.mxu0 0.0
    %3109 = vmatpush1.msra.mxu0 0.0
    %3110 = vmatprep.subr.mxu0 0.0
    %3111 = vmatpush1.msra.mxu0 0.0
    %3112 = vmatprep.subr.mxu0 0.0
    %3113 = vmatpush1.msra.mxu0 0.0
    %3114 = vmatprep.subr.mxu0 0.0
    %3115 = vmatpush1.msra.mxu0 0.0
    %3116 = vmatprep.subr.mxu0 0.0
    %3117 = vmatpush1.msra.mxu0 0.0
    %3118 = vmatprep.subr.mxu0 0.0
    %3119 = vmatpush1.msra.mxu0 0.0
    %3120 = vmatprep.subr.mxu0 0.0
    %3121 = vmatpush1.msra.mxu0 0.0
    %3122 = vmatprep.subr.mxu0 0.0
    %3123 = vmatpush1.msra.mxu0 0.0
    %3124 = vmatprep.subr.mxu0 0.0
    %3125 = vmatpush1.msra.mxu0 0.0
    %3126 = vmatprep.subr.mxu0 0.0
    %3127 = vmatpush1.msra.mxu0 0.0
    %3128 = vmatprep.subr.mxu0 0.0
    %3129 = vmatpush1.msra.mxu0 0.0
    %3130 = vmatprep.subr.mxu0 0.0
    %3131 = vmatpush1.msra.mxu0 0.0
    %3132 = vmatprep.subr.mxu0 0.0
    %3133 = vmatpush1.msra.mxu0 0.0
    %3134 = vmatprep.subr.mxu0 0.0
    %3135 = vmatpush1.msra.mxu0 0.0
    %3136 = vmatprep.subr.mxu0 0.0
    %3137 = vmatpush1.msra.mxu0 0.0
    %3138 = vmatprep.subr.mxu0 0.0
    %3139 = vmatpush1.msra.mxu0 0.0
    %3140 = vmatprep.subr.mxu0 0.0
    %3141 = vmatpush1.msra.mxu0 0.0
    %3142 = vmatprep.subr.mxu0 0.0
    %3143 = vmatpush1.msra.mxu0 0.0
    %3144 = vmatprep.mubr.f32.mxu0 0.0
    %3145 = vmatmul.mubr.f32.gmra.mrb[0].mxu0 %v1174
    %v3146 = vpop.f32.mrb[0].mxu0
    %v3147 = vadd.f32 0.0, %v3146
    %v3148 = vpop.f32.mrb[0].mxu0
    %3149 = vmatprep.mubr.f32.mxu0 0.0
    %3150 = vmatmul.mubr.f32.gmra.mrb[0].mxu0 %v1174
    %v3151 = vpop.f32.mrb[0].mxu0
    %v3152 = vadd.f32 0.0, %v3151
    %v3153 = vpop.f32.mrb[0].mxu0
    %3154 = vmatprep.mubr.f32.mxu0 0.0
    %3155 = vmatmul.mubr.f32.gmra.mrb[0].mxu0 %v1174
    %v3156 = vpop.f32.mrb[0].mxu0
    %v3157 = vadd.f32 0.0, %v3156
    %v3158 = vpop.f32.mrb[0].mxu0
    %3159 = vmatprep.mubr.f32.mxu0 0.0
    %3160 = vmatmul.mubr.f32.gmra.mrb[0].mxu0 %v1174
    %v3161 = vpop.f32.mrb[0].mxu0
    %v3162 = vadd.f32 0.0, %v3161
    %v3163 = vpop.f32.mrb[0].mxu0
    %3164 = vmatprep.mubr.f32.mxu0 0.0
    %3165 = vmatmul.mubr.f32.gmra.mrb[0].mxu0 %v1174
    %v3166 = vpop.f32.mrb[0].mxu0
    %v3167 = vadd.f32 0.0, %v3166
    %v3168 = vpop.f32.mrb[0].mxu0
    %3169 = vmatprep.mubr.f32.mxu0 0.0
    %3170 = vmatmul.mubr.f32.gmra.mrb[0].mxu0 %v1174
    %v3171 = vpop.f32.mrb[0].mxu0
    %v3172 = vadd.f32 0.0, %v3171
    %v3173 = vpop.f32.mrb[0].mxu0
    %3174 = vmatprep.mubr.f32.mxu0 0.0
    %3175 = vmatmul.mubr.f32.gmra.mrb[0].mxu0 %v1174
    %v3176 = vpop.f32.mrb[0].mxu0
    %v3177 = vadd.f32 0.0, %v3176
    %v3178 = vpop.f32.mrb[0].mxu0
    %3179 = vmatprep.mubr.f32.mxu0 0.0
    %3180 = vmatmul.mubr.f32.gmra.mrb[0].mxu0 %v1174
    %v3181 = vpop.f32.mrb[0].mxu0
    %v3182 = vadd.f32 0.0, %v3181
    %v3183 = vpop.f32.mrb[0].mxu0
    %3184 = vdwg.mxu0
    %v3185 = vadd.f32 %v2858, %v3147
    %v3186 = vadd.f32 %v2859, %v3152
    %v3187 = vadd.f32 %v2860, %v3157
    %v3188 = vadd.f32 %v2861, %v3162
    %v3189 = vadd.f32 %v2862, %v3167
    %v3190 = vadd.f32 %v2863, %v3172
    %v3191 = vadd.f32 %v2864, %v3177
    %v3192 = vadd.f32 %v2865, %v3182
    %s3193 = scalar_lea.vmem %s16, 1
    %v3194 = vld [vmem:[%s3193] sm:$0x1]
    %v3196 = vlaneseq
    %v3197 = vshrl.u32 %v3196, 7
    %v3198 = vsub.s32 0, %v3197
    %v3199 = vrot.slane %v3194, %v3198
    %v3201 = vadd.f32 %v3185, %v3199
    %v3202 = vadd.f32 %v3186, %v3199
    %v3203 = vadd.f32 %v3187, %v3199
    %v3204 = vadd.f32 %v3188, %v3199
    %v3205 = vadd.f32 %v3189, %v3199
    %v3206 = vadd.f32 %v3190, %v3199
    %v3207 = vadd.f32 %v3191, %v3199
    %v3208 = vadd.f32 %v3192, %v3199
    %s3209 = scalar_lea.vmem [#allocation10], 32
    %v3210 = vld [vmem:[%s3209] sm:$0xff]
    %v3211 = vld [vmem:[%s3209 + $0x8] sm:$0xff]
    %v3212 = vld [vmem:[%s3209 + $0x10] sm:$0xff]
    %v3213 = vld [vmem:[%s3209 + $0x18] sm:$0xff]
    %3214 = vmatprep.subr.mxu0 0.0
    %3215 = vmatpush1.msra.mxu0 %v3210
    %3216 = vmatprep.subr.mxu0 0.0
    %3217 = vmatpush1.msra.mxu0 %v3211
    %3218 = vmatprep.subr.mxu0 0.0
    %3219 = vmatpush1.msra.mxu0 %v3212
    %3220 = vmatprep.subr.mxu0 0.0
    %3221 = vmatpush1.msra.mxu0 %v3213
    %3222 = vmatprep.subr.mxu0 0.0
    %3223 = vmatpush1.msra.mxu0 0.0
    %3224 = vmatprep.subr.mxu0 0.0
    %3225 = vmatpush1.msra.mxu0 0.0
    %3226 = vmatprep.subr.mxu0 0.0
    %3227 = vmatpush1.msra.mxu0 0.0
    %3228 = vmatprep.subr.mxu0 0.0
    %3229 = vmatpush1.msra.mxu0 0.0
    %3230 = vmatprep.subr.mxu0 0.0
    %3231 = vmatpush1.msra.mxu0 0.0
    %3232 = vmatprep.subr.mxu0 0.0
    %3233 = vmatpush1.msra.mxu0 0.0
    %3234 = vmatprep.subr.mxu0 0.0
    %3235 = vmatpush1.msra.mxu0 0.0
    %3236 = vmatprep.subr.mxu0 0.0
    %3237 = vmatpush1.msra.mxu0 0.0
    %3238 = vmatprep.subr.mxu0 0.0
    %3239 = vmatpush1.msra.mxu0 0.0
    %3240 = vmatprep.subr.mxu0 0.0
    %3241 = vmatpush1.msra.mxu0 0.0
    %3242 = vmatprep.subr.mxu0 0.0
    %3243 = vmatpush1.msra.mxu0 0.0
    %3244 = vmatprep.subr.mxu0 0.0
    %3245 = vmatpush1.msra.mxu0 0.0
    %3246 = vmatprep.subr.mxu0 0.0
    %3247 = vmatpush1.msra.mxu0 0.0
    %3248 = vmatprep.subr.mxu0 0.0
    %3249 = vmatpush1.msra.mxu0 0.0
    %3250 = vmatprep.subr.mxu0 0.0
    %3251 = vmatpush1.msra.mxu0 0.0
    %3252 = vmatprep.subr.mxu0 0.0
    %3253 = vmatpush1.msra.mxu0 0.0
    %3254 = vmatprep.subr.mxu0 0.0
    %3255 = vmatpush1.msra.mxu0 0.0
    %3256 = vmatprep.subr.mxu0 0.0
    %3257 = vmatpush1.msra.mxu0 0.0
    %3258 = vmatprep.subr.mxu0 0.0
    %3259 = vmatpush1.msra.mxu0 0.0
    %3260 = vmatprep.subr.mxu0 0.0
    %3261 = vmatpush1.msra.mxu0 0.0
    %3262 = vmatprep.subr.mxu0 0.0
    %3263 = vmatpush1.msra.mxu0 0.0
    %3264 = vmatprep.subr.mxu0 0.0
    %3265 = vmatpush1.msra.mxu0 0.0
    %3266 = vmatprep.subr.mxu0 0.0
    %3267 = vmatpush1.msra.mxu0 0.0
    %3268 = vmatprep.subr.mxu0 0.0
    %3269 = vmatpush1.msra.mxu0 0.0
    %3270 = vmatprep.subr.mxu0 0.0
    %3271 = vmatpush1.msra.mxu0 0.0
    %3272 = vmatprep.subr.mxu0 0.0
    %3273 = vmatpush1.msra.mxu0 0.0
    %3274 = vmatprep.subr.mxu0 0.0
    %3275 = vmatpush1.msra.mxu0 0.0
    %3276 = vmatprep.subr.mxu0 0.0
    %3277 = vmatpush1.msra.mxu0 0.0
    %3278 = vmatprep.mubr.f32.mxu0 0.0
    %3279 = vmatmul.mubr.f32.gmra.mrb[0].mxu0 %v1174
    %v3280 = vpop.f32.mrb[0].mxu0
    %v3281 = vadd.f32 0.0, %v3280
    %v3282 = vpop.f32.mrb[0].mxu0
    %3283 = vmatprep.mubr.f32.mxu0 0.0
    %3284 = vmatmul.mubr.f32.gmra.mrb[0].mxu0 %v1174
    %v3285 = vpop.f32.mrb[0].mxu0
    %v3286 = vadd.f32 0.0, %v3285
    %v3287 = vpop.f32.mrb[0].mxu0
    %3288 = vmatprep.mubr.f32.mxu0 0.0
    %3289 = vmatmul.mubr.f32.gmra.mrb[0].mxu0 %v1174
    %v3290 = vpop.f32.mrb[0].mxu0
    %v3291 = vadd.f32 0.0, %v3290
    %v3292 = vpop.f32.mrb[0].mxu0
    %3293 = vmatprep.mubr.f32.mxu0 0.0
    %3294 = vmatmul.mubr.f32.gmra.mrb[0].mxu0 %v1174
    %v3295 = vpop.f32.mrb[0].mxu0
    %v3296 = vadd.f32 0.0, %v3295
    %v3297 = vpop.f32.mrb[0].mxu0
    %3298 = vmatprep.mubr.f32.mxu0 0.0
    %3299 = vmatmul.mubr.f32.gmra.mrb[0].mxu0 %v1174
    %v3300 = vpop.f32.mrb[0].mxu0
    %v3301 = vadd.f32 0.0, %v3300
    %v3302 = vpop.f32.mrb[0].mxu0
    %3303 = vmatprep.mubr.f32.mxu0 0.0
    %3304 = vmatmul.mubr.f32.gmra.mrb[0].mxu0 %v1174
    %v3305 = vpop.f32.mrb[0].mxu0
    %v3306 = vadd.f32 0.0, %v3305
    %v3307 = vpop.f32.mrb[0].mxu0
    %3308 = vdwg.mxu0
    %v3309 = vadd.f32 %v3069, %v3281
    %v3310 = vadd.f32 %v3070, %v3286
    %v3311 = vadd.f32 %v3071, %v3291
    %v3312 = vadd.f32 %v3072, %v3296
    %v3313 = vadd.f32 %v3073, %v3301
    %v3314 = vadd.f32 %v3074, %v3306
    %s3315 = scalar_lea.vmem %s17, 1
    %v3316 = vld [vmem:[%s3315] sm:$0x1]
    %v3318 = vlaneseq
    %v3319 = vshrl.u32 %v3318, 7
    %v3320 = vsub.s32 0, %v3319
    %v3321 = vrot.slane %v3316, %v3320
    %v3323 = vadd.f32 %v3309, %v3321
    %v3324 = vadd.f32 %v3310, %v3321
    %v3325 = vadd.f32 %v3311, %v3321
    %v3326 = vadd.f32 %v3312, %v3321
    %v3327 = vadd.f32 %v3313, %v3321
    %v3328 = vadd.f32 %v3314, %v3321
    %s3329 = scalar_lea.vmem %s14, 4
    %v3330 = vld [vmem:[%s3329] sm:$0x7]
    %v3331 = vlaneseq
    %v3332 = vshrl.u32 %v3331, 7
    %v3333 = vsub.s32 0, %v3332
    %v3334 = vrot.slane %v3330, %v3333
    %v3335 = vmul.f32 %v3334, 0.0
    %v3336 = vadd.f32 %v3201, %v3335
    %v3337 = vadd.f32 %v3202, %v3335
    %v3338 = vadd.f32 %v3203, %v3335
    %v3339 = vadd.f32 %v3204, %v3335
    %v3340 = vadd.f32 %v3205, %v3335
    %v3341 = vadd.f32 %v3206, %v3335
    %v3342 = vadd.f32 %v3207, %v3335
    %v3343 = vadd.f32 %v3208, %v3335
    %v3344 = vxor.u32 %v3336, 2147483648
    %v3345 = vxor.u32 %v3337, 2147483648
    %v3346 = vxor.u32 %v3338, 2147483648
    %v3347 = vxor.u32 %v3339, 2147483648
    %v3348 = vxor.u32 %v3340, 2147483648
    %v3349 = vxor.u32 %v3341, 2147483648
    %v3350 = vxor.u32 %v3342, 2147483648
    %v3351 = vxor.u32 %v3343, 2147483648
    %v3352 = vmul.f32 %v3344, 1.442695
    %v3353 = vpow.pop %v3352
    %v3354 = vmul.f32 %v3345, 1.442695
    %v3355 = vpow.pop %v3354
    %v3356 = vmul.f32 %v3346, 1.442695
    %v3357 = vpow.pop %v3356
    %v3358 = vmul.f32 %v3347, 1.442695
    %v3359 = vpow.pop %v3358
    %v3360 = vmul.f32 %v3348, 1.442695
    %v3361 = vpow.pop %v3360
    %v3362 = vmul.f32 %v3349, 1.442695
    %v3363 = vpow.pop %v3362
    %v3364 = vmul.f32 %v3350, 1.442695
    %v3365 = vpow.pop %v3364
    %v3366 = vmul.f32 %v3351, 1.442695
    %v3367 = vpow.pop %v3366
    %v3368 = vadd.f32 %v3353, 1.0
    %v3369 = vadd.f32 %v3355, 1.0
    %v3370 = vadd.f32 %v3357, 1.0
    %v3371 = vadd.f32 %v3359, 1.0
    %v3372 = vadd.f32 %v3361, 1.0
    %v3373 = vadd.f32 %v3363, 1.0
    %v3374 = vadd.f32 %v3365, 1.0
    %v3375 = vadd.f32 %v3367, 1.0
    %v3376 = vrcp.pop %v3368
    %v3377 = vmul.f32 1.0, %v3376
    %v3378 = vrcp.pop %v3369
    %v3379 = vmul.f32 1.0, %v3378
    %v3380 = vrcp.pop %v3370
    %v3381 = vmul.f32 1.0, %v3380
    %v3382 = vrcp.pop %v3371
    %v3383 = vmul.f32 1.0, %v3382
    %v3384 = vrcp.pop %v3372
    %v3385 = vmul.f32 1.0, %v3384
    %v3386 = vrcp.pop %v3373
    %v3387 = vmul.f32 1.0, %v3386
    %v3388 = vrcp.pop %v3374
    %v3389 = vmul.f32 1.0, %v3388
    %v3390 = vrcp.pop %v3375
    %v3391 = vmul.f32 1.0, %v3390
    %v3392 = vlaneseq
    %v3393 = vshrl.u32 %v3392, 7
    %v3394 = vsub.s32 1, %v3393
    %v3395 = vrot.slane %v3330, %v3394
    %v3396 = vmul.f32 %v3395, 0.0
    %3398 = vrot.lane.b32.xlu0 %v3396, 32
    %v3399 = vpop.permute.xlu0 %3398
    %v3401 = vadd.f32 %v3201, %v3399
    %v3402 = vadd.f32 %v3202, %v3399
    %v3403 = vadd.f32 %v3203, %v3399
    %v3404 = vadd.f32 %v3204, %v3399
    %v3405 = vadd.f32 %v3205, %v3399
    %v3406 = vadd.f32 %v3206, %v3399
    %v3407 = vadd.f32 %v3207, %v3399
    %v3408 = vadd.f32 %v3208, %v3399
    %v3409 = vxor.u32 %v3401, 2147483648
    %v3410 = vxor.u32 %v3402, 2147483648
    %v3411 = vxor.u32 %v3403, 2147483648
    %v3412 = vxor.u32 %v3404, 2147483648
    %v3413 = vxor.u32 %v3405, 2147483648
    %v3414 = vxor.u32 %v3406, 2147483648
    %v3415 = vxor.u32 %v3407, 2147483648
    %v3416 = vxor.u32 %v3408, 2147483648
    %v3417 = vmul.f32 %v3409, 1.442695
    %v3418 = vpow.pop %v3417
    %v3419 = vmul.f32 %v3410, 1.442695
    %v3420 = vpow.pop %v3419
    %v3421 = vmul.f32 %v3411, 1.442695
    %v3422 = vpow.pop %v3421
    %v3423 = vmul.f32 %v3412, 1.442695
    %v3424 = vpow.pop %v3423
    %v3425 = vmul.f32 %v3413, 1.442695
    %v3426 = vpow.pop %v3425
    %v3427 = vmul.f32 %v3414, 1.442695
    %v3428 = vpow.pop %v3427
    %v3429 = vmul.f32 %v3415, 1.442695
    %v3430 = vpow.pop %v3429
    %v3431 = vmul.f32 %v3416, 1.442695
    %v3432 = vpow.pop %v3431
    %v3433 = vadd.f32 %v3418, 1.0
    %v3434 = vadd.f32 %v3420, 1.0
    %v3435 = vadd.f32 %v3422, 1.0
    %v3436 = vadd.f32 %v3424, 1.0
    %v3437 = vadd.f32 %v3426, 1.0
    %v3438 = vadd.f32 %v3428, 1.0
    %v3439 = vadd.f32 %v3430, 1.0
    %v3440 = vadd.f32 %v3432, 1.0
    %v3441 = vrcp.pop %v3433
    %v3442 = vmul.f32 1.0, %v3441
    %v3443 = vrcp.pop %v3434
    %v3444 = vmul.f32 1.0, %v3443
    %v3445 = vrcp.pop %v3435
    %v3446 = vmul.f32 1.0, %v3445
    %v3447 = vrcp.pop %v3436
    %v3448 = vmul.f32 1.0, %v3447
    %v3449 = vrcp.pop %v3437
    %v3450 = vmul.f32 1.0, %v3449
    %v3451 = vrcp.pop %v3438
    %v3452 = vmul.f32 1.0, %v3451
    %v3453 = vrcp.pop %v3439
    %v3454 = vmul.f32 1.0, %v3453
    %v3455 = vrcp.pop %v3440
    %v3456 = vmul.f32 1.0, %v3455
    %v3457 = vtanh.pop %v3201
    %v3458 = vtanh.pop %v3202
    %v3459 = vtanh.pop %v3203
    %v3460 = vtanh.pop %v3204
    %v3461 = vtanh.pop %v3205
    %v3462 = vtanh.pop %v3206
    %v3463 = vtanh.pop %v3207
    %v3464 = vtanh.pop %v3208
    %v3465 = vmul.f32 %v3442, 0.0
    %v3466 = vmul.f32 %v3444, 0.0
    %v3467 = vmul.f32 %v3446, 0.0
    %v3468 = vmul.f32 %v3448, 0.0
    %v3469 = vmul.f32 %v3450, 0.0
    %v3470 = vmul.f32 %v3452, 0.0
    %v3471 = vmul.f32 %v3454, 0.0
    %v3472 = vmul.f32 %v3456, 0.0
    %3481 = vrot.lane.b32.xlu0 %v3457, 64
    %v3482 = vpop.permute.xlu0 %3481
    %3483 = vrot.lane.b32.xlu0 %v3458, 64
    %v3484 = vpop.permute.xlu0 %3483
    %3485 = vrot.lane.b32.xlu0 %v3459, 64
    %v3486 = vpop.permute.xlu0 %3485
    %3487 = vrot.lane.b32.xlu0 %v3460, 64
    %v3488 = vpop.permute.xlu0 %3487
    %3489 = vrot.lane.b32.xlu0 %v3461, 64
    %v3490 = vpop.permute.xlu0 %3489
    %3491 = vrot.lane.b32.xlu0 %v3462, 64
    %v3492 = vpop.permute.xlu0 %3491
    %3493 = vrot.lane.b32.xlu0 %v3463, 64
    %v3494 = vpop.permute.xlu0 %3493
    %3495 = vrot.lane.b32.xlu0 %v3464, 64
    %v3496 = vpop.permute.xlu0 %3495
    %v3505 = vmul.f32 %v3377, %v3482
    %v3506 = vmul.f32 %v3379, %v3484
    %v3507 = vmul.f32 %v3381, %v3486
    %v3508 = vmul.f32 %v3383, %v3488
    %v3509 = vmul.f32 %v3385, %v3490
    %v3510 = vmul.f32 %v3387, %v3492
    %v3511 = vmul.f32 %v3389, %v3494
    %v3512 = vmul.f32 %v3391, %v3496
    %3521 = vrot.lane.b32.xlu0 %v3505, 32
    %v3522 = vpop.permute.xlu0 %3521
    %3523 = vrot.lane.b32.xlu0 %v3506, 32
    %v3524 = vpop.permute.xlu0 %3523
    %3525 = vrot.lane.b32.xlu0 %v3507, 32
    %v3526 = vpop.permute.xlu0 %3525
    %3527 = vrot.lane.b32.xlu0 %v3508, 32
    %v3528 = vpop.permute.xlu0 %3527
    %3529 = vrot.lane.b32.xlu0 %v3509, 32
    %v3530 = vpop.permute.xlu0 %3529
    %3531 = vrot.lane.b32.xlu0 %v3510, 32
    %v3532 = vpop.permute.xlu0 %3531
    %3533 = vrot.lane.b32.xlu0 %v3511, 32
    %v3534 = vpop.permute.xlu0 %3533
    %3535 = vrot.lane.b32.xlu0 %v3512, 32
    %v3536 = vpop.permute.xlu0 %3535
    %v3545 = vadd.f32 %v3465, %v3522
    %v3546 = vadd.f32 %v3466, %v3524
    %v3547 = vadd.f32 %v3467, %v3526
    %v3548 = vadd.f32 %v3468, %v3528
    %v3549 = vadd.f32 %v3469, %v3530
    %v3550 = vadd.f32 %v3470, %v3532
    %v3551 = vadd.f32 %v3471, %v3534
    %v3552 = vadd.f32 %v3472, %v3536
    %v3553 = vlaneseq
    %v3554 = vshrl.u32 %v3553, 7
    %v3555 = vsub.s32 2, %v3554
    %v3556 = vrot.slane %v3330, %v3555
    %3565 = vrot.lane.b32.xlu0 %v3545, 96
    %v3566 = vpop.permute.xlu0 %3565
    %3567 = vrot.lane.b32.xlu0 %v3546, 96
    %v3568 = vpop.permute.xlu0 %3567
    %3569 = vrot.lane.b32.xlu0 %v3547, 96
    %v3570 = vpop.permute.xlu0 %3569
    %3571 = vrot.lane.b32.xlu0 %v3548, 96
    %v3572 = vpop.permute.xlu0 %3571
    %3573 = vrot.lane.b32.xlu0 %v3549, 96
    %v3574 = vpop.permute.xlu0 %3573
    %3575 = vrot.lane.b32.xlu0 %v3550, 96
    %v3576 = vpop.permute.xlu0 %3575
    %3577 = vrot.lane.b32.xlu0 %v3551, 96
    %v3578 = vpop.permute.xlu0 %3577
    %3579 = vrot.lane.b32.xlu0 %v3552, 96
    %v3580 = vpop.permute.xlu0 %3579
    %v3589 = vmul.f32 %v3556, %v3566
    %v3590 = vmul.f32 %v3556, %v3568
    %v3591 = vmul.f32 %v3556, %v3570
    %v3592 = vmul.f32 %v3556, %v3572
    %v3593 = vmul.f32 %v3556, %v3574
    %v3594 = vmul.f32 %v3556, %v3576
    %v3595 = vmul.f32 %v3556, %v3578
    %v3596 = vmul.f32 %v3556, %v3580
    %3605 = vrot.lane.b32.xlu0 %v3589, 96
    %v3606 = vpop.permute.xlu0 %3605
    %3607 = vrot.lane.b32.xlu0 %v3590, 96
    %v3608 = vpop.permute.xlu0 %3607
    %3609 = vrot.lane.b32.xlu0 %v3591, 96
    %v3610 = vpop.permute.xlu0 %3609
    %3611 = vrot.lane.b32.xlu0 %v3592, 96
    %v3612 = vpop.permute.xlu0 %3611
    %3613 = vrot.lane.b32.xlu0 %v3593, 96
    %v3614 = vpop.permute.xlu0 %3613
    %3615 = vrot.lane.b32.xlu0 %v3594, 96
    %v3616 = vpop.permute.xlu0 %3615
    %3617 = vrot.lane.b32.xlu0 %v3595, 96
    %v3618 = vpop.permute.xlu0 %3617
    %3619 = vrot.lane.b32.xlu0 %v3596, 96
    %v3620 = vpop.permute.xlu0 %3619
    %v3629 = vadd.f32 %v3201, %v3606
    %v3630 = vadd.f32 %v3202, %v3608
    %v3631 = vadd.f32 %v3203, %v3610
    %v3632 = vadd.f32 %v3204, %v3612
    %v3633 = vadd.f32 %v3205, %v3614
    %v3634 = vadd.f32 %v3206, %v3616
    %v3635 = vadd.f32 %v3207, %v3618
    %v3636 = vadd.f32 %v3208, %v3620
    %v3637 = vxor.u32 %v3629, 2147483648
    %v3638 = vxor.u32 %v3630, 2147483648
    %v3639 = vxor.u32 %v3631, 2147483648
    %v3640 = vxor.u32 %v3632, 2147483648
    %v3641 = vxor.u32 %v3633, 2147483648
    %v3642 = vxor.u32 %v3634, 2147483648
    %v3643 = vxor.u32 %v3635, 2147483648
    %v3644 = vxor.u32 %v3636, 2147483648
    %v3645 = vmul.f32 %v3637, 1.442695
    %v3646 = vpow.pop %v3645
    %v3647 = vmul.f32 %v3638, 1.442695
    %v3648 = vpow.pop %v3647
    %v3649 = vmul.f32 %v3639, 1.442695
    %v3650 = vpow.pop %v3649
    %v3651 = vmul.f32 %v3640, 1.442695
    %v3652 = vpow.pop %v3651
    %v3653 = vmul.f32 %v3641, 1.442695
    %v3654 = vpow.pop %v3653
    %v3655 = vmul.f32 %v3642, 1.442695
    %v3656 = vpow.pop %v3655
    %v3657 = vmul.f32 %v3643, 1.442695
    %v3658 = vpow.pop %v3657
    %v3659 = vmul.f32 %v3644, 1.442695
    %v3660 = vpow.pop %v3659
    %v3661 = vadd.f32 %v3646, 1.0
    %v3662 = vadd.f32 %v3648, 1.0
    %v3663 = vadd.f32 %v3650, 1.0
    %v3664 = vadd.f32 %v3652, 1.0
    %v3665 = vadd.f32 %v3654, 1.0
    %v3666 = vadd.f32 %v3656, 1.0
    %v3667 = vadd.f32 %v3658, 1.0
    %v3668 = vadd.f32 %v3660, 1.0
    %v3669 = vrcp.pop %v3661
    %v3670 = vmul.f32 1.0, %v3669
    %v3671 = vrcp.pop %v3662
    %v3672 = vmul.f32 1.0, %v3671
    %v3673 = vrcp.pop %v3663
    %v3674 = vmul.f32 1.0, %v3673
    %v3675 = vrcp.pop %v3664
    %v3676 = vmul.f32 1.0, %v3675
    %v3677 = vrcp.pop %v3665
    %v3678 = vmul.f32 1.0, %v3677
    %v3679 = vrcp.pop %v3666
    %v3680 = vmul.f32 1.0, %v3679
    %v3681 = vrcp.pop %v3667
    %v3682 = vmul.f32 1.0, %v3681
    %v3683 = vrcp.pop %v3668
    %v3684 = vmul.f32 1.0, %v3683
    %v3685 = vtanh.pop %v3545
    %v3686 = vtanh.pop %v3546
    %v3687 = vtanh.pop %v3547
    %v3688 = vtanh.pop %v3548
    %v3689 = vtanh.pop %v3549
    %v3690 = vtanh.pop %v3550
    %v3691 = vtanh.pop %v3551
    %v3692 = vtanh.pop %v3552
    %3701 = vrot.lane.b32.xlu0 %v3685, 64
    %v3702 = vpop.permute.xlu0 %3701
    %3703 = vrot.lane.b32.xlu0 %v3686, 64
    %v3704 = vpop.permute.xlu0 %3703
    %3705 = vrot.lane.b32.xlu0 %v3687, 64
    %v3706 = vpop.permute.xlu0 %3705
    %3707 = vrot.lane.b32.xlu0 %v3688, 64
    %v3708 = vpop.permute.xlu0 %3707
    %3709 = vrot.lane.b32.xlu0 %v3689, 64
    %v3710 = vpop.permute.xlu0 %3709
    %3711 = vrot.lane.b32.xlu0 %v3690, 64
    %v3712 = vpop.permute.xlu0 %3711
    %3713 = vrot.lane.b32.xlu0 %v3691, 64
    %v3714 = vpop.permute.xlu0 %3713
    %3715 = vrot.lane.b32.xlu0 %v3692, 64
    %v3716 = vpop.permute.xlu0 %3715
    %v3725 = vmul.f32 %v3670, %v3702
    %v3726 = vmul.f32 %v3672, %v3704
    %v3727 = vmul.f32 %v3674, %v3706
    %v3728 = vmul.f32 %v3676, %v3708
    %v3729 = vmul.f32 %v3678, %v3710
    %v3730 = vmul.f32 %v3680, %v3712
    %v3731 = vmul.f32 %v3682, %v3714
    %v3732 = vmul.f32 %v3684, %v3716
    %s3733 = scalar_lea.vmem %s15, 4
    %v3734 = vld [vmem:[%s3733] sm:$0x7]
    %v3735 = vlaneseq
    %v3736 = vshrl.u32 %v3735, 7
    %v3737 = vsub.s32 0, %v3736
    %v3738 = vrot.slane %v3734, %v3737
    %v3739 = vmul.f32 %v3738, 0.0
    %v3740 = vadd.f32 %v3323, %v3739
    %v3741 = vadd.f32 %v3324, %v3739
    %v3742 = vadd.f32 %v3325, %v3739
    %v3743 = vadd.f32 %v3326, %v3739
    %v3744 = vadd.f32 %v3327, %v3739
    %v3745 = vadd.f32 %v3328, %v3739
    %v3746 = vxor.u32 %v3740, 2147483648
    %v3747 = vxor.u32 %v3741, 2147483648
    %v3748 = vxor.u32 %v3742, 2147483648
    %v3749 = vxor.u32 %v3743, 2147483648
    %v3750 = vxor.u32 %v3744, 2147483648
    %v3751 = vxor.u32 %v3745, 2147483648
    %v3752 = vmul.f32 %v3746, 1.442695
    %v3753 = vpow.pop %v3752
    %v3754 = vmul.f32 %v3747, 1.442695
    %v3755 = vpow.pop %v3754
    %v3756 = vmul.f32 %v3748, 1.442695
    %v3757 = vpow.pop %v3756
    %v3758 = vmul.f32 %v3749, 1.442695
    %v3759 = vpow.pop %v3758
    %v3760 = vmul.f32 %v3750, 1.442695
    %v3761 = vpow.pop %v3760
    %v3762 = vmul.f32 %v3751, 1.442695
    %v3763 = vpow.pop %v3762
    %v3764 = vadd.f32 %v3753, 1.0
    %v3765 = vadd.f32 %v3755, 1.0
    %v3766 = vadd.f32 %v3757, 1.0
    %v3767 = vadd.f32 %v3759, 1.0
    %v3768 = vadd.f32 %v3761, 1.0
    %v3769 = vadd.f32 %v3763, 1.0
    %v3770 = vrcp.pop %v3764
    %v3771 = vmul.f32 1.0, %v3770
    %v3772 = vrcp.pop %v3765
    %v3773 = vmul.f32 1.0, %v3772
    %v3774 = vrcp.pop %v3766
    %v3775 = vmul.f32 1.0, %v3774
    %v3776 = vrcp.pop %v3767
    %v3777 = vmul.f32 1.0, %v3776
    %v3778 = vrcp.pop %v3768
    %v3779 = vmul.f32 1.0, %v3778
    %v3780 = vrcp.pop %v3769
    %v3781 = vmul.f32 1.0, %v3780
    %v3782 = vlaneseq
    %v3783 = vshrl.u32 %v3782, 7
    %v3784 = vsub.s32 1, %v3783
    %v3785 = vrot.slane %v3734, %v3784
    %v3786 = vmul.f32 %v3785, 0.0
    %3788 = vrot.lane.b32.xlu0 %v3786, 32
    %v3789 = vpop.permute.xlu0 %3788
    %v3791 = vadd.f32 %v3323, %v3789
    %v3792 = vadd.f32 %v3324, %v3789
    %v3793 = vadd.f32 %v3325, %v3789
    %v3794 = vadd.f32 %v3326, %v3789
    %v3795 = vadd.f32 %v3327, %v3789
    %v3796 = vadd.f32 %v3328, %v3789
    %v3797 = vxor.u32 %v3791, 2147483648
    %v3798 = vxor.u32 %v3792, 2147483648
    %v3799 = vxor.u32 %v3793, 2147483648
    %v3800 = vxor.u32 %v3794, 2147483648
    %v3801 = vxor.u32 %v3795, 2147483648
    %v3802 = vxor.u32 %v3796, 2147483648
    %v3803 = vmul.f32 %v3797, 1.442695
    %v3804 = vpow.pop %v3803
    %v3805 = vmul.f32 %v3798, 1.442695
    %v3806 = vpow.pop %v3805
    %v3807 = vmul.f32 %v3799, 1.442695
    %v3808 = vpow.pop %v3807
    %v3809 = vmul.f32 %v3800, 1.442695
    %v3810 = vpow.pop %v3809
    %v3811 = vmul.f32 %v3801, 1.442695
    %v3812 = vpow.pop %v3811
    %v3813 = vmul.f32 %v3802, 1.442695
    %v3814 = vpow.pop %v3813
    %v3815 = vadd.f32 %v3804, 1.0
    %v3816 = vadd.f32 %v3806, 1.0
    %v3817 = vadd.f32 %v3808, 1.0
    %v3818 = vadd.f32 %v3810, 1.0
    %v3819 = vadd.f32 %v3812, 1.0
    %v3820 = vadd.f32 %v3814, 1.0
    %v3821 = vrcp.pop %v3815
    %v3822 = vmul.f32 1.0, %v3821
    %v3823 = vrcp.pop %v3816
    %v3824 = vmul.f32 1.0, %v3823
    %v3825 = vrcp.pop %v3817
    %v3826 = vmul.f32 1.0, %v3825
    %v3827 = vrcp.pop %v3818
    %v3828 = vmul.f32 1.0, %v3827
    %v3829 = vrcp.pop %v3819
    %v3830 = vmul.f32 1.0, %v3829
    %v3831 = vrcp.pop %v3820
    %v3832 = vmul.f32 1.0, %v3831
    %v3833 = vtanh.pop %v3323
    %v3834 = vtanh.pop %v3324
    %v3835 = vtanh.pop %v3325
    %v3836 = vtanh.pop %v3326
    %v3837 = vtanh.pop %v3327
    %v3838 = vtanh.pop %v3328
    %v3839 = vmul.f32 %v3822, 0.0
    %v3840 = vmul.f32 %v3824, 0.0
    %v3841 = vmul.f32 %v3826, 0.0
    %v3842 = vmul.f32 %v3828, 0.0
    %v3843 = vmul.f32 %v3830, 0.0
    %v3844 = vmul.f32 %v3832, 0.0
    %3851 = vrot.lane.b32.xlu0 %v3833, 64
    %v3852 = vpop.permute.xlu0 %3851
    %3853 = vrot.lane.b32.xlu0 %v3834, 64
    %v3854 = vpop.permute.xlu0 %3853
    %3855 = vrot.lane.b32.xlu0 %v3835, 64
    %v3856 = vpop.permute.xlu0 %3855
    %3857 = vrot.lane.b32.xlu0 %v3836, 64
    %v3858 = vpop.permute.xlu0 %3857
    %3859 = vrot.lane.b32.xlu0 %v3837, 64
    %v3860 = vpop.permute.xlu0 %3859
    %3861 = vrot.lane.b32.xlu0 %v3838, 64
    %v3862 = vpop.permute.xlu0 %3861
    %v3869 = vmul.f32 %v3771, %v3852
    %v3870 = vmul.f32 %v3773, %v3854
    %v3871 = vmul.f32 %v3775, %v3856
    %v3872 = vmul.f32 %v3777, %v3858
    %v3873 = vmul.f32 %v3779, %v3860
    %v3874 = vmul.f32 %v3781, %v3862
    %3881 = vrot.lane.b32.xlu0 %v3869, 32
    %v3882 = vpop.permute.xlu0 %3881
    %3883 = vrot.lane.b32.xlu0 %v3870, 32
    %v3884 = vpop.permute.xlu0 %3883
    %3885 = vrot.lane.b32.xlu0 %v3871, 32
    %v3886 = vpop.permute.xlu0 %3885
    %3887 = vrot.lane.b32.xlu0 %v3872, 32
    %v3888 = vpop.permute.xlu0 %3887
    %3889 = vrot.lane.b32.xlu0 %v3873, 32
    %v3890 = vpop.permute.xlu0 %3889
    %3891 = vrot.lane.b32.xlu0 %v3874, 32
    %v3892 = vpop.permute.xlu0 %3891
    %v3899 = vadd.f32 %v3839, %v3882
    %v3900 = vadd.f32 %v3840, %v3884
    %v3901 = vadd.f32 %v3841, %v3886
    %v3902 = vadd.f32 %v3842, %v3888
    %v3903 = vadd.f32 %v3843, %v3890
    %v3904 = vadd.f32 %v3844, %v3892
    %v3905 = vlaneseq
    %v3906 = vshrl.u32 %v3905, 7
    %v3907 = vsub.s32 2, %v3906
    %v3908 = vrot.slane %v3734, %v3907
    %3915 = vrot.lane.b32.xlu0 %v3899, 96
    %v3916 = vpop.permute.xlu0 %3915
    %3917 = vrot.lane.b32.xlu0 %v3900, 96
    %v3918 = vpop.permute.xlu0 %3917
    %3919 = vrot.lane.b32.xlu0 %v3901, 96
    %v3920 = vpop.permute.xlu0 %3919
    %3921 = vrot.lane.b32.xlu0 %v3902, 96
    %v3922 = vpop.permute.xlu0 %3921
    %3923 = vrot.lane.b32.xlu0 %v3903, 96
    %v3924 = vpop.permute.xlu0 %3923
    %3925 = vrot.lane.b32.xlu0 %v3904, 96
    %v3926 = vpop.permute.xlu0 %3925
    %v3933 = vmul.f32 %v3908, %v3916
    %v3934 = vmul.f32 %v3908, %v3918
    %v3935 = vmul.f32 %v3908, %v3920
    %v3936 = vmul.f32 %v3908, %v3922
    %v3937 = vmul.f32 %v3908, %v3924
    %v3938 = vmul.f32 %v3908, %v3926
    %3945 = vrot.lane.b32.xlu0 %v3933, 96
    %v3946 = vpop.permute.xlu0 %3945
    %3947 = vrot.lane.b32.xlu0 %v3934, 96
    %v3948 = vpop.permute.xlu0 %3947
    %3949 = vrot.lane.b32.xlu0 %v3935, 96
    %v3950 = vpop.permute.xlu0 %3949
    %3951 = vrot.lane.b32.xlu0 %v3936, 96
    %v3952 = vpop.permute.xlu0 %3951
    %3953 = vrot.lane.b32.xlu0 %v3937, 96
    %v3954 = vpop.permute.xlu0 %3953
    %3955 = vrot.lane.b32.xlu0 %v3938, 96
    %v3956 = vpop.permute.xlu0 %3955
    %v3963 = vadd.f32 %v3323, %v3946
    %v3964 = vadd.f32 %v3324, %v3948
    %v3965 = vadd.f32 %v3325, %v3950
    %v3966 = vadd.f32 %v3326, %v3952
    %v3967 = vadd.f32 %v3327, %v3954
    %v3968 = vadd.f32 %v3328, %v3956
    %v3969 = vxor.u32 %v3963, 2147483648
    %v3970 = vxor.u32 %v3964, 2147483648
    %v3971 = vxor.u32 %v3965, 2147483648
    %v3972 = vxor.u32 %v3966, 2147483648
    %v3973 = vxor.u32 %v3967, 2147483648
    %v3974 = vxor.u32 %v3968, 2147483648
    %v3975 = vmul.f32 %v3969, 1.442695
    %v3976 = vpow.pop %v3975
    %v3977 = vmul.f32 %v3970, 1.442695
    %v3978 = vpow.pop %v3977
    %v3979 = vmul.f32 %v3971, 1.442695
    %v3980 = vpow.pop %v3979
    %v3981 = vmul.f32 %v3972, 1.442695
    %v3982 = vpow.pop %v3981
    %v3983 = vmul.f32 %v3973, 1.442695
    %v3984 = vpow.pop %v3983
    %v3985 = vmul.f32 %v3974, 1.442695
    %v3986 = vpow.pop %v3985
    %v3987 = vadd.f32 %v3976, 1.0
    %v3988 = vadd.f32 %v3978, 1.0
    %v3989 = vadd.f32 %v3980, 1.0
    %v3990 = vadd.f32 %v3982, 1.0
    %v3991 = vadd.f32 %v3984, 1.0
    %v3992 = vadd.f32 %v3986, 1.0
    %v3993 = vrcp.pop %v3987
    %v3994 = vmul.f32 1.0, %v3993
    %v3995 = vrcp.pop %v3988
    %v3996 = vmul.f32 1.0, %v3995
    %v3997 = vrcp.pop %v3989
    %v3998 = vmul.f32 1.0, %v3997
    %v3999 = vrcp.pop %v3990
    %v4000 = vmul.f32 1.0, %v3999
    %v4001 = vrcp.pop %v3991
    %v4002 = vmul.f32 1.0, %v4001
    %v4003 = vrcp.pop %v3992
    %v4004 = vmul.f32 1.0, %v4003
    %v4005 = vtanh.pop %v3899
    %v4006 = vtanh.pop %v3900
    %v4007 = vtanh.pop %v3901
    %v4008 = vtanh.pop %v3902
    %v4009 = vtanh.pop %v3903
    %v4010 = vtanh.pop %v3904
    %4017 = vrot.lane.b32.xlu0 %v4005, 64
    %v4018 = vpop.permute.xlu0 %4017
    %4019 = vrot.lane.b32.xlu0 %v4006, 64
    %v4020 = vpop.permute.xlu0 %4019
    %4021 = vrot.lane.b32.xlu0 %v4007, 64
    %v4022 = vpop.permute.xlu0 %4021
    %4023 = vrot.lane.b32.xlu0 %v4008, 64
    %v4024 = vpop.permute.xlu0 %4023
    %4025 = vrot.lane.b32.xlu0 %v4009, 64
    %v4026 = vpop.permute.xlu0 %4025
    %4027 = vrot.lane.b32.xlu0 %v4010, 64
    %v4028 = vpop.permute.xlu0 %4027
    %v4035 = vmul.f32 %v3994, %v4018
    %v4036 = vmul.f32 %v3996, %v4020
    %v4037 = vmul.f32 %v3998, %v4022
    %v4038 = vmul.f32 %v4000, %v4024
    %v4039 = vmul.f32 %v4002, %v4026
    %v4040 = vmul.f32 %v4004, %v4028
    %s4041 = scalar_lea.vmem %s5, 64
    %v4042 = vld [vmem:[%s4041] sm:$0xff]
    %v4043 = vld [vmem:[%s4041 + $0x8] sm:$0xff]
    %v4044 = vld [vmem:[%s4041 + $0x10] sm:$0xff]
    %v4045 = vld [vmem:[%s4041 + $0x18] sm:$0xff]
    %4046 = vmatprep.subr.mxu0 0.0
    %4047 = vmatpush1.msra.mxu0 %v4042
    %4048 = vmatprep.subr.mxu0 0.0
    %4049 = vmatpush1.msra.mxu0 %v4043
    %4050 = vmatprep.subr.mxu0 0.0
    %4051 = vmatpush1.msra.mxu0 %v4044
    %4052 = vmatprep.subr.mxu0 0.0
    %4053 = vmatpush1.msra.mxu0 %v4045
    %4054 = vmatprep.subr.mxu0 0.0
    %4055 = vmatpush1.msra.mxu0 0.0
    %4056 = vmatprep.subr.mxu0 0.0
    %4057 = vmatpush1.msra.mxu0 0.0
    %4058 = vmatprep.subr.mxu0 0.0
    %4059 = vmatpush1.msra.mxu0 0.0
    %4060 = vmatprep.subr.mxu0 0.0
    %4061 = vmatpush1.msra.mxu0 0.0
    %4062 = vmatprep.subr.mxu0 0.0
    %4063 = vmatpush1.msra.mxu0 0.0
    %4064 = vmatprep.subr.mxu0 0.0
    %4065 = vmatpush1.msra.mxu0 0.0
    %4066 = vmatprep.subr.mxu0 0.0
    %4067 = vmatpush1.msra.mxu0 0.0
    %4068 = vmatprep.subr.mxu0 0.0
    %4069 = vmatpush1.msra.mxu0 0.0
    %4070 = vmatprep.subr.mxu0 0.0
    %4071 = vmatpush1.msra.mxu0 0.0
    %4072 = vmatprep.subr.mxu0 0.0
    %4073 = vmatpush1.msra.mxu0 0.0
    %4074 = vmatprep.subr.mxu0 0.0
    %4075 = vmatpush1.msra.mxu0 0.0
    %4076 = vmatprep.subr.mxu0 0.0
    %4077 = vmatpush1.msra.mxu0 0.0
    %4078 = vmatprep.subr.mxu0 0.0
    %4079 = vmatpush1.msra.mxu0 0.0
    %4080 = vmatprep.subr.mxu0 0.0
    %4081 = vmatpush1.msra.mxu0 0.0
    %4082 = vmatprep.subr.mxu0 0.0
    %4083 = vmatpush1.msra.mxu0 0.0
    %4084 = vmatprep.subr.mxu0 0.0
    %4085 = vmatpush1.msra.mxu0 0.0
    %4086 = vmatprep.subr.mxu0 0.0
    %4087 = vmatpush1.msra.mxu0 0.0
    %4088 = vmatprep.subr.mxu0 0.0
    %4089 = vmatpush1.msra.mxu0 0.0
    %4090 = vmatprep.subr.mxu0 0.0
    %4091 = vmatpush1.msra.mxu0 0.0
    %4092 = vmatprep.subr.mxu0 0.0
    %4093 = vmatpush1.msra.mxu0 0.0
    %4094 = vmatprep.subr.mxu0 0.0
    %4095 = vmatpush1.msra.mxu0 0.0
    %4096 = vmatprep.subr.mxu0 0.0
    %4097 = vmatpush1.msra.mxu0 0.0
    %4098 = vmatprep.subr.mxu0 0.0
    %4099 = vmatpush1.msra.mxu0 0.0
    %4100 = vmatprep.subr.mxu0 0.0
    %4101 = vmatpush1.msra.mxu0 0.0
    %4102 = vmatprep.subr.mxu0 0.0
    %4103 = vmatpush1.msra.mxu0 0.0
    %4104 = vmatprep.subr.mxu0 0.0
    %4105 = vmatpush1.msra.mxu0 0.0
    %4106 = vmatprep.subr.mxu0 0.0
    %4107 = vmatpush1.msra.mxu0 0.0
    %4108 = vmatprep.subr.mxu0 0.0
    %4109 = vmatpush1.msra.mxu0 0.0
    %4110 = vmatprep.mubr.f32.mxu0 0.0
    %4111 = vmatmul.mubr.f32.gmra.mrb[0].mxu0 %v198
    %v4112 = vpop.f32.mrb[0].mxu0
    %v4113 = vadd.f32 0.0, %v4112
    %v4114 = vpop.f32.mrb[0].mxu0
    %4115 = vmatprep.mubr.f32.mxu0 0.0
    %4116 = vmatmul.mubr.f32.gmra.mrb[0].mxu0 %v201
    %v4117 = vpop.f32.mrb[0].mxu0
    %v4118 = vadd.f32 0.0, %v4117
    %v4119 = vpop.f32.mrb[0].mxu0
    %4120 = vmatprep.mubr.f32.mxu0 0.0
    %4121 = vmatmul.mubr.f32.gmra.mrb[0].mxu0 %v204
    %v4122 = vpop.f32.mrb[0].mxu0
    %v4123 = vadd.f32 0.0, %v4122
    %v4124 = vpop.f32.mrb[0].mxu0
    %4125 = vmatprep.mubr.f32.mxu0 0.0
    %4126 = vmatmul.mubr.f32.gmra.mrb[0].mxu0 %v207
    %v4127 = vpop.f32.mrb[0].mxu0
    %v4128 = vadd.f32 0.0, %v4127
    %v4129 = vpop.f32.mrb[0].mxu0
    %4130 = vmatprep.mubr.f32.mxu0 0.0
    %4131 = vmatmul.mubr.f32.gmra.mrb[0].mxu0 %v210
    %v4132 = vpop.f32.mrb[0].mxu0
    %v4133 = vadd.f32 0.0, %v4132
    %v4134 = vpop.f32.mrb[0].mxu0
    %4135 = vmatprep.mubr.f32.mxu0 0.0
    %4136 = vmatmul.mubr.f32.gmra.mrb[0].mxu0 %v213
    %v4137 = vpop.f32.mrb[0].mxu0
    %v4138 = vadd.f32 0.0, %v4137
    %v4139 = vpop.f32.mrb[0].mxu0
    %4140 = vmatprep.mubr.f32.mxu0 0.0
    %4141 = vmatmul.mubr.f32.gmra.mrb[0].mxu0 %v216
    %v4142 = vpop.f32.mrb[0].mxu0
    %v4143 = vadd.f32 0.0, %v4142
    %v4144 = vpop.f32.mrb[0].mxu0
    %4145 = vmatprep.mubr.f32.mxu0 0.0
    %4146 = vmatmul.mubr.f32.gmra.mrb[0].mxu0 %v219
    %v4147 = vpop.f32.mrb[0].mxu0
    %v4148 = vadd.f32 0.0, %v4147
    %v4149 = vpop.f32.mrb[0].mxu0
    %4150 = vdwg.mxu0
    %s4151 = scalar_lea.vmem %s6, 64
    %v4152 = vld [vmem:[%s4151] sm:$0xff]
    %v4153 = vld [vmem:[%s4151 + $0x8] sm:$0xff]
    %v4154 = vld [vmem:[%s4151 + $0x10] sm:$0xff]
    %v4155 = vld [vmem:[%s4151 + $0x18] sm:$0xff]
    %4156 = vmatprep.subr.mxu0 0.0
    %4157 = vmatpush1.msra.mxu0 %v4152
    %4158 = vmatprep.subr.mxu0 0.0
    %4159 = vmatpush1.msra.mxu0 %v4153
    %4160 = vmatprep.subr.mxu0 0.0
    %4161 = vmatpush1.msra.mxu0 %v4154
    %4162 = vmatprep.subr.mxu0 0.0
    %4163 = vmatpush1.msra.mxu0 %v4155
    %4164 = vmatprep.subr.mxu0 0.0
    %4165 = vmatpush1.msra.mxu0 0.0
    %4166 = vmatprep.subr.mxu0 0.0
    %4167 = vmatpush1.msra.mxu0 0.0
    %4168 = vmatprep.subr.mxu0 0.0
    %4169 = vmatpush1.msra.mxu0 0.0
    %4170 = vmatprep.subr.mxu0 0.0
    %4171 = vmatpush1.msra.mxu0 0.0
    %4172 = vmatprep.subr.mxu0 0.0
    %4173 = vmatpush1.msra.mxu0 0.0
    %4174 = vmatprep.subr.mxu0 0.0
    %4175 = vmatpush1.msra.mxu0 0.0
    %4176 = vmatprep.subr.mxu0 0.0
    %4177 = vmatpush1.msra.mxu0 0.0
    %4178 = vmatprep.subr.mxu0 0.0
    %4179 = vmatpush1.msra.mxu0 0.0
    %4180 = vmatprep.subr.mxu0 0.0
    %4181 = vmatpush1.msra.mxu0 0.0
    %4182 = vmatprep.subr.mxu0 0.0
    %4183 = vmatpush1.msra.mxu0 0.0
    %4184 = vmatprep.subr.mxu0 0.0
    %4185 = vmatpush1.msra.mxu0 0.0
    %4186 = vmatprep.subr.mxu0 0.0
    %4187 = vmatpush1.msra.mxu0 0.0
    %4188 = vmatprep.subr.mxu0 0.0
    %4189 = vmatpush1.msra.mxu0 0.0
    %4190 = vmatprep.subr.mxu0 0.0
    %4191 = vmatpush1.msra.mxu0 0.0
    %4192 = vmatprep.subr.mxu0 0.0
    %4193 = vmatpush1.msra.mxu0 0.0
    %4194 = vmatprep.subr.mxu0 0.0
    %4195 = vmatpush1.msra.mxu0 0.0
    %4196 = vmatprep.subr.mxu0 0.0
    %4197 = vmatpush1.msra.mxu0 0.0
    %4198 = vmatprep.subr.mxu0 0.0
    %4199 = vmatpush1.msra.mxu0 0.0
    %4200 = vmatprep.subr.mxu0 0.0
    %4201 = vmatpush1.msra.mxu0 0.0
    %4202 = vmatprep.subr.mxu0 0.0
    %4203 = vmatpush1.msra.mxu0 0.0
    %4204 = vmatprep.subr.mxu0 0.0
    %4205 = vmatpush1.msra.mxu0 0.0
    %4206 = vmatprep.subr.mxu0 0.0
    %4207 = vmatpush1.msra.mxu0 0.0
    %4208 = vmatprep.subr.mxu0 0.0
    %4209 = vmatpush1.msra.mxu0 0.0
    %4210 = vmatprep.subr.mxu0 0.0
    %4211 = vmatpush1.msra.mxu0 0.0
    %4212 = vmatprep.subr.mxu0 0.0
    %4213 = vmatpush1.msra.mxu0 0.0
    %4214 = vmatprep.subr.mxu0 0.0
    %4215 = vmatpush1.msra.mxu0 0.0
    %4216 = vmatprep.subr.mxu0 0.0
    %4217 = vmatpush1.msra.mxu0 0.0
    %4218 = vmatprep.subr.mxu0 0.0
    %4219 = vmatpush1.msra.mxu0 0.0
    %4220 = vmatprep.mubr.f32.mxu0 0.0
    %4221 = vmatmul.mubr.f32.gmra.mrb[0].mxu0 %v331
    %v4222 = vpop.f32.mrb[0].mxu0
    %v4223 = vadd.f32 0.0, %v4222
    %v4224 = vpop.f32.mrb[0].mxu0
    %4225 = vmatprep.mubr.f32.mxu0 0.0
    %4226 = vmatmul.mubr.f32.gmra.mrb[0].mxu0 %v334
    %v4227 = vpop.f32.mrb[0].mxu0
    %v4228 = vadd.f32 0.0, %v4227
    %v4229 = vpop.f32.mrb[0].mxu0
    %4230 = vmatprep.mubr.f32.mxu0 0.0
    %4231 = vmatmul.mubr.f32.gmra.mrb[0].mxu0 %v337
    %v4232 = vpop.f32.mrb[0].mxu0
    %v4233 = vadd.f32 0.0, %v4232
    %v4234 = vpop.f32.mrb[0].mxu0
    %4235 = vmatprep.mubr.f32.mxu0 0.0
    %4236 = vmatmul.mubr.f32.gmra.mrb[0].mxu0 %v340
    %v4237 = vpop.f32.mrb[0].mxu0
    %v4238 = vadd.f32 0.0, %v4237
    %v4239 = vpop.f32.mrb[0].mxu0
    %4240 = vmatprep.mubr.f32.mxu0 0.0
    %4241 = vmatmul.mubr.f32.gmra.mrb[0].mxu0 %v343
    %v4242 = vpop.f32.mrb[0].mxu0
    %v4243 = vadd.f32 0.0, %v4242
    %v4244 = vpop.f32.mrb[0].mxu0
    %4245 = vmatprep.mubr.f32.mxu0 0.0
    %4246 = vmatmul.mubr.f32.gmra.mrb[0].mxu0 %v346
    %v4247 = vpop.f32.mrb[0].mxu0
    %v4248 = vadd.f32 0.0, %v4247
    %v4249 = vpop.f32.mrb[0].mxu0
    %4250 = vdwg.mxu0
    %s4251 = scalar_lea.vmem %s7, 64
    %v4252 = vld [vmem:[%s4251] sm:$0xff]
    %v4253 = vld [vmem:[%s4251 + $0x8] sm:$0xff]
    %v4254 = vld [vmem:[%s4251 + $0x10] sm:$0xff]
    %v4255 = vld [vmem:[%s4251 + $0x18] sm:$0xff]
    %4256 = vmatprep.subr.mxu0 0.0
    %4257 = vmatpush1.msra.mxu0 %v4252
    %4258 = vmatprep.subr.mxu0 0.0
    %4259 = vmatpush1.msra.mxu0 %v4253
    %4260 = vmatprep.subr.mxu0 0.0
    %4261 = vmatpush1.msra.mxu0 %v4254
    %4262 = vmatprep.subr.mxu0 0.0
    %4263 = vmatpush1.msra.mxu0 %v4255
    %4264 = vmatprep.subr.mxu0 0.0
    %4265 = vmatpush1.msra.mxu0 0.0
    %4266 = vmatprep.subr.mxu0 0.0
    %4267 = vmatpush1.msra.mxu0 0.0
    %4268 = vmatprep.subr.mxu0 0.0
    %4269 = vmatpush1.msra.mxu0 0.0
    %4270 = vmatprep.subr.mxu0 0.0
    %4271 = vmatpush1.msra.mxu0 0.0
    %4272 = vmatprep.subr.mxu0 0.0
    %4273 = vmatpush1.msra.mxu0 0.0
    %4274 = vmatprep.subr.mxu0 0.0
    %4275 = vmatpush1.msra.mxu0 0.0
    %4276 = vmatprep.subr.mxu0 0.0
    %4277 = vmatpush1.msra.mxu0 0.0
    %4278 = vmatprep.subr.mxu0 0.0
    %4279 = vmatpush1.msra.mxu0 0.0
    %4280 = vmatprep.subr.mxu0 0.0
    %4281 = vmatpush1.msra.mxu0 0.0
    %4282 = vmatprep.subr.mxu0 0.0
    %4283 = vmatpush1.msra.mxu0 0.0
    %4284 = vmatprep.subr.mxu0 0.0
    %4285 = vmatpush1.msra.mxu0 0.0
    %4286 = vmatprep.subr.mxu0 0.0
    %4287 = vmatpush1.msra.mxu0 0.0
    %4288 = vmatprep.subr.mxu0 0.0
    %4289 = vmatpush1.msra.mxu0 0.0
    %4290 = vmatprep.subr.mxu0 0.0
    %4291 = vmatpush1.msra.mxu0 0.0
    %4292 = vmatprep.subr.mxu0 0.0
    %4293 = vmatpush1.msra.mxu0 0.0
    %4294 = vmatprep.subr.mxu0 0.0
    %4295 = vmatpush1.msra.mxu0 0.0
    %4296 = vmatprep.subr.mxu0 0.0
    %4297 = vmatpush1.msra.mxu0 0.0
    %4298 = vmatprep.subr.mxu0 0.0
    %4299 = vmatpush1.msra.mxu0 0.0
    %4300 = vmatprep.subr.mxu0 0.0
    %4301 = vmatpush1.msra.mxu0 0.0
    %4302 = vmatprep.subr.mxu0 0.0
    %4303 = vmatpush1.msra.mxu0 0.0
    %4304 = vmatprep.subr.mxu0 0.0
    %4305 = vmatpush1.msra.mxu0 0.0
    %4306 = vmatprep.subr.mxu0 0.0
    %4307 = vmatpush1.msra.mxu0 0.0
    %4308 = vmatprep.subr.mxu0 0.0
    %4309 = vmatpush1.msra.mxu0 0.0
    %4310 = vmatprep.subr.mxu0 0.0
    %4311 = vmatpush1.msra.mxu0 0.0
    %4312 = vmatprep.subr.mxu0 0.0
    %4313 = vmatpush1.msra.mxu0 0.0
    %4314 = vmatprep.subr.mxu0 0.0
    %4315 = vmatpush1.msra.mxu0 0.0
    %4316 = vmatprep.subr.mxu0 0.0
    %4317 = vmatpush1.msra.mxu0 0.0
    %4318 = vmatprep.subr.mxu0 0.0
    %4319 = vmatpush1.msra.mxu0 0.0
    %4320 = vmatprep.mubr.f32.mxu0 0.0
    %4321 = vmatmul.mubr.f32.gmra.mrb[0].mxu0 %v198
    %v4322 = vpop.f32.mrb[0].mxu0
    %v4323 = vadd.f32 0.0, %v4322
    %v4324 = vpop.f32.mrb[0].mxu0
    %4325 = vmatprep.mubr.f32.mxu0 0.0
    %4326 = vmatmul.mubr.f32.gmra.mrb[0].mxu0 %v201
    %v4327 = vpop.f32.mrb[0].mxu0
    %v4328 = vadd.f32 0.0, %v4327
    %v4329 = vpop.f32.mrb[0].mxu0
    %4330 = vmatprep.mubr.f32.mxu0 0.0
    %4331 = vmatmul.mubr.f32.gmra.mrb[0].mxu0 %v204
    %v4332 = vpop.f32.mrb[0].mxu0
    %v4333 = vadd.f32 0.0, %v4332
    %v4334 = vpop.f32.mrb[0].mxu0
    %4335 = vmatprep.mubr.f32.mxu0 0.0
    %4336 = vmatmul.mubr.f32.gmra.mrb[0].mxu0 %v207
    %v4337 = vpop.f32.mrb[0].mxu0
    %v4338 = vadd.f32 0.0, %v4337
    %v4339 = vpop.f32.mrb[0].mxu0
    %4340 = vmatprep.mubr.f32.mxu0 0.0
    %4341 = vmatmul.mubr.f32.gmra.mrb[0].mxu0 %v210
    %v4342 = vpop.f32.mrb[0].mxu0
    %v4343 = vadd.f32 0.0, %v4342
    %v4344 = vpop.f32.mrb[0].mxu0
    %4345 = vmatprep.mubr.f32.mxu0 0.0
    %4346 = vmatmul.mubr.f32.gmra.mrb[0].mxu0 %v213
    %v4347 = vpop.f32.mrb[0].mxu0
    %v4348 = vadd.f32 0.0, %v4347
    %v4349 = vpop.f32.mrb[0].mxu0
    %4350 = vmatprep.mubr.f32.mxu0 0.0
    %4351 = vmatmul.mubr.f32.gmra.mrb[0].mxu0 %v216
    %v4352 = vpop.f32.mrb[0].mxu0
    %v4353 = vadd.f32 0.0, %v4352
    %v4354 = vpop.f32.mrb[0].mxu0
    %4355 = vmatprep.mubr.f32.mxu0 0.0
    %4356 = vmatmul.mubr.f32.gmra.mrb[0].mxu0 %v219
    %v4357 = vpop.f32.mrb[0].mxu0
    %v4358 = vadd.f32 0.0, %v4357
    %v4359 = vpop.f32.mrb[0].mxu0
    %4360 = vdwg.mxu0
    %4361 = vmatprep.subr.mxu0 0.0
    %4362 = vmatpush1.msra.mxu0 %v4223
    %4363 = vmatprep.subr.mxu0 0.0
    %4364 = vmatpush1.msra.mxu0 %v4228
    %4365 = vmatprep.subr.mxu0 0.0
    %4366 = vmatpush1.msra.mxu0 %v4233
    %4367 = vmatprep.subr.mxu0 0.0
    %4368 = vmatpush1.msra.mxu0 %v4238
    %4369 = vmatprep.subr.mxu0 0.0
    %4370 = vmatpush1.msra.mxu0 %v4243
    %4371 = vmatprep.subr.mxu0 0.0
    %4372 = vmatpush1.msra.mxu0 %v4248
    %4373 = vmatprep.subr.mxu0 0.0
    %4374 = vmatpush1.msra.mxu0 0.0
    %4375 = vmatprep.subr.mxu0 0.0
    %4376 = vmatpush1.msra.mxu0 0.0
    %4377 = vmatprep.subr.mxu0 0.0
    %4378 = vmatpush1.msra.mxu0 0.0
    %4379 = vmatprep.subr.mxu0 0.0
    %4380 = vmatpush1.msra.mxu0 0.0
    %4381 = vmatprep.subr.mxu0 0.0
    %4382 = vmatpush1.msra.mxu0 0.0
    %4383 = vmatprep.subr.mxu0 0.0
    %4384 = vmatpush1.msra.mxu0 0.0
    %4385 = vmatprep.subr.mxu0 0.0
    %4386 = vmatpush1.msra.mxu0 0.0
    %4387 = vmatprep.subr.mxu0 0.0
    %4388 = vmatpush1.msra.mxu0 0.0
    %4389 = vmatprep.subr.mxu0 0.0
    %4390 = vmatpush1.msra.mxu0 0.0
    %4391 = vmatprep.subr.mxu0 0.0
    %4392 = vmatpush1.msra.mxu0 0.0
    %4393 = vmatprep.subr.mxu0 0.0
    %4394 = vmatpush1.msra.mxu0 0.0
    %4395 = vmatprep.subr.mxu0 0.0
    %4396 = vmatpush1.msra.mxu0 0.0
    %4397 = vmatprep.subr.mxu0 0.0
    %4398 = vmatpush1.msra.mxu0 0.0
    %4399 = vmatprep.subr.mxu0 0.0
    %4400 = vmatpush1.msra.mxu0 0.0
    %4401 = vmatprep.subr.mxu0 0.0
    %4402 = vmatpush1.msra.mxu0 0.0
    %4403 = vmatprep.subr.mxu0 0.0
    %4404 = vmatpush1.msra.mxu0 0.0
    %4405 = vmatprep.subr.mxu0 0.0
    %4406 = vmatpush1.msra.mxu0 0.0
    %4407 = vmatprep.subr.mxu0 0.0
    %4408 = vmatpush1.msra.mxu0 0.0
    %4409 = vmatprep.subr.mxu0 0.0
    %4410 = vmatpush1.msra.mxu0 0.0
    %4411 = vmatprep.subr.mxu0 0.0
    %4412 = vmatpush1.msra.mxu0 0.0
    %4413 = vmatprep.subr.mxu0 0.0
    %4414 = vmatpush1.msra.mxu0 0.0
    %4415 = vmatprep.subr.mxu0 0.0
    %4416 = vmatpush1.msra.mxu0 0.0
    %4417 = vmatprep.subr.mxu0 0.0
    %4418 = vmatpush1.msra.mxu0 0.0
    %4419 = vmatprep.subr.mxu0 0.0
    %4420 = vmatpush1.msra.mxu0 0.0
    %4421 = vmatprep.subr.mxu0 0.0
    %4422 = vmatpush1.msra.mxu0 0.0
    %4423 = vmatprep.subr.mxu0 0.0
    %4424 = vmatpush1.msra.mxu0 0.0
    %4425 = vmatprep.mubr.f32.mxu0 0.0
    %4426 = vmatmul.mubr.f32.gmra.mrb[0].mxu0 %v554
    %v4427 = vpop.f32.mrb[0].mxu0
    %v4428 = vadd.f32 0.0, %v4427
    %v4429 = vpop.f32.mrb[0].mxu0
    %4430 = vmatprep.mubr.f32.mxu0 0.0
    %4431 = vmatmul.mubr.f32.gmra.mrb[0].mxu0 %v557
    %v4432 = vpop.f32.mrb[0].mxu0
    %v4433 = vadd.f32 0.0, %v4432
    %v4434 = vpop.f32.mrb[0].mxu0
    %4435 = vmatprep.mubr.f32.mxu0 0.0
    %4436 = vmatmul.mubr.f32.gmra.mrb[0].mxu0 %v560
    %v4437 = vpop.f32.mrb[0].mxu0
    %v4438 = vadd.f32 0.0, %v4437
    %v4439 = vpop.f32.mrb[0].mxu0
    %4440 = vmatprep.mubr.f32.mxu0 0.0
    %4441 = vmatmul.mubr.f32.gmra.mrb[0].mxu0 %v563
    %v4442 = vpop.f32.mrb[0].mxu0
    %v4443 = vadd.f32 0.0, %v4442
    %v4444 = vpop.f32.mrb[0].mxu0
    %4445 = vmatprep.mubr.f32.mxu0 0.0
    %4446 = vmatmul.mubr.f32.gmra.mrb[0].mxu0 %v566
    %v4447 = vpop.f32.mrb[0].mxu0
    %v4448 = vadd.f32 0.0, %v4447
    %v4449 = vpop.f32.mrb[0].mxu0
    %4450 = vmatprep.mubr.f32.mxu0 0.0
    %4451 = vmatmul.mubr.f32.gmra.mrb[0].mxu0 %v569
    %v4452 = vpop.f32.mrb[0].mxu0
    %v4453 = vadd.f32 0.0, %v4452
    %v4454 = vpop.f32.mrb[0].mxu0
    %4455 = vmatprep.mubr.f32.mxu0 0.0
    %4456 = vmatmul.mubr.f32.gmra.mrb[0].mxu0 %v572
    %v4457 = vpop.f32.mrb[0].mxu0
    %v4458 = vadd.f32 0.0, %v4457
    %v4459 = vpop.f32.mrb[0].mxu0
    %4460 = vmatprep.mubr.f32.mxu0 0.0
    %4461 = vmatmul.mubr.f32.gmra.mrb[0].mxu0 %v575
    %v4462 = vpop.f32.mrb[0].mxu0
    %v4463 = vadd.f32 0.0, %v4462
    %v4464 = vpop.f32.mrb[0].mxu0
    %4465 = vdwg.mxu0
    %4466 = vmatprep.subr.mxu0 0.0
    %4467 = vmatpush1.msra.mxu0 %v4113
    %4468 = vmatprep.subr.mxu0 0.0
    %4469 = vmatpush1.msra.mxu0 %v4118
    %4470 = vmatprep.subr.mxu0 0.0
    %4471 = vmatpush1.msra.mxu0 %v4123
    %4472 = vmatprep.subr.mxu0 0.0
    %4473 = vmatpush1.msra.mxu0 %v4128
    %4474 = vmatprep.subr.mxu0 0.0
    %4475 = vmatpush1.msra.mxu0 %v4133
    %4476 = vmatprep.subr.mxu0 0.0
    %4477 = vmatpush1.msra.mxu0 %v4138
    %4478 = vmatprep.subr.mxu0 0.0
    %4479 = vmatpush1.msra.mxu0 %v4143
    %4480 = vmatprep.subr.mxu0 0.0
    %4481 = vmatpush1.msra.mxu0 %v4148
    %4482 = vmatprep.subr.mxu0 0.0
    %4483 = vmatpush1.msra.mxu0 0.0
    %4484 = vmatprep.subr.mxu0 0.0
    %4485 = vmatpush1.msra.mxu0 0.0
    %4486 = vmatprep.subr.mxu0 0.0
    %4487 = vmatpush1.msra.mxu0 0.0
    %4488 = vmatprep.subr.mxu0 0.0
    %4489 = vmatpush1.msra.mxu0 0.0
    %4490 = vmatprep.subr.mxu0 0.0
    %4491 = vmatpush1.msra.mxu0 0.0
    %4492 = vmatprep.subr.mxu0 0.0
    %4493 = vmatpush1.msra.mxu0 0.0
    %4494 = vmatprep.subr.mxu0 0.0
    %4495 = vmatpush1.msra.mxu0 0.0
    %4496 = vmatprep.subr.mxu0 0.0
    %4497 = vmatpush1.msra.mxu0 0.0
    %4498 = vmatprep.subr.mxu0 0.0
    %4499 = vmatpush1.msra.mxu0 0.0
    %4500 = vmatprep.subr.mxu0 0.0
    %4501 = vmatpush1.msra.mxu0 0.0
    %4502 = vmatprep.subr.mxu0 0.0
    %4503 = vmatpush1.msra.mxu0 0.0
    %4504 = vmatprep.subr.mxu0 0.0
    %4505 = vmatpush1.msra.mxu0 0.0
    %4506 = vmatprep.subr.mxu0 0.0
    %4507 = vmatpush1.msra.mxu0 0.0
    %4508 = vmatprep.subr.mxu0 0.0
    %4509 = vmatpush1.msra.mxu0 0.0
    %4510 = vmatprep.subr.mxu0 0.0
    %4511 = vmatpush1.msra.mxu0 0.0
    %4512 = vmatprep.subr.mxu0 0.0
    %4513 = vmatpush1.msra.mxu0 0.0
    %4514 = vmatprep.subr.mxu0 0.0
    %4515 = vmatpush1.msra.mxu0 0.0
    %4516 = vmatprep.subr.mxu0 0.0
    %4517 = vmatpush1.msra.mxu0 0.0
    %4518 = vmatprep.subr.mxu0 0.0
    %4519 = vmatpush1.msra.mxu0 0.0
    %4520 = vmatprep.subr.mxu0 0.0
    %4521 = vmatpush1.msra.mxu0 0.0
    %4522 = vmatprep.subr.mxu0 0.0
    %4523 = vmatpush1.msra.mxu0 0.0
    %4524 = vmatprep.subr.mxu0 0.0
    %4525 = vmatpush1.msra.mxu0 0.0
    %4526 = vmatprep.subr.mxu0 0.0
    %4527 = vmatpush1.msra.mxu0 0.0
    %4528 = vmatprep.subr.mxu0 0.0
    %4529 = vmatpush1.msra.mxu0 0.0
    %4530 = vmatprep.mubr.f32.mxu0 0.0
    %4531 = vmatmul.mubr.f32.gmra.mrb[0].mxu0 %v684
    %v4532 = vpop.f32.mrb[0].mxu0
    %v4533 = vadd.f32 %v4428, %v4532
    %v4534 = vpop.f32.mrb[0].mxu0
    %4535 = vmatprep.mubr.f32.mxu0 0.0
    %4536 = vmatmul.mubr.f32.gmra.mrb[0].mxu0 %v687
    %v4537 = vpop.f32.mrb[0].mxu0
    %v4538 = vadd.f32 %v4433, %v4537
    %v4539 = vpop.f32.mrb[0].mxu0
    %4540 = vmatprep.mubr.f32.mxu0 0.0
    %4541 = vmatmul.mubr.f32.gmra.mrb[0].mxu0 %v690
    %v4542 = vpop.f32.mrb[0].mxu0
    %v4543 = vadd.f32 %v4438, %v4542
    %v4544 = vpop.f32.mrb[0].mxu0
    %4545 = vmatprep.mubr.f32.mxu0 0.0
    %4546 = vmatmul.mubr.f32.gmra.mrb[0].mxu0 %v693
    %v4547 = vpop.f32.mrb[0].mxu0
    %v4548 = vadd.f32 %v4443, %v4547
    %v4549 = vpop.f32.mrb[0].mxu0
    %4550 = vmatprep.mubr.f32.mxu0 0.0
    %4551 = vmatmul.mubr.f32.gmra.mrb[0].mxu0 %v696
    %v4552 = vpop.f32.mrb[0].mxu0
    %v4553 = vadd.f32 %v4448, %v4552
    %v4554 = vpop.f32.mrb[0].mxu0
    %4555 = vmatprep.mubr.f32.mxu0 0.0
    %4556 = vmatmul.mubr.f32.gmra.mrb[0].mxu0 %v699
    %v4557 = vpop.f32.mrb[0].mxu0
    %v4558 = vadd.f32 %v4453, %v4557
    %v4559 = vpop.f32.mrb[0].mxu0
    %4560 = vmatprep.mubr.f32.mxu0 0.0
    %4561 = vmatmul.mubr.f32.gmra.mrb[0].mxu0 %v702
    %v4562 = vpop.f32.mrb[0].mxu0
    %v4563 = vadd.f32 %v4458, %v4562
    %v4564 = vpop.f32.mrb[0].mxu0
    %4565 = vmatprep.mubr.f32.mxu0 0.0
    %4566 = vmatmul.mubr.f32.gmra.mrb[0].mxu0 %v705
    %v4567 = vpop.f32.mrb[0].mxu0
    %v4568 = vadd.f32 %v4463, %v4567
    %v4569 = vpop.f32.mrb[0].mxu0
    %4570 = vdwg.mxu0
    %s4571 = scalar_lea.vmem [#allocation6], 64
    %v4572 = vld [vmem:[%s4571] sm:$0xff]
    %v4573 = vld [vmem:[%s4571 + $0x8] sm:$0xff]
    %v4574 = vld [vmem:[%s4571 + $0x10] sm:$0xff]
    %v4575 = vld [vmem:[%s4571 + $0x18] sm:$0xff]
    %4576 = vmatprep.subr.mxu0 0.0
    %4577 = vmatpush1.msra.mxu0 %v4572
    %4578 = vmatprep.subr.mxu0 0.0
    %4579 = vmatpush1.msra.mxu0 %v4573
    %4580 = vmatprep.subr.mxu0 0.0
    %4581 = vmatpush1.msra.mxu0 %v4574
    %4582 = vmatprep.subr.mxu0 0.0
    %4583 = vmatpush1.msra.mxu0 %v4575
    %4584 = vmatprep.subr.mxu0 0.0
    %4585 = vmatpush1.msra.mxu0 0.0
    %4586 = vmatprep.subr.mxu0 0.0
    %4587 = vmatpush1.msra.mxu0 0.0
    %4588 = vmatprep.subr.mxu0 0.0
    %4589 = vmatpush1.msra.mxu0 0.0
    %4590 = vmatprep.subr.mxu0 0.0
    %4591 = vmatpush1.msra.mxu0 0.0
    %4592 = vmatprep.subr.mxu0 0.0
    %4593 = vmatpush1.msra.mxu0 0.0
    %4594 = vmatprep.subr.mxu0 0.0
    %4595 = vmatpush1.msra.mxu0 0.0
    %4596 = vmatprep.subr.mxu0 0.0
    %4597 = vmatpush1.msra.mxu0 0.0
    %4598 = vmatprep.subr.mxu0 0.0
    %4599 = vmatpush1.msra.mxu0 0.0
    %4600 = vmatprep.subr.mxu0 0.0
    %4601 = vmatpush1.msra.mxu0 0.0
    %4602 = vmatprep.subr.mxu0 0.0
    %4603 = vmatpush1.msra.mxu0 0.0
    %4604 = vmatprep.subr.mxu0 0.0
    %4605 = vmatpush1.msra.mxu0 0.0
    %4606 = vmatprep.subr.mxu0 0.0
    %4607 = vmatpush1.msra.mxu0 0.0
    %4608 = vmatprep.subr.mxu0 0.0
    %4609 = vmatpush1.msra.mxu0 0.0
    %4610 = vmatprep.subr.mxu0 0.0
    %4611 = vmatpush1.msra.mxu0 0.0
    %4612 = vmatprep.subr.mxu0 0.0
    %4613 = vmatpush1.msra.mxu0 0.0
    %4614 = vmatprep.subr.mxu0 0.0
    %4615 = vmatpush1.msra.mxu0 0.0
    %4616 = vmatprep.subr.mxu0 0.0
    %4617 = vmatpush1.msra.mxu0 0.0
    %4618 = vmatprep.subr.mxu0 0.0
    %4619 = vmatpush1.msra.mxu0 0.0
    %4620 = vmatprep.subr.mxu0 0.0
    %4621 = vmatpush1.msra.mxu0 0.0
    %4622 = vmatprep.subr.mxu0 0.0
    %4623 = vmatpush1.msra.mxu0 0.0
    %4624 = vmatprep.subr.mxu0 0.0
    %4625 = vmatpush1.msra.mxu0 0.0
    %4626 = vmatprep.subr.mxu0 0.0
    %4627 = vmatpush1.msra.mxu0 0.0
    %4628 = vmatprep.subr.mxu0 0.0
    %4629 = vmatpush1.msra.mxu0 0.0
    %4630 = vmatprep.subr.mxu0 0.0
    %4631 = vmatpush1.msra.mxu0 0.0
    %4632 = vmatprep.subr.mxu0 0.0
    %4633 = vmatpush1.msra.mxu0 0.0
    %4634 = vmatprep.subr.mxu0 0.0
    %4635 = vmatpush1.msra.mxu0 0.0
    %4636 = vmatprep.subr.mxu0 0.0
    %4637 = vmatpush1.msra.mxu0 0.0
    %4638 = vmatprep.subr.mxu0 0.0
    %4639 = vmatpush1.msra.mxu0 0.0
    %4640 = vmatprep.mubr.f32.mxu0 0.0
    %4641 = vmatmul.mubr.f32.gmra.mrb[0].mxu0 %v198
    %v4642 = vpop.f32.mrb[0].mxu0
    %v4643 = vadd.f32 0.0, %v4642
    %v4644 = vpop.f32.mrb[0].mxu0
    %4645 = vmatprep.mubr.f32.mxu0 0.0
    %4646 = vmatmul.mubr.f32.gmra.mrb[0].mxu0 %v201
    %v4647 = vpop.f32.mrb[0].mxu0
    %v4648 = vadd.f32 0.0, %v4647
    %v4649 = vpop.f32.mrb[0].mxu0
    %4650 = vmatprep.mubr.f32.mxu0 0.0
    %4651 = vmatmul.mubr.f32.gmra.mrb[0].mxu0 %v204
    %v4652 = vpop.f32.mrb[0].mxu0
    %v4653 = vadd.f32 0.0, %v4652
    %v4654 = vpop.f32.mrb[0].mxu0
    %4655 = vmatprep.mubr.f32.mxu0 0.0
    %4656 = vmatmul.mubr.f32.gmra.mrb[0].mxu0 %v207
    %v4657 = vpop.f32.mrb[0].mxu0
    %v4658 = vadd.f32 0.0, %v4657
    %v4659 = vpop.f32.mrb[0].mxu0
    %4660 = vmatprep.mubr.f32.mxu0 0.0
    %4661 = vmatmul.mubr.f32.gmra.mrb[0].mxu0 %v210
    %v4662 = vpop.f32.mrb[0].mxu0
    %v4663 = vadd.f32 0.0, %v4662
    %v4664 = vpop.f32.mrb[0].mxu0
    %4665 = vmatprep.mubr.f32.mxu0 0.0
    %4666 = vmatmul.mubr.f32.gmra.mrb[0].mxu0 %v213
    %v4667 = vpop.f32.mrb[0].mxu0
    %v4668 = vadd.f32 0.0, %v4667
    %v4669 = vpop.f32.mrb[0].mxu0
    %4670 = vmatprep.mubr.f32.mxu0 0.0
    %4671 = vmatmul.mubr.f32.gmra.mrb[0].mxu0 %v216
    %v4672 = vpop.f32.mrb[0].mxu0
    %v4673 = vadd.f32 0.0, %v4672
    %v4674 = vpop.f32.mrb[0].mxu0
    %4675 = vmatprep.mubr.f32.mxu0 0.0
    %4676 = vmatmul.mubr.f32.gmra.mrb[0].mxu0 %v219
    %v4677 = vpop.f32.mrb[0].mxu0
    %v4678 = vadd.f32 0.0, %v4677
    %v4679 = vpop.f32.mrb[0].mxu0
    %4680 = vdwg.mxu0
    %v4681 = vadd.f32 %v4533, %v4643
    %v4682 = vadd.f32 %v4538, %v4648
    %v4683 = vadd.f32 %v4543, %v4653
    %v4684 = vadd.f32 %v4548, %v4658
    %v4685 = vadd.f32 %v4553, %v4663
    %v4686 = vadd.f32 %v4558, %v4668
    %v4687 = vadd.f32 %v4563, %v4673
    %v4688 = vadd.f32 %v4568, %v4678
    %s4689 = scalar_lea.vmem %s10, 2
    %v4690 = vld [vmem:[%s4689] sm:$0x1]
    %v4692 = vlaneseq
    %v4693 = vshrl.u32 %v4692, 7
    %v4694 = vsub.s32 0, %v4693
    %v4695 = vrot.slane %v4690, %v4694
    %v4697 = vadd.f32 %v4681, %v4695
    %v4698 = vadd.f32 %v4682, %v4695
    %v4699 = vadd.f32 %v4683, %v4695
    %v4700 = vadd.f32 %v4684, %v4695
    %v4701 = vadd.f32 %v4685, %v4695
    %v4702 = vadd.f32 %v4686, %v4695
    %v4703 = vadd.f32 %v4687, %v4695
    %v4704 = vadd.f32 %v4688, %v4695
    %s4705 = scalar_lea.vmem [#allocation7], 64
    %v4706 = vld [vmem:[%s4705] sm:$0xff]
    %v4707 = vld [vmem:[%s4705 + $0x8] sm:$0xff]
    %v4708 = vld [vmem:[%s4705 + $0x10] sm:$0xff]
    %v4709 = vld [vmem:[%s4705 + $0x18] sm:$0xff]
    %4710 = vmatprep.subr.mxu0 0.0
    %4711 = vmatpush1.msra.mxu0 %v4706
    %4712 = vmatprep.subr.mxu0 0.0
    %4713 = vmatpush1.msra.mxu0 %v4707
    %4714 = vmatprep.subr.mxu0 0.0
    %4715 = vmatpush1.msra.mxu0 %v4708
    %4716 = vmatprep.subr.mxu0 0.0
    %4717 = vmatpush1.msra.mxu0 %v4709
    %4718 = vmatprep.subr.mxu0 0.0
    %4719 = vmatpush1.msra.mxu0 0.0
    %4720 = vmatprep.subr.mxu0 0.0
    %4721 = vmatpush1.msra.mxu0 0.0
    %4722 = vmatprep.subr.mxu0 0.0
    %4723 = vmatpush1.msra.mxu0 0.0
    %4724 = vmatprep.subr.mxu0 0.0
    %4725 = vmatpush1.msra.mxu0 0.0
    %4726 = vmatprep.subr.mxu0 0.0
    %4727 = vmatpush1.msra.mxu0 0.0
    %4728 = vmatprep.subr.mxu0 0.0
    %4729 = vmatpush1.msra.mxu0 0.0
    %4730 = vmatprep.subr.mxu0 0.0
    %4731 = vmatpush1.msra.mxu0 0.0
    %4732 = vmatprep.subr.mxu0 0.0
    %4733 = vmatpush1.msra.mxu0 0.0
    %4734 = vmatprep.subr.mxu0 0.0
    %4735 = vmatpush1.msra.mxu0 0.0
    %4736 = vmatprep.subr.mxu0 0.0
    %4737 = vmatpush1.msra.mxu0 0.0
    %4738 = vmatprep.subr.mxu0 0.0
    %4739 = vmatpush1.msra.mxu0 0.0
    %4740 = vmatprep.subr.mxu0 0.0
    %4741 = vmatpush1.msra.mxu0 0.0
    %4742 = vmatprep.subr.mxu0 0.0
    %4743 = vmatpush1.msra.mxu0 0.0
    %4744 = vmatprep.subr.mxu0 0.0
    %4745 = vmatpush1.msra.mxu0 0.0
    %4746 = vmatprep.subr.mxu0 0.0
    %4747 = vmatpush1.msra.mxu0 0.0
    %4748 = vmatprep.subr.mxu0 0.0
    %4749 = vmatpush1.msra.mxu0 0.0
    %4750 = vmatprep.subr.mxu0 0.0
    %4751 = vmatpush1.msra.mxu0 0.0
    %4752 = vmatprep.subr.mxu0 0.0
    %4753 = vmatpush1.msra.mxu0 0.0
    %4754 = vmatprep.subr.mxu0 0.0
    %4755 = vmatpush1.msra.mxu0 0.0
    %4756 = vmatprep.subr.mxu0 0.0
    %4757 = vmatpush1.msra.mxu0 0.0
    %4758 = vmatprep.subr.mxu0 0.0
    %4759 = vmatpush1.msra.mxu0 0.0
    %4760 = vmatprep.subr.mxu0 0.0
    %4761 = vmatpush1.msra.mxu0 0.0
    %4762 = vmatprep.subr.mxu0 0.0
    %4763 = vmatpush1.msra.mxu0 0.0
    %4764 = vmatprep.subr.mxu0 0.0
    %4765 = vmatpush1.msra.mxu0 0.0
    %4766 = vmatprep.subr.mxu0 0.0
    %4767 = vmatpush1.msra.mxu0 0.0
    %4768 = vmatprep.subr.mxu0 0.0
    %4769 = vmatpush1.msra.mxu0 0.0
    %4770 = vmatprep.subr.mxu0 0.0
    %4771 = vmatpush1.msra.mxu0 0.0
    %4772 = vmatprep.subr.mxu0 0.0
    %4773 = vmatpush1.msra.mxu0 0.0
    %4774 = vmatprep.mubr.f32.mxu0 0.0
    %4775 = vmatmul.mubr.f32.gmra.mrb[0].mxu0 %v331
    %v4776 = vpop.f32.mrb[0].mxu0
    %v4777 = vadd.f32 0.0, %v4776
    %v4778 = vpop.f32.mrb[0].mxu0
    %4779 = vmatprep.mubr.f32.mxu0 0.0
    %4780 = vmatmul.mubr.f32.gmra.mrb[0].mxu0 %v334
    %v4781 = vpop.f32.mrb[0].mxu0
    %v4782 = vadd.f32 0.0, %v4781
    %v4783 = vpop.f32.mrb[0].mxu0
    %4784 = vmatprep.mubr.f32.mxu0 0.0
    %4785 = vmatmul.mubr.f32.gmra.mrb[0].mxu0 %v337
    %v4786 = vpop.f32.mrb[0].mxu0
    %v4787 = vadd.f32 0.0, %v4786
    %v4788 = vpop.f32.mrb[0].mxu0
    %4789 = vmatprep.mubr.f32.mxu0 0.0
    %4790 = vmatmul.mubr.f32.gmra.mrb[0].mxu0 %v340
    %v4791 = vpop.f32.mrb[0].mxu0
    %v4792 = vadd.f32 0.0, %v4791
    %v4793 = vpop.f32.mrb[0].mxu0
    %4794 = vmatprep.mubr.f32.mxu0 0.0
    %4795 = vmatmul.mubr.f32.gmra.mrb[0].mxu0 %v343
    %v4796 = vpop.f32.mrb[0].mxu0
    %v4797 = vadd.f32 0.0, %v4796
    %v4798 = vpop.f32.mrb[0].mxu0
    %4799 = vmatprep.mubr.f32.mxu0 0.0
    %4800 = vmatmul.mubr.f32.gmra.mrb[0].mxu0 %v346
    %v4801 = vpop.f32.mrb[0].mxu0
    %v4802 = vadd.f32 0.0, %v4801
    %v4803 = vpop.f32.mrb[0].mxu0
    %4804 = vdwg.mxu0
    %4805 = vmatprep.subr.mxu0 0.0
    %4806 = vmatpush1.msra.mxu0 %v4323
    %4807 = vmatprep.subr.mxu0 0.0
    %4808 = vmatpush1.msra.mxu0 %v4328
    %4809 = vmatprep.subr.mxu0 0.0
    %4810 = vmatpush1.msra.mxu0 %v4333
    %4811 = vmatprep.subr.mxu0 0.0
    %4812 = vmatpush1.msra.mxu0 %v4338
    %4813 = vmatprep.subr.mxu0 0.0
    %4814 = vmatpush1.msra.mxu0 %v4343
    %4815 = vmatprep.subr.mxu0 0.0
    %4816 = vmatpush1.msra.mxu0 %v4348
    %4817 = vmatprep.subr.mxu0 0.0
    %4818 = vmatpush1.msra.mxu0 %v4353
    %4819 = vmatprep.subr.mxu0 0.0
    %4820 = vmatpush1.msra.mxu0 %v4358
    %4821 = vmatprep.subr.mxu0 0.0
    %4822 = vmatpush1.msra.mxu0 0.0
    %4823 = vmatprep.subr.mxu0 0.0
    %4824 = vmatpush1.msra.mxu0 0.0
    %4825 = vmatprep.subr.mxu0 0.0
    %4826 = vmatpush1.msra.mxu0 0.0
    %4827 = vmatprep.subr.mxu0 0.0
    %4828 = vmatpush1.msra.mxu0 0.0
    %4829 = vmatprep.subr.mxu0 0.0
    %4830 = vmatpush1.msra.mxu0 0.0
    %4831 = vmatprep.subr.mxu0 0.0
    %4832 = vmatpush1.msra.mxu0 0.0
    %4833 = vmatprep.subr.mxu0 0.0
    %4834 = vmatpush1.msra.mxu0 0.0
    %4835 = vmatprep.subr.mxu0 0.0
    %4836 = vmatpush1.msra.mxu0 0.0
    %4837 = vmatprep.subr.mxu0 0.0
    %4838 = vmatpush1.msra.mxu0 0.0
    %4839 = vmatprep.subr.mxu0 0.0
    %4840 = vmatpush1.msra.mxu0 0.0
    %4841 = vmatprep.subr.mxu0 0.0
    %4842 = vmatpush1.msra.mxu0 0.0
    %4843 = vmatprep.subr.mxu0 0.0
    %4844 = vmatpush1.msra.mxu0 0.0
    %4845 = vmatprep.subr.mxu0 0.0
    %4846 = vmatpush1.msra.mxu0 0.0
    %4847 = vmatprep.subr.mxu0 0.0
    %4848 = vmatpush1.msra.mxu0 0.0
    %4849 = vmatprep.subr.mxu0 0.0
    %4850 = vmatpush1.msra.mxu0 0.0
    %4851 = vmatprep.subr.mxu0 0.0
    %4852 = vmatpush1.msra.mxu0 0.0
    %4853 = vmatprep.subr.mxu0 0.0
    %4854 = vmatpush1.msra.mxu0 0.0
    %4855 = vmatprep.subr.mxu0 0.0
    %4856 = vmatpush1.msra.mxu0 0.0
    %4857 = vmatprep.subr.mxu0 0.0
    %4858 = vmatpush1.msra.mxu0 0.0
    %4859 = vmatprep.subr.mxu0 0.0
    %4860 = vmatpush1.msra.mxu0 0.0
    %4861 = vmatprep.subr.mxu0 0.0
    %4862 = vmatpush1.msra.mxu0 0.0
    %4863 = vmatprep.subr.mxu0 0.0
    %4864 = vmatpush1.msra.mxu0 0.0
    %4865 = vmatprep.subr.mxu0 0.0
    %4866 = vmatpush1.msra.mxu0 0.0
    %4867 = vmatprep.subr.mxu0 0.0
    %4868 = vmatpush1.msra.mxu0 0.0
    %4869 = vmatprep.mubr.f32.mxu0 0.0
    %4870 = vmatmul.mubr.f32.gmra.mrb[0].mxu0 %v1044
    %v4871 = vpop.f32.mrb[0].mxu0
    %v4872 = vadd.f32 %v4777, %v4871
    %v4873 = vpop.f32.mrb[0].mxu0
    %4874 = vmatprep.mubr.f32.mxu0 0.0
    %4875 = vmatmul.mubr.f32.gmra.mrb[0].mxu0 %v1047
    %v4876 = vpop.f32.mrb[0].mxu0
    %v4877 = vadd.f32 %v4782, %v4876
    %v4878 = vpop.f32.mrb[0].mxu0
    %4879 = vmatprep.mubr.f32.mxu0 0.0
    %4880 = vmatmul.mubr.f32.gmra.mrb[0].mxu0 %v1050
    %v4881 = vpop.f32.mrb[0].mxu0
    %v4882 = vadd.f32 %v4787, %v4881
    %v4883 = vpop.f32.mrb[0].mxu0
    %4884 = vmatprep.mubr.f32.mxu0 0.0
    %4885 = vmatmul.mubr.f32.gmra.mrb[0].mxu0 %v1053
    %v4886 = vpop.f32.mrb[0].mxu0
    %v4887 = vadd.f32 %v4792, %v4886
    %v4888 = vpop.f32.mrb[0].mxu0
    %4889 = vmatprep.mubr.f32.mxu0 0.0
    %4890 = vmatmul.mubr.f32.gmra.mrb[0].mxu0 %v1056
    %v4891 = vpop.f32.mrb[0].mxu0
    %v4892 = vadd.f32 %v4797, %v4891
    %v4893 = vpop.f32.mrb[0].mxu0
    %4894 = vmatprep.mubr.f32.mxu0 0.0
    %4895 = vmatmul.mubr.f32.gmra.mrb[0].mxu0 %v1059
    %v4896 = vpop.f32.mrb[0].mxu0
    %v4897 = vadd.f32 %v4802, %v4896
    %v4898 = vpop.f32.mrb[0].mxu0
    %4899 = vdwg.mxu0
    %s4900 = scalar_lea.vmem %s11, 2
    %v4901 = vld [vmem:[%s4900] sm:$0x1]
    %v4903 = vlaneseq
    %v4904 = vshrl.u32 %v4903, 7
    %v4905 = vsub.s32 0, %v4904
    %v4906 = vrot.slane %v4901, %v4905
    %v4908 = vadd.f32 %v4872, %v4906
    %v4909 = vadd.f32 %v4877, %v4906
    %v4910 = vadd.f32 %v4882, %v4906
    %v4911 = vadd.f32 %v4887, %v4906
    %v4912 = vadd.f32 %v4892, %v4906
    %v4913 = vadd.f32 %v4897, %v4906
    %s4914 = scalar_lea.vmem [#allocation9], 64
    %v4915 = vld [vmem:[%s4914] sm:$0xff]
    %v4916 = vld [vmem:[%s4914 + $0x8] sm:$0xff]
    %v4917 = vld [vmem:[%s4914 + $0x10] sm:$0xff]
    %v4918 = vld [vmem:[%s4914 + $0x18] sm:$0xff]
    %4919 = vmatprep.subr.mxu0 0.0
    %4920 = vmatpush1.msra.mxu0 %v4915
    %4921 = vmatprep.subr.mxu0 0.0
    %4922 = vmatpush1.msra.mxu0 %v4916
    %4923 = vmatprep.subr.mxu0 0.0
    %4924 = vmatpush1.msra.mxu0 %v4917
    %4925 = vmatprep.subr.mxu0 0.0
    %4926 = vmatpush1.msra.mxu0 %v4918
    %4927 = vmatprep.subr.mxu0 0.0
    %4928 = vmatpush1.msra.mxu0 0.0
    %4929 = vmatprep.subr.mxu0 0.0
    %4930 = vmatpush1.msra.mxu0 0.0
    %4931 = vmatprep.subr.mxu0 0.0
    %4932 = vmatpush1.msra.mxu0 0.0
    %4933 = vmatprep.subr.mxu0 0.0
    %4934 = vmatpush1.msra.mxu0 0.0
    %4935 = vmatprep.subr.mxu0 0.0
    %4936 = vmatpush1.msra.mxu0 0.0
    %4937 = vmatprep.subr.mxu0 0.0
    %4938 = vmatpush1.msra.mxu0 0.0
    %4939 = vmatprep.subr.mxu0 0.0
    %4940 = vmatpush1.msra.mxu0 0.0
    %4941 = vmatprep.subr.mxu0 0.0
    %4942 = vmatpush1.msra.mxu0 0.0
    %4943 = vmatprep.subr.mxu0 0.0
    %4944 = vmatpush1.msra.mxu0 0.0
    %4945 = vmatprep.subr.mxu0 0.0
    %4946 = vmatpush1.msra.mxu0 0.0
    %4947 = vmatprep.subr.mxu0 0.0
    %4948 = vmatpush1.msra.mxu0 0.0
    %4949 = vmatprep.subr.mxu0 0.0
    %4950 = vmatpush1.msra.mxu0 0.0
    %4951 = vmatprep.subr.mxu0 0.0
    %4952 = vmatpush1.msra.mxu0 0.0
    %4953 = vmatprep.subr.mxu0 0.0
    %4954 = vmatpush1.msra.mxu0 0.0
    %4955 = vmatprep.subr.mxu0 0.0
    %4956 = vmatpush1.msra.mxu0 0.0
    %4957 = vmatprep.subr.mxu0 0.0
    %4958 = vmatpush1.msra.mxu0 0.0
    %4959 = vmatprep.subr.mxu0 0.0
    %4960 = vmatpush1.msra.mxu0 0.0
    %4961 = vmatprep.subr.mxu0 0.0
    %4962 = vmatpush1.msra.mxu0 0.0
    %4963 = vmatprep.subr.mxu0 0.0
    %4964 = vmatpush1.msra.mxu0 0.0
    %4965 = vmatprep.subr.mxu0 0.0
    %4966 = vmatpush1.msra.mxu0 0.0
    %4967 = vmatprep.subr.mxu0 0.0
    %4968 = vmatpush1.msra.mxu0 0.0
    %4969 = vmatprep.subr.mxu0 0.0
    %4970 = vmatpush1.msra.mxu0 0.0
    %4971 = vmatprep.subr.mxu0 0.0
    %4972 = vmatpush1.msra.mxu0 0.0
    %4973 = vmatprep.subr.mxu0 0.0
    %4974 = vmatpush1.msra.mxu0 0.0
    %4975 = vmatprep.subr.mxu0 0.0
    %4976 = vmatpush1.msra.mxu0 0.0
    %4977 = vmatprep.subr.mxu0 0.0
    %4978 = vmatpush1.msra.mxu0 0.0
    %4979 = vmatprep.subr.mxu0 0.0
    %4980 = vmatpush1.msra.mxu0 0.0
    %4981 = vmatprep.subr.mxu0 0.0
    %4982 = vmatpush1.msra.mxu0 0.0
    %4983 = vmatprep.mubr.f32.mxu0 0.0
    %4984 = vmatmul.mubr.f32.gmra.mrb[0].mxu0 %v2161
    %v4985 = vpop.f32.mrb[0].mxu0
    %v4986 = vadd.f32 0.0, %v4985
    %v4987 = vpop.f32.mrb[0].mxu0
    %4988 = vmatprep.mubr.f32.mxu0 0.0
    %4989 = vmatmul.mubr.f32.gmra.mrb[0].mxu0 %v2163
    %v4990 = vpop.f32.mrb[0].mxu0
    %v4991 = vadd.f32 0.0, %v4990
    %v4992 = vpop.f32.mrb[0].mxu0
    %4993 = vmatprep.mubr.f32.mxu0 0.0
    %4994 = vmatmul.mubr.f32.gmra.mrb[0].mxu0 %v2165
    %v4995 = vpop.f32.mrb[0].mxu0
    %v4996 = vadd.f32 0.0, %v4995
    %v4997 = vpop.f32.mrb[0].mxu0
    %4998 = vmatprep.mubr.f32.mxu0 0.0
    %4999 = vmatmul.mubr.f32.gmra.mrb[0].mxu0 %v2167
    %v5000 = vpop.f32.mrb[0].mxu0
    %v5001 = vadd.f32 0.0, %v5000
    %v5002 = vpop.f32.mrb[0].mxu0
    %5003 = vmatprep.mubr.f32.mxu0 0.0
    %5004 = vmatmul.mubr.f32.gmra.mrb[0].mxu0 %v2169
    %v5005 = vpop.f32.mrb[0].mxu0
    %v5006 = vadd.f32 0.0, %v5005
    %v5007 = vpop.f32.mrb[0].mxu0
    %5008 = vmatprep.mubr.f32.mxu0 0.0
    %5009 = vmatmul.mubr.f32.gmra.mrb[0].mxu0 %v2171
    %v5010 = vpop.f32.mrb[0].mxu0
    %v5011 = vadd.f32 0.0, %v5010
    %v5012 = vpop.f32.mrb[0].mxu0
    %5013 = vmatprep.mubr.f32.mxu0 0.0
    %5014 = vmatmul.mubr.f32.gmra.mrb[0].mxu0 %v2173
    %v5015 = vpop.f32.mrb[0].mxu0
    %v5016 = vadd.f32 0.0, %v5015
    %v5017 = vpop.f32.mrb[0].mxu0
    %5018 = vmatprep.mubr.f32.mxu0 0.0
    %5019 = vmatmul.mubr.f32.gmra.mrb[0].mxu0 %v2175
    %v5020 = vpop.f32.mrb[0].mxu0
    %v5021 = vadd.f32 0.0, %v5020
    %v5022 = vpop.f32.mrb[0].mxu0
    %5023 = vdwg.mxu0
    %v5024 = vadd.f32 %v4697, %v4986
    %v5025 = vadd.f32 %v4698, %v4991
    %v5026 = vadd.f32 %v4699, %v4996
    %v5027 = vadd.f32 %v4700, %v5001
    %v5028 = vadd.f32 %v4701, %v5006
    %v5029 = vadd.f32 %v4702, %v5011
    %v5030 = vadd.f32 %v4703, %v5016
    %v5031 = vadd.f32 %v4704, %v5021
    %s5032 = scalar_lea.vmem %s16, 2
    %v5033 = vld [vmem:[%s5032] sm:$0x1]
    %v5035 = vlaneseq
    %v5036 = vshrl.u32 %v5035, 7
    %v5037 = vsub.s32 0, %v5036
    %v5038 = vrot.slane %v5033, %v5037
    %v5040 = vadd.f32 %v5024, %v5038
    %v5041 = vadd.f32 %v5025, %v5038
    %v5042 = vadd.f32 %v5026, %v5038
    %v5043 = vadd.f32 %v5027, %v5038
    %v5044 = vadd.f32 %v5028, %v5038
    %v5045 = vadd.f32 %v5029, %v5038
    %v5046 = vadd.f32 %v5030, %v5038
    %v5047 = vadd.f32 %v5031, %v5038
    %s5048 = scalar_lea.vmem [#allocation10], 64
    %v5049 = vld [vmem:[%s5048] sm:$0xff]
    %v5050 = vld [vmem:[%s5048 + $0x8] sm:$0xff]
    %v5051 = vld [vmem:[%s5048 + $0x10] sm:$0xff]
    %v5052 = vld [vmem:[%s5048 + $0x18] sm:$0xff]
    %5053 = vmatprep.subr.mxu0 0.0
    %5054 = vmatpush1.msra.mxu0 %v5049
    %5055 = vmatprep.subr.mxu0 0.0
    %5056 = vmatpush1.msra.mxu0 %v5050
    %5057 = vmatprep.subr.mxu0 0.0
    %5058 = vmatpush1.msra.mxu0 %v5051
    %5059 = vmatprep.subr.mxu0 0.0
    %5060 = vmatpush1.msra.mxu0 %v5052
    %5061 = vmatprep.subr.mxu0 0.0
    %5062 = vmatpush1.msra.mxu0 0.0
    %5063 = vmatprep.subr.mxu0 0.0
    %5064 = vmatpush1.msra.mxu0 0.0
    %5065 = vmatprep.subr.mxu0 0.0
    %5066 = vmatpush1.msra.mxu0 0.0
    %5067 = vmatprep.subr.mxu0 0.0
    %5068 = vmatpush1.msra.mxu0 0.0
    %5069 = vmatprep.subr.mxu0 0.0
    %5070 = vmatpush1.msra.mxu0 0.0
    %5071 = vmatprep.subr.mxu0 0.0
    %5072 = vmatpush1.msra.mxu0 0.0
    %5073 = vmatprep.subr.mxu0 0.0
    %5074 = vmatpush1.msra.mxu0 0.0
    %5075 = vmatprep.subr.mxu0 0.0
    %5076 = vmatpush1.msra.mxu0 0.0
    %5077 = vmatprep.subr.mxu0 0.0
    %5078 = vmatpush1.msra.mxu0 0.0
    %5079 = vmatprep.subr.mxu0 0.0
    %5080 = vmatpush1.msra.mxu0 0.0
    %5081 = vmatprep.subr.mxu0 0.0
    %5082 = vmatpush1.msra.mxu0 0.0
    %5083 = vmatprep.subr.mxu0 0.0
    %5084 = vmatpush1.msra.mxu0 0.0
    %5085 = vmatprep.subr.mxu0 0.0
    %5086 = vmatpush1.msra.mxu0 0.0
    %5087 = vmatprep.subr.mxu0 0.0
    %5088 = vmatpush1.msra.mxu0 0.0
    %5089 = vmatprep.subr.mxu0 0.0
    %5090 = vmatpush1.msra.mxu0 0.0
    %5091 = vmatprep.subr.mxu0 0.0
    %5092 = vmatpush1.msra.mxu0 0.0
    %5093 = vmatprep.subr.mxu0 0.0
    %5094 = vmatpush1.msra.mxu0 0.0
    %5095 = vmatprep.subr.mxu0 0.0
    %5096 = vmatpush1.msra.mxu0 0.0
    %5097 = vmatprep.subr.mxu0 0.0
    %5098 = vmatpush1.msra.mxu0 0.0
    %5099 = vmatprep.subr.mxu0 0.0
    %5100 = vmatpush1.msra.mxu0 0.0
    %5101 = vmatprep.subr.mxu0 0.0
    %5102 = vmatpush1.msra.mxu0 0.0
    %5103 = vmatprep.subr.mxu0 0.0
    %5104 = vmatpush1.msra.mxu0 0.0
    %5105 = vmatprep.subr.mxu0 0.0
    %5106 = vmatpush1.msra.mxu0 0.0
    %5107 = vmatprep.subr.mxu0 0.0
    %5108 = vmatpush1.msra.mxu0 0.0
    %5109 = vmatprep.subr.mxu0 0.0
    %5110 = vmatpush1.msra.mxu0 0.0
    %5111 = vmatprep.subr.mxu0 0.0
    %5112 = vmatpush1.msra.mxu0 0.0
    %5113 = vmatprep.subr.mxu0 0.0
    %5114 = vmatpush1.msra.mxu0 0.0
    %5115 = vmatprep.subr.mxu0 0.0
    %5116 = vmatpush1.msra.mxu0 0.0
    %5117 = vmatprep.mubr.f32.mxu0 0.0
    %5118 = vmatmul.mubr.f32.gmra.mrb[0].mxu0 %v2305
    %v5119 = vpop.f32.mrb[0].mxu0
    %v5120 = vadd.f32 0.0, %v5119
    %v5121 = vpop.f32.mrb[0].mxu0
    %5122 = vmatprep.mubr.f32.mxu0 0.0
    %5123 = vmatmul.mubr.f32.gmra.mrb[0].mxu0 %v2307
    %v5124 = vpop.f32.mrb[0].mxu0
    %v5125 = vadd.f32 0.0, %v5124
    %v5126 = vpop.f32.mrb[0].mxu0
    %5127 = vmatprep.mubr.f32.mxu0 0.0
    %5128 = vmatmul.mubr.f32.gmra.mrb[0].mxu0 %v2309
    %v5129 = vpop.f32.mrb[0].mxu0
    %v5130 = vadd.f32 0.0, %v5129
    %v5131 = vpop.f32.mrb[0].mxu0
    %5132 = vmatprep.mubr.f32.mxu0 0.0
    %5133 = vmatmul.mubr.f32.gmra.mrb[0].mxu0 %v2311
    %v5134 = vpop.f32.mrb[0].mxu0
    %v5135 = vadd.f32 0.0, %v5134
    %v5136 = vpop.f32.mrb[0].mxu0
    %5137 = vmatprep.mubr.f32.mxu0 0.0
    %5138 = vmatmul.mubr.f32.gmra.mrb[0].mxu0 %v2313
    %v5139 = vpop.f32.mrb[0].mxu0
    %v5140 = vadd.f32 0.0, %v5139
    %v5141 = vpop.f32.mrb[0].mxu0
    %5142 = vmatprep.mubr.f32.mxu0 0.0
    %5143 = vmatmul.mubr.f32.gmra.mrb[0].mxu0 %v2315
    %v5144 = vpop.f32.mrb[0].mxu0
    %v5145 = vadd.f32 0.0, %v5144
    %v5146 = vpop.f32.mrb[0].mxu0
    %5147 = vdwg.mxu0
    %v5148 = vadd.f32 %v4908, %v5120
    %v5149 = vadd.f32 %v4909, %v5125
    %v5150 = vadd.f32 %v4910, %v5130
    %v5151 = vadd.f32 %v4911, %v5135
    %v5152 = vadd.f32 %v4912, %v5140
    %v5153 = vadd.f32 %v4913, %v5145
    %s5154 = scalar_lea.vmem %s17, 2
    %v5155 = vld [vmem:[%s5154] sm:$0x1]
    %v5157 = vlaneseq
    %v5158 = vshrl.u32 %v5157, 7
    %v5159 = vsub.s32 0, %v5158
    %v5160 = vrot.slane %v5155, %v5159
    %v5162 = vadd.f32 %v5148, %v5160
    %v5163 = vadd.f32 %v5149, %v5160
    %v5164 = vadd.f32 %v5150, %v5160
    %v5165 = vadd.f32 %v5151, %v5160
    %v5166 = vadd.f32 %v5152, %v5160
    %v5167 = vadd.f32 %v5153, %v5160
    %s5168 = scalar_lea.vmem %s14, 8
    %v5169 = vld [vmem:[%s5168] sm:$0x7]
    %v5170 = vlaneseq
    %v5171 = vshrl.u32 %v5170, 7
    %v5172 = vsub.s32 0, %v5171
    %v5173 = vrot.slane %v5169, %v5172
    %v5174 = vmul.f32 %v5173, %v1658
    %v5175 = vmul.f32 %v5173, %v1660
    %v5176 = vmul.f32 %v5173, %v1662
    %v5177 = vmul.f32 %v5173, %v1664
    %v5178 = vmul.f32 %v5173, %v1666
    %v5179 = vmul.f32 %v5173, %v1668
    %v5180 = vmul.f32 %v5173, %v1670
    %v5181 = vmul.f32 %v5173, %v1672
    %v5182 = vadd.f32 %v5040, %v5174
    %v5183 = vadd.f32 %v5041, %v5175
    %v5184 = vadd.f32 %v5042, %v5176
    %v5185 = vadd.f32 %v5043, %v5177
    %v5186 = vadd.f32 %v5044, %v5178
    %v5187 = vadd.f32 %v5045, %v5179
    %v5188 = vadd.f32 %v5046, %v5180
    %v5189 = vadd.f32 %v5047, %v5181
    %v5190 = vxor.u32 %v5182, 2147483648
    %v5191 = vxor.u32 %v5183, 2147483648
    %v5192 = vxor.u32 %v5184, 2147483648
    %v5193 = vxor.u32 %v5185, 2147483648
    %v5194 = vxor.u32 %v5186, 2147483648
    %v5195 = vxor.u32 %v5187, 2147483648
    %v5196 = vxor.u32 %v5188, 2147483648
    %v5197 = vxor.u32 %v5189, 2147483648
    %v5198 = vmul.f32 %v5190, 1.442695
    %v5199 = vpow.pop %v5198
    %v5200 = vmul.f32 %v5191, 1.442695
    %v5201 = vpow.pop %v5200
    %v5202 = vmul.f32 %v5192, 1.442695
    %v5203 = vpow.pop %v5202
    %v5204 = vmul.f32 %v5193, 1.442695
    %v5205 = vpow.pop %v5204
    %v5206 = vmul.f32 %v5194, 1.442695
    %v5207 = vpow.pop %v5206
    %v5208 = vmul.f32 %v5195, 1.442695
    %v5209 = vpow.pop %v5208
    %v5210 = vmul.f32 %v5196, 1.442695
    %v5211 = vpow.pop %v5210
    %v5212 = vmul.f32 %v5197, 1.442695
    %v5213 = vpow.pop %v5212
    %v5214 = vadd.f32 %v5199, 1.0
    %v5215 = vadd.f32 %v5201, 1.0
    %v5216 = vadd.f32 %v5203, 1.0
    %v5217 = vadd.f32 %v5205, 1.0
    %v5218 = vadd.f32 %v5207, 1.0
    %v5219 = vadd.f32 %v5209, 1.0
    %v5220 = vadd.f32 %v5211, 1.0
    %v5221 = vadd.f32 %v5213, 1.0
    %v5222 = vrcp.pop %v5214
    %v5223 = vmul.f32 1.0, %v5222
    %v5224 = vrcp.pop %v5215
    %v5225 = vmul.f32 1.0, %v5224
    %v5226 = vrcp.pop %v5216
    %v5227 = vmul.f32 1.0, %v5226
    %v5228 = vrcp.pop %v5217
    %v5229 = vmul.f32 1.0, %v5228
    %v5230 = vrcp.pop %v5218
    %v5231 = vmul.f32 1.0, %v5230
    %v5232 = vrcp.pop %v5219
    %v5233 = vmul.f32 1.0, %v5232
    %v5234 = vrcp.pop %v5220
    %v5235 = vmul.f32 1.0, %v5234
    %v5236 = vrcp.pop %v5221
    %v5237 = vmul.f32 1.0, %v5236
    %v5238 = vlaneseq
    %v5239 = vshrl.u32 %v5238, 7
    %v5240 = vsub.s32 1, %v5239
    %v5241 = vrot.slane %v5169, %v5240
    %v5242 = vmul.f32 %v5241, %v1658
    %v5243 = vmul.f32 %v5241, %v1660
    %v5244 = vmul.f32 %v5241, %v1662
    %v5245 = vmul.f32 %v5241, %v1664
    %v5246 = vmul.f32 %v5241, %v1666
    %v5247 = vmul.f32 %v5241, %v1668
    %v5248 = vmul.f32 %v5241, %v1670
    %v5249 = vmul.f32 %v5241, %v1672
    %5258 = vrot.lane.b32.xlu0 %v5242, 32
    %v5259 = vpop.permute.xlu0 %5258
    %5260 = vrot.lane.b32.xlu0 %v5243, 32
    %v5261 = vpop.permute.xlu0 %5260
    %5262 = vrot.lane.b32.xlu0 %v5244, 32
    %v5263 = vpop.permute.xlu0 %5262
    %5264 = vrot.lane.b32.xlu0 %v5245, 32
    %v5265 = vpop.permute.xlu0 %5264
    %5266 = vrot.lane.b32.xlu0 %v5246, 32
    %v5267 = vpop.permute.xlu0 %5266
    %5268 = vrot.lane.b32.xlu0 %v5247, 32
    %v5269 = vpop.permute.xlu0 %5268
    %5270 = vrot.lane.b32.xlu0 %v5248, 32
    %v5271 = vpop.permute.xlu0 %5270
    %5272 = vrot.lane.b32.xlu0 %v5249, 32
    %v5273 = vpop.permute.xlu0 %5272
    %v5282 = vadd.f32 %v5040, %v5259
    %v5283 = vadd.f32 %v5041, %v5261
    %v5284 = vadd.f32 %v5042, %v5263
    %v5285 = vadd.f32 %v5043, %v5265
    %v5286 = vadd.f32 %v5044, %v5267
    %v5287 = vadd.f32 %v5045, %v5269
    %v5288 = vadd.f32 %v5046, %v5271
    %v5289 = vadd.f32 %v5047, %v5273
    %v5290 = vxor.u32 %v5282, 2147483648
    %v5291 = vxor.u32 %v5283, 2147483648
    %v5292 = vxor.u32 %v5284, 2147483648
    %v5293 = vxor.u32 %v5285, 2147483648
    %v5294 = vxor.u32 %v5286, 2147483648
    %v5295 = vxor.u32 %v5287, 2147483648
    %v5296 = vxor.u32 %v5288, 2147483648
    %v5297 = vxor.u32 %v5289, 2147483648
    %v5298 = vmul.f32 %v5290, 1.442695
    %v5299 = vpow.pop %v5298
    %v5300 = vmul.f32 %v5291, 1.442695
    %v5301 = vpow.pop %v5300
    %v5302 = vmul.f32 %v5292, 1.442695
    %v5303 = vpow.pop %v5302
    %v5304 = vmul.f32 %v5293, 1.442695
    %v5305 = vpow.pop %v5304
    %v5306 = vmul.f32 %v5294, 1.442695
    %v5307 = vpow.pop %v5306
    %v5308 = vmul.f32 %v5295, 1.442695
    %v5309 = vpow.pop %v5308
    %v5310 = vmul.f32 %v5296, 1.442695
    %v5311 = vpow.pop %v5310
    %v5312 = vmul.f32 %v5297, 1.442695
    %v5313 = vpow.pop %v5312
    %v5314 = vadd.f32 %v5299, 1.0
    %v5315 = vadd.f32 %v5301, 1.0
    %v5316 = vadd.f32 %v5303, 1.0
    %v5317 = vadd.f32 %v5305, 1.0
    %v5318 = vadd.f32 %v5307, 1.0
    %v5319 = vadd.f32 %v5309, 1.0
    %v5320 = vadd.f32 %v5311, 1.0
    %v5321 = vadd.f32 %v5313, 1.0
    %v5322 = vrcp.pop %v5314
    %v5323 = vmul.f32 1.0, %v5322
    %v5324 = vrcp.pop %v5315
    %v5325 = vmul.f32 1.0, %v5324
    %v5326 = vrcp.pop %v5316
    %v5327 = vmul.f32 1.0, %v5326
    %v5328 = vrcp.pop %v5317
    %v5329 = vmul.f32 1.0, %v5328
    %v5330 = vrcp.pop %v5318
    %v5331 = vmul.f32 1.0, %v5330
    %v5332 = vrcp.pop %v5319
    %v5333 = vmul.f32 1.0, %v5332
    %v5334 = vrcp.pop %v5320
    %v5335 = vmul.f32 1.0, %v5334
    %v5336 = vrcp.pop %v5321
    %v5337 = vmul.f32 1.0, %v5336
    %v5338 = vtanh.pop %v5040
    %v5339 = vtanh.pop %v5041
    %v5340 = vtanh.pop %v5042
    %v5341 = vtanh.pop %v5043
    %v5342 = vtanh.pop %v5044
    %v5343 = vtanh.pop %v5045
    %v5344 = vtanh.pop %v5046
    %v5345 = vtanh.pop %v5047
    %v5346 = vmul.f32 %v5323, %v1637
    %v5347 = vmul.f32 %v5325, %v1638
    %v5348 = vmul.f32 %v5327, %v1639
    %v5349 = vmul.f32 %v5329, %v1640
    %v5350 = vmul.f32 %v5331, %v1641
    %v5351 = vmul.f32 %v5333, %v1642
    %v5352 = vmul.f32 %v5335, %v1643
    %v5353 = vmul.f32 %v5337, %v1644
    %5362 = vrot.lane.b32.xlu0 %v5338, 64
    %v5363 = vpop.permute.xlu0 %5362
    %5364 = vrot.lane.b32.xlu0 %v5339, 64
    %v5365 = vpop.permute.xlu0 %5364
    %5366 = vrot.lane.b32.xlu0 %v5340, 64
    %v5367 = vpop.permute.xlu0 %5366
    %5368 = vrot.lane.b32.xlu0 %v5341, 64
    %v5369 = vpop.permute.xlu0 %5368
    %5370 = vrot.lane.b32.xlu0 %v5342, 64
    %v5371 = vpop.permute.xlu0 %5370
    %5372 = vrot.lane.b32.xlu0 %v5343, 64
    %v5373 = vpop.permute.xlu0 %5372
    %5374 = vrot.lane.b32.xlu0 %v5344, 64
    %v5375 = vpop.permute.xlu0 %5374
    %5376 = vrot.lane.b32.xlu0 %v5345, 64
    %v5377 = vpop.permute.xlu0 %5376
    %v5386 = vmul.f32 %v5223, %v5363
    %v5387 = vmul.f32 %v5225, %v5365
    %v5388 = vmul.f32 %v5227, %v5367
    %v5389 = vmul.f32 %v5229, %v5369
    %v5390 = vmul.f32 %v5231, %v5371
    %v5391 = vmul.f32 %v5233, %v5373
    %v5392 = vmul.f32 %v5235, %v5375
    %v5393 = vmul.f32 %v5237, %v5377
    %5402 = vrot.lane.b32.xlu0 %v5386, 32
    %v5403 = vpop.permute.xlu0 %5402
    %5404 = vrot.lane.b32.xlu0 %v5387, 32
    %v5405 = vpop.permute.xlu0 %5404
    %5406 = vrot.lane.b32.xlu0 %v5388, 32
    %v5407 = vpop.permute.xlu0 %5406
    %5408 = vrot.lane.b32.xlu0 %v5389, 32
    %v5409 = vpop.permute.xlu0 %5408
    %5410 = vrot.lane.b32.xlu0 %v5390, 32
    %v5411 = vpop.permute.xlu0 %5410
    %5412 = vrot.lane.b32.xlu0 %v5391, 32
    %v5413 = vpop.permute.xlu0 %5412
    %5414 = vrot.lane.b32.xlu0 %v5392, 32
    %v5415 = vpop.permute.xlu0 %5414
    %5416 = vrot.lane.b32.xlu0 %v5393, 32
    %v5417 = vpop.permute.xlu0 %5416
    %v5426 = vadd.f32 %v5346, %v5403
    %v5427 = vadd.f32 %v5347, %v5405
    %v5428 = vadd.f32 %v5348, %v5407
    %v5429 = vadd.f32 %v5349, %v5409
    %v5430 = vadd.f32 %v5350, %v5411
    %v5431 = vadd.f32 %v5351, %v5413
    %v5432 = vadd.f32 %v5352, %v5415
    %v5433 = vadd.f32 %v5353, %v5417
    %v5434 = vlaneseq
    %v5435 = vshrl.u32 %v5434, 7
    %v5436 = vsub.s32 2, %v5435
    %v5437 = vrot.slane %v5169, %v5436
    %5446 = vrot.lane.b32.xlu0 %v5426, 96
    %v5447 = vpop.permute.xlu0 %5446
    %5448 = vrot.lane.b32.xlu0 %v5427, 96
    %v5449 = vpop.permute.xlu0 %5448
    %5450 = vrot.lane.b32.xlu0 %v5428, 96
    %v5451 = vpop.permute.xlu0 %5450
    %5452 = vrot.lane.b32.xlu0 %v5429, 96
    %v5453 = vpop.permute.xlu0 %5452
    %5454 = vrot.lane.b32.xlu0 %v5430, 96
    %v5455 = vpop.permute.xlu0 %5454
    %5456 = vrot.lane.b32.xlu0 %v5431, 96
    %v5457 = vpop.permute.xlu0 %5456
    %5458 = vrot.lane.b32.xlu0 %v5432, 96
    %v5459 = vpop.permute.xlu0 %5458
    %5460 = vrot.lane.b32.xlu0 %v5433, 96
    %v5461 = vpop.permute.xlu0 %5460
    %v5470 = vmul.f32 %v5437, %v5447
    %v5471 = vmul.f32 %v5437, %v5449
    %v5472 = vmul.f32 %v5437, %v5451
    %v5473 = vmul.f32 %v5437, %v5453
    %v5474 = vmul.f32 %v5437, %v5455
    %v5475 = vmul.f32 %v5437, %v5457
    %v5476 = vmul.f32 %v5437, %v5459
    %v5477 = vmul.f32 %v5437, %v5461
    %5486 = vrot.lane.b32.xlu0 %v5470, 96
    %v5487 = vpop.permute.xlu0 %5486
    %5488 = vrot.lane.b32.xlu0 %v5471, 96
    %v5489 = vpop.permute.xlu0 %5488
    %5490 = vrot.lane.b32.xlu0 %v5472, 96
    %v5491 = vpop.permute.xlu0 %5490
    %5492 = vrot.lane.b32.xlu0 %v5473, 96
    %v5493 = vpop.permute.xlu0 %5492
    %5494 = vrot.lane.b32.xlu0 %v5474, 96
    %v5495 = vpop.permute.xlu0 %5494
    %5496 = vrot.lane.b32.xlu0 %v5475, 96
    %v5497 = vpop.permute.xlu0 %5496
    %5498 = vrot.lane.b32.xlu0 %v5476, 96
    %v5499 = vpop.permute.xlu0 %5498
    %5500 = vrot.lane.b32.xlu0 %v5477, 96
    %v5501 = vpop.permute.xlu0 %5500
    %v5510 = vadd.f32 %v5040, %v5487
    %v5511 = vadd.f32 %v5041, %v5489
    %v5512 = vadd.f32 %v5042, %v5491
    %v5513 = vadd.f32 %v5043, %v5493
    %v5514 = vadd.f32 %v5044, %v5495
    %v5515 = vadd.f32 %v5045, %v5497
    %v5516 = vadd.f32 %v5046, %v5499
    %v5517 = vadd.f32 %v5047, %v5501
    %v5518 = vxor.u32 %v5510, 2147483648
    %v5519 = vxor.u32 %v5511, 2147483648
    %v5520 = vxor.u32 %v5512, 2147483648
    %v5521 = vxor.u32 %v5513, 2147483648
    %v5522 = vxor.u32 %v5514, 2147483648
    %v5523 = vxor.u32 %v5515, 2147483648
    %v5524 = vxor.u32 %v5516, 2147483648
    %v5525 = vxor.u32 %v5517, 2147483648
    %v5526 = vmul.f32 %v5518, 1.442695
    %v5527 = vpow.pop %v5526
    %v5528 = vmul.f32 %v5519, 1.442695
    %v5529 = vpow.pop %v5528
    %v5530 = vmul.f32 %v5520, 1.442695
    %v5531 = vpow.pop %v5530
    %v5532 = vmul.f32 %v5521, 1.442695
    %v5533 = vpow.pop %v5532
    %v5534 = vmul.f32 %v5522, 1.442695
    %v5535 = vpow.pop %v5534
    %v5536 = vmul.f32 %v5523, 1.442695
    %v5537 = vpow.pop %v5536
    %v5538 = vmul.f32 %v5524, 1.442695
    %v5539 = vpow.pop %v5538
    %v5540 = vmul.f32 %v5525, 1.442695
    %v5541 = vpow.pop %v5540
    %v5542 = vadd.f32 %v5527, 1.0
    %v5543 = vadd.f32 %v5529, 1.0
    %v5544 = vadd.f32 %v5531, 1.0
    %v5545 = vadd.f32 %v5533, 1.0
    %v5546 = vadd.f32 %v5535, 1.0
    %v5547 = vadd.f32 %v5537, 1.0
    %v5548 = vadd.f32 %v5539, 1.0
    %v5549 = vadd.f32 %v5541, 1.0
    %v5550 = vrcp.pop %v5542
    %v5551 = vmul.f32 1.0, %v5550
    %v5552 = vrcp.pop %v5543
    %v5553 = vmul.f32 1.0, %v5552
    %v5554 = vrcp.pop %v5544
    %v5555 = vmul.f32 1.0, %v5554
    %v5556 = vrcp.pop %v5545
    %v5557 = vmul.f32 1.0, %v5556
    %v5558 = vrcp.pop %v5546
    %v5559 = vmul.f32 1.0, %v5558
    %v5560 = vrcp.pop %v5547
    %v5561 = vmul.f32 1.0, %v5560
    %v5562 = vrcp.pop %v5548
    %v5563 = vmul.f32 1.0, %v5562
    %v5564 = vrcp.pop %v5549
    %v5565 = vmul.f32 1.0, %v5564
    %v5566 = vtanh.pop %v5426
    %v5567 = vtanh.pop %v5427
    %v5568 = vtanh.pop %v5428
    %v5569 = vtanh.pop %v5429
    %v5570 = vtanh.pop %v5430
    %v5571 = vtanh.pop %v5431
    %v5572 = vtanh.pop %v5432
    %v5573 = vtanh.pop %v5433
    %5582 = vrot.lane.b32.xlu0 %v5566, 64
    %v5583 = vpop.permute.xlu0 %5582
    %5584 = vrot.lane.b32.xlu0 %v5567, 64
    %v5585 = vpop.permute.xlu0 %5584
    %5586 = vrot.lane.b32.xlu0 %v5568, 64
    %v5587 = vpop.permute.xlu0 %5586
    %5588 = vrot.lane.b32.xlu0 %v5569, 64
    %v5589 = vpop.permute.xlu0 %5588
    %5590 = vrot.lane.b32.xlu0 %v5570, 64
    %v5591 = vpop.permute.xlu0 %5590
    %5592 = vrot.lane.b32.xlu0 %v5571, 64
    %v5593 = vpop.permute.xlu0 %5592
    %5594 = vrot.lane.b32.xlu0 %v5572, 64
    %v5595 = vpop.permute.xlu0 %5594
    %5596 = vrot.lane.b32.xlu0 %v5573, 64
    %v5597 = vpop.permute.xlu0 %5596
    %v5606 = vmul.f32 %v5551, %v5583
    %v5607 = vmul.f32 %v5553, %v5585
    %v5608 = vmul.f32 %v5555, %v5587
    %v5609 = vmul.f32 %v5557, %v5589
    %v5610 = vmul.f32 %v5559, %v5591
    %v5611 = vmul.f32 %v5561, %v5593
    %v5612 = vmul.f32 %v5563, %v5595
    %v5613 = vmul.f32 %v5565, %v5597
    %s5614 = scalar_lea.vmem %s15, 8
    %v5615 = vld [vmem:[%s5614] sm:$0x7]
    %v5616 = vlaneseq
    %v5617 = vshrl.u32 %v5616, 7
    %v5618 = vsub.s32 0, %v5617
    %v5619 = vrot.slane %v5615, %v5618
    %v5620 = vmul.f32 %v5619, %v2007
    %v5621 = vmul.f32 %v5619, %v2009
    %v5622 = vmul.f32 %v5619, %v2011
    %v5623 = vmul.f32 %v5619, %v2013
    %v5624 = vmul.f32 %v5619, %v2015
    %v5625 = vmul.f32 %v5619, %v2017
    %v5626 = vadd.f32 %v5162, %v5620
    %v5627 = vadd.f32 %v5163, %v5621
    %v5628 = vadd.f32 %v5164, %v5622
    %v5629 = vadd.f32 %v5165, %v5623
    %v5630 = vadd.f32 %v5166, %v5624
    %v5631 = vadd.f32 %v5167, %v5625
    %v5632 = vxor.u32 %v5626, 2147483648
    %v5633 = vxor.u32 %v5627, 2147483648
    %v5634 = vxor.u32 %v5628, 2147483648
    %v5635 = vxor.u32 %v5629, 2147483648
    %v5636 = vxor.u32 %v5630, 2147483648
    %v5637 = vxor.u32 %v5631, 2147483648
    %v5638 = vmul.f32 %v5632, 1.442695
    %v5639 = vpow.pop %v5638
    %v5640 = vmul.f32 %v5633, 1.442695
    %v5641 = vpow.pop %v5640
    %v5642 = vmul.f32 %v5634, 1.442695
    %v5643 = vpow.pop %v5642
    %v5644 = vmul.f32 %v5635, 1.442695
    %v5645 = vpow.pop %v5644
    %v5646 = vmul.f32 %v5636, 1.442695
    %v5647 = vpow.pop %v5646
    %v5648 = vmul.f32 %v5637, 1.442695
    %v5649 = vpow.pop %v5648
    %v5650 = vadd.f32 %v5639, 1.0
    %v5651 = vadd.f32 %v5641, 1.0
    %v5652 = vadd.f32 %v5643, 1.0
    %v5653 = vadd.f32 %v5645, 1.0
    %v5654 = vadd.f32 %v5647, 1.0
    %v5655 = vadd.f32 %v5649, 1.0
    %v5656 = vrcp.pop %v5650
    %v5657 = vmul.f32 1.0, %v5656
    %v5658 = vrcp.pop %v5651
    %v5659 = vmul.f32 1.0, %v5658
    %v5660 = vrcp.pop %v5652
    %v5661 = vmul.f32 1.0, %v5660
    %v5662 = vrcp.pop %v5653
    %v5663 = vmul.f32 1.0, %v5662
    %v5664 = vrcp.pop %v5654
    %v5665 = vmul.f32 1.0, %v5664
    %v5666 = vrcp.pop %v5655
    %v5667 = vmul.f32 1.0, %v5666
    %v5668 = vlaneseq
    %v5669 = vshrl.u32 %v5668, 7
    %v5670 = vsub.s32 1, %v5669
    %v5671 = vrot.slane %v5615, %v5670
    %v5672 = vmul.f32 %v5671, %v2007
    %v5673 = vmul.f32 %v5671, %v2009
    %v5674 = vmul.f32 %v5671, %v2011
    %v5675 = vmul.f32 %v5671, %v2013
    %v5676 = vmul.f32 %v5671, %v2015
    %v5677 = vmul.f32 %v5671, %v2017
    %5684 = vrot.lane.b32.xlu0 %v5672, 32
    %v5685 = vpop.permute.xlu0 %5684
    %5686 = vrot.lane.b32.xlu0 %v5673, 32
    %v5687 = vpop.permute.xlu0 %5686
    %5688 = vrot.lane.b32.xlu0 %v5674, 32
    %v5689 = vpop.permute.xlu0 %5688
    %5690 = vrot.lane.b32.xlu0 %v5675, 32
    %v5691 = vpop.permute.xlu0 %5690
    %5692 = vrot.lane.b32.xlu0 %v5676, 32
    %v5693 = vpop.permute.xlu0 %5692
    %5694 = vrot.lane.b32.xlu0 %v5677, 32
    %v5695 = vpop.permute.xlu0 %5694
    %v5702 = vadd.f32 %v5162, %v5685
    %v5703 = vadd.f32 %v5163, %v5687
    %v5704 = vadd.f32 %v5164, %v5689
    %v5705 = vadd.f32 %v5165, %v5691
    %v5706 = vadd.f32 %v5166, %v5693
    %v5707 = vadd.f32 %v5167, %v5695
    %v5708 = vxor.u32 %v5702, 2147483648
    %v5709 = vxor.u32 %v5703, 2147483648
    %v5710 = vxor.u32 %v5704, 2147483648
    %v5711 = vxor.u32 %v5705, 2147483648
    %v5712 = vxor.u32 %v5706, 2147483648
    %v5713 = vxor.u32 %v5707, 2147483648
    %v5714 = vmul.f32 %v5708, 1.442695
    %v5715 = vpow.pop %v5714
    %v5716 = vmul.f32 %v5709, 1.442695
    %v5717 = vpow.pop %v5716
    %v5718 = vmul.f32 %v5710, 1.442695
    %v5719 = vpow.pop %v5718
    %v5720 = vmul.f32 %v5711, 1.442695
    %v5721 = vpow.pop %v5720
    %v5722 = vmul.f32 %v5712, 1.442695
    %v5723 = vpow.pop %v5722
    %v5724 = vmul.f32 %v5713, 1.442695
    %v5725 = vpow.pop %v5724
    %v5726 = vadd.f32 %v5715, 1.0
    %v5727 = vadd.f32 %v5717, 1.0
    %v5728 = vadd.f32 %v5719, 1.0
    %v5729 = vadd.f32 %v5721, 1.0
    %v5730 = vadd.f32 %v5723, 1.0
    %v5731 = vadd.f32 %v5725, 1.0
    %v5732 = vrcp.pop %v5726
    %v5733 = vmul.f32 1.0, %v5732
    %v5734 = vrcp.pop %v5727
    %v5735 = vmul.f32 1.0, %v5734
    %v5736 = vrcp.pop %v5728
    %v5737 = vmul.f32 1.0, %v5736
    %v5738 = vrcp.pop %v5729
    %v5739 = vmul.f32 1.0, %v5738
    %v5740 = vrcp.pop %v5730
    %v5741 = vmul.f32 1.0, %v5740
    %v5742 = vrcp.pop %v5731
    %v5743 = vmul.f32 1.0, %v5742
    %v5744 = vtanh.pop %v5162
    %v5745 = vtanh.pop %v5163
    %v5746 = vtanh.pop %v5164
    %v5747 = vtanh.pop %v5165
    %v5748 = vtanh.pop %v5166
    %v5749 = vtanh.pop %v5167
    %v5750 = vmul.f32 %v5733, %v1990
    %v5751 = vmul.f32 %v5735, %v1991
    %v5752 = vmul.f32 %v5737, %v1992
    %v5753 = vmul.f32 %v5739, %v1993
    %v5754 = vmul.f32 %v5741, %v1994
    %v5755 = vmul.f32 %v5743, %v1995
    %5762 = vrot.lane.b32.xlu0 %v5744, 64
    %v5763 = vpop.permute.xlu0 %5762
    %5764 = vrot.lane.b32.xlu0 %v5745, 64
    %v5765 = vpop.permute.xlu0 %5764
    %5766 = vrot.lane.b32.xlu0 %v5746, 64
    %v5767 = vpop.permute.xlu0 %5766
    %5768 = vrot.lane.b32.xlu0 %v5747, 64
    %v5769 = vpop.permute.xlu0 %5768
    %5770 = vrot.lane.b32.xlu0 %v5748, 64
    %v5771 = vpop.permute.xlu0 %5770
    %5772 = vrot.lane.b32.xlu0 %v5749, 64
    %v5773 = vpop.permute.xlu0 %5772
    %v5780 = vmul.f32 %v5657, %v5763
    %v5781 = vmul.f32 %v5659, %v5765
    %v5782 = vmul.f32 %v5661, %v5767
    %v5783 = vmul.f32 %v5663, %v5769
    %v5784 = vmul.f32 %v5665, %v5771
    %v5785 = vmul.f32 %v5667, %v5773
    %5792 = vrot.lane.b32.xlu0 %v5780, 32
    %v5793 = vpop.permute.xlu0 %5792
    %5794 = vrot.lane.b32.xlu0 %v5781, 32
    %v5795 = vpop.permute.xlu0 %5794
    %5796 = vrot.lane.b32.xlu0 %v5782, 32
    %v5797 = vpop.permute.xlu0 %5796
    %5798 = vrot.lane.b32.xlu0 %v5783, 32
    %v5799 = vpop.permute.xlu0 %5798
    %5800 = vrot.lane.b32.xlu0 %v5784, 32
    %v5801 = vpop.permute.xlu0 %5800
    %5802 = vrot.lane.b32.xlu0 %v5785, 32
    %v5803 = vpop.permute.xlu0 %5802
    %v5810 = vadd.f32 %v5750, %v5793
    %v5811 = vadd.f32 %v5751, %v5795
    %v5812 = vadd.f32 %v5752, %v5797
    %v5813 = vadd.f32 %v5753, %v5799
    %v5814 = vadd.f32 %v5754, %v5801
    %v5815 = vadd.f32 %v5755, %v5803
    %v5816 = vlaneseq
    %v5817 = vshrl.u32 %v5816, 7
    %v5818 = vsub.s32 2, %v5817
    %v5819 = vrot.slane %v5615, %v5818
    %5826 = vrot.lane.b32.xlu0 %v5810, 96
    %v5827 = vpop.permute.xlu0 %5826
    %5828 = vrot.lane.b32.xlu0 %v5811, 96
    %v5829 = vpop.permute.xlu0 %5828
    %5830 = vrot.lane.b32.xlu0 %v5812, 96
    %v5831 = vpop.permute.xlu0 %5830
    %5832 = vrot.lane.b32.xlu0 %v5813, 96
    %v5833 = vpop.permute.xlu0 %5832
    %5834 = vrot.lane.b32.xlu0 %v5814, 96
    %v5835 = vpop.permute.xlu0 %5834
    %5836 = vrot.lane.b32.xlu0 %v5815, 96
    %v5837 = vpop.permute.xlu0 %5836
    %v5844 = vmul.f32 %v5819, %v5827
    %v5845 = vmul.f32 %v5819, %v5829
    %v5846 = vmul.f32 %v5819, %v5831
    %v5847 = vmul.f32 %v5819, %v5833
    %v5848 = vmul.f32 %v5819, %v5835
    %v5849 = vmul.f32 %v5819, %v5837
    %5856 = vrot.lane.b32.xlu0 %v5844, 96
    %v5857 = vpop.permute.xlu0 %5856
    %5858 = vrot.lane.b32.xlu0 %v5845, 96
    %v5859 = vpop.permute.xlu0 %5858
    %5860 = vrot.lane.b32.xlu0 %v5846, 96
    %v5861 = vpop.permute.xlu0 %5860
    %5862 = vrot.lane.b32.xlu0 %v5847, 96
    %v5863 = vpop.permute.xlu0 %5862
    %5864 = vrot.lane.b32.xlu0 %v5848, 96
    %v5865 = vpop.permute.xlu0 %5864
    %5866 = vrot.lane.b32.xlu0 %v5849, 96
    %v5867 = vpop.permute.xlu0 %5866
    %v5874 = vadd.f32 %v5162, %v5857
    %v5875 = vadd.f32 %v5163, %v5859
    %v5876 = vadd.f32 %v5164, %v5861
    %v5877 = vadd.f32 %v5165, %v5863
    %v5878 = vadd.f32 %v5166, %v5865
    %v5879 = vadd.f32 %v5167, %v5867
    %v5880 = vxor.u32 %v5874, 2147483648
    %v5881 = vxor.u32 %v5875, 2147483648
    %v5882 = vxor.u32 %v5876, 2147483648
    %v5883 = vxor.u32 %v5877, 2147483648
    %v5884 = vxor.u32 %v5878, 2147483648
    %v5885 = vxor.u32 %v5879, 2147483648
    %v5886 = vmul.f32 %v5880, 1.442695
    %v5887 = vpow.pop %v5886
    %v5888 = vmul.f32 %v5881, 1.442695
    %v5889 = vpow.pop %v5888
    %v5890 = vmul.f32 %v5882, 1.442695
    %v5891 = vpow.pop %v5890
    %v5892 = vmul.f32 %v5883, 1.442695
    %v5893 = vpow.pop %v5892
    %v5894 = vmul.f32 %v5884, 1.442695
    %v5895 = vpow.pop %v5894
    %v5896 = vmul.f32 %v5885, 1.442695
    %v5897 = vpow.pop %v5896
    %v5898 = vadd.f32 %v5887, 1.0
    %v5899 = vadd.f32 %v5889, 1.0
    %v5900 = vadd.f32 %v5891, 1.0
    %v5901 = vadd.f32 %v5893, 1.0
    %v5902 = vadd.f32 %v5895, 1.0
    %v5903 = vadd.f32 %v5897, 1.0
    %v5904 = vrcp.pop %v5898
    %v5905 = vmul.f32 1.0, %v5904
    %v5906 = vrcp.pop %v5899
    %v5907 = vmul.f32 1.0, %v5906
    %v5908 = vrcp.pop %v5900
    %v5909 = vmul.f32 1.0, %v5908
    %v5910 = vrcp.pop %v5901
    %v5911 = vmul.f32 1.0, %v5910
    %v5912 = vrcp.pop %v5902
    %v5913 = vmul.f32 1.0, %v5912
    %v5914 = vrcp.pop %v5903
    %v5915 = vmul.f32 1.0, %v5914
    %v5916 = vtanh.pop %v5810
    %v5917 = vtanh.pop %v5811
    %v5918 = vtanh.pop %v5812
    %v5919 = vtanh.pop %v5813
    %v5920 = vtanh.pop %v5814
    %v5921 = vtanh.pop %v5815
    %5928 = vrot.lane.b32.xlu0 %v5916, 64
    %v5929 = vpop.permute.xlu0 %5928
    %5930 = vrot.lane.b32.xlu0 %v5917, 64
    %v5931 = vpop.permute.xlu0 %5930
    %5932 = vrot.lane.b32.xlu0 %v5918, 64
    %v5933 = vpop.permute.xlu0 %5932
    %5934 = vrot.lane.b32.xlu0 %v5919, 64
    %v5935 = vpop.permute.xlu0 %5934
    %5936 = vrot.lane.b32.xlu0 %v5920, 64
    %v5937 = vpop.permute.xlu0 %5936
    %5938 = vrot.lane.b32.xlu0 %v5921, 64
    %v5939 = vpop.permute.xlu0 %5938
    %v5946 = vmul.f32 %v5905, %v5929
    %v5947 = vmul.f32 %v5907, %v5931
    %v5948 = vmul.f32 %v5909, %v5933
    %v5949 = vmul.f32 %v5911, %v5935
    %v5950 = vmul.f32 %v5913, %v5937
    %v5951 = vmul.f32 %v5915, %v5939
    %s5952 = scalar_lea.vmem %s5, 96
    %v5953 = vld [vmem:[%s5952] sm:$0xff]
    %v5954 = vld [vmem:[%s5952 + $0x8] sm:$0xff]
    %v5955 = vld [vmem:[%s5952 + $0x10] sm:$0xff]
    %v5956 = vld [vmem:[%s5952 + $0x18] sm:$0xff]
    %5965 = vrot.lane.b32.xlu0 %v5606, 32
    %v5966 = vpop.permute.xlu0 %5965
    %5967 = vrot.lane.b32.xlu0 %v5607, 32
    %v5968 = vpop.permute.xlu0 %5967
    %5969 = vrot.lane.b32.xlu0 %v5608, 32
    %v5970 = vpop.permute.xlu0 %5969
    %5971 = vrot.lane.b32.xlu0 %v5609, 32
    %v5972 = vpop.permute.xlu0 %5971
    %5973 = vrot.lane.b32.xlu0 %v5610, 32
    %v5974 = vpop.permute.xlu0 %5973
    %5975 = vrot.lane.b32.xlu0 %v5611, 32
    %v5976 = vpop.permute.xlu0 %5975
    %5977 = vrot.lane.b32.xlu0 %v5612, 32
    %v5978 = vpop.permute.xlu0 %5977
    %5979 = vrot.lane.b32.xlu0 %v5613, 32
    %v5980 = vpop.permute.xlu0 %5979
    %v5981 = vsel %vm196, %v5966, 0
    %v5983 = vsel %vm196, %v5968, 0
    %v5985 = vsel %vm196, %v5970, 0
    %v5987 = vsel %vm196, %v5972, 0
    %v5989 = vsel %vm196, %v5974, 0
    %v5991 = vsel %vm196, %v5976, 0
    %v5993 = vsel %vm196, %v5978, 0
    %v5995 = vsel %vm196, %v5980, 0
    %5997 = vmatprep.subr.mxu0 0.0
    %5998 = vmatpush1.msra.mxu0 %v5953
    %5999 = vmatprep.subr.mxu0 0.0
    %6000 = vmatpush1.msra.mxu0 %v5954
    %6001 = vmatprep.subr.mxu0 0.0
    %6002 = vmatpush1.msra.mxu0 %v5955
    %6003 = vmatprep.subr.mxu0 0.0
    %6004 = vmatpush1.msra.mxu0 %v5956
    %6005 = vmatprep.subr.mxu0 0.0
    %6006 = vmatpush1.msra.mxu0 0.0
    %6007 = vmatprep.subr.mxu0 0.0
    %6008 = vmatpush1.msra.mxu0 0.0
    %6009 = vmatprep.subr.mxu0 0.0
    %6010 = vmatpush1.msra.mxu0 0.0
    %6011 = vmatprep.subr.mxu0 0.0
    %6012 = vmatpush1.msra.mxu0 0.0
    %6013 = vmatprep.subr.mxu0 0.0
    %6014 = vmatpush1.msra.mxu0 0.0
    %6015 = vmatprep.subr.mxu0 0.0
    %6016 = vmatpush1.msra.mxu0 0.0
    %6017 = vmatprep.subr.mxu0 0.0
    %6018 = vmatpush1.msra.mxu0 0.0
    %6019 = vmatprep.subr.mxu0 0.0
    %6020 = vmatpush1.msra.mxu0 0.0
    %6021 = vmatprep.subr.mxu0 0.0
    %6022 = vmatpush1.msra.mxu0 0.0
    %6023 = vmatprep.subr.mxu0 0.0
    %6024 = vmatpush1.msra.mxu0 0.0
    %6025 = vmatprep.subr.mxu0 0.0
    %6026 = vmatpush1.msra.mxu0 0.0
    %6027 = vmatprep.subr.mxu0 0.0
    %6028 = vmatpush1.msra.mxu0 0.0
    %6029 = vmatprep.subr.mxu0 0.0
    %6030 = vmatpush1.msra.mxu0 0.0
    %6031 = vmatprep.subr.mxu0 0.0
    %6032 = vmatpush1.msra.mxu0 0.0
    %6033 = vmatprep.subr.mxu0 0.0
    %6034 = vmatpush1.msra.mxu0 0.0
    %6035 = vmatprep.subr.mxu0 0.0
    %6036 = vmatpush1.msra.mxu0 0.0
    %6037 = vmatprep.subr.mxu0 0.0
    %6038 = vmatpush1.msra.mxu0 0.0
    %6039 = vmatprep.subr.mxu0 0.0
    %6040 = vmatpush1.msra.mxu0 0.0
    %6041 = vmatprep.subr.mxu0 0.0
    %6042 = vmatpush1.msra.mxu0 0.0
    %6043 = vmatprep.subr.mxu0 0.0
    %6044 = vmatpush1.msra.mxu0 0.0
    %6045 = vmatprep.subr.mxu0 0.0
    %6046 = vmatpush1.msra.mxu0 0.0
    %6047 = vmatprep.subr.mxu0 0.0
    %6048 = vmatpush1.msra.mxu0 0.0
    %6049 = vmatprep.subr.mxu0 0.0
    %6050 = vmatpush1.msra.mxu0 0.0
    %6051 = vmatprep.subr.mxu0 0.0
    %6052 = vmatpush1.msra.mxu0 0.0
    %6053 = vmatprep.subr.mxu0 0.0
    %6054 = vmatpush1.msra.mxu0 0.0
    %6055 = vmatprep.subr.mxu0 0.0
    %6056 = vmatpush1.msra.mxu0 0.0
    %6057 = vmatprep.subr.mxu0 0.0
    %6058 = vmatpush1.msra.mxu0 0.0
    %6059 = vmatprep.subr.mxu0 0.0
    %6060 = vmatpush1.msra.mxu0 0.0
    %6061 = vmatprep.mubr.f32.mxu0 0.0
    %6062 = vmatmul.mubr.f32.gmra.mrb[0].mxu0 %v5981
    %v6063 = vpop.f32.mrb[0].mxu0
    %v6064 = vadd.f32 0.0, %v6063
    %v6065 = vpop.f32.mrb[0].mxu0
    %6066 = vmatprep.mubr.f32.mxu0 0.0
    %6067 = vmatmul.mubr.f32.gmra.mrb[0].mxu0 %v5983
    %v6068 = vpop.f32.mrb[0].mxu0
    %v6069 = vadd.f32 0.0, %v6068
    %v6070 = vpop.f32.mrb[0].mxu0
    %6071 = vmatprep.mubr.f32.mxu0 0.0
    %6072 = vmatmul.mubr.f32.gmra.mrb[0].mxu0 %v5985
    %v6073 = vpop.f32.mrb[0].mxu0
    %v6074 = vadd.f32 0.0, %v6073
    %v6075 = vpop.f32.mrb[0].mxu0
    %6076 = vmatprep.mubr.f32.mxu0 0.0
    %6077 = vmatmul.mubr.f32.gmra.mrb[0].mxu0 %v5987
    %v6078 = vpop.f32.mrb[0].mxu0
    %v6079 = vadd.f32 0.0, %v6078
    %v6080 = vpop.f32.mrb[0].mxu0
    %6081 = vmatprep.mubr.f32.mxu0 0.0
    %6082 = vmatmul.mubr.f32.gmra.mrb[0].mxu0 %v5989
    %v6083 = vpop.f32.mrb[0].mxu0
    %v6084 = vadd.f32 0.0, %v6083
    %v6085 = vpop.f32.mrb[0].mxu0
    %6086 = vmatprep.mubr.f32.mxu0 0.0
    %6087 = vmatmul.mubr.f32.gmra.mrb[0].mxu0 %v5991
    %v6088 = vpop.f32.mrb[0].mxu0
    %v6089 = vadd.f32 0.0, %v6088
    %v6090 = vpop.f32.mrb[0].mxu0
    %6091 = vmatprep.mubr.f32.mxu0 0.0
    %6092 = vmatmul.mubr.f32.gmra.mrb[0].mxu0 %v5993
    %v6093 = vpop.f32.mrb[0].mxu0
    %v6094 = vadd.f32 0.0, %v6093
    %v6095 = vpop.f32.mrb[0].mxu0
    %6096 = vmatprep.mubr.f32.mxu0 0.0
    %6097 = vmatmul.mubr.f32.gmra.mrb[0].mxu0 %v5995
    %v6098 = vpop.f32.mrb[0].mxu0
    %v6099 = vadd.f32 0.0, %v6098
    %v6100 = vpop.f32.mrb[0].mxu0
    %6101 = vdwg.mxu0
    %s6102 = scalar_lea.vmem %s6, 96
    %v6103 = vld [vmem:[%s6102] sm:$0xff]
    %v6104 = vld [vmem:[%s6102 + $0x8] sm:$0xff]
    %v6105 = vld [vmem:[%s6102 + $0x10] sm:$0xff]
    %v6106 = vld [vmem:[%s6102 + $0x18] sm:$0xff]
    %6113 = vrot.lane.b32.xlu0 %v5946, 32
    %v6114 = vpop.permute.xlu0 %6113
    %6115 = vrot.lane.b32.xlu0 %v5947, 32
    %v6116 = vpop.permute.xlu0 %6115
    %6117 = vrot.lane.b32.xlu0 %v5948, 32
    %v6118 = vpop.permute.xlu0 %6117
    %6119 = vrot.lane.b32.xlu0 %v5949, 32
    %v6120 = vpop.permute.xlu0 %6119
    %6121 = vrot.lane.b32.xlu0 %v5950, 32
    %v6122 = vpop.permute.xlu0 %6121
    %6123 = vrot.lane.b32.xlu0 %v5951, 32
    %v6124 = vpop.permute.xlu0 %6123
    %v6125 = vsel %vm196, %v6114, 0
    %v6127 = vsel %vm196, %v6116, 0
    %v6129 = vsel %vm196, %v6118, 0
    %v6131 = vsel %vm196, %v6120, 0
    %v6133 = vsel %vm196, %v6122, 0
    %v6135 = vsel %vm196, %v6124, 0
    %6137 = vmatprep.subr.mxu0 0.0
    %6138 = vmatpush1.msra.mxu0 %v6103
    %6139 = vmatprep.subr.mxu0 0.0
    %6140 = vmatpush1.msra.mxu0 %v6104
    %6141 = vmatprep.subr.mxu0 0.0
    %6142 = vmatpush1.msra.mxu0 %v6105
    %6143 = vmatprep.subr.mxu0 0.0
    %6144 = vmatpush1.msra.mxu0 %v6106
    %6145 = vmatprep.subr.mxu0 0.0
    %6146 = vmatpush1.msra.mxu0 0.0
    %6147 = vmatprep.subr.mxu0 0.0
    %6148 = vmatpush1.msra.mxu0 0.0
    %6149 = vmatprep.subr.mxu0 0.0
    %6150 = vmatpush1.msra.mxu0 0.0
    %6151 = vmatprep.subr.mxu0 0.0
    %6152 = vmatpush1.msra.mxu0 0.0
    %6153 = vmatprep.subr.mxu0 0.0
    %6154 = vmatpush1.msra.mxu0 0.0
    %6155 = vmatprep.subr.mxu0 0.0
    %6156 = vmatpush1.msra.mxu0 0.0
    %6157 = vmatprep.subr.mxu0 0.0
    %6158 = vmatpush1.msra.mxu0 0.0
    %6159 = vmatprep.subr.mxu0 0.0
    %6160 = vmatpush1.msra.mxu0 0.0
    %6161 = vmatprep.subr.mxu0 0.0
    %6162 = vmatpush1.msra.mxu0 0.0
    %6163 = vmatprep.subr.mxu0 0.0
    %6164 = vmatpush1.msra.mxu0 0.0
    %6165 = vmatprep.subr.mxu0 0.0
    %6166 = vmatpush1.msra.mxu0 0.0
    %6167 = vmatprep.subr.mxu0 0.0
    %6168 = vmatpush1.msra.mxu0 0.0
    %6169 = vmatprep.subr.mxu0 0.0
    %6170 = vmatpush1.msra.mxu0 0.0
    %6171 = vmatprep.subr.mxu0 0.0
    %6172 = vmatpush1.msra.mxu0 0.0
    %6173 = vmatprep.subr.mxu0 0.0
    %6174 = vmatpush1.msra.mxu0 0.0
    %6175 = vmatprep.subr.mxu0 0.0
    %6176 = vmatpush1.msra.mxu0 0.0
    %6177 = vmatprep.subr.mxu0 0.0
    %6178 = vmatpush1.msra.mxu0 0.0
    %6179 = vmatprep.subr.mxu0 0.0
    %6180 = vmatpush1.msra.mxu0 0.0
    %6181 = vmatprep.subr.mxu0 0.0
    %6182 = vmatpush1.msra.mxu0 0.0
    %6183 = vmatprep.subr.mxu0 0.0
    %6184 = vmatpush1.msra.mxu0 0.0
    %6185 = vmatprep.subr.mxu0 0.0
    %6186 = vmatpush1.msra.mxu0 0.0
    %6187 = vmatprep.subr.mxu0 0.0
    %6188 = vmatpush1.msra.mxu0 0.0
    %6189 = vmatprep.subr.mxu0 0.0
    %6190 = vmatpush1.msra.mxu0 0.0
    %6191 = vmatprep.subr.mxu0 0.0
    %6192 = vmatpush1.msra.mxu0 0.0
    %6193 = vmatprep.subr.mxu0 0.0
    %6194 = vmatpush1.msra.mxu0 0.0
    %6195 = vmatprep.subr.mxu0 0.0
    %6196 = vmatpush1.msra.mxu0 0.0
    %6197 = vmatprep.subr.mxu0 0.0
    %6198 = vmatpush1.msra.mxu0 0.0
    %6199 = vmatprep.subr.mxu0 0.0
    %6200 = vmatpush1.msra.mxu0 0.0
    %6201 = vmatprep.mubr.f32.mxu0 0.0
    %6202 = vmatmul.mubr.f32.gmra.mrb[0].mxu0 %v6125
    %v6203 = vpop.f32.mrb[0].mxu0
    %v6204 = vadd.f32 0.0, %v6203
    %v6205 = vpop.f32.mrb[0].mxu0
    %6206 = vmatprep.mubr.f32.mxu0 0.0
    %6207 = vmatmul.mubr.f32.gmra.mrb[0].mxu0 %v6127
    %v6208 = vpop.f32.mrb[0].mxu0
    %v6209 = vadd.f32 0.0, %v6208
    %v6210 = vpop.f32.mrb[0].mxu0
    %6211 = vmatprep.mubr.f32.mxu0 0.0
    %6212 = vmatmul.mubr.f32.gmra.mrb[0].mxu0 %v6129
    %v6213 = vpop.f32.mrb[0].mxu0
    %v6214 = vadd.f32 0.0, %v6213
    %v6215 = vpop.f32.mrb[0].mxu0
    %6216 = vmatprep.mubr.f32.mxu0 0.0
    %6217 = vmatmul.mubr.f32.gmra.mrb[0].mxu0 %v6131
    %v6218 = vpop.f32.mrb[0].mxu0
    %v6219 = vadd.f32 0.0, %v6218
    %v6220 = vpop.f32.mrb[0].mxu0
    %6221 = vmatprep.mubr.f32.mxu0 0.0
    %6222 = vmatmul.mubr.f32.gmra.mrb[0].mxu0 %v6133
    %v6223 = vpop.f32.mrb[0].mxu0
    %v6224 = vadd.f32 0.0, %v6223
    %v6225 = vpop.f32.mrb[0].mxu0
    %6226 = vmatprep.mubr.f32.mxu0 0.0
    %6227 = vmatmul.mubr.f32.gmra.mrb[0].mxu0 %v6135
    %v6228 = vpop.f32.mrb[0].mxu0
    %v6229 = vadd.f32 0.0, %v6228
    %v6230 = vpop.f32.mrb[0].mxu0
    %6231 = vdwg.mxu0
    %s6232 = scalar_lea.vmem %s7, 96
    %v6233 = vld [vmem:[%s6232] sm:$0xff]
    %v6234 = vld [vmem:[%s6232 + $0x8] sm:$0xff]
    %v6235 = vld [vmem:[%s6232 + $0x10] sm:$0xff]
    %v6236 = vld [vmem:[%s6232 + $0x18] sm:$0xff]
    %6237 = vmatprep.subr.mxu0 0.0
    %6238 = vmatpush1.msra.mxu0 %v6233
    %6239 = vmatprep.subr.mxu0 0.0
    %6240 = vmatpush1.msra.mxu0 %v6234
    %6241 = vmatprep.subr.mxu0 0.0
    %6242 = vmatpush1.msra.mxu0 %v6235
    %6243 = vmatprep.subr.mxu0 0.0
    %6244 = vmatpush1.msra.mxu0 %v6236
    %6245 = vmatprep.subr.mxu0 0.0
    %6246 = vmatpush1.msra.mxu0 0.0
    %6247 = vmatprep.subr.mxu0 0.0
    %6248 = vmatpush1.msra.mxu0 0.0
    %6249 = vmatprep.subr.mxu0 0.0
    %6250 = vmatpush1.msra.mxu0 0.0
    %6251 = vmatprep.subr.mxu0 0.0
    %6252 = vmatpush1.msra.mxu0 0.0
    %6253 = vmatprep.subr.mxu0 0.0
    %6254 = vmatpush1.msra.mxu0 0.0
    %6255 = vmatprep.subr.mxu0 0.0
    %6256 = vmatpush1.msra.mxu0 0.0
    %6257 = vmatprep.subr.mxu0 0.0
    %6258 = vmatpush1.msra.mxu0 0.0
    %6259 = vmatprep.subr.mxu0 0.0
    %6260 = vmatpush1.msra.mxu0 0.0
    %6261 = vmatprep.subr.mxu0 0.0
    %6262 = vmatpush1.msra.mxu0 0.0
    %6263 = vmatprep.subr.mxu0 0.0
    %6264 = vmatpush1.msra.mxu0 0.0
    %6265 = vmatprep.subr.mxu0 0.0
    %6266 = vmatpush1.msra.mxu0 0.0
    %6267 = vmatprep.subr.mxu0 0.0
    %6268 = vmatpush1.msra.mxu0 0.0
    %6269 = vmatprep.subr.mxu0 0.0
    %6270 = vmatpush1.msra.mxu0 0.0
    %6271 = vmatprep.subr.mxu0 0.0
    %6272 = vmatpush1.msra.mxu0 0.0
    %6273 = vmatprep.subr.mxu0 0.0
    %6274 = vmatpush1.msra.mxu0 0.0
    %6275 = vmatprep.subr.mxu0 0.0
    %6276 = vmatpush1.msra.mxu0 0.0
    %6277 = vmatprep.subr.mxu0 0.0
    %6278 = vmatpush1.msra.mxu0 0.0
    %6279 = vmatprep.subr.mxu0 0.0
    %6280 = vmatpush1.msra.mxu0 0.0
    %6281 = vmatprep.subr.mxu0 0.0
    %6282 = vmatpush1.msra.mxu0 0.0
    %6283 = vmatprep.subr.mxu0 0.0
    %6284 = vmatpush1.msra.mxu0 0.0
    %6285 = vmatprep.subr.mxu0 0.0
    %6286 = vmatpush1.msra.mxu0 0.0
    %6287 = vmatprep.subr.mxu0 0.0
    %6288 = vmatpush1.msra.mxu0 0.0
    %6289 = vmatprep.subr.mxu0 0.0
    %6290 = vmatpush1.msra.mxu0 0.0
    %6291 = vmatprep.subr.mxu0 0.0
    %6292 = vmatpush1.msra.mxu0 0.0
    %6293 = vmatprep.subr.mxu0 0.0
    %6294 = vmatpush1.msra.mxu0 0.0
    %6295 = vmatprep.subr.mxu0 0.0
    %6296 = vmatpush1.msra.mxu0 0.0
    %6297 = vmatprep.subr.mxu0 0.0
    %6298 = vmatpush1.msra.mxu0 0.0
    %6299 = vmatprep.subr.mxu0 0.0
    %6300 = vmatpush1.msra.mxu0 0.0
    %6301 = vmatprep.mubr.f32.mxu0 0.0
    %6302 = vmatmul.mubr.f32.gmra.mrb[0].mxu0 %v5981
    %v6303 = vpop.f32.mrb[0].mxu0
    %v6304 = vadd.f32 0.0, %v6303
    %v6305 = vpop.f32.mrb[0].mxu0
    %6306 = vmatprep.mubr.f32.mxu0 0.0
    %6307 = vmatmul.mubr.f32.gmra.mrb[0].mxu0 %v5983
    %v6308 = vpop.f32.mrb[0].mxu0
    %v6309 = vadd.f32 0.0, %v6308
    %v6310 = vpop.f32.mrb[0].mxu0
    %6311 = vmatprep.mubr.f32.mxu0 0.0
    %6312 = vmatmul.mubr.f32.gmra.mrb[0].mxu0 %v5985
    %v6313 = vpop.f32.mrb[0].mxu0
    %v6314 = vadd.f32 0.0, %v6313
    %v6315 = vpop.f32.mrb[0].mxu0
    %6316 = vmatprep.mubr.f32.mxu0 0.0
    %6317 = vmatmul.mubr.f32.gmra.mrb[0].mxu0 %v5987
    %v6318 = vpop.f32.mrb[0].mxu0
    %v6319 = vadd.f32 0.0, %v6318
    %v6320 = vpop.f32.mrb[0].mxu0
    %6321 = vmatprep.mubr.f32.mxu0 0.0
    %6322 = vmatmul.mubr.f32.gmra.mrb[0].mxu0 %v5989
    %v6323 = vpop.f32.mrb[0].mxu0
    %v6324 = vadd.f32 0.0, %v6323
    %v6325 = vpop.f32.mrb[0].mxu0
    %6326 = vmatprep.mubr.f32.mxu0 0.0
    %6327 = vmatmul.mubr.f32.gmra.mrb[0].mxu0 %v5991
    %v6328 = vpop.f32.mrb[0].mxu0
    %v6329 = vadd.f32 0.0, %v6328
    %v6330 = vpop.f32.mrb[0].mxu0
    %6331 = vmatprep.mubr.f32.mxu0 0.0
    %6332 = vmatmul.mubr.f32.gmra.mrb[0].mxu0 %v5993
    %v6333 = vpop.f32.mrb[0].mxu0
    %v6334 = vadd.f32 0.0, %v6333
    %v6335 = vpop.f32.mrb[0].mxu0
    %6336 = vmatprep.mubr.f32.mxu0 0.0
    %6337 = vmatmul.mubr.f32.gmra.mrb[0].mxu0 %v5995
    %v6338 = vpop.f32.mrb[0].mxu0
    %v6339 = vadd.f32 0.0, %v6338
    %v6340 = vpop.f32.mrb[0].mxu0
    %6341 = vdwg.mxu0
    %6342 = vmatprep.subr.mxu0 0.0
    %6343 = vmatpush1.msra.mxu0 %v6204
    %6344 = vmatprep.subr.mxu0 0.0
    %6345 = vmatpush1.msra.mxu0 %v6209
    %6346 = vmatprep.subr.mxu0 0.0
    %6347 = vmatpush1.msra.mxu0 %v6214
    %6348 = vmatprep.subr.mxu0 0.0
    %6349 = vmatpush1.msra.mxu0 %v6219
    %6350 = vmatprep.subr.mxu0 0.0
    %6351 = vmatpush1.msra.mxu0 %v6224
    %6352 = vmatprep.subr.mxu0 0.0
    %6353 = vmatpush1.msra.mxu0 %v6229
    %6354 = vmatprep.subr.mxu0 0.0
    %6355 = vmatpush1.msra.mxu0 0.0
    %6356 = vmatprep.subr.mxu0 0.0
    %6357 = vmatpush1.msra.mxu0 0.0
    %6358 = vmatprep.subr.mxu0 0.0
    %6359 = vmatpush1.msra.mxu0 0.0
    %6360 = vmatprep.subr.mxu0 0.0
    %6361 = vmatpush1.msra.mxu0 0.0
    %6362 = vmatprep.subr.mxu0 0.0
    %6363 = vmatpush1.msra.mxu0 0.0
    %6364 = vmatprep.subr.mxu0 0.0
    %6365 = vmatpush1.msra.mxu0 0.0
    %6366 = vmatprep.subr.mxu0 0.0
    %6367 = vmatpush1.msra.mxu0 0.0
    %6368 = vmatprep.subr.mxu0 0.0
    %6369 = vmatpush1.msra.mxu0 0.0
    %6370 = vmatprep.subr.mxu0 0.0
    %6371 = vmatpush1.msra.mxu0 0.0
    %6372 = vmatprep.subr.mxu0 0.0
    %6373 = vmatpush1.msra.mxu0 0.0
    %6374 = vmatprep.subr.mxu0 0.0
    %6375 = vmatpush1.msra.mxu0 0.0
    %6376 = vmatprep.subr.mxu0 0.0
    %6377 = vmatpush1.msra.mxu0 0.0
    %6378 = vmatprep.subr.mxu0 0.0
    %6379 = vmatpush1.msra.mxu0 0.0
    %6380 = vmatprep.subr.mxu0 0.0
    %6381 = vmatpush1.msra.mxu0 0.0
    %6382 = vmatprep.subr.mxu0 0.0
    %6383 = vmatpush1.msra.mxu0 0.0
    %6384 = vmatprep.subr.mxu0 0.0
    %6385 = vmatpush1.msra.mxu0 0.0
    %6386 = vmatprep.subr.mxu0 0.0
    %6387 = vmatpush1.msra.mxu0 0.0
    %6388 = vmatprep.subr.mxu0 0.0
    %6389 = vmatpush1.msra.mxu0 0.0
    %6390 = vmatprep.subr.mxu0 0.0
    %6391 = vmatpush1.msra.mxu0 0.0
    %6392 = vmatprep.subr.mxu0 0.0
    %6393 = vmatpush1.msra.mxu0 0.0
    %6394 = vmatprep.subr.mxu0 0.0
    %6395 = vmatpush1.msra.mxu0 0.0
    %6396 = vmatprep.subr.mxu0 0.0
    %6397 = vmatpush1.msra.mxu0 0.0
    %6398 = vmatprep.subr.mxu0 0.0
    %6399 = vmatpush1.msra.mxu0 0.0
    %6400 = vmatprep.subr.mxu0 0.0
    %6401 = vmatpush1.msra.mxu0 0.0
    %6402 = vmatprep.subr.mxu0 0.0
    %6403 = vmatpush1.msra.mxu0 0.0
    %6404 = vmatprep.subr.mxu0 0.0
    %6405 = vmatpush1.msra.mxu0 0.0
    %6406 = vmatprep.mubr.f32.mxu0 0.0
    %6407 = vmatmul.mubr.f32.gmra.mrb[0].mxu0 %v554
    %v6408 = vpop.f32.mrb[0].mxu0
    %v6409 = vadd.f32 0.0, %v6408
    %v6410 = vpop.f32.mrb[0].mxu0
    %6411 = vmatprep.mubr.f32.mxu0 0.0
    %6412 = vmatmul.mubr.f32.gmra.mrb[0].mxu0 %v557
    %v6413 = vpop.f32.mrb[0].mxu0
    %v6414 = vadd.f32 0.0, %v6413
    %v6415 = vpop.f32.mrb[0].mxu0
    %6416 = vmatprep.mubr.f32.mxu0 0.0
    %6417 = vmatmul.mubr.f32.gmra.mrb[0].mxu0 %v560
    %v6418 = vpop.f32.mrb[0].mxu0
    %v6419 = vadd.f32 0.0, %v6418
    %v6420 = vpop.f32.mrb[0].mxu0
    %6421 = vmatprep.mubr.f32.mxu0 0.0
    %6422 = vmatmul.mubr.f32.gmra.mrb[0].mxu0 %v563
    %v6423 = vpop.f32.mrb[0].mxu0
    %v6424 = vadd.f32 0.0, %v6423
    %v6425 = vpop.f32.mrb[0].mxu0
    %6426 = vmatprep.mubr.f32.mxu0 0.0
    %6427 = vmatmul.mubr.f32.gmra.mrb[0].mxu0 %v566
    %v6428 = vpop.f32.mrb[0].mxu0
    %v6429 = vadd.f32 0.0, %v6428
    %v6430 = vpop.f32.mrb[0].mxu0
    %6431 = vmatprep.mubr.f32.mxu0 0.0
    %6432 = vmatmul.mubr.f32.gmra.mrb[0].mxu0 %v569
    %v6433 = vpop.f32.mrb[0].mxu0
    %v6434 = vadd.f32 0.0, %v6433
    %v6435 = vpop.f32.mrb[0].mxu0
    %6436 = vmatprep.mubr.f32.mxu0 0.0
    %6437 = vmatmul.mubr.f32.gmra.mrb[0].mxu0 %v572
    %v6438 = vpop.f32.mrb[0].mxu0
    %v6439 = vadd.f32 0.0, %v6438
    %v6440 = vpop.f32.mrb[0].mxu0
    %6441 = vmatprep.mubr.f32.mxu0 0.0
    %6442 = vmatmul.mubr.f32.gmra.mrb[0].mxu0 %v575
    %v6443 = vpop.f32.mrb[0].mxu0
    %v6444 = vadd.f32 0.0, %v6443
    %v6445 = vpop.f32.mrb[0].mxu0
    %6446 = vdwg.mxu0
    %6447 = vmatprep.subr.mxu0 0.0
    %6448 = vmatpush1.msra.mxu0 %v6064
    %6449 = vmatprep.subr.mxu0 0.0
    %6450 = vmatpush1.msra.mxu0 %v6069
    %6451 = vmatprep.subr.mxu0 0.0
    %6452 = vmatpush1.msra.mxu0 %v6074
    %6453 = vmatprep.subr.mxu0 0.0
    %6454 = vmatpush1.msra.mxu0 %v6079
    %6455 = vmatprep.subr.mxu0 0.0
    %6456 = vmatpush1.msra.mxu0 %v6084
    %6457 = vmatprep.subr.mxu0 0.0
    %6458 = vmatpush1.msra.mxu0 %v6089
    %6459 = vmatprep.subr.mxu0 0.0
    %6460 = vmatpush1.msra.mxu0 %v6094
    %6461 = vmatprep.subr.mxu0 0.0
    %6462 = vmatpush1.msra.mxu0 %v6099
    %6463 = vmatprep.subr.mxu0 0.0
    %6464 = vmatpush1.msra.mxu0 0.0
    %6465 = vmatprep.subr.mxu0 0.0
    %6466 = vmatpush1.msra.mxu0 0.0
    %6467 = vmatprep.subr.mxu0 0.0
    %6468 = vmatpush1.msra.mxu0 0.0
    %6469 = vmatprep.subr.mxu0 0.0
    %6470 = vmatpush1.msra.mxu0 0.0
    %6471 = vmatprep.subr.mxu0 0.0
    %6472 = vmatpush1.msra.mxu0 0.0
    %6473 = vmatprep.subr.mxu0 0.0
    %6474 = vmatpush1.msra.mxu0 0.0
    %6475 = vmatprep.subr.mxu0 0.0
    %6476 = vmatpush1.msra.mxu0 0.0
    %6477 = vmatprep.subr.mxu0 0.0
    %6478 = vmatpush1.msra.mxu0 0.0
    %6479 = vmatprep.subr.mxu0 0.0
    %6480 = vmatpush1.msra.mxu0 0.0
    %6481 = vmatprep.subr.mxu0 0.0
    %6482 = vmatpush1.msra.mxu0 0.0
    %6483 = vmatprep.subr.mxu0 0.0
    %6484 = vmatpush1.msra.mxu0 0.0
    %6485 = vmatprep.subr.mxu0 0.0
    %6486 = vmatpush1.msra.mxu0 0.0
    %6487 = vmatprep.subr.mxu0 0.0
    %6488 = vmatpush1.msra.mxu0 0.0
    %6489 = vmatprep.subr.mxu0 0.0
    %6490 = vmatpush1.msra.mxu0 0.0
    %6491 = vmatprep.subr.mxu0 0.0
    %6492 = vmatpush1.msra.mxu0 0.0
    %6493 = vmatprep.subr.mxu0 0.0
    %6494 = vmatpush1.msra.mxu0 0.0
    %6495 = vmatprep.subr.mxu0 0.0
    %6496 = vmatpush1.msra.mxu0 0.0
    %6497 = vmatprep.subr.mxu0 0.0
    %6498 = vmatpush1.msra.mxu0 0.0
    %6499 = vmatprep.subr.mxu0 0.0
    %6500 = vmatpush1.msra.mxu0 0.0
    %6501 = vmatprep.subr.mxu0 0.0
    %6502 = vmatpush1.msra.mxu0 0.0
    %6503 = vmatprep.subr.mxu0 0.0
    %6504 = vmatpush1.msra.mxu0 0.0
    %6505 = vmatprep.subr.mxu0 0.0
    %6506 = vmatpush1.msra.mxu0 0.0
    %6507 = vmatprep.subr.mxu0 0.0
    %6508 = vmatpush1.msra.mxu0 0.0
    %6509 = vmatprep.subr.mxu0 0.0
    %6510 = vmatpush1.msra.mxu0 0.0
    %6511 = vmatprep.mubr.f32.mxu0 0.0
    %6512 = vmatmul.mubr.f32.gmra.mrb[0].mxu0 %v684
    %v6513 = vpop.f32.mrb[0].mxu0
    %v6514 = vadd.f32 %v6409, %v6513
    %v6515 = vpop.f32.mrb[0].mxu0
    %6516 = vmatprep.mubr.f32.mxu0 0.0
    %6517 = vmatmul.mubr.f32.gmra.mrb[0].mxu0 %v687
    %v6518 = vpop.f32.mrb[0].mxu0
    %v6519 = vadd.f32 %v6414, %v6518
    %v6520 = vpop.f32.mrb[0].mxu0
    %6521 = vmatprep.mubr.f32.mxu0 0.0
    %6522 = vmatmul.mubr.f32.gmra.mrb[0].mxu0 %v690
    %v6523 = vpop.f32.mrb[0].mxu0
    %v6524 = vadd.f32 %v6419, %v6523
    %v6525 = vpop.f32.mrb[0].mxu0
    %6526 = vmatprep.mubr.f32.mxu0 0.0
    %6527 = vmatmul.mubr.f32.gmra.mrb[0].mxu0 %v693
    %v6528 = vpop.f32.mrb[0].mxu0
    %v6529 = vadd.f32 %v6424, %v6528
    %v6530 = vpop.f32.mrb[0].mxu0
    %6531 = vmatprep.mubr.f32.mxu0 0.0
    %6532 = vmatmul.mubr.f32.gmra.mrb[0].mxu0 %v696
    %v6533 = vpop.f32.mrb[0].mxu0
    %v6534 = vadd.f32 %v6429, %v6533
    %v6535 = vpop.f32.mrb[0].mxu0
    %6536 = vmatprep.mubr.f32.mxu0 0.0
    %6537 = vmatmul.mubr.f32.gmra.mrb[0].mxu0 %v699
    %v6538 = vpop.f32.mrb[0].mxu0
    %v6539 = vadd.f32 %v6434, %v6538
    %v6540 = vpop.f32.mrb[0].mxu0
    %6541 = vmatprep.mubr.f32.mxu0 0.0
    %6542 = vmatmul.mubr.f32.gmra.mrb[0].mxu0 %v702
    %v6543 = vpop.f32.mrb[0].mxu0
    %v6544 = vadd.f32 %v6439, %v6543
    %v6545 = vpop.f32.mrb[0].mxu0
    %6546 = vmatprep.mubr.f32.mxu0 0.0
    %6547 = vmatmul.mubr.f32.gmra.mrb[0].mxu0 %v705
    %v6548 = vpop.f32.mrb[0].mxu0
    %v6549 = vadd.f32 %v6444, %v6548
    %v6550 = vpop.f32.mrb[0].mxu0
    %6551 = vdwg.mxu0
    %s6552 = scalar_lea.vmem [#allocation6], 96
    %v6553 = vld [vmem:[%s6552] sm:$0xff]
    %v6554 = vld [vmem:[%s6552 + $0x8] sm:$0xff]
    %v6555 = vld [vmem:[%s6552 + $0x10] sm:$0xff]
    %v6556 = vld [vmem:[%s6552 + $0x18] sm:$0xff]
    %6557 = vmatprep.subr.mxu0 0.0
    %6558 = vmatpush1.msra.mxu0 %v6553
    %6559 = vmatprep.subr.mxu0 0.0
    %6560 = vmatpush1.msra.mxu0 %v6554
    %6561 = vmatprep.subr.mxu0 0.0
    %6562 = vmatpush1.msra.mxu0 %v6555
    %6563 = vmatprep.subr.mxu0 0.0
    %6564 = vmatpush1.msra.mxu0 %v6556
    %6565 = vmatprep.subr.mxu0 0.0
    %6566 = vmatpush1.msra.mxu0 0.0
    %6567 = vmatprep.subr.mxu0 0.0
    %6568 = vmatpush1.msra.mxu0 0.0
    %6569 = vmatprep.subr.mxu0 0.0
    %6570 = vmatpush1.msra.mxu0 0.0
    %6571 = vmatprep.subr.mxu0 0.0
    %6572 = vmatpush1.msra.mxu0 0.0
    %6573 = vmatprep.subr.mxu0 0.0
    %6574 = vmatpush1.msra.mxu0 0.0
    %6575 = vmatprep.subr.mxu0 0.0
    %6576 = vmatpush1.msra.mxu0 0.0
    %6577 = vmatprep.subr.mxu0 0.0
    %6578 = vmatpush1.msra.mxu0 0.0
    %6579 = vmatprep.subr.mxu0 0.0
    %6580 = vmatpush1.msra.mxu0 0.0
    %6581 = vmatprep.subr.mxu0 0.0
    %6582 = vmatpush1.msra.mxu0 0.0
    %6583 = vmatprep.subr.mxu0 0.0
    %6584 = vmatpush1.msra.mxu0 0.0
    %6585 = vmatprep.subr.mxu0 0.0
    %6586 = vmatpush1.msra.mxu0 0.0
    %6587 = vmatprep.subr.mxu0 0.0
    %6588 = vmatpush1.msra.mxu0 0.0
    %6589 = vmatprep.subr.mxu0 0.0
    %6590 = vmatpush1.msra.mxu0 0.0
    %6591 = vmatprep.subr.mxu0 0.0
    %6592 = vmatpush1.msra.mxu0 0.0
    %6593 = vmatprep.subr.mxu0 0.0
    %6594 = vmatpush1.msra.mxu0 0.0
    %6595 = vmatprep.subr.mxu0 0.0
    %6596 = vmatpush1.msra.mxu0 0.0
    %6597 = vmatprep.subr.mxu0 0.0
    %6598 = vmatpush1.msra.mxu0 0.0
    %6599 = vmatprep.subr.mxu0 0.0
    %6600 = vmatpush1.msra.mxu0 0.0
    %6601 = vmatprep.subr.mxu0 0.0
    %6602 = vmatpush1.msra.mxu0 0.0
    %6603 = vmatprep.subr.mxu0 0.0
    %6604 = vmatpush1.msra.mxu0 0.0
    %6605 = vmatprep.subr.mxu0 0.0
    %6606 = vmatpush1.msra.mxu0 0.0
    %6607 = vmatprep.subr.mxu0 0.0
    %6608 = vmatpush1.msra.mxu0 0.0
    %6609 = vmatprep.subr.mxu0 0.0
    %6610 = vmatpush1.msra.mxu0 0.0
    %6611 = vmatprep.subr.mxu0 0.0
    %6612 = vmatpush1.msra.mxu0 0.0
    %6613 = vmatprep.subr.mxu0 0.0
    %6614 = vmatpush1.msra.mxu0 0.0
    %6615 = vmatprep.subr.mxu0 0.0
    %6616 = vmatpush1.msra.mxu0 0.0
    %6617 = vmatprep.subr.mxu0 0.0
    %6618 = vmatpush1.msra.mxu0 0.0
    %6619 = vmatprep.subr.mxu0 0.0
    %6620 = vmatpush1.msra.mxu0 0.0
    %6621 = vmatprep.mubr.f32.mxu0 0.0
    %6622 = vmatmul.mubr.f32.gmra.mrb[0].mxu0 %v5981
    %v6623 = vpop.f32.mrb[0].mxu0
    %v6624 = vadd.f32 0.0, %v6623
    %v6625 = vpop.f32.mrb[0].mxu0
    %6626 = vmatprep.mubr.f32.mxu0 0.0
    %6627 = vmatmul.mubr.f32.gmra.mrb[0].mxu0 %v5983
    %v6628 = vpop.f32.mrb[0].mxu0
    %v6629 = vadd.f32 0.0, %v6628
    %v6630 = vpop.f32.mrb[0].mxu0
    %6631 = vmatprep.mubr.f32.mxu0 0.0
    %6632 = vmatmul.mubr.f32.gmra.mrb[0].mxu0 %v5985
    %v6633 = vpop.f32.mrb[0].mxu0
    %v6634 = vadd.f32 0.0, %v6633
    %v6635 = vpop.f32.mrb[0].mxu0
    %6636 = vmatprep.mubr.f32.mxu0 0.0
    %6637 = vmatmul.mubr.f32.gmra.mrb[0].mxu0 %v5987
    %v6638 = vpop.f32.mrb[0].mxu0
    %v6639 = vadd.f32 0.0, %v6638
    %v6640 = vpop.f32.mrb[0].mxu0
    %6641 = vmatprep.mubr.f32.mxu0 0.0
    %6642 = vmatmul.mubr.f32.gmra.mrb[0].mxu0 %v5989
    %v6643 = vpop.f32.mrb[0].mxu0
    %v6644 = vadd.f32 0.0, %v6643
    %v6645 = vpop.f32.mrb[0].mxu0
    %6646 = vmatprep.mubr.f32.mxu0 0.0
    %6647 = vmatmul.mubr.f32.gmra.mrb[0].mxu0 %v5991
    %v6648 = vpop.f32.mrb[0].mxu0
    %v6649 = vadd.f32 0.0, %v6648
    %v6650 = vpop.f32.mrb[0].mxu0
    %6651 = vmatprep.mubr.f32.mxu0 0.0
    %6652 = vmatmul.mubr.f32.gmra.mrb[0].mxu0 %v5993
    %v6653 = vpop.f32.mrb[0].mxu0
    %v6654 = vadd.f32 0.0, %v6653
    %v6655 = vpop.f32.mrb[0].mxu0
    %6656 = vmatprep.mubr.f32.mxu0 0.0
    %6657 = vmatmul.mubr.f32.gmra.mrb[0].mxu0 %v5995
    %v6658 = vpop.f32.mrb[0].mxu0
    %v6659 = vadd.f32 0.0, %v6658
    %v6660 = vpop.f32.mrb[0].mxu0
    %6661 = vdwg.mxu0
    %v6662 = vadd.f32 %v6514, %v6624
    %v6663 = vadd.f32 %v6519, %v6629
    %v6664 = vadd.f32 %v6524, %v6634
    %v6665 = vadd.f32 %v6529, %v6639
    %v6666 = vadd.f32 %v6534, %v6644
    %v6667 = vadd.f32 %v6539, %v6649
    %v6668 = vadd.f32 %v6544, %v6654
    %v6669 = vadd.f32 %v6549, %v6659
    %s6670 = scalar_lea.vmem %s10, 3
    %v6671 = vld [vmem:[%s6670] sm:$0x1]
    %v6673 = vlaneseq
    %v6674 = vshrl.u32 %v6673, 7
    %v6675 = vsub.s32 0, %v6674
    %v6676 = vrot.slane %v6671, %v6675
    %v6678 = vadd.f32 %v6662, %v6676
    %v6679 = vadd.f32 %v6663, %v6676
    %v6680 = vadd.f32 %v6664, %v6676
    %v6681 = vadd.f32 %v6665, %v6676
    %v6682 = vadd.f32 %v6666, %v6676
    %v6683 = vadd.f32 %v6667, %v6676
    %v6684 = vadd.f32 %v6668, %v6676
    %v6685 = vadd.f32 %v6669, %v6676
    %s6686 = scalar_lea.vmem [#allocation7], 96
    %v6687 = vld [vmem:[%s6686] sm:$0xff]
    %v6688 = vld [vmem:[%s6686 + $0x8] sm:$0xff]
    %v6689 = vld [vmem:[%s6686 + $0x10] sm:$0xff]
    %v6690 = vld [vmem:[%s6686 + $0x18] sm:$0xff]
    %6691 = vmatprep.subr.mxu0 0.0
    %6692 = vmatpush1.msra.mxu0 %v6687
    %6693 = vmatprep.subr.mxu0 0.0
    %6694 = vmatpush1.msra.mxu0 %v6688
    %6695 = vmatprep.subr.mxu0 0.0
    %6696 = vmatpush1.msra.mxu0 %v6689
    %6697 = vmatprep.subr.mxu0 0.0
    %6698 = vmatpush1.msra.mxu0 %v6690
    %6699 = vmatprep.subr.mxu0 0.0
    %6700 = vmatpush1.msra.mxu0 0.0
    %6701 = vmatprep.subr.mxu0 0.0
    %6702 = vmatpush1.msra.mxu0 0.0
    %6703 = vmatprep.subr.mxu0 0.0
    %6704 = vmatpush1.msra.mxu0 0.0
    %6705 = vmatprep.subr.mxu0 0.0
    %6706 = vmatpush1.msra.mxu0 0.0
    %6707 = vmatprep.subr.mxu0 0.0
    %6708 = vmatpush1.msra.mxu0 0.0
    %6709 = vmatprep.subr.mxu0 0.0
    %6710 = vmatpush1.msra.mxu0 0.0
    %6711 = vmatprep.subr.mxu0 0.0
    %6712 = vmatpush1.msra.mxu0 0.0
    %6713 = vmatprep.subr.mxu0 0.0
    %6714 = vmatpush1.msra.mxu0 0.0
    %6715 = vmatprep.subr.mxu0 0.0
    %6716 = vmatpush1.msra.mxu0 0.0
    %6717 = vmatprep.subr.mxu0 0.0
    %6718 = vmatpush1.msra.mxu0 0.0
    %6719 = vmatprep.subr.mxu0 0.0
    %6720 = vmatpush1.msra.mxu0 0.0
    %6721 = vmatprep.subr.mxu0 0.0
    %6722 = vmatpush1.msra.mxu0 0.0
    %6723 = vmatprep.subr.mxu0 0.0
    %6724 = vmatpush1.msra.mxu0 0.0
    %6725 = vmatprep.subr.mxu0 0.0
    %6726 = vmatpush1.msra.mxu0 0.0
    %6727 = vmatprep.subr.mxu0 0.0
    %6728 = vmatpush1.msra.mxu0 0.0
    %6729 = vmatprep.subr.mxu0 0.0
    %6730 = vmatpush1.msra.mxu0 0.0
    %6731 = vmatprep.subr.mxu0 0.0
    %6732 = vmatpush1.msra.mxu0 0.0
    %6733 = vmatprep.subr.mxu0 0.0
    %6734 = vmatpush1.msra.mxu0 0.0
    %6735 = vmatprep.subr.mxu0 0.0
    %6736 = vmatpush1.msra.mxu0 0.0
    %6737 = vmatprep.subr.mxu0 0.0
    %6738 = vmatpush1.msra.mxu0 0.0
    %6739 = vmatprep.subr.mxu0 0.0
    %6740 = vmatpush1.msra.mxu0 0.0
    %6741 = vmatprep.subr.mxu0 0.0
    %6742 = vmatpush1.msra.mxu0 0.0
    %6743 = vmatprep.subr.mxu0 0.0
    %6744 = vmatpush1.msra.mxu0 0.0
    %6745 = vmatprep.subr.mxu0 0.0
    %6746 = vmatpush1.msra.mxu0 0.0
    %6747 = vmatprep.subr.mxu0 0.0
    %6748 = vmatpush1.msra.mxu0 0.0
    %6749 = vmatprep.subr.mxu0 0.0
    %6750 = vmatpush1.msra.mxu0 0.0
    %6751 = vmatprep.subr.mxu0 0.0
    %6752 = vmatpush1.msra.mxu0 0.0
    %6753 = vmatprep.subr.mxu0 0.0
    %6754 = vmatpush1.msra.mxu0 0.0
    %6755 = vmatprep.mubr.f32.mxu0 0.0
    %6756 = vmatmul.mubr.f32.gmra.mrb[0].mxu0 %v6125
    %v6757 = vpop.f32.mrb[0].mxu0
    %v6758 = vadd.f32 0.0, %v6757
    %v6759 = vpop.f32.mrb[0].mxu0
    %6760 = vmatprep.mubr.f32.mxu0 0.0
    %6761 = vmatmul.mubr.f32.gmra.mrb[0].mxu0 %v6127
    %v6762 = vpop.f32.mrb[0].mxu0
    %v6763 = vadd.f32 0.0, %v6762
    %v6764 = vpop.f32.mrb[0].mxu0
    %6765 = vmatprep.mubr.f32.mxu0 0.0
    %6766 = vmatmul.mubr.f32.gmra.mrb[0].mxu0 %v6129
    %v6767 = vpop.f32.mrb[0].mxu0
    %v6768 = vadd.f32 0.0, %v6767
    %v6769 = vpop.f32.mrb[0].mxu0
    %6770 = vmatprep.mubr.f32.mxu0 0.0
    %6771 = vmatmul.mubr.f32.gmra.mrb[0].mxu0 %v6131
    %v6772 = vpop.f32.mrb[0].mxu0
    %v6773 = vadd.f32 0.0, %v6772
    %v6774 = vpop.f32.mrb[0].mxu0
    %6775 = vmatprep.mubr.f32.mxu0 0.0
    %6776 = vmatmul.mubr.f32.gmra.mrb[0].mxu0 %v6133
    %v6777 = vpop.f32.mrb[0].mxu0
    %v6778 = vadd.f32 0.0, %v6777
    %v6779 = vpop.f32.mrb[0].mxu0
    %6780 = vmatprep.mubr.f32.mxu0 0.0
    %6781 = vmatmul.mubr.f32.gmra.mrb[0].mxu0 %v6135
    %v6782 = vpop.f32.mrb[0].mxu0
    %v6783 = vadd.f32 0.0, %v6782
    %v6784 = vpop.f32.mrb[0].mxu0
    %6785 = vdwg.mxu0
    %6786 = vmatprep.subr.mxu0 0.0
    %6787 = vmatpush1.msra.mxu0 %v6304
    %6788 = vmatprep.subr.mxu0 0.0
    %6789 = vmatpush1.msra.mxu0 %v6309
    %6790 = vmatprep.subr.mxu0 0.0
    %6791 = vmatpush1.msra.mxu0 %v6314
    %6792 = vmatprep.subr.mxu0 0.0
    %6793 = vmatpush1.msra.mxu0 %v6319
    %6794 = vmatprep.subr.mxu0 0.0
    %6795 = vmatpush1.msra.mxu0 %v6324
    %6796 = vmatprep.subr.mxu0 0.0
    %6797 = vmatpush1.msra.mxu0 %v6329
    %6798 = vmatprep.subr.mxu0 0.0
    %6799 = vmatpush1.msra.mxu0 %v6334
    %6800 = vmatprep.subr.mxu0 0.0
    %6801 = vmatpush1.msra.mxu0 %v6339
    %6802 = vmatprep.subr.mxu0 0.0
    %6803 = vmatpush1.msra.mxu0 0.0
    %6804 = vmatprep.subr.mxu0 0.0
    %6805 = vmatpush1.msra.mxu0 0.0
    %6806 = vmatprep.subr.mxu0 0.0
    %6807 = vmatpush1.msra.mxu0 0.0
    %6808 = vmatprep.subr.mxu0 0.0
    %6809 = vmatpush1.msra.mxu0 0.0
    %6810 = vmatprep.subr.mxu0 0.0
    %6811 = vmatpush1.msra.mxu0 0.0
    %6812 = vmatprep.subr.mxu0 0.0
    %6813 = vmatpush1.msra.mxu0 0.0
    %6814 = vmatprep.subr.mxu0 0.0
    %6815 = vmatpush1.msra.mxu0 0.0
    %6816 = vmatprep.subr.mxu0 0.0
    %6817 = vmatpush1.msra.mxu0 0.0
    %6818 = vmatprep.subr.mxu0 0.0
    %6819 = vmatpush1.msra.mxu0 0.0
    %6820 = vmatprep.subr.mxu0 0.0
    %6821 = vmatpush1.msra.mxu0 0.0
    %6822 = vmatprep.subr.mxu0 0.0
    %6823 = vmatpush1.msra.mxu0 0.0
    %6824 = vmatprep.subr.mxu0 0.0
    %6825 = vmatpush1.msra.mxu0 0.0
    %6826 = vmatprep.subr.mxu0 0.0
    %6827 = vmatpush1.msra.mxu0 0.0
    %6828 = vmatprep.subr.mxu0 0.0
    %6829 = vmatpush1.msra.mxu0 0.0
    %6830 = vmatprep.subr.mxu0 0.0
    %6831 = vmatpush1.msra.mxu0 0.0
    %6832 = vmatprep.subr.mxu0 0.0
    %6833 = vmatpush1.msra.mxu0 0.0
    %6834 = vmatprep.subr.mxu0 0.0
    %6835 = vmatpush1.msra.mxu0 0.0
    %6836 = vmatprep.subr.mxu0 0.0
    %6837 = vmatpush1.msra.mxu0 0.0
    %6838 = vmatprep.subr.mxu0 0.0
    %6839 = vmatpush1.msra.mxu0 0.0
    %6840 = vmatprep.subr.mxu0 0.0
    %6841 = vmatpush1.msra.mxu0 0.0
    %6842 = vmatprep.subr.mxu0 0.0
    %6843 = vmatpush1.msra.mxu0 0.0
    %6844 = vmatprep.subr.mxu0 0.0
    %6845 = vmatpush1.msra.mxu0 0.0
    %6846 = vmatprep.subr.mxu0 0.0
    %6847 = vmatpush1.msra.mxu0 0.0
    %6848 = vmatprep.subr.mxu0 0.0
    %6849 = vmatpush1.msra.mxu0 0.0
    %6850 = vmatprep.mubr.f32.mxu0 0.0
    %6851 = vmatmul.mubr.f32.gmra.mrb[0].mxu0 %v1044
    %v6852 = vpop.f32.mrb[0].mxu0
    %v6853 = vadd.f32 %v6758, %v6852
    %v6854 = vpop.f32.mrb[0].mxu0
    %6855 = vmatprep.mubr.f32.mxu0 0.0
    %6856 = vmatmul.mubr.f32.gmra.mrb[0].mxu0 %v1047
    %v6857 = vpop.f32.mrb[0].mxu0
    %v6858 = vadd.f32 %v6763, %v6857
    %v6859 = vpop.f32.mrb[0].mxu0
    %6860 = vmatprep.mubr.f32.mxu0 0.0
    %6861 = vmatmul.mubr.f32.gmra.mrb[0].mxu0 %v1050
    %v6862 = vpop.f32.mrb[0].mxu0
    %v6863 = vadd.f32 %v6768, %v6862
    %v6864 = vpop.f32.mrb[0].mxu0
    %6865 = vmatprep.mubr.f32.mxu0 0.0
    %6866 = vmatmul.mubr.f32.gmra.mrb[0].mxu0 %v1053
    %v6867 = vpop.f32.mrb[0].mxu0
    %v6868 = vadd.f32 %v6773, %v6867
    %v6869 = vpop.f32.mrb[0].mxu0
    %6870 = vmatprep.mubr.f32.mxu0 0.0
    %6871 = vmatmul.mubr.f32.gmra.mrb[0].mxu0 %v1056
    %v6872 = vpop.f32.mrb[0].mxu0
    %v6873 = vadd.f32 %v6778, %v6872
    %v6874 = vpop.f32.mrb[0].mxu0
    %6875 = vmatprep.mubr.f32.mxu0 0.0
    %6876 = vmatmul.mubr.f32.gmra.mrb[0].mxu0 %v1059
    %v6877 = vpop.f32.mrb[0].mxu0
    %v6878 = vadd.f32 %v6783, %v6877
    %v6879 = vpop.f32.mrb[0].mxu0
    %6880 = vdwg.mxu0
    %s6881 = scalar_lea.vmem %s11, 3
    %v6882 = vld [vmem:[%s6881] sm:$0x1]
    %v6884 = vlaneseq
    %v6885 = vshrl.u32 %v6884, 7
    %v6886 = vsub.s32 0, %v6885
    %v6887 = vrot.slane %v6882, %v6886
    %v6889 = vadd.f32 %v6853, %v6887
    %v6890 = vadd.f32 %v6858, %v6887
    %v6891 = vadd.f32 %v6863, %v6887
    %v6892 = vadd.f32 %v6868, %v6887
    %v6893 = vadd.f32 %v6873, %v6887
    %v6894 = vadd.f32 %v6878, %v6887
    %s6895 = scalar_lea.vmem [#allocation9], 96
    %v6896 = vld [vmem:[%s6895] sm:$0xff]
    %v6897 = vld [vmem:[%s6895 + $0x8] sm:$0xff]
    %v6898 = vld [vmem:[%s6895 + $0x10] sm:$0xff]
    %v6899 = vld [vmem:[%s6895 + $0x18] sm:$0xff]
    %6908 = vrot.lane.b32.xlu0 %v3725, 32
    %v6909 = vpop.permute.xlu0 %6908
    %6910 = vrot.lane.b32.xlu0 %v3726, 32
    %v6911 = vpop.permute.xlu0 %6910
    %6912 = vrot.lane.b32.xlu0 %v3727, 32
    %v6913 = vpop.permute.xlu0 %6912
    %6914 = vrot.lane.b32.xlu0 %v3728, 32
    %v6915 = vpop.permute.xlu0 %6914
    %6916 = vrot.lane.b32.xlu0 %v3729, 32
    %v6917 = vpop.permute.xlu0 %6916
    %6918 = vrot.lane.b32.xlu0 %v3730, 32
    %v6919 = vpop.permute.xlu0 %6918
    %6920 = vrot.lane.b32.xlu0 %v3731, 32
    %v6921 = vpop.permute.xlu0 %6920
    %6922 = vrot.lane.b32.xlu0 %v3732, 32
    %v6923 = vpop.permute.xlu0 %6922
    %v6924 = vsel %vm196, %v6909, 0
    %v6926 = vsel %vm196, %v6911, 0
    %v6928 = vsel %vm196, %v6913, 0
    %v6930 = vsel %vm196, %v6915, 0
    %v6932 = vsel %vm196, %v6917, 0
    %v6934 = vsel %vm196, %v6919, 0
    %v6936 = vsel %vm196, %v6921, 0
    %v6938 = vsel %vm196, %v6923, 0
    %6940 = vmatprep.subr.mxu0 0.0
    %6941 = vmatpush1.msra.mxu0 %v6896
    %6942 = vmatprep.subr.mxu0 0.0
    %6943 = vmatpush1.msra.mxu0 %v6897
    %6944 = vmatprep.subr.mxu0 0.0
    %6945 = vmatpush1.msra.mxu0 %v6898
    %6946 = vmatprep.subr.mxu0 0.0
    %6947 = vmatpush1.msra.mxu0 %v6899
    %6948 = vmatprep.subr.mxu0 0.0
    %6949 = vmatpush1.msra.mxu0 0.0
    %6950 = vmatprep.subr.mxu0 0.0
    %6951 = vmatpush1.msra.mxu0 0.0
    %6952 = vmatprep.subr.mxu0 0.0
    %6953 = vmatpush1.msra.mxu0 0.0
    %6954 = vmatprep.subr.mxu0 0.0
    %6955 = vmatpush1.msra.mxu0 0.0
    %6956 = vmatprep.subr.mxu0 0.0
    %6957 = vmatpush1.msra.mxu0 0.0
    %6958 = vmatprep.subr.mxu0 0.0
    %6959 = vmatpush1.msra.mxu0 0.0
    %6960 = vmatprep.subr.mxu0 0.0
    %6961 = vmatpush1.msra.mxu0 0.0
    %6962 = vmatprep.subr.mxu0 0.0
    %6963 = vmatpush1.msra.mxu0 0.0
    %6964 = vmatprep.subr.mxu0 0.0
    %6965 = vmatpush1.msra.mxu0 0.0
    %6966 = vmatprep.subr.mxu0 0.0
    %6967 = vmatpush1.msra.mxu0 0.0
    %6968 = vmatprep.subr.mxu0 0.0
    %6969 = vmatpush1.msra.mxu0 0.0
    %6970 = vmatprep.subr.mxu0 0.0
    %6971 = vmatpush1.msra.mxu0 0.0
    %6972 = vmatprep.subr.mxu0 0.0
    %6973 = vmatpush1.msra.mxu0 0.0
    %6974 = vmatprep.subr.mxu0 0.0
    %6975 = vmatpush1.msra.mxu0 0.0
    %6976 = vmatprep.subr.mxu0 0.0
    %6977 = vmatpush1.msra.mxu0 0.0
    %6978 = vmatprep.subr.mxu0 0.0
    %6979 = vmatpush1.msra.mxu0 0.0
    %6980 = vmatprep.subr.mxu0 0.0
    %6981 = vmatpush1.msra.mxu0 0.0
    %6982 = vmatprep.subr.mxu0 0.0
    %6983 = vmatpush1.msra.mxu0 0.0
    %6984 = vmatprep.subr.mxu0 0.0
    %6985 = vmatpush1.msra.mxu0 0.0
    %6986 = vmatprep.subr.mxu0 0.0
    %6987 = vmatpush1.msra.mxu0 0.0
    %6988 = vmatprep.subr.mxu0 0.0
    %6989 = vmatpush1.msra.mxu0 0.0
    %6990 = vmatprep.subr.mxu0 0.0
    %6991 = vmatpush1.msra.mxu0 0.0
    %6992 = vmatprep.subr.mxu0 0.0
    %6993 = vmatpush1.msra.mxu0 0.0
    %6994 = vmatprep.subr.mxu0 0.0
    %6995 = vmatpush1.msra.mxu0 0.0
    %6996 = vmatprep.subr.mxu0 0.0
    %6997 = vmatpush1.msra.mxu0 0.0
    %6998 = vmatprep.subr.mxu0 0.0
    %6999 = vmatpush1.msra.mxu0 0.0
    %7000 = vmatprep.subr.mxu0 0.0
    %7001 = vmatpush1.msra.mxu0 0.0
    %7002 = vmatprep.subr.mxu0 0.0
    %7003 = vmatpush1.msra.mxu0 0.0
    %7004 = vmatprep.mubr.f32.mxu0 0.0
    %7005 = vmatmul.mubr.f32.gmra.mrb[0].mxu0 %v6924
    %v7006 = vpop.f32.mrb[0].mxu0
    %v7007 = vadd.f32 0.0, %v7006
    %v7008 = vpop.f32.mrb[0].mxu0
    %7009 = vmatprep.mubr.f32.mxu0 0.0
    %7010 = vmatmul.mubr.f32.gmra.mrb[0].mxu0 %v6926
    %v7011 = vpop.f32.mrb[0].mxu0
    %v7012 = vadd.f32 0.0, %v7011
    %v7013 = vpop.f32.mrb[0].mxu0
    %7014 = vmatprep.mubr.f32.mxu0 0.0
    %7015 = vmatmul.mubr.f32.gmra.mrb[0].mxu0 %v6928
    %v7016 = vpop.f32.mrb[0].mxu0
    %v7017 = vadd.f32 0.0, %v7016
    %v7018 = vpop.f32.mrb[0].mxu0
    %7019 = vmatprep.mubr.f32.mxu0 0.0
    %7020 = vmatmul.mubr.f32.gmra.mrb[0].mxu0 %v6930
    %v7021 = vpop.f32.mrb[0].mxu0
    %v7022 = vadd.f32 0.0, %v7021
    %v7023 = vpop.f32.mrb[0].mxu0
    %7024 = vmatprep.mubr.f32.mxu0 0.0
    %7025 = vmatmul.mubr.f32.gmra.mrb[0].mxu0 %v6932
    %v7026 = vpop.f32.mrb[0].mxu0
    %v7027 = vadd.f32 0.0, %v7026
    %v7028 = vpop.f32.mrb[0].mxu0
    %7029 = vmatprep.mubr.f32.mxu0 0.0
    %7030 = vmatmul.mubr.f32.gmra.mrb[0].mxu0 %v6934
    %v7031 = vpop.f32.mrb[0].mxu0
    %v7032 = vadd.f32 0.0, %v7031
    %v7033 = vpop.f32.mrb[0].mxu0
    %7034 = vmatprep.mubr.f32.mxu0 0.0
    %7035 = vmatmul.mubr.f32.gmra.mrb[0].mxu0 %v6936
    %v7036 = vpop.f32.mrb[0].mxu0
    %v7037 = vadd.f32 0.0, %v7036
    %v7038 = vpop.f32.mrb[0].mxu0
    %7039 = vmatprep.mubr.f32.mxu0 0.0
    %7040 = vmatmul.mubr.f32.gmra.mrb[0].mxu0 %v6938
    %v7041 = vpop.f32.mrb[0].mxu0
    %v7042 = vadd.f32 0.0, %v7041
    %v7043 = vpop.f32.mrb[0].mxu0
    %7044 = vdwg.mxu0
    %v7045 = vadd.f32 %v6678, %v7007
    %v7046 = vadd.f32 %v6679, %v7012
    %v7047 = vadd.f32 %v6680, %v7017
    %v7048 = vadd.f32 %v6681, %v7022
    %v7049 = vadd.f32 %v6682, %v7027
    %v7050 = vadd.f32 %v6683, %v7032
    %v7051 = vadd.f32 %v6684, %v7037
    %v7052 = vadd.f32 %v6685, %v7042
    %s7053 = scalar_lea.vmem %s16, 3
    %v7054 = vld [vmem:[%s7053] sm:$0x1]
    %v7056 = vlaneseq
    %v7057 = vshrl.u32 %v7056, 7
    %v7058 = vsub.s32 0, %v7057
    %v7059 = vrot.slane %v7054, %v7058
    %v7061 = vadd.f32 %v7045, %v7059
    %v7062 = vadd.f32 %v7046, %v7059
    %v7063 = vadd.f32 %v7047, %v7059
    %v7064 = vadd.f32 %v7048, %v7059
    %v7065 = vadd.f32 %v7049, %v7059
    %v7066 = vadd.f32 %v7050, %v7059
    %v7067 = vadd.f32 %v7051, %v7059
    %v7068 = vadd.f32 %v7052, %v7059
    %s7069 = scalar_lea.vmem [#allocation10], 96
    %v7070 = vld [vmem:[%s7069] sm:$0xff]
    %v7071 = vld [vmem:[%s7069 + $0x8] sm:$0xff]
    %v7072 = vld [vmem:[%s7069 + $0x10] sm:$0xff]
    %v7073 = vld [vmem:[%s7069 + $0x18] sm:$0xff]
    %7080 = vrot.lane.b32.xlu0 %v4035, 32
    %v7081 = vpop.permute.xlu0 %7080
    %7082 = vrot.lane.b32.xlu0 %v4036, 32
    %v7083 = vpop.permute.xlu0 %7082
    %7084 = vrot.lane.b32.xlu0 %v4037, 32
    %v7085 = vpop.permute.xlu0 %7084
    %7086 = vrot.lane.b32.xlu0 %v4038, 32
    %v7087 = vpop.permute.xlu0 %7086
    %7088 = vrot.lane.b32.xlu0 %v4039, 32
    %v7089 = vpop.permute.xlu0 %7088
    %7090 = vrot.lane.b32.xlu0 %v4040, 32
    %v7091 = vpop.permute.xlu0 %7090
    %v7092 = vsel %vm196, %v7081, 0
    %v7094 = vsel %vm196, %v7083, 0
    %v7096 = vsel %vm196, %v7085, 0
    %v7098 = vsel %vm196, %v7087, 0
    %v7100 = vsel %vm196, %v7089, 0
    %v7102 = vsel %vm196, %v7091, 0
    %7104 = vmatprep.subr.mxu0 0.0
    %7105 = vmatpush1.msra.mxu0 %v7070
    %7106 = vmatprep.subr.mxu0 0.0
    %7107 = vmatpush1.msra.mxu0 %v7071
    %7108 = vmatprep.subr.mxu0 0.0
    %7109 = vmatpush1.msra.mxu0 %v7072
    %7110 = vmatprep.subr.mxu0 0.0
    %7111 = vmatpush1.msra.mxu0 %v7073
    %7112 = vmatprep.subr.mxu0 0.0
    %7113 = vmatpush1.msra.mxu0 0.0
    %7114 = vmatprep.subr.mxu0 0.0
    %7115 = vmatpush1.msra.mxu0 0.0
    %7116 = vmatprep.subr.mxu0 0.0
    %7117 = vmatpush1.msra.mxu0 0.0
    %7118 = vmatprep.subr.mxu0 0.0
    %7119 = vmatpush1.msra.mxu0 0.0
    %7120 = vmatprep.subr.mxu0 0.0
    %7121 = vmatpush1.msra.mxu0 0.0
    %7122 = vmatprep.subr.mxu0 0.0
    %7123 = vmatpush1.msra.mxu0 0.0
    %7124 = vmatprep.subr.mxu0 0.0
    %7125 = vmatpush1.msra.mxu0 0.0
    %7126 = vmatprep.subr.mxu0 0.0
    %7127 = vmatpush1.msra.mxu0 0.0
    %7128 = vmatprep.subr.mxu0 0.0
    %7129 = vmatpush1.msra.mxu0 0.0
    %7130 = vmatprep.subr.mxu0 0.0
    %7131 = vmatpush1.msra.mxu0 0.0
    %7132 = vmatprep.subr.mxu0 0.0
    %7133 = vmatpush1.msra.mxu0 0.0
    %7134 = vmatprep.subr.mxu0 0.0
    %7135 = vmatpush1.msra.mxu0 0.0
    %7136 = vmatprep.subr.mxu0 0.0
    %7137 = vmatpush1.msra.mxu0 0.0
    %7138 = vmatprep.subr.mxu0 0.0
    %7139 = vmatpush1.msra.mxu0 0.0
    %7140 = vmatprep.subr.mxu0 0.0
    %7141 = vmatpush1.msra.mxu0 0.0
    %7142 = vmatprep.subr.mxu0 0.0
    %7143 = vmatpush1.msra.mxu0 0.0
    %7144 = vmatprep.subr.mxu0 0.0
    %7145 = vmatpush1.msra.mxu0 0.0
    %7146 = vmatprep.subr.mxu0 0.0
    %7147 = vmatpush1.msra.mxu0 0.0
    %7148 = vmatprep.subr.mxu0 0.0
    %7149 = vmatpush1.msra.mxu0 0.0
    %7150 = vmatprep.subr.mxu0 0.0
    %7151 = vmatpush1.msra.mxu0 0.0
    %7152 = vmatprep.subr.mxu0 0.0
    %7153 = vmatpush1.msra.mxu0 0.0
    %7154 = vmatprep.subr.mxu0 0.0
    %7155 = vmatpush1.msra.mxu0 0.0
    %7156 = vmatprep.subr.mxu0 0.0
    %7157 = vmatpush1.msra.mxu0 0.0
    %7158 = vmatprep.subr.mxu0 0.0
    %7159 = vmatpush1.msra.mxu0 0.0
    %7160 = vmatprep.subr.mxu0 0.0
    %7161 = vmatpush1.msra.mxu0 0.0
    %7162 = vmatprep.subr.mxu0 0.0
    %7163 = vmatpush1.msra.mxu0 0.0
    %7164 = vmatprep.subr.mxu0 0.0
    %7165 = vmatpush1.msra.mxu0 0.0
    %7166 = vmatprep.subr.mxu0 0.0
    %7167 = vmatpush1.msra.mxu0 0.0
    %7168 = vmatprep.mubr.f32.mxu0 0.0
    %7169 = vmatmul.mubr.f32.gmra.mrb[0].mxu0 %v7092
    %v7170 = vpop.f32.mrb[0].mxu0
    %v7171 = vadd.f32 0.0, %v7170
    %v7172 = vpop.f32.mrb[0].mxu0
    %7173 = vmatprep.mubr.f32.mxu0 0.0
    %7174 = vmatmul.mubr.f32.gmra.mrb[0].mxu0 %v7094
    %v7175 = vpop.f32.mrb[0].mxu0
    %v7176 = vadd.f32 0.0, %v7175
    %v7177 = vpop.f32.mrb[0].mxu0
    %7178 = vmatprep.mubr.f32.mxu0 0.0
    %7179 = vmatmul.mubr.f32.gmra.mrb[0].mxu0 %v7096
    %v7180 = vpop.f32.mrb[0].mxu0
    %v7181 = vadd.f32 0.0, %v7180
    %v7182 = vpop.f32.mrb[0].mxu0
    %7183 = vmatprep.mubr.f32.mxu0 0.0
    %7184 = vmatmul.mubr.f32.gmra.mrb[0].mxu0 %v7098
    %v7185 = vpop.f32.mrb[0].mxu0
    %v7186 = vadd.f32 0.0, %v7185
    %v7187 = vpop.f32.mrb[0].mxu0
    %7188 = vmatprep.mubr.f32.mxu0 0.0
    %7189 = vmatmul.mubr.f32.gmra.mrb[0].mxu0 %v7100
    %v7190 = vpop.f32.mrb[0].mxu0
    %v7191 = vadd.f32 0.0, %v7190
    %v7192 = vpop.f32.mrb[0].mxu0
    %7193 = vmatprep.mubr.f32.mxu0 0.0
    %7194 = vmatmul.mubr.f32.gmra.mrb[0].mxu0 %v7102
    %v7195 = vpop.f32.mrb[0].mxu0
    %v7196 = vadd.f32 0.0, %v7195
    %v7197 = vpop.f32.mrb[0].mxu0
    %7198 = vdwg.mxu0
    %v7199 = vadd.f32 %v6889, %v7171
    %v7200 = vadd.f32 %v6890, %v7176
    %v7201 = vadd.f32 %v6891, %v7181
    %v7202 = vadd.f32 %v6892, %v7186
    %v7203 = vadd.f32 %v6893, %v7191
    %v7204 = vadd.f32 %v6894, %v7196
    %s7205 = scalar_lea.vmem %s17, 3
    %v7206 = vld [vmem:[%s7205] sm:$0x1]
    %v7208 = vlaneseq
    %v7209 = vshrl.u32 %v7208, 7
    %v7210 = vsub.s32 0, %v7209
    %v7211 = vrot.slane %v7206, %v7210
    %v7213 = vadd.f32 %v7199, %v7211
    %v7214 = vadd.f32 %v7200, %v7211
    %v7215 = vadd.f32 %v7201, %v7211
    %v7216 = vadd.f32 %v7202, %v7211
    %v7217 = vadd.f32 %v7203, %v7211
    %v7218 = vadd.f32 %v7204, %v7211
    %s7219 = scalar_lea.vmem %s14, 12
    %v7220 = vld [vmem:[%s7219] sm:$0x7]
    %v7221 = vlaneseq
    %v7222 = vshrl.u32 %v7221, 7
    %v7223 = vsub.s32 0, %v7222
    %v7224 = vrot.slane %v7220, %v7223
    %v7225 = vmul.f32 %v7224, %v3566
    %v7226 = vmul.f32 %v7224, %v3568
    %v7227 = vmul.f32 %v7224, %v3570
    %v7228 = vmul.f32 %v7224, %v3572
    %v7229 = vmul.f32 %v7224, %v3574
    %v7230 = vmul.f32 %v7224, %v3576
    %v7231 = vmul.f32 %v7224, %v3578
    %v7232 = vmul.f32 %v7224, %v3580
    %v7233 = vadd.f32 %v7061, %v7225
    %v7234 = vadd.f32 %v7062, %v7226
    %v7235 = vadd.f32 %v7063, %v7227
    %v7236 = vadd.f32 %v7064, %v7228
    %v7237 = vadd.f32 %v7065, %v7229
    %v7238 = vadd.f32 %v7066, %v7230
    %v7239 = vadd.f32 %v7067, %v7231
    %v7240 = vadd.f32 %v7068, %v7232
    %v7241 = vxor.u32 %v7233, 2147483648
    %v7242 = vxor.u32 %v7234, 2147483648
    %v7243 = vxor.u32 %v7235, 2147483648
    %v7244 = vxor.u32 %v7236, 2147483648
    %v7245 = vxor.u32 %v7237, 2147483648
    %v7246 = vxor.u32 %v7238, 2147483648
    %v7247 = vxor.u32 %v7239, 2147483648
    %v7248 = vxor.u32 %v7240, 2147483648
    %v7249 = vmul.f32 %v7241, 1.442695
    %v7250 = vpow.pop %v7249
    %v7251 = vmul.f32 %v7242, 1.442695
    %v7252 = vpow.pop %v7251
    %v7253 = vmul.f32 %v7243, 1.442695
    %v7254 = vpow.pop %v7253
    %v7255 = vmul.f32 %v7244, 1.442695
    %v7256 = vpow.pop %v7255
    %v7257 = vmul.f32 %v7245, 1.442695
    %v7258 = vpow.pop %v7257
    %v7259 = vmul.f32 %v7246, 1.442695
    %v7260 = vpow.pop %v7259
    %v7261 = vmul.f32 %v7247, 1.442695
    %v7262 = vpow.pop %v7261
    %v7263 = vmul.f32 %v7248, 1.442695
    %v7264 = vpow.pop %v7263
    %v7265 = vadd.f32 %v7250, 1.0
    %v7266 = vadd.f32 %v7252, 1.0
    %v7267 = vadd.f32 %v7254, 1.0
    %v7268 = vadd.f32 %v7256, 1.0
    %v7269 = vadd.f32 %v7258, 1.0
    %v7270 = vadd.f32 %v7260, 1.0
    %v7271 = vadd.f32 %v7262, 1.0
    %v7272 = vadd.f32 %v7264, 1.0
    %v7273 = vrcp.pop %v7265
    %v7274 = vmul.f32 1.0, %v7273
    %v7275 = vrcp.pop %v7266
    %v7276 = vmul.f32 1.0, %v7275
    %v7277 = vrcp.pop %v7267
    %v7278 = vmul.f32 1.0, %v7277
    %v7279 = vrcp.pop %v7268
    %v7280 = vmul.f32 1.0, %v7279
    %v7281 = vrcp.pop %v7269
    %v7282 = vmul.f32 1.0, %v7281
    %v7283 = vrcp.pop %v7270
    %v7284 = vmul.f32 1.0, %v7283
    %v7285 = vrcp.pop %v7271
    %v7286 = vmul.f32 1.0, %v7285
    %v7287 = vrcp.pop %v7272
    %v7288 = vmul.f32 1.0, %v7287
    %v7289 = vlaneseq
    %v7290 = vshrl.u32 %v7289, 7
    %v7291 = vsub.s32 1, %v7290
    %v7292 = vrot.slane %v7220, %v7291
    %v7293 = vmul.f32 %v7292, %v3566
    %v7294 = vmul.f32 %v7292, %v3568
    %v7295 = vmul.f32 %v7292, %v3570
    %v7296 = vmul.f32 %v7292, %v3572
    %v7297 = vmul.f32 %v7292, %v3574
    %v7298 = vmul.f32 %v7292, %v3576
    %v7299 = vmul.f32 %v7292, %v3578
    %v7300 = vmul.f32 %v7292, %v3580
    %7309 = vrot.lane.b32.xlu0 %v7293, 32
    %v7310 = vpop.permute.xlu0 %7309
    %7311 = vrot.lane.b32.xlu0 %v7294, 32
    %v7312 = vpop.permute.xlu0 %7311
    %7313 = vrot.lane.b32.xlu0 %v7295, 32
    %v7314 = vpop.permute.xlu0 %7313
    %7315 = vrot.lane.b32.xlu0 %v7296, 32
    %v7316 = vpop.permute.xlu0 %7315
    %7317 = vrot.lane.b32.xlu0 %v7297, 32
    %v7318 = vpop.permute.xlu0 %7317
    %7319 = vrot.lane.b32.xlu0 %v7298, 32
    %v7320 = vpop.permute.xlu0 %7319
    %7321 = vrot.lane.b32.xlu0 %v7299, 32
    %v7322 = vpop.permute.xlu0 %7321
    %7323 = vrot.lane.b32.xlu0 %v7300, 32
    %v7324 = vpop.permute.xlu0 %7323
    %v7333 = vadd.f32 %v7061, %v7310
    %v7334 = vadd.f32 %v7062, %v7312
    %v7335 = vadd.f32 %v7063, %v7314
    %v7336 = vadd.f32 %v7064, %v7316
    %v7337 = vadd.f32 %v7065, %v7318
    %v7338 = vadd.f32 %v7066, %v7320
    %v7339 = vadd.f32 %v7067, %v7322
    %v7340 = vadd.f32 %v7068, %v7324
    %v7341 = vxor.u32 %v7333, 2147483648
    %v7342 = vxor.u32 %v7334, 2147483648
    %v7343 = vxor.u32 %v7335, 2147483648
    %v7344 = vxor.u32 %v7336, 2147483648
    %v7345 = vxor.u32 %v7337, 2147483648
    %v7346 = vxor.u32 %v7338, 2147483648
    %v7347 = vxor.u32 %v7339, 2147483648
    %v7348 = vxor.u32 %v7340, 2147483648
    %v7349 = vmul.f32 %v7341, 1.442695
    %v7350 = vpow.pop %v7349
    %v7351 = vmul.f32 %v7342, 1.442695
    %v7352 = vpow.pop %v7351
    %v7353 = vmul.f32 %v7343, 1.442695
    %v7354 = vpow.pop %v7353
    %v7355 = vmul.f32 %v7344, 1.442695
    %v7356 = vpow.pop %v7355
    %v7357 = vmul.f32 %v7345, 1.442695
    %v7358 = vpow.pop %v7357
    %v7359 = vmul.f32 %v7346, 1.442695
    %v7360 = vpow.pop %v7359
    %v7361 = vmul.f32 %v7347, 1.442695
    %v7362 = vpow.pop %v7361
    %v7363 = vmul.f32 %v7348, 1.442695
    %v7364 = vpow.pop %v7363
    %v7365 = vadd.f32 %v7350, 1.0
    %v7366 = vadd.f32 %v7352, 1.0
    %v7367 = vadd.f32 %v7354, 1.0
    %v7368 = vadd.f32 %v7356, 1.0
    %v7369 = vadd.f32 %v7358, 1.0
    %v7370 = vadd.f32 %v7360, 1.0
    %v7371 = vadd.f32 %v7362, 1.0
    %v7372 = vadd.f32 %v7364, 1.0
    %v7373 = vrcp.pop %v7365
    %v7374 = vmul.f32 1.0, %v7373
    %v7375 = vrcp.pop %v7366
    %v7376 = vmul.f32 1.0, %v7375
    %v7377 = vrcp.pop %v7367
    %v7378 = vmul.f32 1.0, %v7377
    %v7379 = vrcp.pop %v7368
    %v7380 = vmul.f32 1.0, %v7379
    %v7381 = vrcp.pop %v7369
    %v7382 = vmul.f32 1.0, %v7381
    %v7383 = vrcp.pop %v7370
    %v7384 = vmul.f32 1.0, %v7383
    %v7385 = vrcp.pop %v7371
    %v7386 = vmul.f32 1.0, %v7385
    %v7387 = vrcp.pop %v7372
    %v7388 = vmul.f32 1.0, %v7387
    %v7389 = vtanh.pop %v7061
    %v7390 = vtanh.pop %v7062
    %v7391 = vtanh.pop %v7063
    %v7392 = vtanh.pop %v7064
    %v7393 = vtanh.pop %v7065
    %v7394 = vtanh.pop %v7066
    %v7395 = vtanh.pop %v7067
    %v7396 = vtanh.pop %v7068
    %v7397 = vmul.f32 %v7374, %v3545
    %v7398 = vmul.f32 %v7376, %v3546
    %v7399 = vmul.f32 %v7378, %v3547
    %v7400 = vmul.f32 %v7380, %v3548
    %v7401 = vmul.f32 %v7382, %v3549
    %v7402 = vmul.f32 %v7384, %v3550
    %v7403 = vmul.f32 %v7386, %v3551
    %v7404 = vmul.f32 %v7388, %v3552
    %7413 = vrot.lane.b32.xlu0 %v7389, 64
    %v7414 = vpop.permute.xlu0 %7413
    %7415 = vrot.lane.b32.xlu0 %v7390, 64
    %v7416 = vpop.permute.xlu0 %7415
    %7417 = vrot.lane.b32.xlu0 %v7391, 64
    %v7418 = vpop.permute.xlu0 %7417
    %7419 = vrot.lane.b32.xlu0 %v7392, 64
    %v7420 = vpop.permute.xlu0 %7419
    %7421 = vrot.lane.b32.xlu0 %v7393, 64
    %v7422 = vpop.permute.xlu0 %7421
    %7423 = vrot.lane.b32.xlu0 %v7394, 64
    %v7424 = vpop.permute.xlu0 %7423
    %7425 = vrot.lane.b32.xlu0 %v7395, 64
    %v7426 = vpop.permute.xlu0 %7425
    %7427 = vrot.lane.b32.xlu0 %v7396, 64
    %v7428 = vpop.permute.xlu0 %7427
    %v7437 = vmul.f32 %v7274, %v7414
    %v7438 = vmul.f32 %v7276, %v7416
    %v7439 = vmul.f32 %v7278, %v7418
    %v7440 = vmul.f32 %v7280, %v7420
    %v7441 = vmul.f32 %v7282, %v7422
    %v7442 = vmul.f32 %v7284, %v7424
    %v7443 = vmul.f32 %v7286, %v7426
    %v7444 = vmul.f32 %v7288, %v7428
    %7453 = vrot.lane.b32.xlu0 %v7437, 32
    %v7454 = vpop.permute.xlu0 %7453
    %7455 = vrot.lane.b32.xlu0 %v7438, 32
    %v7456 = vpop.permute.xlu0 %7455
    %7457 = vrot.lane.b32.xlu0 %v7439, 32
    %v7458 = vpop.permute.xlu0 %7457
    %7459 = vrot.lane.b32.xlu0 %v7440, 32
    %v7460 = vpop.permute.xlu0 %7459
    %7461 = vrot.lane.b32.xlu0 %v7441, 32
    %v7462 = vpop.permute.xlu0 %7461
    %7463 = vrot.lane.b32.xlu0 %v7442, 32
    %v7464 = vpop.permute.xlu0 %7463
    %7465 = vrot.lane.b32.xlu0 %v7443, 32
    %v7466 = vpop.permute.xlu0 %7465
    %7467 = vrot.lane.b32.xlu0 %v7444, 32
    %v7468 = vpop.permute.xlu0 %7467
    %v7477 = vadd.f32 %v7397, %v7454
    %v7478 = vadd.f32 %v7398, %v7456
    %v7479 = vadd.f32 %v7399, %v7458
    %v7480 = vadd.f32 %v7400, %v7460
    %v7481 = vadd.f32 %v7401, %v7462
    %v7482 = vadd.f32 %v7402, %v7464
    %v7483 = vadd.f32 %v7403, %v7466
    %v7484 = vadd.f32 %v7404, %v7468
    %v7485 = vlaneseq
    %v7486 = vshrl.u32 %v7485, 7
    %v7487 = vsub.s32 2, %v7486
    %v7488 = vrot.slane %v7220, %v7487
    %7497 = vrot.lane.b32.xlu0 %v7477, 96
    %v7498 = vpop.permute.xlu0 %7497
    %7499 = vrot.lane.b32.xlu0 %v7478, 96
    %v7500 = vpop.permute.xlu0 %7499
    %7501 = vrot.lane.b32.xlu0 %v7479, 96
    %v7502 = vpop.permute.xlu0 %7501
    %7503 = vrot.lane.b32.xlu0 %v7480, 96
    %v7504 = vpop.permute.xlu0 %7503
    %7505 = vrot.lane.b32.xlu0 %v7481, 96
    %v7506 = vpop.permute.xlu0 %7505
    %7507 = vrot.lane.b32.xlu0 %v7482, 96
    %v7508 = vpop.permute.xlu0 %7507
    %7509 = vrot.lane.b32.xlu0 %v7483, 96
    %v7510 = vpop.permute.xlu0 %7509
    %7511 = vrot.lane.b32.xlu0 %v7484, 96
    %v7512 = vpop.permute.xlu0 %7511
    %v7521 = vmul.f32 %v7488, %v7498
    %v7522 = vmul.f32 %v7488, %v7500
    %v7523 = vmul.f32 %v7488, %v7502
    %v7524 = vmul.f32 %v7488, %v7504
    %v7525 = vmul.f32 %v7488, %v7506
    %v7526 = vmul.f32 %v7488, %v7508
    %v7527 = vmul.f32 %v7488, %v7510
    %v7528 = vmul.f32 %v7488, %v7512
    %7537 = vrot.lane.b32.xlu0 %v7521, 96
    %v7538 = vpop.permute.xlu0 %7537
    %7539 = vrot.lane.b32.xlu0 %v7522, 96
    %v7540 = vpop.permute.xlu0 %7539
    %7541 = vrot.lane.b32.xlu0 %v7523, 96
    %v7542 = vpop.permute.xlu0 %7541
    %7543 = vrot.lane.b32.xlu0 %v7524, 96
    %v7544 = vpop.permute.xlu0 %7543
    %7545 = vrot.lane.b32.xlu0 %v7525, 96
    %v7546 = vpop.permute.xlu0 %7545
    %7547 = vrot.lane.b32.xlu0 %v7526, 96
    %v7548 = vpop.permute.xlu0 %7547
    %7549 = vrot.lane.b32.xlu0 %v7527, 96
    %v7550 = vpop.permute.xlu0 %7549
    %7551 = vrot.lane.b32.xlu0 %v7528, 96
    %v7552 = vpop.permute.xlu0 %7551
    %v7561 = vadd.f32 %v7061, %v7538
    %v7562 = vadd.f32 %v7062, %v7540
    %v7563 = vadd.f32 %v7063, %v7542
    %v7564 = vadd.f32 %v7064, %v7544
    %v7565 = vadd.f32 %v7065, %v7546
    %v7566 = vadd.f32 %v7066, %v7548
    %v7567 = vadd.f32 %v7067, %v7550
    %v7568 = vadd.f32 %v7068, %v7552
    %v7569 = vxor.u32 %v7561, 2147483648
    %v7570 = vxor.u32 %v7562, 2147483648
    %v7571 = vxor.u32 %v7563, 2147483648
    %v7572 = vxor.u32 %v7564, 2147483648
    %v7573 = vxor.u32 %v7565, 2147483648
    %v7574 = vxor.u32 %v7566, 2147483648
    %v7575 = vxor.u32 %v7567, 2147483648
    %v7576 = vxor.u32 %v7568, 2147483648
    %v7577 = vmul.f32 %v7569, 1.442695
    %v7578 = vpow.pop %v7577
    %v7579 = vmul.f32 %v7570, 1.442695
    %v7580 = vpow.pop %v7579
    %v7581 = vmul.f32 %v7571, 1.442695
    %v7582 = vpow.pop %v7581
    %v7583 = vmul.f32 %v7572, 1.442695
    %v7584 = vpow.pop %v7583
    %v7585 = vmul.f32 %v7573, 1.442695
    %v7586 = vpow.pop %v7585
    %v7587 = vmul.f32 %v7574, 1.442695
    %v7588 = vpow.pop %v7587
    %v7589 = vmul.f32 %v7575, 1.442695
    %v7590 = vpow.pop %v7589
    %v7591 = vmul.f32 %v7576, 1.442695
    %v7592 = vpow.pop %v7591
    %v7593 = vadd.f32 %v7578, 1.0
    %v7594 = vadd.f32 %v7580, 1.0
    %v7595 = vadd.f32 %v7582, 1.0
    %v7596 = vadd.f32 %v7584, 1.0
    %v7597 = vadd.f32 %v7586, 1.0
    %v7598 = vadd.f32 %v7588, 1.0
    %v7599 = vadd.f32 %v7590, 1.0
    %v7600 = vadd.f32 %v7592, 1.0
    %v7601 = vrcp.pop %v7593
    %v7602 = vmul.f32 1.0, %v7601
    %v7603 = vrcp.pop %v7594
    %v7604 = vmul.f32 1.0, %v7603
    %v7605 = vrcp.pop %v7595
    %v7606 = vmul.f32 1.0, %v7605
    %v7607 = vrcp.pop %v7596
    %v7608 = vmul.f32 1.0, %v7607
    %v7609 = vrcp.pop %v7597
    %v7610 = vmul.f32 1.0, %v7609
    %v7611 = vrcp.pop %v7598
    %v7612 = vmul.f32 1.0, %v7611
    %v7613 = vrcp.pop %v7599
    %v7614 = vmul.f32 1.0, %v7613
    %v7615 = vrcp.pop %v7600
    %v7616 = vmul.f32 1.0, %v7615
    %v7617 = vtanh.pop %v7477
    %v7618 = vtanh.pop %v7478
    %v7619 = vtanh.pop %v7479
    %v7620 = vtanh.pop %v7480
    %v7621 = vtanh.pop %v7481
    %v7622 = vtanh.pop %v7482
    %v7623 = vtanh.pop %v7483
    %v7624 = vtanh.pop %v7484
    %7633 = vrot.lane.b32.xlu0 %v7617, 64
    %v7634 = vpop.permute.xlu0 %7633
    %7635 = vrot.lane.b32.xlu0 %v7618, 64
    %v7636 = vpop.permute.xlu0 %7635
    %7637 = vrot.lane.b32.xlu0 %v7619, 64
    %v7638 = vpop.permute.xlu0 %7637
    %7639 = vrot.lane.b32.xlu0 %v7620, 64
    %v7640 = vpop.permute.xlu0 %7639
    %7641 = vrot.lane.b32.xlu0 %v7621, 64
    %v7642 = vpop.permute.xlu0 %7641
    %7643 = vrot.lane.b32.xlu0 %v7622, 64
    %v7644 = vpop.permute.xlu0 %7643
    %7645 = vrot.lane.b32.xlu0 %v7623, 64
    %v7646 = vpop.permute.xlu0 %7645
    %7647 = vrot.lane.b32.xlu0 %v7624, 64
    %v7648 = vpop.permute.xlu0 %7647
    %v7657 = vmul.f32 %v7602, %v7634
    %v7658 = vmul.f32 %v7604, %v7636
    %v7659 = vmul.f32 %v7606, %v7638
    %v7660 = vmul.f32 %v7608, %v7640
    %v7661 = vmul.f32 %v7610, %v7642
    %v7662 = vmul.f32 %v7612, %v7644
    %v7663 = vmul.f32 %v7614, %v7646
    %v7664 = vmul.f32 %v7616, %v7648
    %s7665 = scalar_lea.vmem %s15, 12
    %v7666 = vld [vmem:[%s7665] sm:$0x7]
    %v7667 = vlaneseq
    %v7668 = vshrl.u32 %v7667, 7
    %v7669 = vsub.s32 0, %v7668
    %v7670 = vrot.slane %v7666, %v7669
    %v7671 = vmul.f32 %v7670, %v3916
    %v7672 = vmul.f32 %v7670, %v3918
    %v7673 = vmul.f32 %v7670, %v3920
    %v7674 = vmul.f32 %v7670, %v3922
    %v7675 = vmul.f32 %v7670, %v3924
    %v7676 = vmul.f32 %v7670, %v3926
    %v7677 = vadd.f32 %v7213, %v7671
    %v7678 = vadd.f32 %v7214, %v7672
    %v7679 = vadd.f32 %v7215, %v7673
    %v7680 = vadd.f32 %v7216, %v7674
    %v7681 = vadd.f32 %v7217, %v7675
    %v7682 = vadd.f32 %v7218, %v7676
    %v7683 = vxor.u32 %v7677, 2147483648
    %v7684 = vxor.u32 %v7678, 2147483648
    %v7685 = vxor.u32 %v7679, 2147483648
    %v7686 = vxor.u32 %v7680, 2147483648
    %v7687 = vxor.u32 %v7681, 2147483648
    %v7688 = vxor.u32 %v7682, 2147483648
    %v7689 = vmul.f32 %v7683, 1.442695
    %v7690 = vpow.pop %v7689
    %v7691 = vmul.f32 %v7684, 1.442695
    %v7692 = vpow.pop %v7691
    %v7693 = vmul.f32 %v7685, 1.442695
    %v7694 = vpow.pop %v7693
    %v7695 = vmul.f32 %v7686, 1.442695
    %v7696 = vpow.pop %v7695
    %v7697 = vmul.f32 %v7687, 1.442695
    %v7698 = vpow.pop %v7697
    %v7699 = vmul.f32 %v7688, 1.442695
    %v7700 = vpow.pop %v7699
    %v7701 = vadd.f32 %v7690, 1.0
    %v7702 = vadd.f32 %v7692, 1.0
    %v7703 = vadd.f32 %v7694, 1.0
    %v7704 = vadd.f32 %v7696, 1.0
    %v7705 = vadd.f32 %v7698, 1.0
    %v7706 = vadd.f32 %v7700, 1.0
    %v7707 = vrcp.pop %v7701
    %v7708 = vmul.f32 1.0, %v7707
    %v7709 = vrcp.pop %v7702
    %v7710 = vmul.f32 1.0, %v7709
    %v7711 = vrcp.pop %v7703
    %v7712 = vmul.f32 1.0, %v7711
    %v7713 = vrcp.pop %v7704
    %v7714 = vmul.f32 1.0, %v7713
    %v7715 = vrcp.pop %v7705
    %v7716 = vmul.f32 1.0, %v7715
    %v7717 = vrcp.pop %v7706
    %v7718 = vmul.f32 1.0, %v7717
    %v7719 = vlaneseq
    %v7720 = vshrl.u32 %v7719, 7
    %v7721 = vsub.s32 1, %v7720
    %v7722 = vrot.slane %v7666, %v7721
    %v7723 = vmul.f32 %v7722, %v3916
    %v7724 = vmul.f32 %v7722, %v3918
    %v7725 = vmul.f32 %v7722, %v3920
    %v7726 = vmul.f32 %v7722, %v3922
    %v7727 = vmul.f32 %v7722, %v3924
    %v7728 = vmul.f32 %v7722, %v3926
    %7735 = vrot.lane.b32.xlu0 %v7723, 32
    %v7736 = vpop.permute.xlu0 %7735
    %7737 = vrot.lane.b32.xlu0 %v7724, 32
    %v7738 = vpop.permute.xlu0 %7737
    %7739 = vrot.lane.b32.xlu0 %v7725, 32
    %v7740 = vpop.permute.xlu0 %7739
    %7741 = vrot.lane.b32.xlu0 %v7726, 32
    %v7742 = vpop.permute.xlu0 %7741
    %7743 = vrot.lane.b32.xlu0 %v7727, 32
    %v7744 = vpop.permute.xlu0 %7743
    %7745 = vrot.lane.b32.xlu0 %v7728, 32
    %v7746 = vpop.permute.xlu0 %7745
    %v7753 = vadd.f32 %v7213, %v7736
    %v7754 = vadd.f32 %v7214, %v7738
    %v7755 = vadd.f32 %v7215, %v7740
    %v7756 = vadd.f32 %v7216, %v7742
    %v7757 = vadd.f32 %v7217, %v7744
    %v7758 = vadd.f32 %v7218, %v7746
    %v7759 = vxor.u32 %v7753, 2147483648
    %v7760 = vxor.u32 %v7754, 2147483648
    %v7761 = vxor.u32 %v7755, 2147483648
    %v7762 = vxor.u32 %v7756, 2147483648
    %v7763 = vxor.u32 %v7757, 2147483648
    %v7764 = vxor.u32 %v7758, 2147483648
    %v7765 = vmul.f32 %v7759, 1.442695
    %v7766 = vpow.pop %v7765
    %v7767 = vmul.f32 %v7760, 1.442695
    %v7768 = vpow.pop %v7767
    %v7769 = vmul.f32 %v7761, 1.442695
    %v7770 = vpow.pop %v7769
    %v7771 = vmul.f32 %v7762, 1.442695
    %v7772 = vpow.pop %v7771
    %v7773 = vmul.f32 %v7763, 1.442695
    %v7774 = vpow.pop %v7773
    %v7775 = vmul.f32 %v7764, 1.442695
    %v7776 = vpow.pop %v7775
    %v7777 = vadd.f32 %v7766, 1.0
    %v7778 = vadd.f32 %v7768, 1.0
    %v7779 = vadd.f32 %v7770, 1.0
    %v7780 = vadd.f32 %v7772, 1.0
    %v7781 = vadd.f32 %v7774, 1.0
    %v7782 = vadd.f32 %v7776, 1.0
    %v7783 = vrcp.pop %v7777
    %v7784 = vmul.f32 1.0, %v7783
    %v7785 = vrcp.pop %v7778
    %v7786 = vmul.f32 1.0, %v7785
    %v7787 = vrcp.pop %v7779
    %v7788 = vmul.f32 1.0, %v7787
    %v7789 = vrcp.pop %v7780
    %v7790 = vmul.f32 1.0, %v7789
    %v7791 = vrcp.pop %v7781
    %v7792 = vmul.f32 1.0, %v7791
    %v7793 = vrcp.pop %v7782
    %v7794 = vmul.f32 1.0, %v7793
    %v7795 = vtanh.pop %v7213
    %v7796 = vtanh.pop %v7214
    %v7797 = vtanh.pop %v7215
    %v7798 = vtanh.pop %v7216
    %v7799 = vtanh.pop %v7217
    %v7800 = vtanh.pop %v7218
    %v7801 = vmul.f32 %v7784, %v3899
    %v7802 = vmul.f32 %v7786, %v3900
    %v7803 = vmul.f32 %v7788, %v3901
    %v7804 = vmul.f32 %v7790, %v3902
    %v7805 = vmul.f32 %v7792, %v3903
    %v7806 = vmul.f32 %v7794, %v3904
    %7813 = vrot.lane.b32.xlu0 %v7795, 64
    %v7814 = vpop.permute.xlu0 %7813
    %7815 = vrot.lane.b32.xlu0 %v7796, 64
    %v7816 = vpop.permute.xlu0 %7815
    %7817 = vrot.lane.b32.xlu0 %v7797, 64
    %v7818 = vpop.permute.xlu0 %7817
    %7819 = vrot.lane.b32.xlu0 %v7798, 64
    %v7820 = vpop.permute.xlu0 %7819
    %7821 = vrot.lane.b32.xlu0 %v7799, 64
    %v7822 = vpop.permute.xlu0 %7821
    %7823 = vrot.lane.b32.xlu0 %v7800, 64
    %v7824 = vpop.permute.xlu0 %7823
    %v7831 = vmul.f32 %v7708, %v7814
    %v7832 = vmul.f32 %v7710, %v7816
    %v7833 = vmul.f32 %v7712, %v7818
    %v7834 = vmul.f32 %v7714, %v7820
    %v7835 = vmul.f32 %v7716, %v7822
    %v7836 = vmul.f32 %v7718, %v7824
    %7843 = vrot.lane.b32.xlu0 %v7831, 32
    %v7844 = vpop.permute.xlu0 %7843
    %7845 = vrot.lane.b32.xlu0 %v7832, 32
    %v7846 = vpop.permute.xlu0 %7845
    %7847 = vrot.lane.b32.xlu0 %v7833, 32
    %v7848 = vpop.permute.xlu0 %7847
    %7849 = vrot.lane.b32.xlu0 %v7834, 32
    %v7850 = vpop.permute.xlu0 %7849
    %7851 = vrot.lane.b32.xlu0 %v7835, 32
    %v7852 = vpop.permute.xlu0 %7851
    %7853 = vrot.lane.b32.xlu0 %v7836, 32
    %v7854 = vpop.permute.xlu0 %7853
    %v7861 = vadd.f32 %v7801, %v7844
    %v7862 = vadd.f32 %v7802, %v7846
    %v7863 = vadd.f32 %v7803, %v7848
    %v7864 = vadd.f32 %v7804, %v7850
    %v7865 = vadd.f32 %v7805, %v7852
    %v7866 = vadd.f32 %v7806, %v7854
    %v7867 = vlaneseq
    %v7868 = vshrl.u32 %v7867, 7
    %v7869 = vsub.s32 2, %v7868
    %v7870 = vrot.slane %v7666, %v7869
    %7877 = vrot.lane.b32.xlu0 %v7861, 96
    %v7878 = vpop.permute.xlu0 %7877
    %7879 = vrot.lane.b32.xlu0 %v7862, 96
    %v7880 = vpop.permute.xlu0 %7879
    %7881 = vrot.lane.b32.xlu0 %v7863, 96
    %v7882 = vpop.permute.xlu0 %7881
    %7883 = vrot.lane.b32.xlu0 %v7864, 96
    %v7884 = vpop.permute.xlu0 %7883
    %7885 = vrot.lane.b32.xlu0 %v7865, 96
    %v7886 = vpop.permute.xlu0 %7885
    %7887 = vrot.lane.b32.xlu0 %v7866, 96
    %v7888 = vpop.permute.xlu0 %7887
    %v7895 = vmul.f32 %v7870, %v7878
    %v7896 = vmul.f32 %v7870, %v7880
    %v7897 = vmul.f32 %v7870, %v7882
    %v7898 = vmul.f32 %v7870, %v7884
    %v7899 = vmul.f32 %v7870, %v7886
    %v7900 = vmul.f32 %v7870, %v7888
    %7907 = vrot.lane.b32.xlu0 %v7895, 96
    %v7908 = vpop.permute.xlu0 %7907
    %7909 = vrot.lane.b32.xlu0 %v7896, 96
    %v7910 = vpop.permute.xlu0 %7909
    %7911 = vrot.lane.b32.xlu0 %v7897, 96
    %v7912 = vpop.permute.xlu0 %7911
    %7913 = vrot.lane.b32.xlu0 %v7898, 96
    %v7914 = vpop.permute.xlu0 %7913
    %7915 = vrot.lane.b32.xlu0 %v7899, 96
    %v7916 = vpop.permute.xlu0 %7915
    %7917 = vrot.lane.b32.xlu0 %v7900, 96
    %v7918 = vpop.permute.xlu0 %7917
    %v7925 = vadd.f32 %v7213, %v7908
    %v7926 = vadd.f32 %v7214, %v7910
    %v7927 = vadd.f32 %v7215, %v7912
    %v7928 = vadd.f32 %v7216, %v7914
    %v7929 = vadd.f32 %v7217, %v7916
    %v7930 = vadd.f32 %v7218, %v7918
    %v7931 = vxor.u32 %v7925, 2147483648
    %v7932 = vxor.u32 %v7926, 2147483648
    %v7933 = vxor.u32 %v7927, 2147483648
    %v7934 = vxor.u32 %v7928, 2147483648
    %v7935 = vxor.u32 %v7929, 2147483648
    %v7936 = vxor.u32 %v7930, 2147483648
    %v7937 = vmul.f32 %v7931, 1.442695
    %v7938 = vpow.pop %v7937
    %v7939 = vmul.f32 %v7932, 1.442695
    %v7940 = vpow.pop %v7939
    %v7941 = vmul.f32 %v7933, 1.442695
    %v7942 = vpow.pop %v7941
    %v7943 = vmul.f32 %v7934, 1.442695
    %v7944 = vpow.pop %v7943
    %v7945 = vmul.f32 %v7935, 1.442695
    %v7946 = vpow.pop %v7945
    %v7947 = vmul.f32 %v7936, 1.442695
    %v7948 = vpow.pop %v7947
    %v7949 = vadd.f32 %v7938, 1.0
    %v7950 = vadd.f32 %v7940, 1.0
    %v7951 = vadd.f32 %v7942, 1.0
    %v7952 = vadd.f32 %v7944, 1.0
    %v7953 = vadd.f32 %v7946, 1.0
    %v7954 = vadd.f32 %v7948, 1.0
    %v7955 = vrcp.pop %v7949
    %v7956 = vmul.f32 1.0, %v7955
    %v7957 = vrcp.pop %v7950
    %v7958 = vmul.f32 1.0, %v7957
    %v7959 = vrcp.pop %v7951
    %v7960 = vmul.f32 1.0, %v7959
    %v7961 = vrcp.pop %v7952
    %v7962 = vmul.f32 1.0, %v7961
    %v7963 = vrcp.pop %v7953
    %v7964 = vmul.f32 1.0, %v7963
    %v7965 = vrcp.pop %v7954
    %v7966 = vmul.f32 1.0, %v7965
    %v7967 = vtanh.pop %v7861
    %v7968 = vtanh.pop %v7862
    %v7969 = vtanh.pop %v7863
    %v7970 = vtanh.pop %v7864
    %v7971 = vtanh.pop %v7865
    %v7972 = vtanh.pop %v7866
    %7979 = vrot.lane.b32.xlu0 %v7967, 64
    %v7980 = vpop.permute.xlu0 %7979
    %7981 = vrot.lane.b32.xlu0 %v7968, 64
    %v7982 = vpop.permute.xlu0 %7981
    %7983 = vrot.lane.b32.xlu0 %v7969, 64
    %v7984 = vpop.permute.xlu0 %7983
    %7985 = vrot.lane.b32.xlu0 %v7970, 64
    %v7986 = vpop.permute.xlu0 %7985
    %7987 = vrot.lane.b32.xlu0 %v7971, 64
    %v7988 = vpop.permute.xlu0 %7987
    %7989 = vrot.lane.b32.xlu0 %v7972, 64
    %v7990 = vpop.permute.xlu0 %7989
    %v7997 = vmul.f32 %v7956, %v7980
    %v7998 = vmul.f32 %v7958, %v7982
    %v7999 = vmul.f32 %v7960, %v7984
    %v8000 = vmul.f32 %v7962, %v7986
    %v8001 = vmul.f32 %v7964, %v7988
    %v8002 = vmul.f32 %v7966, %v7990
    %v8003 = vld [vmem:[%s18] sm:$0xff]
    %v8004 = vld [vmem:[%s18 + $0x8] sm:$0xff]
    %v8005 = vld [vmem:[%s18 + $0x10] sm:$0xff]
    %v8006 = vld [vmem:[%s18 + $0x18] sm:$0xff]
    %v8007 = vld [vmem:[%s19] sm:$0x1]
    %v8009 = vlaneseq
    %v8010 = vshrl.u32 %v8009, 7
    %v8011 = vsub.s32 0, %v8010
    %v8012 = vrot.slane %v8007, %v8011
    %8022 = vrot.lane.b32.xlu0 %v7657, 32
    %v8023 = vpop.permute.xlu0 %8022
    %8024 = vrot.lane.b32.xlu0 %v7658, 32
    %v8025 = vpop.permute.xlu0 %8024
    %8026 = vrot.lane.b32.xlu0 %v7659, 32
    %v8027 = vpop.permute.xlu0 %8026
    %8028 = vrot.lane.b32.xlu0 %v7660, 32
    %v8029 = vpop.permute.xlu0 %8028
    %8030 = vrot.lane.b32.xlu0 %v7661, 32
    %v8031 = vpop.permute.xlu0 %8030
    %8032 = vrot.lane.b32.xlu0 %v7662, 32
    %v8033 = vpop.permute.xlu0 %8032
    %8034 = vrot.lane.b32.xlu0 %v7663, 32
    %v8035 = vpop.permute.xlu0 %8034
    %8036 = vrot.lane.b32.xlu0 %v7664, 32
    %v8037 = vpop.permute.xlu0 %8036
    %v8038 = vsel %vm196, %v8023, 0
    %v8040 = vsel %vm196, %v8025, 0
    %v8042 = vsel %vm196, %v8027, 0
    %v8044 = vsel %vm196, %v8029, 0
    %v8046 = vsel %vm196, %v8031, 0
    %v8048 = vsel %vm196, %v8033, 0
    %v8050 = vsel %vm196, %v8035, 0
    %v8052 = vsel %vm196, %v8037, 0
    %8054 = vmatprep.subr.mxu0 0.0
    %8055 = vmatpush1.msra.mxu0 %v8003
    %8056 = vmatprep.subr.mxu0 0.0
    %8057 = vmatpush1.msra.mxu0 %v8004
    %8058 = vmatprep.subr.mxu0 0.0
    %8059 = vmatpush1.msra.mxu0 %v8005
    %8060 = vmatprep.subr.mxu0 0.0
    %8061 = vmatpush1.msra.mxu0 %v8006
    %8062 = vmatprep.subr.mxu0 0.0
    %8063 = vmatpush1.msra.mxu0 0.0
    %8064 = vmatprep.subr.mxu0 0.0
    %8065 = vmatpush1.msra.mxu0 0.0
    %8066 = vmatprep.subr.mxu0 0.0
    %8067 = vmatpush1.msra.mxu0 0.0
    %8068 = vmatprep.subr.mxu0 0.0
    %8069 = vmatpush1.msra.mxu0 0.0
    %8070 = vmatprep.subr.mxu0 0.0
    %8071 = vmatpush1.msra.mxu0 0.0
    %8072 = vmatprep.subr.mxu0 0.0
    %8073 = vmatpush1.msra.mxu0 0.0
    %8074 = vmatprep.subr.mxu0 0.0
    %8075 = vmatpush1.msra.mxu0 0.0
    %8076 = vmatprep.subr.mxu0 0.0
    %8077 = vmatpush1.msra.mxu0 0.0
    %8078 = vmatprep.subr.mxu0 0.0
    %8079 = vmatpush1.msra.mxu0 0.0
    %8080 = vmatprep.subr.mxu0 0.0
    %8081 = vmatpush1.msra.mxu0 0.0
    %8082 = vmatprep.subr.mxu0 0.0
    %8083 = vmatpush1.msra.mxu0 0.0
    %8084 = vmatprep.subr.mxu0 0.0
    %8085 = vmatpush1.msra.mxu0 0.0
    %8086 = vmatprep.subr.mxu0 0.0
    %8087 = vmatpush1.msra.mxu0 0.0
    %8088 = vmatprep.subr.mxu0 0.0
    %8089 = vmatpush1.msra.mxu0 0.0
    %8090 = vmatprep.subr.mxu0 0.0
    %8091 = vmatpush1.msra.mxu0 0.0
    %8092 = vmatprep.subr.mxu0 0.0
    %8093 = vmatpush1.msra.mxu0 0.0
    %8094 = vmatprep.subr.mxu0 0.0
    %8095 = vmatpush1.msra.mxu0 0.0
    %8096 = vmatprep.subr.mxu0 0.0
    %8097 = vmatpush1.msra.mxu0 0.0
    %8098 = vmatprep.subr.mxu0 0.0
    %8099 = vmatpush1.msra.mxu0 0.0
    %8100 = vmatprep.subr.mxu0 0.0
    %8101 = vmatpush1.msra.mxu0 0.0
    %8102 = vmatprep.subr.mxu0 0.0
    %8103 = vmatpush1.msra.mxu0 0.0
    %8104 = vmatprep.subr.mxu0 0.0
    %8105 = vmatpush1.msra.mxu0 0.0
    %8106 = vmatprep.subr.mxu0 0.0
    %8107 = vmatpush1.msra.mxu0 0.0
    %8108 = vmatprep.subr.mxu0 0.0
    %8109 = vmatpush1.msra.mxu0 0.0
    %8110 = vmatprep.subr.mxu0 0.0
    %8111 = vmatpush1.msra.mxu0 0.0
    %8112 = vmatprep.subr.mxu0 0.0
    %8113 = vmatpush1.msra.mxu0 0.0
    %8114 = vmatprep.subr.mxu0 0.0
    %8115 = vmatpush1.msra.mxu0 0.0
    %8116 = vmatprep.subr.mxu0 0.0
    %8117 = vmatpush1.msra.mxu0 0.0
    %8118 = vmatprep.mubr.f32.mxu0 0.0
    %8119 = vmatmul.mubr.f32.gmra.mrb[0].mxu0 %v8038
    %v8120 = vpop.f32.mrb[0].mxu0
    %v8121 = vadd.f32 %v8012, %v8120
    %v8122 = vpop.f32.mrb[0].mxu0
    %8123 = vmatprep.mubr.f32.mxu0 0.0
    %8124 = vmatmul.mubr.f32.gmra.mrb[0].mxu0 %v8040
    %v8125 = vpop.f32.mrb[0].mxu0
    %v8126 = vadd.f32 %v8012, %v8125
    %v8127 = vpop.f32.mrb[0].mxu0
    %8128 = vmatprep.mubr.f32.mxu0 0.0
    %8129 = vmatmul.mubr.f32.gmra.mrb[0].mxu0 %v8042
    %v8130 = vpop.f32.mrb[0].mxu0
    %v8131 = vadd.f32 %v8012, %v8130
    %v8132 = vpop.f32.mrb[0].mxu0
    %8133 = vmatprep.mubr.f32.mxu0 0.0
    %8134 = vmatmul.mubr.f32.gmra.mrb[0].mxu0 %v8044
    %v8135 = vpop.f32.mrb[0].mxu0
    %v8136 = vadd.f32 %v8012, %v8135
    %v8137 = vpop.f32.mrb[0].mxu0
    %8138 = vmatprep.mubr.f32.mxu0 0.0
    %8139 = vmatmul.mubr.f32.gmra.mrb[0].mxu0 %v8046
    %v8140 = vpop.f32.mrb[0].mxu0
    %v8141 = vadd.f32 %v8012, %v8140
    %v8142 = vpop.f32.mrb[0].mxu0
    %8143 = vmatprep.mubr.f32.mxu0 0.0
    %8144 = vmatmul.mubr.f32.gmra.mrb[0].mxu0 %v8048
    %v8145 = vpop.f32.mrb[0].mxu0
    %v8146 = vadd.f32 %v8012, %v8145
    %v8147 = vpop.f32.mrb[0].mxu0
    %8148 = vmatprep.mubr.f32.mxu0 0.0
    %8149 = vmatmul.mubr.f32.gmra.mrb[0].mxu0 %v8050
    %v8150 = vpop.f32.mrb[0].mxu0
    %v8151 = vadd.f32 %v8012, %v8150
    %v8152 = vpop.f32.mrb[0].mxu0
    %8153 = vmatprep.mubr.f32.mxu0 0.0
    %8154 = vmatmul.mubr.f32.gmra.mrb[0].mxu0 %v8052
    %v8155 = vpop.f32.mrb[0].mxu0
    %v8156 = vadd.f32 %v8012, %v8155
    %v8157 = vpop.f32.mrb[0].mxu0
    %8158 = vdwg.mxu0
    %v8159 = vtanh.pop %v8121
    %v8160 = vtanh.pop %v8126
    %v8161 = vtanh.pop %v8131
    %v8162 = vtanh.pop %v8136
    %v8163 = vtanh.pop %v8141
    %v8164 = vtanh.pop %v8146
    %v8165 = vtanh.pop %v8151
    %v8166 = vtanh.pop %v8156
    %vm8167 = vcmask 15360
    %8168 = vst.msk [vmem:[%s22] sm:$0xff] %vm8167, %v8159
    %8169 = vst.msk [vmem:[%s22 + $0x8] sm:$0xff] %vm8167, %v8160
    %8170 = vst.msk [vmem:[%s22 + $0x10] sm:$0xff] %vm8167, %v8161
    %8171 = vst.msk [vmem:[%s22 + $0x18] sm:$0xff] %vm8167, %v8162
    %8172 = vst.msk [vmem:[%s22 + $0x20] sm:$0xff] %vm8167, %v8163
    %8173 = vst.msk [vmem:[%s22 + $0x28] sm:$0xff] %vm8167, %v8164
    %8174 = vst.msk [vmem:[%s22 + $0x30] sm:$0xff] %vm8167, %v8165
    %8175 = vst.msk [vmem:[%s22 + $0x38] sm:$0xff] %vm8167, %v8166
    %v8176 = vld [vmem:[%s20] sm:$0xff]
    %v8177 = vld [vmem:[%s20 + $0x8] sm:$0xff]
    %v8178 = vld [vmem:[%s20 + $0x10] sm:$0xff]
    %v8179 = vld [vmem:[%s20 + $0x18] sm:$0xff]
    %v8180 = vld [vmem:[%s21] sm:$0x1]
    %v8182 = vlaneseq
    %v8183 = vshrl.u32 %v8182, 7
    %v8184 = vsub.s32 0, %v8183
    %v8185 = vrot.slane %v8180, %v8184
    %8193 = vrot.lane.b32.xlu0 %v7997, 32
    %v8194 = vpop.permute.xlu0 %8193
    %8195 = vrot.lane.b32.xlu0 %v7998, 32
    %v8196 = vpop.permute.xlu0 %8195
    %8197 = vrot.lane.b32.xlu0 %v7999, 32
    %v8198 = vpop.permute.xlu0 %8197
    %8199 = vrot.lane.b32.xlu0 %v8000, 32
    %v8200 = vpop.permute.xlu0 %8199
    %8201 = vrot.lane.b32.xlu0 %v8001, 32
    %v8202 = vpop.permute.xlu0 %8201
    %8203 = vrot.lane.b32.xlu0 %v8002, 32
    %v8204 = vpop.permute.xlu0 %8203
    %v8205 = vsel %vm196, %v8194, 0
    %v8207 = vsel %vm196, %v8196, 0
    %v8209 = vsel %vm196, %v8198, 0
    %v8211 = vsel %vm196, %v8200, 0
    %v8213 = vsel %vm196, %v8202, 0
    %v8215 = vsel %vm196, %v8204, 0
    %8217 = vmatprep.subr.mxu0 0.0
    %8218 = vmatpush1.msra.mxu0 %v8176
    %8219 = vmatprep.subr.mxu0 0.0
    %8220 = vmatpush1.msra.mxu0 %v8177
    %8221 = vmatprep.subr.mxu0 0.0
    %8222 = vmatpush1.msra.mxu0 %v8178
    %8223 = vmatprep.subr.mxu0 0.0
    %8224 = vmatpush1.msra.mxu0 %v8179
    %8225 = vmatprep.subr.mxu0 0.0
    %8226 = vmatpush1.msra.mxu0 0.0
    %8227 = vmatprep.subr.mxu0 0.0
    %8228 = vmatpush1.msra.mxu0 0.0
    %8229 = vmatprep.subr.mxu0 0.0
    %8230 = vmatpush1.msra.mxu0 0.0
    %8231 = vmatprep.subr.mxu0 0.0
    %8232 = vmatpush1.msra.mxu0 0.0
    %8233 = vmatprep.subr.mxu0 0.0
    %8234 = vmatpush1.msra.mxu0 0.0
    %8235 = vmatprep.subr.mxu0 0.0
    %8236 = vmatpush1.msra.mxu0 0.0
    %8237 = vmatprep.subr.mxu0 0.0
    %8238 = vmatpush1.msra.mxu0 0.0
    %8239 = vmatprep.subr.mxu0 0.0
    %8240 = vmatpush1.msra.mxu0 0.0
    %8241 = vmatprep.subr.mxu0 0.0
    %8242 = vmatpush1.msra.mxu0 0.0
    %8243 = vmatprep.subr.mxu0 0.0
    %8244 = vmatpush1.msra.mxu0 0.0
    %8245 = vmatprep.subr.mxu0 0.0
    %8246 = vmatpush1.msra.mxu0 0.0
    %8247 = vmatprep.subr.mxu0 0.0
    %8248 = vmatpush1.msra.mxu0 0.0
    %8249 = vmatprep.subr.mxu0 0.0
    %8250 = vmatpush1.msra.mxu0 0.0
    %8251 = vmatprep.subr.mxu0 0.0
    %8252 = vmatpush1.msra.mxu0 0.0
    %8253 = vmatprep.subr.mxu0 0.0
    %8254 = vmatpush1.msra.mxu0 0.0
    %8255 = vmatprep.subr.mxu0 0.0
    %8256 = vmatpush1.msra.mxu0 0.0
    %8257 = vmatprep.subr.mxu0 0.0
    %8258 = vmatpush1.msra.mxu0 0.0
    %8259 = vmatprep.subr.mxu0 0.0
    %8260 = vmatpush1.msra.mxu0 0.0
    %8261 = vmatprep.subr.mxu0 0.0
    %8262 = vmatpush1.msra.mxu0 0.0
    %8263 = vmatprep.subr.mxu0 0.0
    %8264 = vmatpush1.msra.mxu0 0.0
    %8265 = vmatprep.subr.mxu0 0.0
    %8266 = vmatpush1.msra.mxu0 0.0
    %8267 = vmatprep.subr.mxu0 0.0
    %8268 = vmatpush1.msra.mxu0 0.0
    %8269 = vmatprep.subr.mxu0 0.0
    %8270 = vmatpush1.msra.mxu0 0.0
    %8271 = vmatprep.subr.mxu0 0.0
    %8272 = vmatpush1.msra.mxu0 0.0
    %8273 = vmatprep.subr.mxu0 0.0
    %8274 = vmatpush1.msra.mxu0 0.0
    %8275 = vmatprep.subr.mxu0 0.0
    %8276 = vmatpush1.msra.mxu0 0.0
    %8277 = vmatprep.subr.mxu0 0.0
    %8278 = vmatpush1.msra.mxu0 0.0
    %8279 = vmatprep.subr.mxu0 0.0
    %8280 = vmatpush1.msra.mxu0 0.0
    %8281 = vmatprep.mubr.f32.mxu0 0.0
    %8282 = vmatmul.mubr.f32.gmra.mrb[0].mxu0 %v8205
    %v8283 = vpop.f32.mrb[0].mxu0
    %v8284 = vadd.f32 %v8185, %v8283
    %v8285 = vpop.f32.mrb[0].mxu0
    %8286 = vmatprep.mubr.f32.mxu0 0.0
    %8287 = vmatmul.mubr.f32.gmra.mrb[0].mxu0 %v8207
    %v8288 = vpop.f32.mrb[0].mxu0
    %v8289 = vadd.f32 %v8185, %v8288
    %v8290 = vpop.f32.mrb[0].mxu0
    %8291 = vmatprep.mubr.f32.mxu0 0.0
    %8292 = vmatmul.mubr.f32.gmra.mrb[0].mxu0 %v8209
    %v8293 = vpop.f32.mrb[0].mxu0
    %v8294 = vadd.f32 %v8185, %v8293
    %v8295 = vpop.f32.mrb[0].mxu0
    %8296 = vmatprep.mubr.f32.mxu0 0.0
    %8297 = vmatmul.mubr.f32.gmra.mrb[0].mxu0 %v8211
    %v8298 = vpop.f32.mrb[0].mxu0
    %v8299 = vadd.f32 %v8185, %v8298
    %v8300 = vpop.f32.mrb[0].mxu0
    %8301 = vmatprep.mubr.f32.mxu0 0.0
    %8302 = vmatmul.mubr.f32.gmra.mrb[0].mxu0 %v8213
    %v8303 = vpop.f32.mrb[0].mxu0
    %v8304 = vadd.f32 %v8185, %v8303
    %v8305 = vpop.f32.mrb[0].mxu0
    %8306 = vmatprep.mubr.f32.mxu0 0.0
    %8307 = vmatmul.mubr.f32.gmra.mrb[0].mxu0 %v8215
    %v8308 = vpop.f32.mrb[0].mxu0
    %v8309 = vadd.f32 %v8185, %v8308
    %v8310 = vpop.f32.mrb[0].mxu0
    %8311 = vdwg.mxu0
    %v8312 = vtanh.pop %v8284
    %v8313 = vtanh.pop %v8289
    %v8314 = vtanh.pop %v8294
    %v8315 = vtanh.pop %v8299
    %v8316 = vtanh.pop %v8304
    %v8317 = vtanh.pop %v8309
    %v8318 = vmax.f32 %v8284, 0.0
    %v8319 = vmax.f32 %v8289, 0.0
    %v8320 = vmax.f32 %v8294, 0.0
    %v8321 = vmax.f32 %v8299, 0.0
    %v8322 = vmax.f32 %v8304, 0.0
    %v8323 = vmax.f32 %v8309, 0.0
    %vm8324 = vcmask 7168
    %v8325 = vsel %vm8324, %v8312, %v8318
    %v8326 = vsel %vm8324, %v8313, %v8319
    %v8327 = vsel %vm8324, %v8314, %v8320
    %v8328 = vsel %vm8324, %v8315, %v8321
    %v8329 = vsel %vm8324, %v8316, %v8322
    %v8330 = vsel %vm8324, %v8317, %v8323
    %8331 = vst.msk [vmem:[%s23] sm:$0xff] %vm8167, %v8325
    %8332 = vst.msk [vmem:[%s23 + $0x8] sm:$0xff] %vm8167, %v8326
    %8333 = vst.msk [vmem:[%s23 + $0x10] sm:$0xff] %vm8167, %v8327
    %8334 = vst.msk [vmem:[%s23 + $0x18] sm:$0xff] %vm8167, %v8328
    %8335 = vst.msk [vmem:[%s23 + $0x20] sm:$0xff] %vm8167, %v8329
    %8336 = vst.msk [vmem:[%s23 + $0x28] sm:$0xff] %vm8167, %v8330
    %v8337 = vrcp.pop 20.0
    %v8338 = vmul.f32 %v8312, %v8337
    %v8339 = vmul.f32 %v8313, %v8337
    %v8340 = vmul.f32 %v8314, %v8337
    %v8341 = vmul.f32 %v8315, %v8337
    %v8342 = vmul.f32 %v8316, %v8337
    %v8343 = vmul.f32 %v8317, %v8337
    %v8344 = vld [vmem:[%s1] sm:$0xff]
    %v8345 = vld [vmem:[%s1 + $0x8] sm:$0xff]
    %v8346 = vld [vmem:[%s1 + $0x10] sm:$0xff]
    %v8347 = vld [vmem:[%s1 + $0x18] sm:$0xff]
    %v8348 = vld [vmem:[%s1 + $0x20] sm:$0xff]
    %v8349 = vld [vmem:[%s1 + $0x28] sm:$0xff]
    %8356 = vrot.lane.b32.xlu0 %v8344, 125
    %v8357 = vpop.permute.xlu0 %8356
    %8358 = vrot.lane.b32.xlu0 %v8345, 125
    %v8359 = vpop.permute.xlu0 %8358
    %8360 = vrot.lane.b32.xlu0 %v8346, 125
    %v8361 = vpop.permute.xlu0 %8360
    %8362 = vrot.lane.b32.xlu0 %v8347, 125
    %v8363 = vpop.permute.xlu0 %8362
    %8364 = vrot.lane.b32.xlu0 %v8348, 125
    %v8365 = vpop.permute.xlu0 %8364
    %8366 = vrot.lane.b32.xlu0 %v8349, 125
    %v8367 = vpop.permute.xlu0 %8366
    %v8374 = vadd.f32 %v8338, %v8357
    %v8375 = vadd.f32 %v8339, %v8359
    %v8376 = vadd.f32 %v8340, %v8361
    %v8377 = vadd.f32 %v8341, %v8363
    %v8378 = vadd.f32 %v8342, %v8365
    %v8379 = vadd.f32 %v8343, %v8367
    %8380 = vst.msk [vmem:[%s24] sm:$0xff] %vm8324, %v8374
    %8381 = vst.msk [vmem:[%s24 + $0x8] sm:$0xff] %vm8324, %v8375
    %8382 = vst.msk [vmem:[%s24 + $0x10] sm:$0xff] %vm8324, %v8376
    %8383 = vst.msk [vmem:[%s24 + $0x18] sm:$0xff] %vm8324, %v8377
    %8384 = vst.msk [vmem:[%s24 + $0x20] sm:$0xff] %vm8324, %v8378
    %8385 = vst.msk [vmem:[%s24 + $0x28] sm:$0xff] %vm8324, %v8379
    // Predicated region
    $region114: #{grainnn_forward.1} parent=1 // pred_check
      _
    $region115: #{grainnn_forward.1} parent=1 // pred_check_branch
      %8387 = sbr.rel (0) target = $region117
    $region116: #{grainnn_forward.1} parent=1 // pred_region
      _
    $region117: #{grainnn_forward.1} parent=1 // pred_fallthru
      _
    // Predicated region
    $region118: #{grainnn_forward.1} parent=1 // pred_check
      _
    $region119: #{grainnn_forward.1} parent=1 // pred_check_branch
      %8389 = sbr.rel (0) target = $region121
    $region120: #{grainnn_forward.1} parent=1 // pred_region
      _
    $region121: #{grainnn_forward.1} parent=1 // pred_fallthru
      _
    // Predicated region
    $region122: #{grainnn_forward.1} parent=1 // pred_check
      _
    $region123: #{grainnn_forward.1} parent=1 // pred_check_branch
      %8391 = sbr.rel (0) target = $region125
    $region124: #{grainnn_forward.1} parent=1 // pred_region
      _
    $region125: #{grainnn_forward.1} parent=1 // pred_fallthru
      _
    // Predicated region
    $region126: #{grainnn_forward.1} parent=1 // pred_check
      _
    $region127: #{grainnn_forward.1} parent=1 // pred_check_branch
      %8393 = sbr.rel (0) target = $region129
    $region128: #{grainnn_forward.1} parent=1 // pred_region
      _
    $region129: #{grainnn_forward.1} parent=1 // pred_fallthru
      _
    // Predicated region
    $region130: #{grainnn_forward.1} parent=1 // pred_check
      _
    $region131: #{grainnn_forward.1} parent=1 // pred_check_branch
      %8395 = sbr.rel (0) target = $region133
    $region132: #{grainnn_forward.1} parent=1 // pred_region
      _
    $region133: #{grainnn_forward.1} parent=1 // pred_fallthru
      _
    // Predicated region
    $region134: #{grainnn_forward.1} parent=1 // pred_check
      _
    $region135: #{grainnn_forward.1} parent=1 // pred_check_branch
      %8397 = sbr.rel (0) target = $region137
    $region136: #{grainnn_forward.1} parent=1 // pred_region
      _
    $region137: #{grainnn_forward.1} parent=1 // pred_fallthru
      _
    %8398 = vsyncpa [#allocation3], 1
    %8399 = vsyncpa [#allocation5], 1
    %8400 = vsyncpa [#allocation8], 1
    %8401 = vsyncpa [#allocation11], 1

</llo_original>
